<compile_context>
chip_gen: v7x
topology: tpu7x:2x2x1
jax: 0.10.0
libtpu: 0.0.40
codegen_flags: <defaults>
</compile_context>

<pallas_src>
import jax
import jax.numpy as jnp
from jax.experimental import pallas as pl
from jax.experimental.pallas import tpu as pltpu

LATENT_DIM = 2048  # fixed by the module (nn.Linear(2048, 2048))


# ---------------------------------------------------------------------------
# Kernel 1: tiled linear  y = x @ W + b   (encoder / decoder)
# ---------------------------------------------------------------------------
def _linear_kernel(x_ref, w_ref, b_ref, o_ref, acc_ref):
    k = pl.program_id(2)

    @pl.when(k == 0)
    def _():
        acc_ref[...] = jnp.zeros_like(acc_ref)

    acc_ref[...] += jnp.dot(
        x_ref[...].astype(w_ref.dtype), w_ref[...],
        preferred_element_type=jnp.float32)

    @pl.when(k == pl.num_programs(2) - 1)
    def _():
        o_ref[...] = (acc_ref[...] + b_ref[...]).astype(o_ref.dtype)


def linear_pallas(x, w, b, *, tn_max=1024, tk_max=1024):
    M, K = x.shape
    Kw, N = w.shape
    assert K == Kw

    # Lane-dense output: pad N up to a multiple of 128 (avoids masked vst.msk stores).
    n_pad = max(128, ((N + 127) // 128) * 128)
    if n_pad != N:
        w = jnp.pad(w, ((0, 0), (0, n_pad - N)))
        b = jnp.pad(b, ((0, n_pad - N),))

    tm = M if M <= 256 else 256
    tn = n_pad if n_pad <= tn_max else tn_max
    tk = K if K <= tk_max else tk_max
    assert M % tm == 0 and n_pad % tn == 0 and K % tk == 0
    b2 = b.reshape(1, n_pad)

    out = pl.pallas_call(
        _linear_kernel,
        out_shape=jax.ShapeDtypeStruct((M, n_pad), x.dtype),
        grid_spec=pltpu.PrefetchScalarGridSpec(
            num_scalar_prefetch=0,
            grid=(M // tm, n_pad // tn, K // tk),
            in_specs=[
                pl.BlockSpec((tm, tk), lambda i, j, k: (i, k)),
                pl.BlockSpec((tk, tn), lambda i, j, k: (k, j)),
                pl.BlockSpec((1, tn), lambda i, j, k: (0, j)),
            ],
            out_specs=pl.BlockSpec((tm, tn), lambda i, j, k: (i, j)),
            scratch_shapes=[pltpu.VMEM((tm, tn), jnp.float32)],
        ),
        compiler_params=pltpu.CompilerParams(
            dimension_semantics=("parallel", "parallel", "arbitrary")),
    )(x, w, b2)
    return out[:, :N] if n_pad != N else out


# ---------------------------------------------------------------------------
# Kernel 2: fused latent block
#   mean  = sigmoid(h @ Wm + bm)
#   sigma = exp(sigmoid(h @ Ws + bs))
#   z     = mean + sigma * eps
# One grid pass streams both 2048x2048 weights while h is loaded once.
# ---------------------------------------------------------------------------
def _latent_kernel(h_ref, wm_ref, bm_ref, ws_ref, bs_ref, eps_ref,
                   z_ref, mean_ref, accm_ref, accs_ref):
    k = pl.program_id(2)

    @pl.when(k == 0)
    def _():
        accm_ref[...] = jnp.zeros_like(accm_ref)
        accs_ref[...] = jnp.zeros_like(accs_ref)

    h = h_ref[...].astype(wm_ref.dtype)
    accm_ref[...] += jnp.dot(h, wm_ref[...], preferred_element_type=jnp.float32)
    accs_ref[...] += jnp.dot(h, ws_ref[...], preferred_element_type=jnp.float32)

    @pl.when(k == pl.num_programs(2) - 1)
    def _():
        mean = jax.nn.sigmoid(accm_ref[...] + bm_ref[...])
        sigma = jnp.exp(jax.nn.sigmoid(accs_ref[...] + bs_ref[...]))
        z = mean + sigma * eps_ref[...]
        mean_ref[...] = mean.astype(mean_ref.dtype)
        z_ref[...] = z.astype(z_ref.dtype)


def latent_pallas(h, w_mean, b_mean, w_sigma, b_sigma, eps, *, tn=1024, tk=1024):
    M, K = h.shape
    Kw, N = w_mean.shape
    assert K == Kw and w_sigma.shape == (K, N)
    tm = M if M <= 256 else 256
    tn = min(tn, N)
    tk = min(tk, K)
    assert M % tm == 0 and N % tn == 0 and K % tk == 0
    bm = b_mean.reshape(1, N)
    bs = b_sigma.reshape(1, N)
    eps2 = eps.reshape(1, N)  # eps drawn once per latent dim, broadcast over batch

    z, mean = pl.pallas_call(
        _latent_kernel,
        out_shape=(jax.ShapeDtypeStruct((M, N), h.dtype),
                   jax.ShapeDtypeStruct((M, N), h.dtype)),
        grid_spec=pltpu.PrefetchScalarGridSpec(
            num_scalar_prefetch=0,
            grid=(M // tm, N // tn, K // tk),
            in_specs=[
                pl.BlockSpec((tm, tk), lambda i, j, k: (i, k)),   # h
                pl.BlockSpec((tk, tn), lambda i, j, k: (k, j)),   # w_mean
                pl.BlockSpec((1, tn), lambda i, j, k: (0, j)),    # b_mean
                pl.BlockSpec((tk, tn), lambda i, j, k: (k, j)),   # w_sigma
                pl.BlockSpec((1, tn), lambda i, j, k: (0, j)),    # b_sigma
                pl.BlockSpec((1, tn), lambda i, j, k: (0, j)),    # eps
            ],
            out_specs=(pl.BlockSpec((tm, tn), lambda i, j, k: (i, j)),
                       pl.BlockSpec((tm, tn), lambda i, j, k: (i, j))),
            scratch_shapes=[pltpu.VMEM((tm, tn), jnp.float32),
                            pltpu.VMEM((tm, tn), jnp.float32)],
        ),
        compiler_params=pltpu.CompilerParams(
            dimension_semantics=("parallel", "parallel", "arbitrary")),
    )(h, w_mean, bm, w_sigma, bs, eps2)
    return z, mean


# ---------------------------------------------------------------------------
# Full VAE forward
# ---------------------------------------------------------------------------
def vae_forward(params, state, eps):
    # encoder: Linear(D_in -> 2048)   (stand-in for the injected `encoder` module)
    h = linear_pallas(state, params["w_enc"], params["b_enc"])
    # meanL + sigmaL + exp + reparameterize, fused in one kernel
    z, mean = latent_pallas(h, params["w_mean"], params["b_mean"],
                            params["w_sigma"], params["b_sigma"], eps)
    # decoder: Linear(2048 -> D_out)  (stand-in for the injected `decoder` module)
    r = linear_pallas(z, params["w_dec"], params["b_dec"])
    return r, mean


def vae_reference(params, state, eps):
    hi = jax.lax.Precision.HIGHEST

    def lin(x, w, b):
        xq = x.astype(w.dtype).astype(jnp.float32)  # same bf16 rounding of activations as the kernels
        return jnp.dot(xq, w.astype(jnp.float32), precision=hi) + b

    h = lin(state, params["w_enc"], params["b_enc"])
    mean = jax.nn.sigmoid(lin(h, params["w_mean"], params["b_mean"]))
    sigma = jnp.exp(jax.nn.sigmoid(lin(h, params["w_sigma"], params["b_sigma"])))
    z = mean + sigma * eps[None, :]
    r = lin(z, params["w_dec"], params["b_dec"])
    return r, mean


if __name__ == "__main__":
    key = jax.random.PRNGKey(0)
    B, D_IN, D_OUT = 4, 32, 32  # small batch / feature dims; latent dim fixed at 2048

    ks = jax.random.split(key, 10)
    scale = 0.02
    wdt = jnp.bfloat16  # bf16 weights: halves HBM bytes on the bandwidth-bound 2048x2048 layers
    params = {
        "w_enc": (scale * jax.random.normal(ks[0], (D_IN, LATENT_DIM), jnp.float32)).astype(wdt),
        "b_enc": scale * jax.random.normal(ks[1], (LATENT_DIM,), jnp.float32),
        "w_mean": (scale * jax.random.normal(ks[2], (LATENT_DIM, LATENT_DIM), jnp.float32)).astype(wdt),
        "b_mean": scale * jax.random.normal(ks[3], (LATENT_DIM,), jnp.float32),
        "w_sigma": (scale * jax.random.normal(ks[4], (LATENT_DIM, LATENT_DIM), jnp.float32)).astype(wdt),
        "b_sigma": scale * jax.random.normal(ks[5], (LATENT_DIM,), jnp.float32),
        "w_dec": (scale * jax.random.normal(ks[6], (LATENT_DIM, D_OUT), jnp.float32)).astype(wdt),
        "b_dec": scale * jax.random.normal(ks[7], (D_OUT,), jnp.float32),
    }

    state = jax.random.normal(ks[8], (B, D_IN), jnp.float32)
    # eps ~ N(0, 1), drawn once with shape (latent_dim,) exactly like the module
    # TODO(synk): the module draws eps with host-side np.random inside forward(); here it is an input.
    eps = jax.random.normal(ks[9], (LATENT_DIM,), jnp.float32)

    fwd = jax.jit(vae_forward)
    r, mean = fwd(params, state, eps)
    r = jax.block_until_ready(r)

    r_ref, mean_ref = vae_reference(params, state, eps)
    assert r.shape == (B, D_OUT)
    assert mean.shape == (B, LATENT_DIM)
    assert jnp.allclose(r, r_ref, atol=2e-3, rtol=2e-3), float(jnp.max(jnp.abs(r - r_ref)))
    assert jnp.allclose(mean, mean_ref, atol=1e-3, rtol=1e-3), float(jnp.max(jnp.abs(mean - mean_ref)))

    print("KERNEL_OK")
</pallas_src>

<mosaic_0001>
module attributes {stable_mosaic.version = 11 : i64} {
  func.func @_latent_kernel(%arg0: i32, %arg1: i32, %arg2: i32, %arg3: memref<4x1024xf32, #tpu.memory_space<vmem>>, %arg4: memref<1024x1024xbf16, #tpu.memory_space<vmem>>, %arg5: memref<1x1024xf32, #tpu.memory_space<vmem>>, %arg6: memref<1024x1024xbf16, #tpu.memory_space<vmem>>, %arg7: memref<1x1024xf32, #tpu.memory_space<vmem>>, %arg8: memref<1x1024xf32, #tpu.memory_space<vmem>>, %arg9: memref<4x1024xf32, #tpu.memory_space<vmem>>, %arg10: memref<4x1024xf32, #tpu.memory_space<vmem>>, %arg11: memref<4x1024xf32, #tpu.memory_space<vmem>>, %arg12: memref<4x1024xf32, #tpu.memory_space<vmem>>) attributes {dimension_semantics = [#tpu.dimension_semantics<parallel>, #tpu.dimension_semantics<parallel>, #tpu.dimension_semantics<arbitrary>], iteration_bounds = array<i64: 1, 2, 2>, scalar_prefetch = 0 : i64, scratch_operands = 2 : i64, tpu.core_type = #tpu.core_type<tc>, window_params = [{transform_indices = @transform_0, window_bounds = array<i64: 4, 1024>}, {transform_indices = @transform_1, window_bounds = array<i64: 1024, 1024>}, {transform_indices = @transform_2, window_bounds = array<i64: 1, 1024>}, {transform_indices = @transform_3, window_bounds = array<i64: 1024, 1024>}, {transform_indices = @transform_4, window_bounds = array<i64: 1, 1024>}, {transform_indices = @transform_5, window_bounds = array<i64: 1, 1024>}, {transform_indices = @transform_6, window_bounds = array<i64: 4, 1024>}, {transform_indices = @transform_7, window_bounds = array<i64: 4, 1024>}]} {
    %c0_i32 = arith.constant 0 : i32
    %0 = arith.cmpi eq, %arg2, %c0_i32 : i32
    %1 = arith.extui %0 : i1 to i32
    %c0_i32_0 = arith.constant 0 : i32
    %2 = arith.cmpi ne, %1, %c0_i32_0 : i32
    scf.if %2 {
      %cst_16 = arith.constant 0.000000e+00 : f32
      %18 = vector.broadcast %cst_16 : f32 to vector<4x1024xf32>
      %c0_17 = arith.constant 0 : index
      %c0_18 = arith.constant 0 : index
      %19 = vector.load %arg11[%c0_17, %c0_18] : memref<4x1024xf32, #tpu.memory_space<vmem>>, vector<4x1024xf32>
      tpu.vector_store %arg11[%c0_17, %c0_18], %18 {strides = array<i32>} : memref<4x1024xf32, #tpu.memory_space<vmem>>, vector<4x1024xf32>,
      %cst_19 = arith.constant 0.000000e+00 : f32
      %20 = vector.broadcast %cst_19 : f32 to vector<4x1024xf32>
      %c0_20 = arith.constant 0 : index
      %c0_21 = arith.constant 0 : index
      %21 = vector.load %arg12[%c0_20, %c0_21] : memref<4x1024xf32, #tpu.memory_space<vmem>>, vector<4x1024xf32>
      tpu.vector_store %arg12[%c0_20, %c0_21], %20 {strides = array<i32>} : memref<4x1024xf32, #tpu.memory_space<vmem>>, vector<4x1024xf32>,
    } else {
    }
    %c0 = arith.constant 0 : index
    %c0_1 = arith.constant 0 : index
    %3 = vector.load %arg3[%c0, %c0_1] : memref<4x1024xf32, #tpu.memory_space<vmem>>, vector<4x1024xf32>
    %4 = arith.truncf %3 : vector<4x1024xf32> to vector<4x1024xbf16>
    %c0_2 = arith.constant 0 : index
    %c0_3 = arith.constant 0 : index
    %5 = vector.load %arg11[%c0_2, %c0_3] : memref<4x1024xf32, #tpu.memory_space<vmem>>, vector<4x1024xf32>
    %c0_4 = arith.constant 0 : index
    %c0_5 = arith.constant 0 : index
    %6 = vector.load %arg4[%c0_4, %c0_5] : memref<1024x1024xbf16, #tpu.memory_space<vmem>>, vector<1024x1024xbf16>
    %cst = arith.constant dense<0.000000e+00> : vector<4x1024xf32>
    %7 = tpu.matmul %4, %6, %cst {dimension_numbers = #tpu.dot_dimension_numbers<[1], [0], [0], [1], [0, 0, 1, 1], [], []>} : vector<4x1024xbf16>, vector<1024x1024xbf16>, vector<4x1024xf32> -> vector<4x1024xf32>
    %8 = arith.addf %5, %7 : vector<4x1024xf32>
    %c0_6 = arith.constant 0 : index
    %c0_7 = arith.constant 0 : index
    %9 = vector.load %arg11[%c0_6, %c0_7] : memref<4x1024xf32, #tpu.memory_space<vmem>>, vector<4x1024xf32>
    tpu.vector_store %arg11[%c0_6, %c0_7], %8 {strides = array<i32>} : memref<4x1024xf32, #tpu.memory_space<vmem>>, vector<4x1024xf32>,
    %c0_8 = arith.constant 0 : index
    %c0_9 = arith.constant 0 : index
    %10 = vector.load %arg12[%c0_8, %c0_9] : memref<4x1024xf32, #tpu.memory_space<vmem>>, vector<4x1024xf32>
    %c0_10 = arith.constant 0 : index
    %c0_11 = arith.constant 0 : index
    %11 = vector.load %arg6[%c0_10, %c0_11] : memref<1024x1024xbf16, #tpu.memory_space<vmem>>, vector<1024x1024xbf16>
    %cst_12 = arith.constant dense<0.000000e+00> : vector<4x1024xf32>
    %12 = tpu.matmul %4, %11, %cst_12 {dimension_numbers = #tpu.dot_dimension_numbers<[1], [0], [0], [1], [0, 0, 1, 1], [], []>} : vector<4x1024xbf16>, vector<1024x1024xbf16>, vector<4x1024xf32> -> vector<4x1024xf32>
    %13 = arith.addf %10, %12 : vector<4x1024xf32>
    %c0_13 = arith.constant 0 : index
    %c0_14 = arith.constant 0 : index
    %14 = vector.load %arg12[%c0_13, %c0_14] : memref<4x1024xf32, #tpu.memory_space<vmem>>, vector<4x1024xf32>
    tpu.vector_store %arg12[%c0_13, %c0_14], %13 {strides = array<i32>} : memref<4x1024xf32, #tpu.memory_space<vmem>>, vector<4x1024xf32>,
    %c1_i32 = arith.constant 1 : i32
    %15 = arith.cmpi eq, %arg2, %c1_i32 : i32
    %16 = arith.extui %15 : i1 to i32
    %c0_i32_15 = arith.constant 0 : i32
    %17 = arith.cmpi ne, %16, %c0_i32_15 : i32
    scf.if %17 {
      %c0_16 = arith.constant 0 : index
      %c0_17 = arith.constant 0 : index
      %18 = vector.load %arg11[%c0_16, %c0_17] : memref<4x1024xf32, #tpu.memory_space<vmem>>, vector<4x1024xf32>
      %c0_18 = arith.constant 0 : index
      %c0_19 = arith.constant 0 : index
      %19 = vector.load %arg5[%c0_18, %c0_19] : memref<1x1024xf32, #tpu.memory_space<vmem>>, vector<1x1024xf32>
      %20 = vector.broadcast %19 : vector<1x1024xf32> to vector<4x1024xf32>
      %21 = arith.addf %18, %20 : vector<4x1024xf32>
      %22 = arith.negf %21 : vector<4x1024xf32>
      %23 = math.exp %22 : vector<4x1024xf32>
      %cst_20 = arith.constant 1.000000e+00 : f32
      %24 = vector.broadcast %cst_20 : f32 to vector<4x1024xf32>
      %25 = arith.addf %24, %23 : vector<4x1024xf32>
      %26 = arith.divf %24, %25 : vector<4x1024xf32>
      %c0_21 = arith.constant 0 : index
      %c0_22 = arith.constant 0 : index
      %27 = vector.load %arg12[%c0_21, %c0_22] : memref<4x1024xf32, #tpu.memory_space<vmem>>, vector<4x1024xf32>
      %c0_23 = arith.constant 0 : index
      %c0_24 = arith.constant 0 : index
      %28 = vector.load %arg7[%c0_23, %c0_24] : memref<1x1024xf32, #tpu.memory_space<vmem>>, vector<1x1024xf32>
      %29 = vector.broadcast %28 : vector<1x1024xf32> to vector<4x1024xf32>
      %30 = arith.addf %27, %29 : vector<4x1024xf32>
      %31 = arith.negf %30 : vector<4x1024xf32>
      %32 = math.exp %31 : vector<4x1024xf32>
      %cst_25 = arith.constant 1.000000e+00 : f32
      %33 = vector.broadcast %cst_25 : f32 to vector<4x1024xf32>
      %34 = arith.addf %33, %32 : vector<4x1024xf32>
      %35 = arith.divf %33, %34 : vector<4x1024xf32>
      %36 = math.exp %35 : vector<4x1024xf32>
      %c0_26 = arith.constant 0 : index
      %c0_27 = arith.constant 0 : index
      %37 = vector.load %arg8[%c0_26, %c0_27] : memref<1x1024xf32, #tpu.memory_space<vmem>>, vector<1x1024xf32>
      %38 = vector.broadcast %37 : vector<1x1024xf32> to vector<4x1024xf32>
      %39 = arith.mulf %36, %38 : vector<4x1024xf32>
      %40 = arith.addf %26, %39 : vector<4x1024xf32>
      %c0_28 = arith.constant 0 : index
      %c0_29 = arith.constant 0 : index
      %41 = vector.load %arg10[%c0_28, %c0_29] : memref<4x1024xf32, #tpu.memory_space<vmem>>, vector<4x1024xf32>
      tpu.vector_store %arg10[%c0_28, %c0_29], %26 {strides = array<i32>} : memref<4x1024xf32, #tpu.memory_space<vmem>>, vector<4x1024xf32>,
      %c0_30 = arith.constant 0 : index
      %c0_31 = arith.constant 0 : index
      %42 = vector.load %arg9[%c0_30, %c0_31] : memref<4x1024xf32, #tpu.memory_space<vmem>>, vector<4x1024xf32>
      tpu.vector_store %arg9[%c0_30, %c0_31], %40 {strides = array<i32>} : memref<4x1024xf32, #tpu.memory_space<vmem>>, vector<4x1024xf32>,
    } else {
    }
    return
  }
  func.func @transform_0(%arg0: i32, %arg1: i32, %arg2: i32) -> (i32, i32) {
    %c0_i32 = arith.constant 0 : i32
    return %arg0, %arg2 : i32, i32
  }
  func.func @transform_1(%arg0: i32, %arg1: i32, %arg2: i32) -> (i32, i32) {
    %c0_i32 = arith.constant 0 : i32
    return %arg2, %arg1 : i32, i32
  }
  func.func @transform_2(%arg0: i32, %arg1: i32, %arg2: i32) -> (i32, i32) {
    %c0_i32 = arith.constant 0 : i32
    %c0_i32_0 = arith.constant 0 : i32
    return %c0_i32, %arg1 : i32, i32
  }
  func.func @transform_3(%arg0: i32, %arg1: i32, %arg2: i32) -> (i32, i32) {
    %c0_i32 = arith.constant 0 : i32
    return %arg2, %arg1 : i32, i32
  }
  func.func @transform_4(%arg0: i32, %arg1: i32, %arg2: i32) -> (i32, i32) {
    %c0_i32 = arith.constant 0 : i32
    %c0_i32_0 = arith.constant 0 : i32
    return %c0_i32, %arg1 : i32, i32
  }
  func.func @transform_5(%arg0: i32, %arg1: i32, %arg2: i32) -> (i32, i32) {
    %c0_i32 = arith.constant 0 : i32
    %c0_i32_0 = arith.constant 0 : i32
    return %c0_i32, %arg1 : i32, i32
  }
  func.func @transform_6(%arg0: i32, %arg1: i32, %arg2: i32) -> (i32, i32) {
    %c0_i32 = arith.constant 0 : i32
    return %arg0, %arg1 : i32, i32
  }
  func.func @transform_7(%arg0: i32, %arg1: i32, %arg2: i32) -> (i32, i32) {
    %c0_i32 = arith.constant 0 : i32
    return %arg0, %arg1 : i32, i32
  }
}

module attributes {stable_mosaic.version = 11 : i64} {
  func.func @_linear_kernel(%arg0: i32, %arg1: i32, %arg2: i32, %arg3: memref<4x32xf32, #tpu.memory_space<vmem>>, %arg4: memref<32x1024xbf16, #tpu.memory_space<vmem>>, %arg5: memref<1x1024xf32, #tpu.memory_space<vmem>>, %arg6: memref<4x1024xf32, #tpu.memory_space<vmem>>, %arg7: memref<4x1024xf32, #tpu.memory_space<vmem>>) attributes {dimension_semantics = [#tpu.dimension_semantics<parallel>, #tpu.dimension_semantics<parallel>, #tpu.dimension_semantics<arbitrary>], iteration_bounds = array<i64: 1, 2, 1>, scalar_prefetch = 0 : i64, scratch_operands = 1 : i64, tpu.core_type = #tpu.core_type<tc>, window_params = [{transform_indices = @transform_0, window_bounds = array<i64: 4, 32>}, {transform_indices = @transform_1, window_bounds = array<i64: 32, 1024>}, {transform_indices = @transform_2, window_bounds = array<i64: 1, 1024>}, {transform_indices = @transform_3, window_bounds = array<i64: 4, 1024>}]} {
    %c0_i32 = arith.constant 0 : i32
    %0 = arith.cmpi eq, %arg2, %c0_i32 : i32
    %1 = arith.extui %0 : i1 to i32
    %c0_i32_0 = arith.constant 0 : i32
    %2 = arith.cmpi ne, %1, %c0_i32_0 : i32
    scf.if %2 {
      %cst_10 = arith.constant 0.000000e+00 : f32
      %13 = vector.broadcast %cst_10 : f32 to vector<4x1024xf32>
      %c0_11 = arith.constant 0 : index
      %c0_12 = arith.constant 0 : index
      %14 = vector.load %arg7[%c0_11, %c0_12] : memref<4x1024xf32, #tpu.memory_space<vmem>>, vector<4x1024xf32>
      tpu.vector_store %arg7[%c0_11, %c0_12], %13 {strides = array<i32>} : memref<4x1024xf32, #tpu.memory_space<vmem>>, vector<4x1024xf32>,
    } else {
    }
    %c0 = arith.constant 0 : index
    %c0_1 = arith.constant 0 : index
    %3 = vector.load %arg7[%c0, %c0_1] : memref<4x1024xf32, #tpu.memory_space<vmem>>, vector<4x1024xf32>
    %c0_2 = arith.constant 0 : index
    %c0_3 = arith.constant 0 : index
    %4 = vector.load %arg3[%c0_2, %c0_3] : memref<4x32xf32, #tpu.memory_space<vmem>>, vector<4x32xf32>
    %5 = arith.truncf %4 : vector<4x32xf32> to vector<4x32xbf16>
    %c0_4 = arith.constant 0 : index
    %c0_5 = arith.constant 0 : index
    %6 = vector.load %arg4[%c0_4, %c0_5] : memref<32x1024xbf16, #tpu.memory_space<vmem>>, vector<32x1024xbf16>
    %cst = arith.constant dense<0.000000e+00> : vector<4x1024xf32>
    %7 = tpu.matmul %5, %6, %cst {dimension_numbers = #tpu.dot_dimension_numbers<[1], [0], [0], [1], [0, 0, 1, 1], [], []>} : vector<4x32xbf16>, vector<32x1024xbf16>, vector<4x1024xf32> -> vector<4x1024xf32>
    %8 = arith.addf %3, %7 : vector<4x1024xf32>
    %c0_6 = arith.constant 0 : index
    %c0_7 = arith.constant 0 : index
    %9 = vector.load %arg7[%c0_6, %c0_7] : memref<4x1024xf32, #tpu.memory_space<vmem>>, vector<4x1024xf32>
    tpu.vector_store %arg7[%c0_6, %c0_7], %8 {strides = array<i32>} : memref<4x1024xf32, #tpu.memory_space<vmem>>, vector<4x1024xf32>,
    %c0_i32_8 = arith.constant 0 : i32
    %10 = arith.cmpi eq, %arg2, %c0_i32_8 : i32
    %11 = arith.extui %10 : i1 to i32
    %c0_i32_9 = arith.constant 0 : i32
    %12 = arith.cmpi ne, %11, %c0_i32_9 : i32
    scf.if %12 {
      %c0_10 = arith.constant 0 : index
      %c0_11 = arith.constant 0 : index
      %13 = vector.load %arg7[%c0_10, %c0_11] : memref<4x1024xf32, #tpu.memory_space<vmem>>, vector<4x1024xf32>
      %c0_12 = arith.constant 0 : index
      %c0_13 = arith.constant 0 : index
      %14 = vector.load %arg5[%c0_12, %c0_13] : memref<1x1024xf32, #tpu.memory_space<vmem>>, vector<1x1024xf32>
      %15 = vector.broadcast %14 : vector<1x1024xf32> to vector<4x1024xf32>
      %16 = arith.addf %13, %15 : vector<4x1024xf32>
      %c0_14 = arith.constant 0 : index
      %c0_15 = arith.constant 0 : index
      %17 = vector.load %arg6[%c0_14, %c0_15] : memref<4x1024xf32, #tpu.memory_space<vmem>>, vector<4x1024xf32>
      tpu.vector_store %arg6[%c0_14, %c0_15], %16 {strides = array<i32>} : memref<4x1024xf32, #tpu.memory_space<vmem>>, vector<4x1024xf32>,
    } else {
    }
    return
  }
  func.func @transform_0(%arg0: i32, %arg1: i32, %arg2: i32) -> (i32, i32) {
    %c0_i32 = arith.constant 0 : i32
    return %arg0, %arg2 : i32, i32
  }
  func.func @transform_1(%arg0: i32, %arg1: i32, %arg2: i32) -> (i32, i32) {
    %c0_i32 = arith.constant 0 : i32
    return %arg2, %arg1 : i32, i32
  }
  func.func @transform_2(%arg0: i32, %arg1: i32, %arg2: i32) -> (i32, i32) {
    %c0_i32 = arith.constant 0 : i32
    %c0_i32_0 = arith.constant 0 : i32
    return %c0_i32, %arg1 : i32, i32
  }
  func.func @transform_3(%arg0: i32, %arg1: i32, %arg2: i32) -> (i32, i32) {
    %c0_i32 = arith.constant 0 : i32
    return %arg0, %arg1 : i32, i32
  }
}

module attributes {stable_mosaic.version = 11 : i64} {
  func.func @_linear_kernel(%arg0: i32, %arg1: i32, %arg2: i32, %arg3: memref<4x1024xf32, #tpu.memory_space<vmem>>, %arg4: memref<1024x128xbf16, #tpu.memory_space<vmem>>, %arg5: memref<1x128xf32, #tpu.memory_space<vmem>>, %arg6: memref<4x128xf32, #tpu.memory_space<vmem>>, %arg7: memref<4x128xf32, #tpu.memory_space<vmem>>) attributes {dimension_semantics = [#tpu.dimension_semantics<parallel>, #tpu.dimension_semantics<parallel>, #tpu.dimension_semantics<arbitrary>], iteration_bounds = array<i64: 1, 1, 2>, scalar_prefetch = 0 : i64, scratch_operands = 1 : i64, tpu.core_type = #tpu.core_type<tc>, window_params = [{transform_indices = @transform_0, window_bounds = array<i64: 4, 1024>}, {transform_indices = @transform_1, window_bounds = array<i64: 1024, 128>}, {transform_indices = @transform_2, window_bounds = array<i64: 1, 128>}, {transform_indices = @transform_3, window_bounds = array<i64: 4, 128>}]} {
    %c0_i32 = arith.constant 0 : i32
    %0 = arith.cmpi eq, %arg2, %c0_i32 : i32
    %1 = arith.extui %0 : i1 to i32
    %c0_i32_0 = arith.constant 0 : i32
    %2 = arith.cmpi ne, %1, %c0_i32_0 : i32
    scf.if %2 {
      %cst_9 = arith.constant 0.000000e+00 : f32
      %13 = vector.broadcast %cst_9 : f32 to vector<4x128xf32>
      %c0_10 = arith.constant 0 : index
      %c0_11 = arith.constant 0 : index
      %14 = vector.load %arg7[%c0_10, %c0_11] : memref<4x128xf32, #tpu.memory_space<vmem>>, vector<4x128xf32>
      tpu.vector_store %arg7[%c0_10, %c0_11], %13 {strides = array<i32>} : memref<4x128xf32, #tpu.memory_space<vmem>>, vector<4x128xf32>,
    } else {
    }
    %c0 = arith.constant 0 : index
    %c0_1 = arith.constant 0 : index
    %3 = vector.load %arg7[%c0, %c0_1] : memref<4x128xf32, #tpu.memory_space<vmem>>, vector<4x128xf32>
    %c0_2 = arith.constant 0 : index
    %c0_3 = arith.constant 0 : index
    %4 = vector.load %arg3[%c0_2, %c0_3] : memref<4x1024xf32, #tpu.memory_space<vmem>>, vector<4x1024xf32>
    %5 = arith.truncf %4 : vector<4x1024xf32> to vector<4x1024xbf16>
    %c0_4 = arith.constant 0 : index
    %c0_5 = arith.constant 0 : index
    %6 = vector.load %arg4[%c0_4, %c0_5] : memref<1024x128xbf16, #tpu.memory_space<vmem>>, vector<1024x128xbf16>
    %cst = arith.constant dense<0.000000e+00> : vector<4x128xf32>
    %7 = tpu.matmul %5, %6, %cst {dimension_numbers = #tpu.dot_dimension_numbers<[1], [0], [0], [1], [0, 0, 1, 1], [], []>} : vector<4x1024xbf16>, vector<1024x128xbf16>, vector<4x128xf32> -> vector<4x128xf32>
    %8 = arith.addf %3, %7 : vector<4x128xf32>
    %c0_6 = arith.constant 0 : index
    %c0_7 = arith.constant 0 : index
    %9 = vector.load %arg7[%c0_6, %c0_7] : memref<4x128xf32, #tpu.memory_space<vmem>>, vector<4x128xf32>
    tpu.vector_store %arg7[%c0_6, %c0_7], %8 {strides = array<i32>} : memref<4x128xf32, #tpu.memory_space<vmem>>, vector<4x128xf32>,
    %c1_i32 = arith.constant 1 : i32
    %10 = arith.cmpi eq, %arg2, %c1_i32 : i32
    %11 = arith.extui %10 : i1 to i32
    %c0_i32_8 = arith.constant 0 : i32
    %12 = arith.cmpi ne, %11, %c0_i32_8 : i32
    scf.if %12 {
      %c0_9 = arith.constant 0 : index
      %c0_10 = arith.constant 0 : index
      %13 = vector.load %arg7[%c0_9, %c0_10] : memref<4x128xf32, #tpu.memory_space<vmem>>, vector<4x128xf32>
      %c0_11 = arith.constant 0 : index
      %c0_12 = arith.constant 0 : index
      %14 = vector.load %arg5[%c0_11, %c0_12] : memref<1x128xf32, #tpu.memory_space<vmem>>, vector<1x128xf32>
      %15 = vector.broadcast %14 : vector<1x128xf32> to vector<4x128xf32>
      %16 = arith.addf %13, %15 : vector<4x128xf32>
      %c0_13 = arith.constant 0 : index
      %c0_14 = arith.constant 0 : index
      %17 = vector.load %arg6[%c0_13, %c0_14] : memref<4x128xf32, #tpu.memory_space<vmem>>, vector<4x128xf32>
      tpu.vector_store %arg6[%c0_13, %c0_14], %16 {strides = array<i32>} : memref<4x128xf32, #tpu.memory_space<vmem>>, vector<4x128xf32>,
    } else {
    }
    return
  }
  func.func @transform_0(%arg0: i32, %arg1: i32, %arg2: i32) -> (i32, i32) {
    %c0_i32 = arith.constant 0 : i32
    return %arg0, %arg2 : i32, i32
  }
  func.func @transform_1(%arg0: i32, %arg1: i32, %arg2: i32) -> (i32, i32) {
    %c0_i32 = arith.constant 0 : i32
    return %arg2, %arg1 : i32, i32
  }
  func.func @transform_2(%arg0: i32, %arg1: i32, %arg2: i32) -> (i32, i32) {
    %c0_i32 = arith.constant 0 : i32
    %c0_i32_0 = arith.constant 0 : i32
    return %c0_i32, %arg1 : i32, i32
  }
  func.func @transform_3(%arg0: i32, %arg1: i32, %arg2: i32) -> (i32, i32) {
    %c0_i32 = arith.constant 0 : i32
    return %arg0, %arg1 : i32, i32
  }
}

</mosaic_0001>

<llo_original>
// kernel: vae_forward.3
$region0: #{vae_forward.3}
  #allocation0 [shape = 'u32[]', space=smem, size = 0x4, offset = 0x4, fixed_abs, tag = 'smem constant byte address 0x4 - core index']
  #allocation1 [shape = 'u32[144,128]{1,0:T(1,128)}', space=vmem, size = 0x12000, scoped, tag = 'internal scratch']
  #allocation2 [shape = 'f32[4,1024]{1,0:T(4,128)}', space=vmem, size = 0x4000, scoped, tag = 'scratch operand']
  %s0 = inlined_call_operand.hbm [shape: f32[4,32], index: 0, kind: input, shape index: {}]
  %s1 = inlined_call_operand.hbm [shape: bf16[32,2048], index: 1, kind: input, shape index: {}]
  %s2 = inlined_call_operand.hbm [shape: f32[1,2048], index: 2, kind: input, shape index: {}]
  %s3 = inlined_call_operand.vmem [shape: f32[4,2048], index: 3, kind: output, shape index: {}]
  %s4 = sld [smem:[#allocation0]]
  $region65: #{vae_forward.3} parent=0
    _
  %s6 = ssub.s32 1, %s4
  %s7 = scalar_select 0, %s6, %s4
  $region1: #{vae_forward.3} parent=0
    #allocation3 [shape = 'u8[2048]{0}', space=vmem, size = 0x800, scoped, tag = 'input window, operand 0, single buffered']
    #allocation4 [shape = 's32[2]{0}', space=sflag, size = 0x8, scoped, tag = 'scoped memory for vae_forward.3']
    #allocation5 [shape = 'u8[131072]{0}', space=vmem, size = 0x20000, scoped, tag = 'input window, operand 1']
    #allocation6 [shape = 's32[2]{0}', space=sflag, size = 0x8, scoped, tag = 'scoped memory for vae_forward.3']
    #allocation7 [shape = 'u8[8192]{0}', space=vmem, size = 0x2000, scoped, tag = 'input window, operand 2']
    %8 = vsyncpa [#allocation4], 0
    %9 = vsyncpa [#allocation6], 0
    %s10 = scalar_lea.sflag [#allocation6], 1
    %11 = vsyncpa %s10, 0
    loop: start=0, step=1, limit=4
    $region2: #{vae_forward.3} parent=1 // loop_pre_header
      _
    $region3: #{vae_forward.3} parent=1 // loop_header
      %s13 = sphi 0, %s17
      %p14 = scmp.ge.s32.totalorder %s13, 4
      %s20 = sphi 0, %s39
      %s21 = sphi 0, %s35
      %s22 = sphi 0, %s31
      %s23 = sphi 0, %s20
      %s24 = sphi 0, %s21
      %s25 = sphi 0, %s22
      %s26 = sphi 0, %s23
      %s27 = sphi 0, %s24
      %s28 = sphi 0, %s25
      %s44 = sphi 0, %s46
      %s47 = sphi 0, %s44
      %s48 = sphi 0, %s47
      %s64 = sphi 0, %s48
      %s72 = sphi 0, %s74
      %s75 = sphi 0, %s72
      %s76 = sphi 0, %s75
      %s92 = sphi 0, %s76
      %s98 = sphi 0, %s100
      %s101 = sphi 0, %s98
      %s102 = sphi 0, %s101
      %s118 = sphi 0, %s102
      %s126 = sphi 0, %s128
      %s129 = sphi 0, %s126
      %s130 = sphi 0, %s129
      %s146 = sphi 0, %s130
    $region4: #{vae_forward.3} parent=1 // loop_header_branch
      %16 = sbr.rel (%p14) target = $region8
    $region5: #{vae_forward.3} parent=1 // loop_body
      %s18 = ssub.s32 %s13, 1
      %s19 = ssub.s32 %s13, 2
      %s29 = sadd.s32 1, %s22
      %p30 = scmp.ge.s32.totalorder %s29, 1
      %s31 = scalar_select %p30, 0, %s29
      %s32 = sadd.s32 1, %s21
      %s33 = scalar_select %p30, %s32, %s21
      %p34 = scmp.ge.s32.totalorder %s33, 2
      %s35 = scalar_select %p34, 0, %s33
      %s36 = sadd.s32 1, %s20
      %s37 = scalar_select %p34, %s36, %s20
      %p38 = scmp.ge.s32.totalorder %s37, 1
      %s39 = scalar_select %p38, 0, %s37
      %s40 = ssub.s32 %s20, %s39
      %s41 = ssub.s32 %s22, %s31
      %s42 = sor.u32 %s40, %s41
      %p43 = scmp.eq.s32.totalorder %s42, 0
      %s45 = sadd.s32 %s44, 1
      %s46 = scalar_select %p43, %s44, %s45
      %p49 = pneg %p43
      %p50 = scmp.eq.s32.totalorder %s13, 1
      %p51 = por %p49, %p50
      %p52 = scmp.ne.s32.totalorder %s44, %s47
      %p53 = scmp.eq.s32.totalorder %s13, 0
      %p54 = por %p52, %p53
      %p55 = scmp.ne.s32.totalorder %s44, %s47
      %p56 = scmp.eq.s32.totalorder %s18, 1
      %p57 = por %p55, %p56
      %p58 = scmp.ne.s32.totalorder %s47, %s48
      %p59 = scmp.eq.s32.totalorder %s18, 0
      %p60 = por %p58, %p59
      %p61 = scmp.ne.s32.totalorder %s47, %s48
      %p62 = scmp.eq.s32.totalorder %s19, 1
      %p63 = por %p61, %p62
      %p65 = scmp.ne.s32.totalorder %s48, %s64
      %p66 = scmp.eq.s32.totalorder %s19, 0
      %p67 = por %p65, %p66
      %s68 = ssub.s32 %s22, %s31
      %s69 = ssub.s32 %s21, %s35
      %s70 = sor.u32 %s68, %s69
      %p71 = scmp.eq.s32.totalorder %s70, 0
      %s73 = sadd.s32 %s72, 1
      %s74 = scalar_select %p71, %s72, %s73
      %p77 = pneg %p71
      %p78 = scmp.eq.s32.totalorder %s13, 1
      %p79 = por %p77, %p78
      %p80 = scmp.ne.s32.totalorder %s72, %s75
      %p81 = scmp.eq.s32.totalorder %s13, 0
      %p82 = por %p80, %p81
      %p83 = scmp.ne.s32.totalorder %s72, %s75
      %p84 = scmp.eq.s32.totalorder %s18, 1
      %p85 = por %p83, %p84
      %p86 = scmp.ne.s32.totalorder %s75, %s76
      %p87 = scmp.eq.s32.totalorder %s18, 0
      %p88 = por %p86, %p87
      %p89 = scmp.ne.s32.totalorder %s75, %s76
      %p90 = scmp.eq.s32.totalorder %s19, 1
      %p91 = por %p89, %p90
      %p93 = scmp.ne.s32.totalorder %s76, %s92
      %p94 = scmp.eq.s32.totalorder %s19, 0
      %p95 = por %p93, %p94
      %s96 = ssub.s32 %s21, %s35
      %p97 = scmp.eq.s32.totalorder %s96, 0
      %s99 = sadd.s32 %s98, 1
      %s100 = scalar_select %p97, %s98, %s99
      %p103 = pneg %p97
      %p104 = scmp.eq.s32.totalorder %s13, 1
      %p105 = por %p103, %p104
      %p106 = scmp.ne.s32.totalorder %s98, %s101
      %p107 = scmp.eq.s32.totalorder %s13, 0
      %p108 = por %p106, %p107
      %p109 = scmp.ne.s32.totalorder %s98, %s101
      %p110 = scmp.eq.s32.totalorder %s18, 1
      %p111 = por %p109, %p110
      %p112 = scmp.ne.s32.totalorder %s101, %s102
      %p113 = scmp.eq.s32.totalorder %s18, 0
      %p114 = por %p112, %p113
      %p115 = scmp.ne.s32.totalorder %s101, %s102
      %p116 = scmp.eq.s32.totalorder %s19, 1
      %p117 = por %p115, %p116
      %p119 = scmp.ne.s32.totalorder %s102, %s118
      %p120 = scmp.eq.s32.totalorder %s19, 0
      %p121 = por %p119, %p120
      %s122 = ssub.s32 %s20, %s39
      %s123 = ssub.s32 %s21, %s35
      %s124 = sor.u32 %s122, %s123
      %p125 = scmp.eq.s32.totalorder %s124, 0
      %s127 = sadd.s32 %s126, 1
      %s128 = scalar_select %p125, %s126, %s127
      %p131 = pneg %p125
      %p132 = scmp.eq.s32.totalorder %s13, 1
      %p133 = por %p131, %p132
      %p134 = scmp.ne.s32.totalorder %s126, %s129
      %p135 = scmp.eq.s32.totalorder %s13, 0
      %p136 = por %p134, %p135
      %p137 = scmp.ne.s32.totalorder %s126, %s129
      %p138 = scmp.eq.s32.totalorder %s18, 1
      %p139 = por %p137, %p138
      %p140 = scmp.ne.s32.totalorder %s129, %s130
      %p141 = scmp.eq.s32.totalorder %s18, 0
      %p142 = por %p140, %p141
      %p143 = scmp.ne.s32.totalorder %s129, %s130
      %p144 = scmp.eq.s32.totalorder %s19, 1
      %p145 = por %p143, %p144
      %p147 = scmp.ne.s32.totalorder %s130, %s146
      %p148 = scmp.eq.s32.totalorder %s19, 0
      %p149 = por %p147, %p148
      %p150 = scmp.le.s32.totalorder 1, %s13
      %p151 = scmp.lt.s32.totalorder %s13, 3
      %p152 = pnand %p150, %p151
      %p153 = pneg %p152
      // Predicated region
      $region9: #{vae_forward.3} parent=5 // pred_check
        _
      $region10: #{vae_forward.3} parent=5 // pred_check_branch
        %155 = sbr.rel (%p152) target = $region12
      $region11: #{vae_forward.3} parent=5 // pred_region
        %s156 = ssub.s32 %s13, 1
        // Predicated region
        $region13: #{vae_forward.3} parent=11 // pred_check
          %p157 = pneg %p60
        $region14: #{vae_forward.3} parent=11 // pred_check_branch
          %159 = sbr.rel (%p157) target = $region16
        $region15: #{vae_forward.3} parent=11 // pred_region
          %s161 = ssub.s32 64, 64
          %162 = vsyncadd [#allocation4], %s161
          %s163 = sadd.s32 %s25, %s23
          %s164 = smul.addr %s163, 64
          %s165 = scalar_lea.hbm %s0, %s164
          %s167 = sshll.u32 [#allocation3], 4
          %s168 = int_to_ptr.vmem [resolvable:$true] %s167
          %170 = dma.hbm_to_vmem [thread:$0]  %s165, 64, %s168, [#allocation4]
        $region16: #{vae_forward.3} parent=11 // pred_fallthru
          _
      $region12: #{vae_forward.3} parent=5 // pred_fallthru
        _
      %p171 = scmp.lt.s32.totalorder %s13, 2
      // Predicated region
      $region17: #{vae_forward.3} parent=5 // pred_check
        %p172 = pneg %p171
      $region18: #{vae_forward.3} parent=5 // pred_check_branch
        %174 = sbr.rel (%p172) target = $region20
      $region19: #{vae_forward.3} parent=5 // pred_region
        // Predicated region
        $region21: #{vae_forward.3} parent=19 // pred_check
          %p175 = pneg %p82
        $region22: #{vae_forward.3} parent=19 // pred_check_branch
          %177 = sbr.rel (%p175) target = $region24
        $region23: #{vae_forward.3} parent=19 // pred_region
          %s178 = sand.u32 %s13, 1
          %s179 = scalar_lea.sflag [#allocation6], %s178
          %s180 = sand.u32 %s72, 1
          %s181 = smul.addr %s180, 128
          %s182 = scalar_lea.vmem [#allocation5], %s181
          %s183 = smul.u32 4, %s22
          %s184 = smul.u32 8, %s21
          %s186 = ssub.s32 2048, 2048
          %187 = vsyncadd %s179, %s186
          %s188 = smul.addr %s183, 16
          %s189 = sadd.s32 %s184, %s188
          %s190 = smul.addr %s189, 64
          %s191 = scalar_lea.hbm %s1, %s190
          %s192 = sshll.u32 %s182, 4
          %s193 = int_to_ptr.vmem [resolvable:$true] %s192
          %198 = dma.hbm_to_vmem [thread:$0]  %s191, 2048, %s193, %s179, 1024, 512, 32
        $region24: #{vae_forward.3} parent=19 // pred_fallthru
          _
        // Predicated region
        $region25: #{vae_forward.3} parent=19 // pred_check
          %p199 = pneg %p108
        $region26: #{vae_forward.3} parent=19 // pred_check_branch
          %201 = sbr.rel (%p199) target = $region28
        $region27: #{vae_forward.3} parent=19 // pred_region
          %s202 = sand.u32 %s13, 1
          %s203 = scalar_lea.sflag [#allocation6], %s202
          %s204 = sand.u32 %s98, 1
          %s205 = smul.addr %s204, 8
          %s206 = scalar_lea.vmem [#allocation7], %s205
          %s207 = smul.u32 8, %s21
          %s209 = ssub.s32 128, 128
          %210 = vsyncadd %s203, %s209
          %s211 = smul.addr %s207, 16
          %s212 = scalar_lea.hbm %s2, %s211
          %s214 = sshll.u32 %s206, 4
          %s215 = int_to_ptr.vmem [resolvable:$true] %s214
          %217 = dma.hbm_to_vmem [thread:$0]  %s212, 128, %s215, %s203
        $region28: #{vae_forward.3} parent=19 // pred_fallthru
          _
      $region20: #{vae_forward.3} parent=5 // pred_fallthru
        _
      %p218 = scmp.le.s32.totalorder 1, %s13
      %p219 = scmp.lt.s32.totalorder %s13, 3
      %p220 = pnand %p218, %p219
      %p221 = pneg %p220
      // Predicated region
      $region29: #{vae_forward.3} parent=5 // pred_check
        _
      $region30: #{vae_forward.3} parent=5 // pred_check_branch
        %223 = sbr.rel (%p220) target = $region32
      $region31: #{vae_forward.3} parent=5 // pred_region
        %s224 = ssub.s32 %s13, 1
        // Predicated region
        $region33: #{vae_forward.3} parent=31 // pred_check
          %p225 = pneg %p60
        $region34: #{vae_forward.3} parent=31 // pred_check_branch
          %227 = sbr.rel (%p225) target = $region36
        $region35: #{vae_forward.3} parent=31 // pred_region
          %228 = dma.done [#allocation4], 64
        $region36: #{vae_forward.3} parent=31 // pred_fallthru
          _
        %s229 = sand.u32 %s18, 1
        %s230 = scalar_lea.sflag [#allocation6], %s229
        %s231 = sand.u32 %s75, 1
        %s232 = smul.addr %s231, 128
        %s233 = scalar_lea.vmem [#allocation5], %s232
        // Predicated region
        $region37: #{vae_forward.3} parent=31 // pred_check
          %p234 = pneg %p88
        $region38: #{vae_forward.3} parent=31 // pred_check_branch
          %236 = sbr.rel (%p234) target = $region40
        $region39: #{vae_forward.3} parent=31 // pred_region
          %237 = dma.done %s230, 2048
        $region40: #{vae_forward.3} parent=31 // pred_fallthru
          _
        %s238 = sand.u32 %s18, 1
        %s239 = scalar_lea.sflag [#allocation6], %s238
        %s240 = sand.u32 %s101, 1
        %s241 = smul.addr %s240, 8
        %s242 = scalar_lea.vmem [#allocation7], %s241
        // Predicated region
        $region41: #{vae_forward.3} parent=31 // pred_check
          %p243 = pneg %p114
        $region42: #{vae_forward.3} parent=31 // pred_check_branch
          %245 = sbr.rel (%p243) target = $region44
        $region43: #{vae_forward.3} parent=31 // pred_region
          %246 = dma.done %s239, 128
        $region44: #{vae_forward.3} parent=31 // pred_fallthru
          _
        %p247 = pneg %p60
        %p248 = pneg %p57
        %s249 = sand.u32 %s18, 1
        %s250 = scalar_lea.sflag [#allocation6], %s249
        %s251 = sand.u32 %s75, 1
        %s252 = smul.addr %s251, 128
        %s253 = scalar_lea.vmem [#allocation5], %s252
        %p254 = pneg %p88
        %p255 = pneg %p85
        %s256 = sand.u32 %s18, 1
        %s257 = scalar_lea.sflag [#allocation6], %s256
        %s258 = sand.u32 %s101, 1
        %s259 = smul.addr %s258, 8
        %s260 = scalar_lea.vmem [#allocation7], %s259
        %p261 = pneg %p114
        %p262 = pneg %p111
        %p263 = pneg %p142
        %p264 = pneg %p139
        %s265 = smul.u32 8, %s24
        %p266 = scmp.lt.s32.totalorder %s23, 0
        %s267 = scalar_select %p266, %s23, 0
        %p268 = scmp.lt.s32.totalorder %s265, 15
        %s269 = scalar_select %p268, %s265, 15
        %s270 = smul.addr %s267, 16
        %s271 = sadd.s32 %s269, %s270
        %s272 = smul.addr %s271, 4
        %s273 = scalar_lea.vmem %s3, %s272
        %s274 = smul.u32 4, %s25
        %s275 = smul.u32 8, %s24
        %s276 = smul.u32 8, %s24
        %s277 = smul.u32 8, %s24
        %p278 = scmp.lt.s32.totalorder %s23, 0
        %s279 = scalar_select %p278, %s23, 0
        %p280 = scmp.lt.s32.totalorder %s277, 15
        %s281 = scalar_select %p280, %s277, 15
        %s282 = smul.addr %s279, 16
        %s283 = sadd.s32 %s281, %s282
        %s284 = smul.addr %s283, 4
        %s285 = scalar_lea.vmem %s3, %s284
        %s286 = smul.u32 8, %s24
        %p288 = scmp.eq.s32.totalorder %s25, 0
        // Predicated region
        $region45: #{vae_forward.3} parent=31 // pred_check
          %p289 = pneg %p288
        $region46: #{vae_forward.3} parent=31 // pred_check_branch
          %291 = sbr.rel (%p289) target = $region48
        $region47: #{vae_forward.3} parent=31 // pred_region
          %292 = vst [vmem:[#allocation2] sm:$0xff] 0.0
          %293 = vst [vmem:[#allocation2 + $0x8] sm:$0xff] 0.0
          %294 = vst [vmem:[#allocation2 + $0x10] sm:$0xff] 0.0
          %295 = vst [vmem:[#allocation2 + $0x18] sm:$0xff] 0.0
        $region48: #{vae_forward.3} parent=31 // pred_fallthru
          _
        %v296 = vld [vmem:[#allocation2] sm:$0xff]
        %v297 = vld [vmem:[#allocation2 + $0x8] sm:$0xff]
        %v298 = vld [vmem:[#allocation2 + $0x10] sm:$0xff]
        %v299 = vld [vmem:[#allocation2 + $0x18] sm:$0xff]
        %v300 = vld [vmem:[#allocation3] sm:$0xf]
        %v301 = vpack.c.bf16 %v300, %v300
        %v302 = vld [vmem:[%s233] sm:$0xff]
        %v303 = vld [vmem:[%s233 + $0x8] sm:$0xff]
        %v304 = vld [vmem:[%s233 + $0x10] sm:$0xff]
        %v305 = vld [vmem:[%s233 + $0x18] sm:$0xff]
        %v306 = vld [vmem:[%s233 + $0x20] sm:$0xff]
        %v307 = vld [vmem:[%s233 + $0x28] sm:$0xff]
        %v308 = vld [vmem:[%s233 + $0x30] sm:$0xff]
        %v309 = vld [vmem:[%s233 + $0x38] sm:$0xff]
        %v310 = vld [vmem:[%s233 + $0x40] sm:$0xff]
        %v311 = vld [vmem:[%s233 + $0x48] sm:$0xff]
        %v312 = vld [vmem:[%s233 + $0x50] sm:$0xff]
        %v313 = vld [vmem:[%s233 + $0x58] sm:$0xff]
        %v314 = vld [vmem:[%s233 + $0x60] sm:$0xff]
        %v315 = vld [vmem:[%s233 + $0x68] sm:$0xff]
        %v316 = vld [vmem:[%s233 + $0x70] sm:$0xff]
        %v317 = vld [vmem:[%s233 + $0x78] sm:$0xff]
        %v334 = vunpack.c.l.b16 %v302
        %v335 = vunpack.c.h.b16 %v302
        %v336 = vunpack.c.l.b16 %v303
        %v337 = vunpack.c.h.b16 %v303
        %v338 = vunpack.c.l.b16 %v304
        %v339 = vunpack.c.h.b16 %v304
        %v340 = vunpack.c.l.b16 %v305
        %v341 = vunpack.c.h.b16 %v305
        %v342 = vunpack.c.l.b16 %v306
        %v343 = vunpack.c.h.b16 %v306
        %v344 = vunpack.c.l.b16 %v307
        %v345 = vunpack.c.h.b16 %v307
        %v346 = vunpack.c.l.b16 %v308
        %v347 = vunpack.c.h.b16 %v308
        %v348 = vunpack.c.l.b16 %v309
        %v349 = vunpack.c.h.b16 %v309
        %v350 = vunpack.c.l.b16 %v310
        %v351 = vunpack.c.h.b16 %v310
        %v352 = vunpack.c.l.b16 %v311
        %v353 = vunpack.c.h.b16 %v311
        %v354 = vunpack.c.l.b16 %v312
        %v355 = vunpack.c.h.b16 %v312
        %v356 = vunpack.c.l.b16 %v313
        %v357 = vunpack.c.h.b16 %v313
        %v358 = vunpack.c.l.b16 %v314
        %v359 = vunpack.c.h.b16 %v314
        %v360 = vunpack.c.l.b16 %v315
        %v361 = vunpack.c.h.b16 %v315
        %v362 = vunpack.c.l.b16 %v316
        %v363 = vunpack.c.h.b16 %v316
        %v364 = vunpack.c.l.b16 %v317
        %v365 = vunpack.c.h.b16 %v317
        %v366 = vpack.c.b16 %v342, %v334
        %v367 = vpack.c.b16 %v343, %v335
        %v368 = vpack.c.b16 %v344, %v336
        %v369 = vpack.c.b16 %v345, %v337
        %v370 = vpack.c.b16 %v346, %v338
        %v371 = vpack.c.b16 %v347, %v339
        %v372 = vpack.c.b16 %v348, %v340
        %v373 = vpack.c.b16 %v349, %v341
        %v374 = vpack.c.b16 %v358, %v350
        %v375 = vpack.c.b16 %v359, %v351
        %v376 = vpack.c.b16 %v360, %v352
        %v377 = vpack.c.b16 %v361, %v353
        %v378 = vpack.c.b16 %v362, %v354
        %v379 = vpack.c.b16 %v363, %v355
        %v380 = vpack.c.b16 %v364, %v356
        %v381 = vpack.c.b16 %v365, %v357
        %vm398 = vcmask 261120
        %v400 = vsel %vm398, %v301, 0
        %402 = vmatprep.subr.bf16.mxu0 %v367
        %403 = vmatpush1.bf16.msra.mxu0 %v366
        %404 = vmatprep.subr.bf16.mxu0 %v375
        %405 = vmatpush1.bf16.msra.mxu0 %v374
        %406 = vmatprep.subr.bf16.mxu0 0
        %407 = vmatpush1.bf16.msra.mxu0 0
        %408 = vmatprep.subr.bf16.mxu0 0
        %409 = vmatpush1.bf16.msra.mxu0 0
        %410 = vmatprep.subr.bf16.mxu0 0
        %411 = vmatpush1.bf16.msra.mxu0 0
        %412 = vmatprep.subr.bf16.mxu0 0
        %413 = vmatpush1.bf16.msra.mxu0 0
        %414 = vmatprep.subr.bf16.mxu0 0
        %415 = vmatpush1.bf16.msra.mxu0 0
        %416 = vmatprep.subr.bf16.mxu0 0
        %417 = vmatpush1.bf16.msra.mxu0 0
        %418 = vmatprep.subr.bf16.mxu0 0
        %419 = vmatpush1.bf16.msra.mxu0 0
        %420 = vmatprep.subr.bf16.mxu0 0
        %421 = vmatpush1.bf16.msra.mxu0 0
        %422 = vmatprep.subr.bf16.mxu0 0
        %423 = vmatpush1.bf16.msra.mxu0 0
        %424 = vmatprep.subr.bf16.mxu0 0
        %425 = vmatpush1.bf16.msra.mxu0 0
        %426 = vmatprep.subr.bf16.mxu0 0
        %427 = vmatpush1.bf16.msra.mxu0 0
        %428 = vmatprep.subr.bf16.mxu0 0
        %429 = vmatpush1.bf16.msra.mxu0 0
        %430 = vmatprep.subr.bf16.mxu0 0
        %431 = vmatpush1.bf16.msra.mxu0 0
        %432 = vmatprep.subr.bf16.mxu0 0
        %433 = vmatpush1.bf16.msra.mxu0 0
        %434 = vmatprep.mubr.bf16.mxu0 0
        %435 = vmatmul.mubr.bf16.gmra.mrb[0].mxu0 %v400
        %v436 = vpop.f32.mrb[0].mxu0
        %v437 = vadd.f32 0.0, %v436
        %v438 = vpop.f32.mrb[0].mxu0
        %v439 = vadd.f32 0.0, %v438
        %v440 = vpop.f32.mrb[0].mxu0
        %v441 = vpop.f32.mrb[0].mxu0
        %442 = vdwg.mxu0
        %443 = vmatprep.subr.bf16.mxu0 %v369
        %444 = vmatpush1.bf16.msra.mxu0 %v368
        %445 = vmatprep.subr.bf16.mxu0 %v377
        %446 = vmatpush1.bf16.msra.mxu0 %v376
        %447 = vmatprep.subr.bf16.mxu0 0
        %448 = vmatpush1.bf16.msra.mxu0 0
        %449 = vmatprep.subr.bf16.mxu0 0
        %450 = vmatpush1.bf16.msra.mxu0 0
        %451 = vmatprep.subr.bf16.mxu0 0
        %452 = vmatpush1.bf16.msra.mxu0 0
        %453 = vmatprep.subr.bf16.mxu0 0
        %454 = vmatpush1.bf16.msra.mxu0 0
        %455 = vmatprep.subr.bf16.mxu0 0
        %456 = vmatpush1.bf16.msra.mxu0 0
        %457 = vmatprep.subr.bf16.mxu0 0
        %458 = vmatpush1.bf16.msra.mxu0 0
        %459 = vmatprep.subr.bf16.mxu0 0
        %460 = vmatpush1.bf16.msra.mxu0 0
        %461 = vmatprep.subr.bf16.mxu0 0
        %462 = vmatpush1.bf16.msra.mxu0 0
        %463 = vmatprep.subr.bf16.mxu0 0
        %464 = vmatpush1.bf16.msra.mxu0 0
        %465 = vmatprep.subr.bf16.mxu0 0
        %466 = vmatpush1.bf16.msra.mxu0 0
        %467 = vmatprep.subr.bf16.mxu0 0
        %468 = vmatpush1.bf16.msra.mxu0 0
        %469 = vmatprep.subr.bf16.mxu0 0
        %470 = vmatpush1.bf16.msra.mxu0 0
        %471 = vmatprep.subr.bf16.mxu0 0
        %472 = vmatpush1.bf16.msra.mxu0 0
        %473 = vmatprep.subr.bf16.mxu0 0
        %474 = vmatpush1.bf16.msra.mxu0 0
        %475 = vmatprep.mubr.bf16.mxu0 0
        %476 = vmatmul.mubr.bf16.gmra.mrb[0].mxu0 %v400
        %v477 = vpop.f32.mrb[0].mxu0
        %v478 = vadd.f32 0.0, %v477
        %v479 = vpop.f32.mrb[0].mxu0
        %v480 = vadd.f32 0.0, %v479
        %v481 = vpop.f32.mrb[0].mxu0
        %v482 = vpop.f32.mrb[0].mxu0
        %483 = vdwg.mxu0
        %484 = vmatprep.subr.bf16.mxu0 %v371
        %485 = vmatpush1.bf16.msra.mxu0 %v370
        %486 = vmatprep.subr.bf16.mxu0 %v379
        %487 = vmatpush1.bf16.msra.mxu0 %v378
        %488 = vmatprep.subr.bf16.mxu0 0
        %489 = vmatpush1.bf16.msra.mxu0 0
        %490 = vmatprep.subr.bf16.mxu0 0
        %491 = vmatpush1.bf16.msra.mxu0 0
        %492 = vmatprep.subr.bf16.mxu0 0
        %493 = vmatpush1.bf16.msra.mxu0 0
        %494 = vmatprep.subr.bf16.mxu0 0
        %495 = vmatpush1.bf16.msra.mxu0 0
        %496 = vmatprep.subr.bf16.mxu0 0
        %497 = vmatpush1.bf16.msra.mxu0 0
        %498 = vmatprep.subr.bf16.mxu0 0
        %499 = vmatpush1.bf16.msra.mxu0 0
        %500 = vmatprep.subr.bf16.mxu0 0
        %501 = vmatpush1.bf16.msra.mxu0 0
        %502 = vmatprep.subr.bf16.mxu0 0
        %503 = vmatpush1.bf16.msra.mxu0 0
        %504 = vmatprep.subr.bf16.mxu0 0
        %505 = vmatpush1.bf16.msra.mxu0 0
        %506 = vmatprep.subr.bf16.mxu0 0
        %507 = vmatpush1.bf16.msra.mxu0 0
        %508 = vmatprep.subr.bf16.mxu0 0
        %509 = vmatpush1.bf16.msra.mxu0 0
        %510 = vmatprep.subr.bf16.mxu0 0
        %511 = vmatpush1.bf16.msra.mxu0 0
        %512 = vmatprep.subr.bf16.mxu0 0
        %513 = vmatpush1.bf16.msra.mxu0 0
        %514 = vmatprep.subr.bf16.mxu0 0
        %515 = vmatpush1.bf16.msra.mxu0 0
        %516 = vmatprep.mubr.bf16.mxu0 0
        %517 = vmatmul.mubr.bf16.gmra.mrb[0].mxu0 %v400
        %v518 = vpop.f32.mrb[0].mxu0
        %v519 = vadd.f32 0.0, %v518
        %v520 = vpop.f32.mrb[0].mxu0
        %v521 = vadd.f32 0.0, %v520
        %v522 = vpop.f32.mrb[0].mxu0
        %v523 = vpop.f32.mrb[0].mxu0
        %524 = vdwg.mxu0
        %525 = vmatprep.subr.bf16.mxu0 %v373
        %526 = vmatpush1.bf16.msra.mxu0 %v372
        %527 = vmatprep.subr.bf16.mxu0 %v381
        %528 = vmatpush1.bf16.msra.mxu0 %v380
        %529 = vmatprep.subr.bf16.mxu0 0
        %530 = vmatpush1.bf16.msra.mxu0 0
        %531 = vmatprep.subr.bf16.mxu0 0
        %532 = vmatpush1.bf16.msra.mxu0 0
        %533 = vmatprep.subr.bf16.mxu0 0
        %534 = vmatpush1.bf16.msra.mxu0 0
        %535 = vmatprep.subr.bf16.mxu0 0
        %536 = vmatpush1.bf16.msra.mxu0 0
        %537 = vmatprep.subr.bf16.mxu0 0
        %538 = vmatpush1.bf16.msra.mxu0 0
        %539 = vmatprep.subr.bf16.mxu0 0
        %540 = vmatpush1.bf16.msra.mxu0 0
        %541 = vmatprep.subr.bf16.mxu0 0
        %542 = vmatpush1.bf16.msra.mxu0 0
        %543 = vmatprep.subr.bf16.mxu0 0
        %544 = vmatpush1.bf16.msra.mxu0 0
        %545 = vmatprep.subr.bf16.mxu0 0
        %546 = vmatpush1.bf16.msra.mxu0 0
        %547 = vmatprep.subr.bf16.mxu0 0
        %548 = vmatpush1.bf16.msra.mxu0 0
        %549 = vmatprep.subr.bf16.mxu0 0
        %550 = vmatpush1.bf16.msra.mxu0 0
        %551 = vmatprep.subr.bf16.mxu0 0
        %552 = vmatpush1.bf16.msra.mxu0 0
        %553 = vmatprep.subr.bf16.mxu0 0
        %554 = vmatpush1.bf16.msra.mxu0 0
        %555 = vmatprep.subr.bf16.mxu0 0
        %556 = vmatpush1.bf16.msra.mxu0 0
        %557 = vmatprep.mubr.bf16.mxu0 0
        %558 = vmatmul.mubr.bf16.gmra.mrb[0].mxu0 %v400
        %v559 = vpop.f32.mrb[0].mxu0
        %v560 = vadd.f32 0.0, %v559
        %v561 = vpop.f32.mrb[0].mxu0
        %v562 = vadd.f32 0.0, %v561
        %v563 = vpop.f32.mrb[0].mxu0
        %v564 = vpop.f32.mrb[0].mxu0
        %565 = vdwg.mxu0
        %v574 = vcombine.low %v437, %v439
        %v575 = vcombine.low %v478, %v480
        %v576 = vcombine.low %v519, %v521
        %v577 = vcombine.low %v560, %v562
        %v582 = vadd.f32 %v296, %v574
        %v583 = vadd.f32 %v297, %v575
        %v584 = vadd.f32 %v298, %v576
        %v585 = vadd.f32 %v299, %v577
        %586 = vst [vmem:[#allocation2] sm:$0xff] %v582
        %587 = vst [vmem:[#allocation2 + $0x8] sm:$0xff] %v583
        %588 = vst [vmem:[#allocation2 + $0x10] sm:$0xff] %v584
        %589 = vst [vmem:[#allocation2 + $0x18] sm:$0xff] %v585
        // Predicated region
        $region49: #{vae_forward.3} parent=31 // pred_check
          %p590 = pneg %p288
        $region50: #{vae_forward.3} parent=31 // pred_check_branch
          %592 = sbr.rel (%p590) target = $region52
        $region51: #{vae_forward.3} parent=31 // pred_region
          %v593 = vld [vmem:[#allocation2] sm:$0xff]
          %v594 = vld [vmem:[#allocation2 + $0x8] sm:$0xff]
          %v595 = vld [vmem:[#allocation2 + $0x10] sm:$0xff]
          %v596 = vld [vmem:[#allocation2 + $0x18] sm:$0xff]
          %v597 = vld [vmem:[%s242] sm:$0xff]
          %v599 = vlaneseq
          %v600 = vshrl.u32 %v599, 7
          %v601 = vsub.s32 0, %v600
          %v602 = vrot.slane %v597, %v601
          %v603 = vlaneseq
          %v604 = vshrl.u32 %v603, 7
          %v605 = vsub.s32 1, %v604
          %v606 = vrot.slane %v597, %v605
          %v607 = vlaneseq
          %v608 = vshrl.u32 %v607, 7
          %v609 = vsub.s32 2, %v608
          %v610 = vrot.slane %v597, %v609
          %v611 = vlaneseq
          %v612 = vshrl.u32 %v611, 7
          %v613 = vsub.s32 3, %v612
          %v614 = vrot.slane %v597, %v613
          %v615 = vlaneseq
          %v616 = vshrl.u32 %v615, 7
          %v617 = vsub.s32 4, %v616
          %v618 = vrot.slane %v597, %v617
          %v619 = vlaneseq
          %v620 = vshrl.u32 %v619, 7
          %v621 = vsub.s32 5, %v620
          %v622 = vrot.slane %v597, %v621
          %v623 = vlaneseq
          %v624 = vshrl.u32 %v623, 7
          %v625 = vsub.s32 6, %v624
          %v626 = vrot.slane %v597, %v625
          %v627 = vlaneseq
          %v628 = vshrl.u32 %v627, 7
          %v629 = vsub.s32 7, %v628
          %v630 = vrot.slane %v597, %v629
          %v631 = vcombine.low %v602, %v606
          %v632 = vcombine.low %v610, %v614
          %v633 = vcombine.low %v618, %v622
          %v634 = vcombine.low %v626, %v630
          %v639 = vadd.f32 %v593, %v631
          %v640 = vadd.f32 %v594, %v632
          %v641 = vadd.f32 %v595, %v633
          %v642 = vadd.f32 %v596, %v634
          %643 = vst [vmem:[%s285] sm:$0xff] %v639
          %644 = vst [vmem:[%s285 + $0x8] sm:$0xff] %v640
          %645 = vst [vmem:[%s285 + $0x10] sm:$0xff] %v641
          %646 = vst [vmem:[%s285 + $0x18] sm:$0xff] %v642
        $region52: #{vae_forward.3} parent=31 // pred_fallthru
          _
        %s647 = smul.u32 8, %s24
        %p648 = scmp.lt.s32.totalorder %s23, 0
        %s649 = scalar_select %p648, %s23, 0
        %p650 = scmp.lt.s32.totalorder %s647, 15
        %s651 = scalar_select %p650, %s647, 15
        %s652 = smul.addr %s649, 16
        %s653 = sadd.s32 %s651, %s652
        %s654 = smul.addr %s653, 4
        %s655 = scalar_lea.vmem %s3, %s654
        // Predicated region
        $region53: #{vae_forward.3} parent=31 // pred_check
          %p656 = pneg %p139
        $region54: #{vae_forward.3} parent=31 // pred_check_branch
          %658 = sbr.rel (%p656) target = $region56
        $region55: #{vae_forward.3} parent=31 // pred_region
          %s659 = smul.u32 8, %s24
        $region56: #{vae_forward.3} parent=31 // pred_fallthru
          _
      $region32: #{vae_forward.3} parent=5 // pred_fallthru
        _
      %p660 = scmp.le.s32.totalorder 2, %s13
      // Predicated region
      $region57: #{vae_forward.3} parent=5 // pred_check
        %p661 = pneg %p660
      $region58: #{vae_forward.3} parent=5 // pred_check_branch
        %663 = sbr.rel (%p661) target = $region60
      $region59: #{vae_forward.3} parent=5 // pred_region
        %s664 = ssub.s32 %s13, 2
        // Predicated region
        $region61: #{vae_forward.3} parent=59 // pred_check
          %p665 = pneg %p145
        $region62: #{vae_forward.3} parent=59 // pred_check_branch
          %667 = sbr.rel (%p665) target = $region64
        $region63: #{vae_forward.3} parent=59 // pred_region
          %s668 = smul.u32 8, %s27
          %p669 = scmp.lt.s32.totalorder %s26, 0
          %s670 = scalar_select %p669, %s26, 0
          %p671 = scmp.lt.s32.totalorder %s668, 15
          %s672 = scalar_select %p671, %s668, 15
          %s673 = smul.addr %s670, 16
          %s674 = sadd.s32 %s672, %s673
          %s675 = smul.addr %s674, 4
          %s676 = scalar_lea.vmem %s3, %s675
        $region64: #{vae_forward.3} parent=59 // pred_fallthru
          _
      $region60: #{vae_forward.3} parent=5 // pred_fallthru
        _
    $region6: #{vae_forward.3} parent=1 // loop_footer
      %s17 = sadd.s32 1, %s13
    $region7: #{vae_forward.3} parent=1 // loop_footer_branch
      %12 = sbr.rel target = $region3
    $region8: #{vae_forward.3} parent=1 // loop_exit
      _
    %677 = vsyncpa [#allocation4], 1
    %s678 = scalar_lea.sflag [#allocation4], 1
    %679 = vsyncpa %s678, 1
    %680 = vsyncpa [#allocation6], 1
    %s681 = scalar_lea.sflag [#allocation6], 1
    %682 = vsyncpa %s681, 1

// kernel: vae_forward.5
$region0: #{vae_forward.5}
  #allocation0 [shape = 'u32[]', space=smem, size = 0x4, offset = 0x4, fixed_abs, tag = 'smem constant byte address 0x4 - core index']
  #allocation1 [shape = 'u32[144,128]{1,0:T(1,128)}', space=vmem, size = 0x12000, scoped, tag = 'internal scratch']
  #allocation2 [shape = 'f32[4,128]{1,0:T(4,128)}', space=vmem, size = 0x800, scoped, tag = 'scratch operand']
  %s0 = inlined_call_operand.vmem [shape: f32[4,2048], index: 0, kind: input, shape index: {}]
  %s1 = inlined_call_operand.vmem [shape: bf16[2048,128], index: 1, kind: input, shape index: {}]
  %s2 = inlined_call_operand.vmem [shape: f32[1,128], index: 2, kind: input, shape index: {}]
  %s3 = inlined_call_operand.hbm [shape: f32[4,128], index: 3, kind: output, shape index: {}]
  %s4 = sld [smem:[#allocation0]]
  $region53: #{vae_forward.5} parent=0
    _
  %s6 = ssub.s32 1, %s4
  %s7 = scalar_select 0, %s6, %s4
  $region1: #{vae_forward.5} parent=0
    #allocation3 [shape = 'u8[2048]{0}', space=vmem, size = 0x800, scoped, tag = 'output window, operand 0, single buffered']
    #allocation4 [shape = 's32[2]{0}', space=sflag, size = 0x8, scoped, tag = 'scoped memory for vae_forward.5']
    %8 = vsyncpa [#allocation4], 0
    loop: start=0, step=1, limit=4
    $region2: #{vae_forward.5} parent=1 // loop_pre_header
      _
    $region3: #{vae_forward.5} parent=1 // loop_header
      %s10 = sphi 0, %s14
      %p11 = scmp.ge.s32.totalorder %s10, 4
      %s17 = sphi 0, %s36
      %s18 = sphi 0, %s32
      %s19 = sphi 0, %s28
      %s20 = sphi 0, %s17
      %s21 = sphi 0, %s18
      %s22 = sphi 0, %s19
      %s23 = sphi 0, %s20
      %s24 = sphi 0, %s21
      %s25 = sphi 0, %s22
      %s41 = sphi 0, %s43
      %s44 = sphi 0, %s41
      %s45 = sphi 0, %s44
      %s61 = sphi 0, %s45
      %s69 = sphi 0, %s71
      %s72 = sphi 0, %s69
      %s73 = sphi 0, %s72
      %s89 = sphi 0, %s73
      %s95 = sphi 0, %s97
      %s98 = sphi 0, %s95
      %s99 = sphi 0, %s98
      %s115 = sphi 0, %s99
      %s123 = sphi 0, %s125
      %s126 = sphi 0, %s123
      %s127 = sphi 0, %s126
      %s143 = sphi 0, %s127
    $region4: #{vae_forward.5} parent=1 // loop_header_branch
      %13 = sbr.rel (%p11) target = $region8
    $region5: #{vae_forward.5} parent=1 // loop_body
      %s15 = ssub.s32 %s10, 1
      %s16 = ssub.s32 %s10, 2
      %s26 = sadd.s32 1, %s19
      %p27 = scmp.ge.s32.totalorder %s26, 2
      %s28 = scalar_select %p27, 0, %s26
      %s29 = sadd.s32 1, %s18
      %s30 = scalar_select %p27, %s29, %s18
      %p31 = scmp.ge.s32.totalorder %s30, 1
      %s32 = scalar_select %p31, 0, %s30
      %s33 = sadd.s32 1, %s17
      %s34 = scalar_select %p31, %s33, %s17
      %p35 = scmp.ge.s32.totalorder %s34, 1
      %s36 = scalar_select %p35, 0, %s34
      %s37 = ssub.s32 %s17, %s36
      %s38 = ssub.s32 %s19, %s28
      %s39 = sor.u32 %s37, %s38
      %p40 = scmp.eq.s32.totalorder %s39, 0
      %s42 = sadd.s32 %s41, 1
      %s43 = scalar_select %p40, %s41, %s42
      %p46 = pneg %p40
      %p47 = scmp.eq.s32.totalorder %s10, 1
      %p48 = por %p46, %p47
      %p49 = scmp.ne.s32.totalorder %s41, %s44
      %p50 = scmp.eq.s32.totalorder %s10, 0
      %p51 = por %p49, %p50
      %p52 = scmp.ne.s32.totalorder %s41, %s44
      %p53 = scmp.eq.s32.totalorder %s15, 1
      %p54 = por %p52, %p53
      %p55 = scmp.ne.s32.totalorder %s44, %s45
      %p56 = scmp.eq.s32.totalorder %s15, 0
      %p57 = por %p55, %p56
      %p58 = scmp.ne.s32.totalorder %s44, %s45
      %p59 = scmp.eq.s32.totalorder %s16, 1
      %p60 = por %p58, %p59
      %p62 = scmp.ne.s32.totalorder %s45, %s61
      %p63 = scmp.eq.s32.totalorder %s16, 0
      %p64 = por %p62, %p63
      %s65 = ssub.s32 %s19, %s28
      %s66 = ssub.s32 %s18, %s32
      %s67 = sor.u32 %s65, %s66
      %p68 = scmp.eq.s32.totalorder %s67, 0
      %s70 = sadd.s32 %s69, 1
      %s71 = scalar_select %p68, %s69, %s70
      %p74 = pneg %p68
      %p75 = scmp.eq.s32.totalorder %s10, 1
      %p76 = por %p74, %p75
      %p77 = scmp.ne.s32.totalorder %s69, %s72
      %p78 = scmp.eq.s32.totalorder %s10, 0
      %p79 = por %p77, %p78
      %p80 = scmp.ne.s32.totalorder %s69, %s72
      %p81 = scmp.eq.s32.totalorder %s15, 1
      %p82 = por %p80, %p81
      %p83 = scmp.ne.s32.totalorder %s72, %s73
      %p84 = scmp.eq.s32.totalorder %s15, 0
      %p85 = por %p83, %p84
      %p86 = scmp.ne.s32.totalorder %s72, %s73
      %p87 = scmp.eq.s32.totalorder %s16, 1
      %p88 = por %p86, %p87
      %p90 = scmp.ne.s32.totalorder %s73, %s89
      %p91 = scmp.eq.s32.totalorder %s16, 0
      %p92 = por %p90, %p91
      %s93 = ssub.s32 %s18, %s32
      %p94 = scmp.eq.s32.totalorder %s93, 0
      %s96 = sadd.s32 %s95, 1
      %s97 = scalar_select %p94, %s95, %s96
      %p100 = pneg %p94
      %p101 = scmp.eq.s32.totalorder %s10, 1
      %p102 = por %p100, %p101
      %p103 = scmp.ne.s32.totalorder %s95, %s98
      %p104 = scmp.eq.s32.totalorder %s10, 0
      %p105 = por %p103, %p104
      %p106 = scmp.ne.s32.totalorder %s95, %s98
      %p107 = scmp.eq.s32.totalorder %s15, 1
      %p108 = por %p106, %p107
      %p109 = scmp.ne.s32.totalorder %s98, %s99
      %p110 = scmp.eq.s32.totalorder %s15, 0
      %p111 = por %p109, %p110
      %p112 = scmp.ne.s32.totalorder %s98, %s99
      %p113 = scmp.eq.s32.totalorder %s16, 1
      %p114 = por %p112, %p113
      %p116 = scmp.ne.s32.totalorder %s99, %s115
      %p117 = scmp.eq.s32.totalorder %s16, 0
      %p118 = por %p116, %p117
      %s119 = ssub.s32 %s17, %s36
      %s120 = ssub.s32 %s18, %s32
      %s121 = sor.u32 %s119, %s120
      %p122 = scmp.eq.s32.totalorder %s121, 0
      %s124 = sadd.s32 %s123, 1
      %s125 = scalar_select %p122, %s123, %s124
      %p128 = pneg %p122
      %p129 = scmp.eq.s32.totalorder %s10, 1
      %p130 = por %p128, %p129
      %p131 = scmp.ne.s32.totalorder %s123, %s126
      %p132 = scmp.eq.s32.totalorder %s10, 0
      %p133 = por %p131, %p132
      %p134 = scmp.ne.s32.totalorder %s123, %s126
      %p135 = scmp.eq.s32.totalorder %s15, 1
      %p136 = por %p134, %p135
      %p137 = scmp.ne.s32.totalorder %s126, %s127
      %p138 = scmp.eq.s32.totalorder %s15, 0
      %p139 = por %p137, %p138
      %p140 = scmp.ne.s32.totalorder %s126, %s127
      %p141 = scmp.eq.s32.totalorder %s16, 1
      %p142 = por %p140, %p141
      %p144 = scmp.ne.s32.totalorder %s127, %s143
      %p145 = scmp.eq.s32.totalorder %s16, 0
      %p146 = por %p144, %p145
      %p147 = scmp.le.s32.totalorder 1, %s10
      %p148 = scmp.lt.s32.totalorder %s10, 3
      %p149 = pnand %p147, %p148
      %p150 = pneg %p149
      // Predicated region
      $region9: #{vae_forward.5} parent=5 // pred_check
        _
      $region10: #{vae_forward.5} parent=5 // pred_check_branch
        %152 = sbr.rel (%p149) target = $region12
      $region11: #{vae_forward.5} parent=5 // pred_region
        %s153 = ssub.s32 %s10, 1
        // Predicated region
        $region13: #{vae_forward.5} parent=11 // pred_check
          %p154 = pneg %p111
        $region14: #{vae_forward.5} parent=11 // pred_check_branch
          %156 = sbr.rel (%p154) target = $region16
        $region15: #{vae_forward.5} parent=11 // pred_region
          %p157 = scmp.lt.s32.totalorder %s21, 0
          %s158 = scalar_select %p157, %s21, 0
          %s159 = scalar_lea.vmem %s2, %s158
        $region16: #{vae_forward.5} parent=11 // pred_fallthru
          _
      $region12: #{vae_forward.5} parent=5 // pred_fallthru
        _
      %p160 = scmp.lt.s32.totalorder %s10, 2
      // Predicated region
      $region17: #{vae_forward.5} parent=5 // pred_check
        %p161 = pneg %p160
      $region18: #{vae_forward.5} parent=5 // pred_check_branch
        %163 = sbr.rel (%p161) target = $region20
      $region19: #{vae_forward.5} parent=5 // pred_region
        // Predicated region
        $region21: #{vae_forward.5} parent=19 // pred_check
          %p164 = pneg %p51
        $region22: #{vae_forward.5} parent=19 // pred_check_branch
          %166 = sbr.rel (%p164) target = $region24
        $region23: #{vae_forward.5} parent=19 // pred_region
          %s167 = smul.u32 8, %s19
          %p168 = scmp.lt.s32.totalorder %s17, 0
          %s169 = scalar_select %p168, %s17, 0
          %p170 = scmp.lt.s32.totalorder %s167, 15
          %s171 = scalar_select %p170, %s167, 15
          %s172 = smul.addr %s169, 16
          %s173 = sadd.s32 %s171, %s172
          %s174 = smul.addr %s173, 4
          %s175 = scalar_lea.vmem %s0, %s174
          %s176 = smul.u32 8, %s19
        $region24: #{vae_forward.5} parent=19 // pred_fallthru
          _
        // Predicated region
        $region25: #{vae_forward.5} parent=19 // pred_check
          %p177 = pneg %p79
        $region26: #{vae_forward.5} parent=19 // pred_check_branch
          %179 = sbr.rel (%p177) target = $region28
        $region27: #{vae_forward.5} parent=19 // pred_region
          %s180 = smul.u32 128, %s19
          %p181 = scmp.lt.s32.totalorder %s180, 255
          %s182 = scalar_select %p181, %s180, 255
          %p183 = scmp.lt.s32.totalorder %s18, 0
          %s184 = scalar_select %p183, %s18, 0
          %s185 = sadd.s32 %s184, %s182
          %s186 = smul.addr %s185, 4
          %s187 = scalar_lea.vmem %s1, %s186
          %s188 = smul.u32 128, %s19
        $region28: #{vae_forward.5} parent=19 // pred_fallthru
          _
      $region20: #{vae_forward.5} parent=5 // pred_fallthru
        _
      %p189 = scmp.le.s32.totalorder 1, %s10
      %p190 = scmp.lt.s32.totalorder %s10, 3
      %p191 = pnand %p189, %p190
      %p192 = pneg %p191
      // Predicated region
      $region29: #{vae_forward.5} parent=5 // pred_check
        _
      $region30: #{vae_forward.5} parent=5 // pred_check_branch
        %194 = sbr.rel (%p191) target = $region32
      $region31: #{vae_forward.5} parent=5 // pred_region
        %s195 = ssub.s32 %s10, 1
        %s196 = smul.u32 8, %s22
        %p197 = scmp.lt.s32.totalorder %s20, 0
        %s198 = scalar_select %p197, %s20, 0
        %p199 = scmp.lt.s32.totalorder %s196, 15
        %s200 = scalar_select %p199, %s196, 15
        %s201 = smul.addr %s198, 16
        %s202 = sadd.s32 %s200, %s201
        %s203 = smul.addr %s202, 4
        %s204 = scalar_lea.vmem %s0, %s203
        %p205 = pneg %p57
        %p206 = pneg %p54
        %s207 = smul.u32 128, %s22
        %p208 = scmp.lt.s32.totalorder %s207, 255
        %s209 = scalar_select %p208, %s207, 255
        %p210 = scmp.lt.s32.totalorder %s21, 0
        %s211 = scalar_select %p210, %s21, 0
        %s212 = sadd.s32 %s211, %s209
        %s213 = smul.addr %s212, 4
        %s214 = scalar_lea.vmem %s1, %s213
        %p215 = pneg %p85
        %p216 = pneg %p82
        %p217 = scmp.lt.s32.totalorder %s21, 0
        %s218 = scalar_select %p217, %s21, 0
        %s219 = scalar_lea.vmem %s2, %s218
        %p220 = pneg %p111
        %p221 = pneg %p108
        %p222 = pneg %p139
        %p223 = pneg %p136
        %s224 = smul.u32 8, %s22
        %p225 = scmp.lt.s32.totalorder %s20, 0
        %s226 = scalar_select %p225, %s20, 0
        %p227 = scmp.lt.s32.totalorder %s224, 15
        %s228 = scalar_select %p227, %s224, 15
        %s229 = smul.addr %s226, 16
        %s230 = sadd.s32 %s228, %s229
        %s231 = smul.addr %s230, 4
        %s232 = scalar_lea.vmem %s0, %s231
        %s233 = smul.u32 8, %s22
        %s234 = smul.u32 128, %s22
        %p235 = scmp.lt.s32.totalorder %s234, 255
        %s236 = scalar_select %p235, %s234, 255
        %p237 = scmp.lt.s32.totalorder %s21, 0
        %s238 = scalar_select %p237, %s21, 0
        %s239 = sadd.s32 %s238, %s236
        %s240 = smul.addr %s239, 4
        %s241 = scalar_lea.vmem %s1, %s240
        %s242 = smul.u32 128, %s22
        %p243 = scmp.lt.s32.totalorder %s21, 0
        %s244 = scalar_select %p243, %s21, 0
        %s245 = scalar_lea.vmem %s2, %s244
        %p247 = scmp.eq.s32.totalorder %s22, 0
        // Predicated region
        $region33: #{vae_forward.5} parent=31 // pred_check
          %p248 = pneg %p247
        $region34: #{vae_forward.5} parent=31 // pred_check_branch
          %250 = sbr.rel (%p248) target = $region36
        $region35: #{vae_forward.5} parent=31 // pred_region
          %251 = vst [vmem:[#allocation2] sm:$0xf] 0.0
        $region36: #{vae_forward.5} parent=31 // pred_fallthru
          _
        %v252 = vld [vmem:[#allocation2] sm:$0xf]
        %v253 = vld [vmem:[%s232] sm:$0xff]
        %v254 = vld [vmem:[%s232 + $0x8] sm:$0xff]
        %v255 = vld [vmem:[%s232 + $0x10] sm:$0xff]
        %v256 = vld [vmem:[%s232 + $0x18] sm:$0xff]
        %v261 = vcombine.high %v253, %v253
        %v262 = vcombine.high %v254, %v254
        %v263 = vcombine.high %v255, %v255
        %v264 = vcombine.high %v256, %v256
        %v269 = vpack.c.bf16 %v253, %v253
        %v270 = vpack.c.bf16 %v261, %v261
        %v271 = vpack.c.bf16 %v254, %v254
        %v272 = vpack.c.bf16 %v262, %v262
        %v273 = vpack.c.bf16 %v255, %v255
        %v274 = vpack.c.bf16 %v263, %v263
        %v275 = vpack.c.bf16 %v256, %v256
        %v276 = vpack.c.bf16 %v264, %v264
        %v277 = vld [vmem:[%s241] sm:$0xf]
        %v278 = vld [vmem:[%s241 + $0x4] sm:$0xf]
        %v279 = vld [vmem:[%s241 + $0x8] sm:$0xf]
        %v280 = vld [vmem:[%s241 + $0xc] sm:$0xf]
        %v281 = vld [vmem:[%s241 + $0x10] sm:$0xf]
        %v282 = vld [vmem:[%s241 + $0x14] sm:$0xf]
        %v283 = vld [vmem:[%s241 + $0x18] sm:$0xf]
        %v284 = vld [vmem:[%s241 + $0x1c] sm:$0xf]
        %v285 = vld [vmem:[%s241 + $0x20] sm:$0xf]
        %v286 = vld [vmem:[%s241 + $0x24] sm:$0xf]
        %v287 = vld [vmem:[%s241 + $0x28] sm:$0xf]
        %v288 = vld [vmem:[%s241 + $0x2c] sm:$0xf]
        %v289 = vld [vmem:[%s241 + $0x30] sm:$0xf]
        %v290 = vld [vmem:[%s241 + $0x34] sm:$0xf]
        %v291 = vld [vmem:[%s241 + $0x38] sm:$0xf]
        %v292 = vld [vmem:[%s241 + $0x3c] sm:$0xf]
        %v293 = vld [vmem:[%s241 + $0x40] sm:$0xf]
        %v294 = vld [vmem:[%s241 + $0x44] sm:$0xf]
        %v295 = vld [vmem:[%s241 + $0x48] sm:$0xf]
        %v296 = vld [vmem:[%s241 + $0x4c] sm:$0xf]
        %v297 = vld [vmem:[%s241 + $0x50] sm:$0xf]
        %v298 = vld [vmem:[%s241 + $0x54] sm:$0xf]
        %v299 = vld [vmem:[%s241 + $0x58] sm:$0xf]
        %v300 = vld [vmem:[%s241 + $0x5c] sm:$0xf]
        %v301 = vld [vmem:[%s241 + $0x60] sm:$0xf]
        %v302 = vld [vmem:[%s241 + $0x64] sm:$0xf]
        %v303 = vld [vmem:[%s241 + $0x68] sm:$0xf]
        %v304 = vld [vmem:[%s241 + $0x6c] sm:$0xf]
        %v305 = vld [vmem:[%s241 + $0x70] sm:$0xf]
        %v306 = vld [vmem:[%s241 + $0x74] sm:$0xf]
        %v307 = vld [vmem:[%s241 + $0x78] sm:$0xf]
        %v308 = vld [vmem:[%s241 + $0x7c] sm:$0xf]
        %v309 = vld [vmem:[%s241 + $0x80] sm:$0xf]
        %v310 = vld [vmem:[%s241 + $0x84] sm:$0xf]
        %v311 = vld [vmem:[%s241 + $0x88] sm:$0xf]
        %v312 = vld [vmem:[%s241 + $0x8c] sm:$0xf]
        %v313 = vld [vmem:[%s241 + $0x90] sm:$0xf]
        %v314 = vld [vmem:[%s241 + $0x94] sm:$0xf]
        %v315 = vld [vmem:[%s241 + $0x98] sm:$0xf]
        %v316 = vld [vmem:[%s241 + $0x9c] sm:$0xf]
        %v317 = vld [vmem:[%s241 + $0xa0] sm:$0xf]
        %v318 = vld [vmem:[%s241 + $0xa4] sm:$0xf]
        %v319 = vld [vmem:[%s241 + $0xa8] sm:$0xf]
        %v320 = vld [vmem:[%s241 + $0xac] sm:$0xf]
        %v321 = vld [vmem:[%s241 + $0xb0] sm:$0xf]
        %v322 = vld [vmem:[%s241 + $0xb4] sm:$0xf]
        %v323 = vld [vmem:[%s241 + $0xb8] sm:$0xf]
        %v324 = vld [vmem:[%s241 + $0xbc] sm:$0xf]
        %v325 = vld [vmem:[%s241 + $0xc0] sm:$0xf]
        %v326 = vld [vmem:[%s241 + $0xc4] sm:$0xf]
        %v327 = vld [vmem:[%s241 + $0xc8] sm:$0xf]
        %v328 = vld [vmem:[%s241 + $0xcc] sm:$0xf]
        %v329 = vld [vmem:[%s241 + $0xd0] sm:$0xf]
        %v330 = vld [vmem:[%s241 + $0xd4] sm:$0xf]
        %v331 = vld [vmem:[%s241 + $0xd8] sm:$0xf]
        %v332 = vld [vmem:[%s241 + $0xdc] sm:$0xf]
        %v333 = vld [vmem:[%s241 + $0xe0] sm:$0xf]
        %v334 = vld [vmem:[%s241 + $0xe4] sm:$0xf]
        %v335 = vld [vmem:[%s241 + $0xe8] sm:$0xf]
        %v336 = vld [vmem:[%s241 + $0xec] sm:$0xf]
        %v337 = vld [vmem:[%s241 + $0xf0] sm:$0xf]
        %v338 = vld [vmem:[%s241 + $0xf4] sm:$0xf]
        %v339 = vld [vmem:[%s241 + $0xf8] sm:$0xf]
        %v340 = vld [vmem:[%s241 + $0xfc] sm:$0xf]
        %v341 = vld [vmem:[%s241 + $0x100] sm:$0xf]
        %v342 = vld [vmem:[%s241 + $0x104] sm:$0xf]
        %v343 = vld [vmem:[%s241 + $0x108] sm:$0xf]
        %v344 = vld [vmem:[%s241 + $0x10c] sm:$0xf]
        %v345 = vld [vmem:[%s241 + $0x110] sm:$0xf]
        %v346 = vld [vmem:[%s241 + $0x114] sm:$0xf]
        %v347 = vld [vmem:[%s241 + $0x118] sm:$0xf]
        %v348 = vld [vmem:[%s241 + $0x11c] sm:$0xf]
        %v349 = vld [vmem:[%s241 + $0x120] sm:$0xf]
        %v350 = vld [vmem:[%s241 + $0x124] sm:$0xf]
        %v351 = vld [vmem:[%s241 + $0x128] sm:$0xf]
        %v352 = vld [vmem:[%s241 + $0x12c] sm:$0xf]
        %v353 = vld [vmem:[%s241 + $0x130] sm:$0xf]
        %v354 = vld [vmem:[%s241 + $0x134] sm:$0xf]
        %v355 = vld [vmem:[%s241 + $0x138] sm:$0xf]
        %v356 = vld [vmem:[%s241 + $0x13c] sm:$0xf]
        %v357 = vld [vmem:[%s241 + $0x140] sm:$0xf]
        %v358 = vld [vmem:[%s241 + $0x144] sm:$0xf]
        %v359 = vld [vmem:[%s241 + $0x148] sm:$0xf]
        %v360 = vld [vmem:[%s241 + $0x14c] sm:$0xf]
        %v361 = vld [vmem:[%s241 + $0x150] sm:$0xf]
        %v362 = vld [vmem:[%s241 + $0x154] sm:$0xf]
        %v363 = vld [vmem:[%s241 + $0x158] sm:$0xf]
        %v364 = vld [vmem:[%s241 + $0x15c] sm:$0xf]
        %v365 = vld [vmem:[%s241 + $0x160] sm:$0xf]
        %v366 = vld [vmem:[%s241 + $0x164] sm:$0xf]
        %v367 = vld [vmem:[%s241 + $0x168] sm:$0xf]
        %v368 = vld [vmem:[%s241 + $0x16c] sm:$0xf]
        %v369 = vld [vmem:[%s241 + $0x170] sm:$0xf]
        %v370 = vld [vmem:[%s241 + $0x174] sm:$0xf]
        %v371 = vld [vmem:[%s241 + $0x178] sm:$0xf]
        %v372 = vld [vmem:[%s241 + $0x17c] sm:$0xf]
        %v373 = vld [vmem:[%s241 + $0x180] sm:$0xf]
        %v374 = vld [vmem:[%s241 + $0x184] sm:$0xf]
        %v375 = vld [vmem:[%s241 + $0x188] sm:$0xf]
        %v376 = vld [vmem:[%s241 + $0x18c] sm:$0xf]
        %v377 = vld [vmem:[%s241 + $0x190] sm:$0xf]
        %v378 = vld [vmem:[%s241 + $0x194] sm:$0xf]
        %v379 = vld [vmem:[%s241 + $0x198] sm:$0xf]
        %v380 = vld [vmem:[%s241 + $0x19c] sm:$0xf]
        %v381 = vld [vmem:[%s241 + $0x1a0] sm:$0xf]
        %v382 = vld [vmem:[%s241 + $0x1a4] sm:$0xf]
        %v383 = vld [vmem:[%s241 + $0x1a8] sm:$0xf]
        %v384 = vld [vmem:[%s241 + $0x1ac] sm:$0xf]
        %v385 = vld [vmem:[%s241 + $0x1b0] sm:$0xf]
        %v386 = vld [vmem:[%s241 + $0x1b4] sm:$0xf]
        %v387 = vld [vmem:[%s241 + $0x1b8] sm:$0xf]
        %v388 = vld [vmem:[%s241 + $0x1bc] sm:$0xf]
        %v389 = vld [vmem:[%s241 + $0x1c0] sm:$0xf]
        %v390 = vld [vmem:[%s241 + $0x1c4] sm:$0xf]
        %v391 = vld [vmem:[%s241 + $0x1c8] sm:$0xf]
        %v392 = vld [vmem:[%s241 + $0x1cc] sm:$0xf]
        %v393 = vld [vmem:[%s241 + $0x1d0] sm:$0xf]
        %v394 = vld [vmem:[%s241 + $0x1d4] sm:$0xf]
        %v395 = vld [vmem:[%s241 + $0x1d8] sm:$0xf]
        %v396 = vld [vmem:[%s241 + $0x1dc] sm:$0xf]
        %v397 = vld [vmem:[%s241 + $0x1e0] sm:$0xf]
        %v398 = vld [vmem:[%s241 + $0x1e4] sm:$0xf]
        %v399 = vld [vmem:[%s241 + $0x1e8] sm:$0xf]
        %v400 = vld [vmem:[%s241 + $0x1ec] sm:$0xf]
        %v401 = vld [vmem:[%s241 + $0x1f0] sm:$0xf]
        %v402 = vld [vmem:[%s241 + $0x1f4] sm:$0xf]
        %v403 = vld [vmem:[%s241 + $0x1f8] sm:$0xf]
        %v404 = vld [vmem:[%s241 + $0x1fc] sm:$0xf]
        %v533 = vunpack.c.l.b16 %v277
        %v534 = vunpack.c.l.b16 %v278
        %v535 = vunpack.c.l.b16 %v279
        %v536 = vunpack.c.l.b16 %v280
        %v537 = vunpack.c.l.b16 %v281
        %v538 = vunpack.c.l.b16 %v282
        %v539 = vunpack.c.l.b16 %v283
        %v540 = vunpack.c.l.b16 %v284
        %v541 = vunpack.c.l.b16 %v285
        %v542 = vunpack.c.l.b16 %v286
        %v543 = vunpack.c.l.b16 %v287
        %v544 = vunpack.c.l.b16 %v288
        %v545 = vunpack.c.l.b16 %v289
        %v546 = vunpack.c.l.b16 %v290
        %v547 = vunpack.c.l.b16 %v291
        %v548 = vunpack.c.l.b16 %v292
        %v549 = vunpack.c.l.b16 %v293
        %v550 = vunpack.c.l.b16 %v294
        %v551 = vunpack.c.l.b16 %v295
        %v552 = vunpack.c.l.b16 %v296
        %v553 = vunpack.c.l.b16 %v297
        %v554 = vunpack.c.l.b16 %v298
        %v555 = vunpack.c.l.b16 %v299
        %v556 = vunpack.c.l.b16 %v300
        %v557 = vunpack.c.l.b16 %v301
        %v558 = vunpack.c.l.b16 %v302
        %v559 = vunpack.c.l.b16 %v303
        %v560 = vunpack.c.l.b16 %v304
        %v561 = vunpack.c.l.b16 %v305
        %v562 = vunpack.c.l.b16 %v306
        %v563 = vunpack.c.l.b16 %v307
        %v564 = vunpack.c.l.b16 %v308
        %v565 = vunpack.c.l.b16 %v309
        %v566 = vunpack.c.l.b16 %v310
        %v567 = vunpack.c.l.b16 %v311
        %v568 = vunpack.c.l.b16 %v312
        %v569 = vunpack.c.l.b16 %v313
        %v570 = vunpack.c.l.b16 %v314
        %v571 = vunpack.c.l.b16 %v315
        %v572 = vunpack.c.l.b16 %v316
        %v573 = vunpack.c.l.b16 %v317
        %v574 = vunpack.c.l.b16 %v318
        %v575 = vunpack.c.l.b16 %v319
        %v576 = vunpack.c.l.b16 %v320
        %v577 = vunpack.c.l.b16 %v321
        %v578 = vunpack.c.l.b16 %v322
        %v579 = vunpack.c.l.b16 %v323
        %v580 = vunpack.c.l.b16 %v324
        %v581 = vunpack.c.l.b16 %v325
        %v582 = vunpack.c.l.b16 %v326
        %v583 = vunpack.c.l.b16 %v327
        %v584 = vunpack.c.l.b16 %v328
        %v585 = vunpack.c.l.b16 %v329
        %v586 = vunpack.c.l.b16 %v330
        %v587 = vunpack.c.l.b16 %v331
        %v588 = vunpack.c.l.b16 %v332
        %v589 = vunpack.c.l.b16 %v333
        %v590 = vunpack.c.l.b16 %v334
        %v591 = vunpack.c.l.b16 %v335
        %v592 = vunpack.c.l.b16 %v336
        %v593 = vunpack.c.l.b16 %v337
        %v594 = vunpack.c.l.b16 %v338
        %v595 = vunpack.c.l.b16 %v339
        %v596 = vunpack.c.l.b16 %v340
        %v597 = vunpack.c.l.b16 %v341
        %v598 = vunpack.c.l.b16 %v342
        %v599 = vunpack.c.l.b16 %v343
        %v600 = vunpack.c.l.b16 %v344
        %v601 = vunpack.c.l.b16 %v345
        %v602 = vunpack.c.l.b16 %v346
        %v603 = vunpack.c.l.b16 %v347
        %v604 = vunpack.c.l.b16 %v348
        %v605 = vunpack.c.l.b16 %v349
        %v606 = vunpack.c.l.b16 %v350
        %v607 = vunpack.c.l.b16 %v351
        %v608 = vunpack.c.l.b16 %v352
        %v609 = vunpack.c.l.b16 %v353
        %v610 = vunpack.c.l.b16 %v354
        %v611 = vunpack.c.l.b16 %v355
        %v612 = vunpack.c.l.b16 %v356
        %v613 = vunpack.c.l.b16 %v357
        %v614 = vunpack.c.l.b16 %v358
        %v615 = vunpack.c.l.b16 %v359
        %v616 = vunpack.c.l.b16 %v360
        %v617 = vunpack.c.l.b16 %v361
        %v618 = vunpack.c.l.b16 %v362
        %v619 = vunpack.c.l.b16 %v363
        %v620 = vunpack.c.l.b16 %v364
        %v621 = vunpack.c.l.b16 %v365
        %v622 = vunpack.c.l.b16 %v366
        %v623 = vunpack.c.l.b16 %v367
        %v624 = vunpack.c.l.b16 %v368
        %v625 = vunpack.c.l.b16 %v369
        %v626 = vunpack.c.l.b16 %v370
        %v627 = vunpack.c.l.b16 %v371
        %v628 = vunpack.c.l.b16 %v372
        %v629 = vunpack.c.l.b16 %v373
        %v630 = vunpack.c.l.b16 %v374
        %v631 = vunpack.c.l.b16 %v375
        %v632 = vunpack.c.l.b16 %v376
        %v633 = vunpack.c.l.b16 %v377
        %v634 = vunpack.c.l.b16 %v378
        %v635 = vunpack.c.l.b16 %v379
        %v636 = vunpack.c.l.b16 %v380
        %v637 = vunpack.c.l.b16 %v381
        %v638 = vunpack.c.l.b16 %v382
        %v639 = vunpack.c.l.b16 %v383
        %v640 = vunpack.c.l.b16 %v384
        %v641 = vunpack.c.l.b16 %v385
        %v642 = vunpack.c.l.b16 %v386
        %v643 = vunpack.c.l.b16 %v387
        %v644 = vunpack.c.l.b16 %v388
        %v645 = vunpack.c.l.b16 %v389
        %v646 = vunpack.c.l.b16 %v390
        %v647 = vunpack.c.l.b16 %v391
        %v648 = vunpack.c.l.b16 %v392
        %v649 = vunpack.c.l.b16 %v393
        %v650 = vunpack.c.l.b16 %v394
        %v651 = vunpack.c.l.b16 %v395
        %v652 = vunpack.c.l.b16 %v396
        %v653 = vunpack.c.l.b16 %v397
        %v654 = vunpack.c.l.b16 %v398
        %v655 = vunpack.c.l.b16 %v399
        %v656 = vunpack.c.l.b16 %v400
        %v657 = vunpack.c.l.b16 %v401
        %v658 = vunpack.c.l.b16 %v402
        %v659 = vunpack.c.l.b16 %v403
        %v660 = vunpack.c.l.b16 %v404
        %v661 = vpack.c.b16 %v534, %v533
        %v662 = vpack.c.b16 %v536, %v535
        %v663 = vpack.c.b16 %v538, %v537
        %v664 = vpack.c.b16 %v540, %v539
        %v665 = vpack.c.b16 %v542, %v541
        %v666 = vpack.c.b16 %v544, %v543
        %v667 = vpack.c.b16 %v546, %v545
        %v668 = vpack.c.b16 %v548, %v547
        %v669 = vpack.c.b16 %v550, %v549
        %v670 = vpack.c.b16 %v552, %v551
        %v671 = vpack.c.b16 %v554, %v553
        %v672 = vpack.c.b16 %v556, %v555
        %v673 = vpack.c.b16 %v558, %v557
        %v674 = vpack.c.b16 %v560, %v559
        %v675 = vpack.c.b16 %v562, %v561
        %v676 = vpack.c.b16 %v564, %v563
        %v677 = vpack.c.b16 %v566, %v565
        %v678 = vpack.c.b16 %v568, %v567
        %v679 = vpack.c.b16 %v570, %v569
        %v680 = vpack.c.b16 %v572, %v571
        %v681 = vpack.c.b16 %v574, %v573
        %v682 = vpack.c.b16 %v576, %v575
        %v683 = vpack.c.b16 %v578, %v577
        %v684 = vpack.c.b16 %v580, %v579
        %v685 = vpack.c.b16 %v582, %v581
        %v686 = vpack.c.b16 %v584, %v583
        %v687 = vpack.c.b16 %v586, %v585
        %v688 = vpack.c.b16 %v588, %v587
        %v689 = vpack.c.b16 %v590, %v589
        %v690 = vpack.c.b16 %v592, %v591
        %v691 = vpack.c.b16 %v594, %v593
        %v692 = vpack.c.b16 %v596, %v595
        %v693 = vpack.c.b16 %v598, %v597
        %v694 = vpack.c.b16 %v600, %v599
        %v695 = vpack.c.b16 %v602, %v601
        %v696 = vpack.c.b16 %v604, %v603
        %v697 = vpack.c.b16 %v606, %v605
        %v698 = vpack.c.b16 %v608, %v607
        %v699 = vpack.c.b16 %v610, %v609
        %v700 = vpack.c.b16 %v612, %v611
        %v701 = vpack.c.b16 %v614, %v613
        %v702 = vpack.c.b16 %v616, %v615
        %v703 = vpack.c.b16 %v618, %v617
        %v704 = vpack.c.b16 %v620, %v619
        %v705 = vpack.c.b16 %v622, %v621
        %v706 = vpack.c.b16 %v624, %v623
        %v707 = vpack.c.b16 %v626, %v625
        %v708 = vpack.c.b16 %v628, %v627
        %v709 = vpack.c.b16 %v630, %v629
        %v710 = vpack.c.b16 %v632, %v631
        %v711 = vpack.c.b16 %v634, %v633
        %v712 = vpack.c.b16 %v636, %v635
        %v713 = vpack.c.b16 %v638, %v637
        %v714 = vpack.c.b16 %v640, %v639
        %v715 = vpack.c.b16 %v642, %v641
        %v716 = vpack.c.b16 %v644, %v643
        %v717 = vpack.c.b16 %v646, %v645
        %v718 = vpack.c.b16 %v648, %v647
        %v719 = vpack.c.b16 %v650, %v649
        %v720 = vpack.c.b16 %v652, %v651
        %v721 = vpack.c.b16 %v654, %v653
        %v722 = vpack.c.b16 %v656, %v655
        %v723 = vpack.c.b16 %v658, %v657
        %v724 = vpack.c.b16 %v660, %v659
        %789 = vmatprep.subr.bf16.mxu0 0
        %790 = vmatpush1.bf16.msra.mxu0 %v661
        %791 = vmatprep.subr.bf16.mxu0 0
        %792 = vmatpush1.bf16.msra.mxu0 %v662
        %793 = vmatprep.subr.bf16.mxu0 0
        %794 = vmatpush1.bf16.msra.mxu0 %v663
        %795 = vmatprep.subr.bf16.mxu0 0
        %796 = vmatpush1.bf16.msra.mxu0 %v664
        %797 = vmatprep.subr.bf16.mxu0 0
        %798 = vmatpush1.bf16.msra.mxu0 %v665
        %799 = vmatprep.subr.bf16.mxu0 0
        %800 = vmatpush1.bf16.msra.mxu0 %v666
        %801 = vmatprep.subr.bf16.mxu0 0
        %802 = vmatpush1.bf16.msra.mxu0 %v667
        %803 = vmatprep.subr.bf16.mxu0 0
        %804 = vmatpush1.bf16.msra.mxu0 %v668
        %805 = vmatprep.subr.bf16.mxu0 0
        %806 = vmatpush1.bf16.msra.mxu0 %v669
        %807 = vmatprep.subr.bf16.mxu0 0
        %808 = vmatpush1.bf16.msra.mxu0 %v670
        %809 = vmatprep.subr.bf16.mxu0 0
        %810 = vmatpush1.bf16.msra.mxu0 %v671
        %811 = vmatprep.subr.bf16.mxu0 0
        %812 = vmatpush1.bf16.msra.mxu0 %v672
        %813 = vmatprep.subr.bf16.mxu0 0
        %814 = vmatpush1.bf16.msra.mxu0 %v673
        %815 = vmatprep.subr.bf16.mxu0 0
        %816 = vmatpush1.bf16.msra.mxu0 %v674
        %817 = vmatprep.subr.bf16.mxu0 0
        %818 = vmatpush1.bf16.msra.mxu0 %v675
        %819 = vmatprep.subr.bf16.mxu0 0
        %820 = vmatpush1.bf16.msra.mxu0 %v676
        %821 = vmatprep.mubr.bf16.mxu0 %v270
        %822 = vmatmul.mubr.bf16.gmra.mrb[0].mxu0 %v269
        %v823 = vpop.f32.mrb[0].mxu0
        %v824 = vadd.f32 0.0, %v823
        %v825 = vpop.f32.mrb[0].mxu0
        %v826 = vpop.f32.mrb[0].mxu0
        %v827 = vpop.f32.mrb[0].mxu0
        %828 = vdwg.mxu0
        %829 = vmatprep.subr.bf16.mxu0 0
        %830 = vmatpush1.bf16.msra.mxu0 %v677
        %831 = vmatprep.subr.bf16.mxu0 0
        %832 = vmatpush1.bf16.msra.mxu0 %v678
        %833 = vmatprep.subr.bf16.mxu0 0
        %834 = vmatpush1.bf16.msra.mxu0 %v679
        %835 = vmatprep.subr.bf16.mxu0 0
        %836 = vmatpush1.bf16.msra.mxu0 %v680
        %837 = vmatprep.subr.bf16.mxu0 0
        %838 = vmatpush1.bf16.msra.mxu0 %v681
        %839 = vmatprep.subr.bf16.mxu0 0
        %840 = vmatpush1.bf16.msra.mxu0 %v682
        %841 = vmatprep.subr.bf16.mxu0 0
        %842 = vmatpush1.bf16.msra.mxu0 %v683
        %843 = vmatprep.subr.bf16.mxu0 0
        %844 = vmatpush1.bf16.msra.mxu0 %v684
        %845 = vmatprep.subr.bf16.mxu0 0
        %846 = vmatpush1.bf16.msra.mxu0 %v685
        %847 = vmatprep.subr.bf16.mxu0 0
        %848 = vmatpush1.bf16.msra.mxu0 %v686
        %849 = vmatprep.subr.bf16.mxu0 0
        %850 = vmatpush1.bf16.msra.mxu0 %v687
        %851 = vmatprep.subr.bf16.mxu0 0
        %852 = vmatpush1.bf16.msra.mxu0 %v688
        %853 = vmatprep.subr.bf16.mxu0 0
        %854 = vmatpush1.bf16.msra.mxu0 %v689
        %855 = vmatprep.subr.bf16.mxu0 0
        %856 = vmatpush1.bf16.msra.mxu0 %v690
        %857 = vmatprep.subr.bf16.mxu0 0
        %858 = vmatpush1.bf16.msra.mxu0 %v691
        %859 = vmatprep.subr.bf16.mxu0 0
        %860 = vmatpush1.bf16.msra.mxu0 %v692
        %861 = vmatprep.mubr.bf16.mxu0 %v272
        %862 = vmatmul.mubr.bf16.gmra.mrb[0].mxu0 %v271
        %v863 = vpop.f32.mrb[0].mxu0
        %v864 = vadd.f32 %v824, %v863
        %v865 = vpop.f32.mrb[0].mxu0
        %v866 = vpop.f32.mrb[0].mxu0
        %v867 = vpop.f32.mrb[0].mxu0
        %868 = vdwg.mxu0
        %869 = vmatprep.subr.bf16.mxu0 0
        %870 = vmatpush1.bf16.msra.mxu0 %v693
        %871 = vmatprep.subr.bf16.mxu0 0
        %872 = vmatpush1.bf16.msra.mxu0 %v694
        %873 = vmatprep.subr.bf16.mxu0 0
        %874 = vmatpush1.bf16.msra.mxu0 %v695
        %875 = vmatprep.subr.bf16.mxu0 0
        %876 = vmatpush1.bf16.msra.mxu0 %v696
        %877 = vmatprep.subr.bf16.mxu0 0
        %878 = vmatpush1.bf16.msra.mxu0 %v697
        %879 = vmatprep.subr.bf16.mxu0 0
        %880 = vmatpush1.bf16.msra.mxu0 %v698
        %881 = vmatprep.subr.bf16.mxu0 0
        %882 = vmatpush1.bf16.msra.mxu0 %v699
        %883 = vmatprep.subr.bf16.mxu0 0
        %884 = vmatpush1.bf16.msra.mxu0 %v700
        %885 = vmatprep.subr.bf16.mxu0 0
        %886 = vmatpush1.bf16.msra.mxu0 %v701
        %887 = vmatprep.subr.bf16.mxu0 0
        %888 = vmatpush1.bf16.msra.mxu0 %v702
        %889 = vmatprep.subr.bf16.mxu0 0
        %890 = vmatpush1.bf16.msra.mxu0 %v703
        %891 = vmatprep.subr.bf16.mxu0 0
        %892 = vmatpush1.bf16.msra.mxu0 %v704
        %893 = vmatprep.subr.bf16.mxu0 0
        %894 = vmatpush1.bf16.msra.mxu0 %v705
        %895 = vmatprep.subr.bf16.mxu0 0
        %896 = vmatpush1.bf16.msra.mxu0 %v706
        %897 = vmatprep.subr.bf16.mxu0 0
        %898 = vmatpush1.bf16.msra.mxu0 %v707
        %899 = vmatprep.subr.bf16.mxu0 0
        %900 = vmatpush1.bf16.msra.mxu0 %v708
        %901 = vmatprep.mubr.bf16.mxu0 %v274
        %902 = vmatmul.mubr.bf16.gmra.mrb[0].mxu0 %v273
        %v903 = vpop.f32.mrb[0].mxu0
        %v904 = vadd.f32 %v864, %v903
        %v905 = vpop.f32.mrb[0].mxu0
        %v906 = vpop.f32.mrb[0].mxu0
        %v907 = vpop.f32.mrb[0].mxu0
        %908 = vdwg.mxu0
        %909 = vmatprep.subr.bf16.mxu0 0
        %910 = vmatpush1.bf16.msra.mxu0 %v709
        %911 = vmatprep.subr.bf16.mxu0 0
        %912 = vmatpush1.bf16.msra.mxu0 %v710
        %913 = vmatprep.subr.bf16.mxu0 0
        %914 = vmatpush1.bf16.msra.mxu0 %v711
        %915 = vmatprep.subr.bf16.mxu0 0
        %916 = vmatpush1.bf16.msra.mxu0 %v712
        %917 = vmatprep.subr.bf16.mxu0 0
        %918 = vmatpush1.bf16.msra.mxu0 %v713
        %919 = vmatprep.subr.bf16.mxu0 0
        %920 = vmatpush1.bf16.msra.mxu0 %v714
        %921 = vmatprep.subr.bf16.mxu0 0
        %922 = vmatpush1.bf16.msra.mxu0 %v715
        %923 = vmatprep.subr.bf16.mxu0 0
        %924 = vmatpush1.bf16.msra.mxu0 %v716
        %925 = vmatprep.subr.bf16.mxu0 0
        %926 = vmatpush1.bf16.msra.mxu0 %v717
        %927 = vmatprep.subr.bf16.mxu0 0
        %928 = vmatpush1.bf16.msra.mxu0 %v718
        %929 = vmatprep.subr.bf16.mxu0 0
        %930 = vmatpush1.bf16.msra.mxu0 %v719
        %931 = vmatprep.subr.bf16.mxu0 0
        %932 = vmatpush1.bf16.msra.mxu0 %v720
        %933 = vmatprep.subr.bf16.mxu0 0
        %934 = vmatpush1.bf16.msra.mxu0 %v721
        %935 = vmatprep.subr.bf16.mxu0 0
        %936 = vmatpush1.bf16.msra.mxu0 %v722
        %937 = vmatprep.subr.bf16.mxu0 0
        %938 = vmatpush1.bf16.msra.mxu0 %v723
        %939 = vmatprep.subr.bf16.mxu0 0
        %940 = vmatpush1.bf16.msra.mxu0 %v724
        %941 = vmatprep.mubr.bf16.mxu0 %v276
        %942 = vmatmul.mubr.bf16.gmra.mrb[0].mxu0 %v275
        %v943 = vpop.f32.mrb[0].mxu0
        %v944 = vadd.f32 %v904, %v943
        %v945 = vpop.f32.mrb[0].mxu0
        %v946 = vpop.f32.mrb[0].mxu0
        %v947 = vpop.f32.mrb[0].mxu0
        %948 = vdwg.mxu0
        %v949 = vadd.f32 %v252, %v944
        %950 = vst [vmem:[#allocation2] sm:$0xf] %v949
        %p951 = scmp.eq.s32.totalorder %s22, 1
        // Predicated region
        $region37: #{vae_forward.5} parent=31 // pred_check
          %p952 = pneg %p951
        $region38: #{vae_forward.5} parent=31 // pred_check_branch
          %954 = sbr.rel (%p952) target = $region40
        $region39: #{vae_forward.5} parent=31 // pred_region
          %v955 = vld [vmem:[#allocation2] sm:$0xf]
          %v956 = vld [vmem:[%s245] sm:$0x1]
          %v958 = vlaneseq
          %v959 = vshrl.u32 %v958, 7
          %v960 = vsub.s32 0, %v959
          %v961 = vrot.slane %v956, %v960
          %v963 = vadd.f32 %v955, %v961
          %964 = vst [vmem:[#allocation3] sm:$0xf] %v963
        $region40: #{vae_forward.5} parent=31 // pred_fallthru
          _
        // Predicated region
        $region41: #{vae_forward.5} parent=31 // pred_check
          %p965 = pneg %p136
        $region42: #{vae_forward.5} parent=31 // pred_check_branch
          %967 = sbr.rel (%p965) target = $region44
        $region43: #{vae_forward.5} parent=31 // pred_region
          %s969 = ssub.s32 64, 64
          %970 = vsyncadd [#allocation4], %s969
          %s971 = sadd.s32 %s21, %s20
          %s972 = smul.addr %s971, 64
          %s973 = scalar_lea.hbm %s3, %s972
          %s975 = sshll.u32 [#allocation3], 4
          %s976 = int_to_ptr.vmem [resolvable:$true] %s975
          %978 = dma.vmem_to_hbm [thread:$0]  %s976, 64, %s973, [#allocation4]
        $region44: #{vae_forward.5} parent=31 // pred_fallthru
          _
        // Predicated region
        $region45: #{vae_forward.5} parent=31 // pred_check
          %p979 = pneg %p136
        $region46: #{vae_forward.5} parent=31 // pred_check_branch
          %981 = sbr.rel (%p979) target = $region48
        $region47: #{vae_forward.5} parent=31 // pred_region
          %982 = dma.done [#allocation4], 64
        $region48: #{vae_forward.5} parent=31 // pred_fallthru
          _
      $region32: #{vae_forward.5} parent=5 // pred_fallthru
        _
      %p983 = scmp.le.s32.totalorder 2, %s10
      // Predicated region
      $region49: #{vae_forward.5} parent=5 // pred_check
        %p984 = pneg %p983
      $region50: #{vae_forward.5} parent=5 // pred_check_branch
        %986 = sbr.rel (%p984) target = $region52
      $region51: #{vae_forward.5} parent=5 // pred_region
        %s987 = ssub.s32 %s10, 2
      $region52: #{vae_forward.5} parent=5 // pred_fallthru
        _
    $region6: #{vae_forward.5} parent=1 // loop_footer
      %s14 = sadd.s32 1, %s10
    $region7: #{vae_forward.5} parent=1 // loop_footer_branch
      %9 = sbr.rel target = $region3
    $region8: #{vae_forward.5} parent=1 // loop_exit
      _
    %988 = vsyncpa [#allocation4], 1
    %s989 = scalar_lea.sflag [#allocation4], 1
    %990 = vsyncpa %s989, 1

// kernel: vae_forward.4
$region0: #{vae_forward.4}
  #allocation0 [shape = 'u32[]', space=smem, size = 0x4, offset = 0x4, fixed_abs, tag = 'smem constant byte address 0x4 - core index']
  #allocation1 [shape = 'u32[144,128]{1,0:T(1,128)}', space=vmem, size = 0x12000, scoped, tag = 'internal scratch']
  #allocation2 [shape = 'f32[4,1024]{1,0:T(4,128)}', space=vmem, size = 0x4000, scoped, tag = 'scratch operand']
  #allocation3 [shape = 'f32[4,1024]{1,0:T(4,128)}', space=vmem, size = 0x4000, scoped, tag = 'scratch operand']
  %s0 = inlined_call_operand.vmem [shape: f32[4,2048], index: 0, kind: input, shape index: {}]
  %s1 = inlined_call_operand.hbm [shape: bf16[2048,2048], index: 1, kind: input, shape index: {}]
  %s2 = inlined_call_operand.hbm [shape: f32[1,2048], index: 2, kind: input, shape index: {}]
  %s3 = inlined_call_operand.hbm [shape: bf16[2048,2048], index: 3, kind: input, shape index: {}]
  %s4 = inlined_call_operand.hbm [shape: f32[1,2048], index: 4, kind: input, shape index: {}]
  %s5 = inlined_call_operand.hbm [shape: f32[1,2048], index: 5, kind: input, shape index: {}]
  %s6 = inlined_call_operand.vmem [shape: f32[4,2048], index: 6, kind: output, shape index: {0}]
  %s7 = inlined_call_operand.hbm [shape: f32[4,2048], index: 7, kind: output, shape index: {1}]
  %8 = xla_tuple %s6, %s7
  %s9 = sld [smem:[#allocation0]]
  $region93: #{vae_forward.4} parent=0
    _
  %s11 = ssub.s32 1, %s9
  %s12 = scalar_select 0, %s11, %s9
  $region1: #{vae_forward.4} parent=0
    #allocation4 [shape = 'u8[4194304]{0}', space=vmem, size = 0x400000, scoped, tag = 'input window, operand 1']
    #allocation5 [shape = 's32[2]{0}', space=sflag, size = 0x8, scoped, tag = 'scoped memory for vae_forward.4']
    #allocation6 [shape = 's32[2]{0}', space=sflag, size = 0x8, scoped, tag = 'scoped memory for vae_forward.4']
    #allocation7 [shape = 'u8[8192]{0}', space=vmem, size = 0x2000, scoped, tag = 'input window, operand 2']
    #allocation8 [shape = 's32[2]{0}', space=sflag, size = 0x8, scoped, tag = 'scoped memory for vae_forward.4']
    #allocation9 [shape = 'u8[4194304]{0}', space=vmem, size = 0x400000, scoped, tag = 'input window, operand 3']
    #allocation10 [shape = 'u8[8192]{0}', space=vmem, size = 0x2000, scoped, tag = 'input window, operand 4']
    #allocation11 [shape = 's32[2]{0}', space=sflag, size = 0x8, scoped, tag = 'scoped memory for vae_forward.4']
    #allocation12 [shape = 'u8[8192]{0}', space=vmem, size = 0x2000, scoped, tag = 'input window, operand 5']
    #allocation13 [shape = 'u8[32768]{0}', space=vmem, size = 0x8000, scoped, tag = 'output window, operand 1']
    %13 = vsyncpa [#allocation5], 0
    %s14 = scalar_lea.sflag [#allocation5], 1
    %15 = vsyncpa %s14, 0
    %16 = vsyncpa [#allocation8], 0
    %s17 = scalar_lea.sflag [#allocation8], 1
    %18 = vsyncpa %s17, 0
    %19 = vsyncpa [#allocation11], 0
    %s20 = scalar_lea.sflag [#allocation11], 1
    %21 = vsyncpa %s20, 0
    %22 = vsyncpa [#allocation6], 0
    %s23 = scalar_lea.sflag [#allocation6], 1
    %24 = vsyncpa %s23, 0
    loop: start=0, step=1, limit=6
    $region2: #{vae_forward.4} parent=1 // loop_pre_header
      _
    $region3: #{vae_forward.4} parent=1 // loop_header
      %s26 = sphi 0, %s30
      %p27 = scmp.ge.s32.totalorder %s26, 6
      %s33 = sphi 0, %s52
      %s34 = sphi 0, %s48
      %s35 = sphi 0, %s44
      %s36 = sphi 0, %s33
      %s37 = sphi 0, %s34
      %s38 = sphi 0, %s35
      %s39 = sphi 0, %s36
      %s40 = sphi 0, %s37
      %s41 = sphi 0, %s38
      %s57 = sphi 0, %s59
      %s60 = sphi 0, %s57
      %s61 = sphi 0, %s60
      %s77 = sphi 0, %s61
      %s85 = sphi 0, %s87
      %s88 = sphi 0, %s85
      %s89 = sphi 0, %s88
      %s105 = sphi 0, %s89
      %s111 = sphi 0, %s113
      %s114 = sphi 0, %s111
      %s115 = sphi 0, %s114
      %s131 = sphi 0, %s115
      %s139 = sphi 0, %s141
      %s142 = sphi 0, %s139
      %s143 = sphi 0, %s142
      %s159 = sphi 0, %s143
      %s165 = sphi 0, %s167
      %s168 = sphi 0, %s165
      %s169 = sphi 0, %s168
      %s185 = sphi 0, %s169
      %s191 = sphi 0, %s193
      %s194 = sphi 0, %s191
      %s195 = sphi 0, %s194
      %s211 = sphi 0, %s195
      %s219 = sphi 0, %s221
      %s222 = sphi 0, %s219
      %s223 = sphi 0, %s222
      %s239 = sphi 0, %s223
      %s247 = sphi 0, %s249
      %s250 = sphi 0, %s247
      %s251 = sphi 0, %s250
      %s267 = sphi 0, %s251
    $region4: #{vae_forward.4} parent=1 // loop_header_branch
      %29 = sbr.rel (%p27) target = $region8
    $region5: #{vae_forward.4} parent=1 // loop_body
      %s31 = ssub.s32 %s26, 1
      %s32 = ssub.s32 %s26, 2
      %s42 = sadd.s32 1, %s35
      %p43 = scmp.ge.s32.totalorder %s42, 2
      %s44 = scalar_select %p43, 0, %s42
      %s45 = sadd.s32 1, %s34
      %s46 = scalar_select %p43, %s45, %s34
      %p47 = scmp.ge.s32.totalorder %s46, 2
      %s48 = scalar_select %p47, 0, %s46
      %s49 = sadd.s32 1, %s33
      %s50 = scalar_select %p47, %s49, %s33
      %p51 = scmp.ge.s32.totalorder %s50, 1
      %s52 = scalar_select %p51, 0, %s50
      %s53 = ssub.s32 %s33, %s52
      %s54 = ssub.s32 %s35, %s44
      %s55 = sor.u32 %s53, %s54
      %p56 = scmp.eq.s32.totalorder %s55, 0
      %s58 = sadd.s32 %s57, 1
      %s59 = scalar_select %p56, %s57, %s58
      %p62 = pneg %p56
      %p63 = scmp.eq.s32.totalorder %s26, 3
      %p64 = por %p62, %p63
      %p65 = scmp.ne.s32.totalorder %s57, %s60
      %p66 = scmp.eq.s32.totalorder %s26, 0
      %p67 = por %p65, %p66
      %p68 = scmp.ne.s32.totalorder %s57, %s60
      %p69 = scmp.eq.s32.totalorder %s31, 3
      %p70 = por %p68, %p69
      %p71 = scmp.ne.s32.totalorder %s60, %s61
      %p72 = scmp.eq.s32.totalorder %s31, 0
      %p73 = por %p71, %p72
      %p74 = scmp.ne.s32.totalorder %s60, %s61
      %p75 = scmp.eq.s32.totalorder %s32, 3
      %p76 = por %p74, %p75
      %p78 = scmp.ne.s32.totalorder %s61, %s77
      %p79 = scmp.eq.s32.totalorder %s32, 0
      %p80 = por %p78, %p79
      %s81 = ssub.s32 %s35, %s44
      %s82 = ssub.s32 %s34, %s48
      %s83 = sor.u32 %s81, %s82
      %p84 = scmp.eq.s32.totalorder %s83, 0
      %s86 = sadd.s32 %s85, 1
      %s87 = scalar_select %p84, %s85, %s86
      %p90 = pneg %p84
      %p91 = scmp.eq.s32.totalorder %s26, 3
      %p92 = por %p90, %p91
      %p93 = scmp.ne.s32.totalorder %s85, %s88
      %p94 = scmp.eq.s32.totalorder %s26, 0
      %p95 = por %p93, %p94
      %p96 = scmp.ne.s32.totalorder %s85, %s88
      %p97 = scmp.eq.s32.totalorder %s31, 3
      %p98 = por %p96, %p97
      %p99 = scmp.ne.s32.totalorder %s88, %s89
      %p100 = scmp.eq.s32.totalorder %s31, 0
      %p101 = por %p99, %p100
      %p102 = scmp.ne.s32.totalorder %s88, %s89
      %p103 = scmp.eq.s32.totalorder %s32, 3
      %p104 = por %p102, %p103
      %p106 = scmp.ne.s32.totalorder %s89, %s105
      %p107 = scmp.eq.s32.totalorder %s32, 0
      %p108 = por %p106, %p107
      %s109 = ssub.s32 %s34, %s48
      %p110 = scmp.eq.s32.totalorder %s109, 0
      %s112 = sadd.s32 %s111, 1
      %s113 = scalar_select %p110, %s111, %s112
      %p116 = pneg %p110
      %p117 = scmp.eq.s32.totalorder %s26, 3
      %p118 = por %p116, %p117
      %p119 = scmp.ne.s32.totalorder %s111, %s114
      %p120 = scmp.eq.s32.totalorder %s26, 0
      %p121 = por %p119, %p120
      %p122 = scmp.ne.s32.totalorder %s111, %s114
      %p123 = scmp.eq.s32.totalorder %s31, 3
      %p124 = por %p122, %p123
      %p125 = scmp.ne.s32.totalorder %s114, %s115
      %p126 = scmp.eq.s32.totalorder %s31, 0
      %p127 = por %p125, %p126
      %p128 = scmp.ne.s32.totalorder %s114, %s115
      %p129 = scmp.eq.s32.totalorder %s32, 3
      %p130 = por %p128, %p129
      %p132 = scmp.ne.s32.totalorder %s115, %s131
      %p133 = scmp.eq.s32.totalorder %s32, 0
      %p134 = por %p132, %p133
      %s135 = ssub.s32 %s35, %s44
      %s136 = ssub.s32 %s34, %s48
      %s137 = sor.u32 %s135, %s136
      %p138 = scmp.eq.s32.totalorder %s137, 0
      %s140 = sadd.s32 %s139, 1
      %s141 = scalar_select %p138, %s139, %s140
      %p144 = pneg %p138
      %p145 = scmp.eq.s32.totalorder %s26, 3
      %p146 = por %p144, %p145
      %p147 = scmp.ne.s32.totalorder %s139, %s142
      %p148 = scmp.eq.s32.totalorder %s26, 0
      %p149 = por %p147, %p148
      %p150 = scmp.ne.s32.totalorder %s139, %s142
      %p151 = scmp.eq.s32.totalorder %s31, 3
      %p152 = por %p150, %p151
      %p153 = scmp.ne.s32.totalorder %s142, %s143
      %p154 = scmp.eq.s32.totalorder %s31, 0
      %p155 = por %p153, %p154
      %p156 = scmp.ne.s32.totalorder %s142, %s143
      %p157 = scmp.eq.s32.totalorder %s32, 3
      %p158 = por %p156, %p157
      %p160 = scmp.ne.s32.totalorder %s143, %s159
      %p161 = scmp.eq.s32.totalorder %s32, 0
      %p162 = por %p160, %p161
      %s163 = ssub.s32 %s34, %s48
      %p164 = scmp.eq.s32.totalorder %s163, 0
      %s166 = sadd.s32 %s165, 1
      %s167 = scalar_select %p164, %s165, %s166
      %p170 = pneg %p164
      %p171 = scmp.eq.s32.totalorder %s26, 3
      %p172 = por %p170, %p171
      %p173 = scmp.ne.s32.totalorder %s165, %s168
      %p174 = scmp.eq.s32.totalorder %s26, 0
      %p175 = por %p173, %p174
      %p176 = scmp.ne.s32.totalorder %s165, %s168
      %p177 = scmp.eq.s32.totalorder %s31, 3
      %p178 = por %p176, %p177
      %p179 = scmp.ne.s32.totalorder %s168, %s169
      %p180 = scmp.eq.s32.totalorder %s31, 0
      %p181 = por %p179, %p180
      %p182 = scmp.ne.s32.totalorder %s168, %s169
      %p183 = scmp.eq.s32.totalorder %s32, 3
      %p184 = por %p182, %p183
      %p186 = scmp.ne.s32.totalorder %s169, %s185
      %p187 = scmp.eq.s32.totalorder %s32, 0
      %p188 = por %p186, %p187
      %s189 = ssub.s32 %s34, %s48
      %p190 = scmp.eq.s32.totalorder %s189, 0
      %s192 = sadd.s32 %s191, 1
      %s193 = scalar_select %p190, %s191, %s192
      %p196 = pneg %p190
      %p197 = scmp.eq.s32.totalorder %s26, 3
      %p198 = por %p196, %p197
      %p199 = scmp.ne.s32.totalorder %s191, %s194
      %p200 = scmp.eq.s32.totalorder %s26, 0
      %p201 = por %p199, %p200
      %p202 = scmp.ne.s32.totalorder %s191, %s194
      %p203 = scmp.eq.s32.totalorder %s31, 3
      %p204 = por %p202, %p203
      %p205 = scmp.ne.s32.totalorder %s194, %s195
      %p206 = scmp.eq.s32.totalorder %s31, 0
      %p207 = por %p205, %p206
      %p208 = scmp.ne.s32.totalorder %s194, %s195
      %p209 = scmp.eq.s32.totalorder %s32, 3
      %p210 = por %p208, %p209
      %p212 = scmp.ne.s32.totalorder %s195, %s211
      %p213 = scmp.eq.s32.totalorder %s32, 0
      %p214 = por %p212, %p213
      %s215 = ssub.s32 %s33, %s52
      %s216 = ssub.s32 %s34, %s48
      %s217 = sor.u32 %s215, %s216
      %p218 = scmp.eq.s32.totalorder %s217, 0
      %s220 = sadd.s32 %s219, 1
      %s221 = scalar_select %p218, %s219, %s220
      %p224 = pneg %p218
      %p225 = scmp.eq.s32.totalorder %s26, 3
      %p226 = por %p224, %p225
      %p227 = scmp.ne.s32.totalorder %s219, %s222
      %p228 = scmp.eq.s32.totalorder %s26, 0
      %p229 = por %p227, %p228
      %p230 = scmp.ne.s32.totalorder %s219, %s222
      %p231 = scmp.eq.s32.totalorder %s31, 3
      %p232 = por %p230, %p231
      %p233 = scmp.ne.s32.totalorder %s222, %s223
      %p234 = scmp.eq.s32.totalorder %s31, 0
      %p235 = por %p233, %p234
      %p236 = scmp.ne.s32.totalorder %s222, %s223
      %p237 = scmp.eq.s32.totalorder %s32, 3
      %p238 = por %p236, %p237
      %p240 = scmp.ne.s32.totalorder %s223, %s239
      %p241 = scmp.eq.s32.totalorder %s32, 0
      %p242 = por %p240, %p241
      %s243 = ssub.s32 %s33, %s52
      %s244 = ssub.s32 %s34, %s48
      %s245 = sor.u32 %s243, %s244
      %p246 = scmp.eq.s32.totalorder %s245, 0
      %s248 = sadd.s32 %s247, 1
      %s249 = scalar_select %p246, %s247, %s248
      %p252 = pneg %p246
      %p253 = scmp.eq.s32.totalorder %s26, 3
      %p254 = por %p252, %p253
      %p255 = scmp.ne.s32.totalorder %s247, %s250
      %p256 = scmp.eq.s32.totalorder %s26, 0
      %p257 = por %p255, %p256
      %p258 = scmp.ne.s32.totalorder %s247, %s250
      %p259 = scmp.eq.s32.totalorder %s31, 3
      %p260 = por %p258, %p259
      %p261 = scmp.ne.s32.totalorder %s250, %s251
      %p262 = scmp.eq.s32.totalorder %s31, 0
      %p263 = por %p261, %p262
      %p264 = scmp.ne.s32.totalorder %s250, %s251
      %p265 = scmp.eq.s32.totalorder %s32, 3
      %p266 = por %p264, %p265
      %p268 = scmp.ne.s32.totalorder %s251, %s267
      %p269 = scmp.eq.s32.totalorder %s32, 0
      %p270 = por %p268, %p269
      %p271 = scmp.le.s32.totalorder 1, %s26
      %p272 = scmp.lt.s32.totalorder %s26, 5
      %p273 = pnand %p271, %p272
      %p274 = pneg %p273
      // Predicated region
      $region9: #{vae_forward.4} parent=5 // pred_check
        _
      $region10: #{vae_forward.4} parent=5 // pred_check_branch
        %276 = sbr.rel (%p273) target = $region12
      $region11: #{vae_forward.4} parent=5 // pred_region
        %s277 = ssub.s32 %s26, 1
      $region12: #{vae_forward.4} parent=5 // pred_fallthru
        _
      %p278 = scmp.lt.s32.totalorder %s26, 4
      // Predicated region
      $region13: #{vae_forward.4} parent=5 // pred_check
        %p279 = pneg %p278
      $region14: #{vae_forward.4} parent=5 // pred_check_branch
        %281 = sbr.rel (%p279) target = $region16
      $region15: #{vae_forward.4} parent=5 // pred_region
        // Predicated region
        $region17: #{vae_forward.4} parent=15 // pred_check
          %p282 = pneg %p67
        $region18: #{vae_forward.4} parent=15 // pred_check_branch
          %284 = sbr.rel (%p282) target = $region20
        $region19: #{vae_forward.4} parent=15 // pred_region
          %s285 = smul.u32 8, %s35
          %p286 = scmp.lt.s32.totalorder %s33, 0
          %s287 = scalar_select %p286, %s33, 0
          %p288 = scmp.lt.s32.totalorder %s285, 15
          %s289 = scalar_select %p288, %s285, 15
          %s290 = smul.addr %s287, 16
          %s291 = sadd.s32 %s289, %s290
          %s292 = smul.addr %s291, 4
          %s293 = scalar_lea.vmem %s0, %s292
          %s294 = smul.u32 8, %s35
        $region20: #{vae_forward.4} parent=15 // pred_fallthru
          _
        // Predicated region
        $region21: #{vae_forward.4} parent=15 // pred_check
          %p295 = pneg %p95
        $region22: #{vae_forward.4} parent=15 // pred_check_branch
          %297 = sbr.rel (%p295) target = $region24
        $region23: #{vae_forward.4} parent=15 // pred_region
          %s298 = sand.u32 %s85, 1
          %s299 = scalar_lea.sflag [#allocation5], %s298
          %s300 = sand.u32 %s85, 1
          %s301 = smul.addr %s300, 4096
          %s302 = scalar_lea.vmem [#allocation4], %s301
          %s303 = smul.u32 128, %s35
          %s304 = smul.u32 8, %s34
          %s306 = ssub.s32 65536, 65536
          %307 = vsyncadd %s299, %s306
          %s308 = smul.addr %s303, 16
          %s309 = sadd.s32 %s304, %s308
          %s310 = smul.addr %s309, 64
          %s311 = scalar_lea.hbm %s1, %s310
          %s312 = sshll.u32 %s302, 4
          %s313 = int_to_ptr.vmem [resolvable:$true] %s312
          %318 = dma.hbm_to_vmem [thread:$0]  %s311, 65536, %s313, %s299, 1024, 512, 32
        $region24: #{vae_forward.4} parent=15 // pred_fallthru
          _
        // Predicated region
        $region25: #{vae_forward.4} parent=15 // pred_check
          %p319 = pneg %p121
        $region26: #{vae_forward.4} parent=15 // pred_check_branch
          %321 = sbr.rel (%p319) target = $region28
        $region27: #{vae_forward.4} parent=15 // pred_region
          %s322 = sand.u32 %s26, 1
          %s323 = scalar_lea.sflag [#allocation8], %s322
          %s324 = sand.u32 %s111, 1
          %s325 = smul.addr %s324, 8
          %s326 = scalar_lea.vmem [#allocation7], %s325
          %s327 = smul.u32 8, %s34
          %s329 = ssub.s32 128, 128
          %330 = vsyncadd %s323, %s329
          %s331 = smul.addr %s327, 16
          %s332 = scalar_lea.hbm %s2, %s331
          %s334 = sshll.u32 %s326, 4
          %s335 = int_to_ptr.vmem [resolvable:$true] %s334
          %337 = dma.hbm_to_vmem [thread:$0]  %s332, 128, %s335, %s323
        $region28: #{vae_forward.4} parent=15 // pred_fallthru
          _
        // Predicated region
        $region29: #{vae_forward.4} parent=15 // pred_check
          %p338 = pneg %p149
        $region30: #{vae_forward.4} parent=15 // pred_check_branch
          %340 = sbr.rel (%p338) target = $region32
        $region31: #{vae_forward.4} parent=15 // pred_region
          %s341 = sand.u32 %s26, 1
          %s342 = scalar_lea.sflag [#allocation8], %s341
          %s343 = sand.u32 %s139, 1
          %s344 = smul.addr %s343, 4096
          %s345 = scalar_lea.vmem [#allocation9], %s344
          %s346 = smul.u32 128, %s35
          %s347 = smul.u32 8, %s34
          %s349 = ssub.s32 65536, 65536
          %350 = vsyncadd %s342, %s349
          %s351 = smul.addr %s346, 16
          %s352 = sadd.s32 %s347, %s351
          %s353 = smul.addr %s352, 64
          %s354 = scalar_lea.hbm %s3, %s353
          %s355 = sshll.u32 %s345, 4
          %s356 = int_to_ptr.vmem [resolvable:$true] %s355
          %361 = dma.hbm_to_vmem [thread:$0]  %s354, 65536, %s356, %s342, 1024, 512, 32
        $region32: #{vae_forward.4} parent=15 // pred_fallthru
          _
        // Predicated region
        $region33: #{vae_forward.4} parent=15 // pred_check
          %p362 = pneg %p175
        $region34: #{vae_forward.4} parent=15 // pred_check_branch
          %364 = sbr.rel (%p362) target = $region36
        $region35: #{vae_forward.4} parent=15 // pred_region
          %s365 = sand.u32 %s26, 1
          %s366 = scalar_lea.sflag [#allocation11], %s365
          %s367 = sand.u32 %s165, 1
          %s368 = smul.addr %s367, 8
          %s369 = scalar_lea.vmem [#allocation10], %s368
          %s370 = smul.u32 8, %s34
          %s372 = ssub.s32 128, 128
          %373 = vsyncadd %s366, %s372
          %s374 = smul.addr %s370, 16
          %s375 = scalar_lea.hbm %s4, %s374
          %s377 = sshll.u32 %s369, 4
          %s378 = int_to_ptr.vmem [resolvable:$true] %s377
          %380 = dma.hbm_to_vmem [thread:$0]  %s375, 128, %s378, %s366
        $region36: #{vae_forward.4} parent=15 // pred_fallthru
          _
        // Predicated region
        $region37: #{vae_forward.4} parent=15 // pred_check
          %p381 = pneg %p201
        $region38: #{vae_forward.4} parent=15 // pred_check_branch
          %383 = sbr.rel (%p381) target = $region40
        $region39: #{vae_forward.4} parent=15 // pred_region
          %s384 = sand.u32 %s26, 1
          %s385 = scalar_lea.sflag [#allocation11], %s384
          %s386 = sand.u32 %s191, 1
          %s387 = smul.addr %s386, 8
          %s388 = scalar_lea.vmem [#allocation12], %s387
          %s389 = smul.u32 8, %s34
          %s391 = ssub.s32 128, 128
          %392 = vsyncadd %s385, %s391
          %s393 = smul.addr %s389, 16
          %s394 = scalar_lea.hbm %s5, %s393
          %s396 = sshll.u32 %s388, 4
          %s397 = int_to_ptr.vmem [resolvable:$true] %s396
          %399 = dma.hbm_to_vmem [thread:$0]  %s394, 128, %s397, %s385
        $region40: #{vae_forward.4} parent=15 // pred_fallthru
          _
      $region16: #{vae_forward.4} parent=5 // pred_fallthru
        _
      %p400 = scmp.le.s32.totalorder 1, %s26
      %p401 = scmp.lt.s32.totalorder %s26, 5
      %p402 = pnand %p400, %p401
      %p403 = pneg %p402
      // Predicated region
      $region41: #{vae_forward.4} parent=5 // pred_check
        _
      $region42: #{vae_forward.4} parent=5 // pred_check_branch
        %405 = sbr.rel (%p402) target = $region44
      $region43: #{vae_forward.4} parent=5 // pred_region
        %s406 = ssub.s32 %s26, 1
        %s407 = sand.u32 %s88, 1
        %s408 = scalar_lea.sflag [#allocation5], %s407
        %s409 = sand.u32 %s88, 1
        %s410 = smul.addr %s409, 4096
        %s411 = scalar_lea.vmem [#allocation4], %s410
        // Predicated region
        $region45: #{vae_forward.4} parent=43 // pred_check
          %p412 = pneg %p101
        $region46: #{vae_forward.4} parent=43 // pred_check_branch
          %414 = sbr.rel (%p412) target = $region48
        $region47: #{vae_forward.4} parent=43 // pred_region
          %415 = dma.done %s408, 65536
        $region48: #{vae_forward.4} parent=43 // pred_fallthru
          _
        %s416 = sand.u32 %s31, 1
        %s417 = scalar_lea.sflag [#allocation8], %s416
        %s418 = sand.u32 %s114, 1
        %s419 = smul.addr %s418, 8
        %s420 = scalar_lea.vmem [#allocation7], %s419
        // Predicated region
        $region49: #{vae_forward.4} parent=43 // pred_check
          %p421 = pneg %p127
        $region50: #{vae_forward.4} parent=43 // pred_check_branch
          %423 = sbr.rel (%p421) target = $region52
        $region51: #{vae_forward.4} parent=43 // pred_region
          %424 = dma.done %s417, 128
        $region52: #{vae_forward.4} parent=43 // pred_fallthru
          _
        %s425 = sand.u32 %s31, 1
        %s426 = scalar_lea.sflag [#allocation8], %s425
        %s427 = sand.u32 %s142, 1
        %s428 = smul.addr %s427, 4096
        %s429 = scalar_lea.vmem [#allocation9], %s428
        // Predicated region
        $region53: #{vae_forward.4} parent=43 // pred_check
          %p430 = pneg %p155
        $region54: #{vae_forward.4} parent=43 // pred_check_branch
          %432 = sbr.rel (%p430) target = $region56
        $region55: #{vae_forward.4} parent=43 // pred_region
          %433 = dma.done %s426, 65536
        $region56: #{vae_forward.4} parent=43 // pred_fallthru
          _
        %s434 = sand.u32 %s31, 1
        %s435 = scalar_lea.sflag [#allocation11], %s434
        %s436 = sand.u32 %s168, 1
        %s437 = smul.addr %s436, 8
        %s438 = scalar_lea.vmem [#allocation10], %s437
        // Predicated region
        $region57: #{vae_forward.4} parent=43 // pred_check
          %p439 = pneg %p181
        $region58: #{vae_forward.4} parent=43 // pred_check_branch
          %441 = sbr.rel (%p439) target = $region60
        $region59: #{vae_forward.4} parent=43 // pred_region
          %442 = dma.done %s435, 128
        $region60: #{vae_forward.4} parent=43 // pred_fallthru
          _
        %s443 = sand.u32 %s31, 1
        %s444 = scalar_lea.sflag [#allocation11], %s443
        %s445 = sand.u32 %s194, 1
        %s446 = smul.addr %s445, 8
        %s447 = scalar_lea.vmem [#allocation12], %s446
        // Predicated region
        $region61: #{vae_forward.4} parent=43 // pred_check
          %p448 = pneg %p207
        $region62: #{vae_forward.4} parent=43 // pred_check_branch
          %450 = sbr.rel (%p448) target = $region64
        $region63: #{vae_forward.4} parent=43 // pred_region
          %451 = dma.done %s444, 128
        $region64: #{vae_forward.4} parent=43 // pred_fallthru
          _
        %s452 = smul.u32 8, %s38
        %p453 = scmp.lt.s32.totalorder %s36, 0
        %s454 = scalar_select %p453, %s36, 0
        %p455 = scmp.lt.s32.totalorder %s452, 15
        %s456 = scalar_select %p455, %s452, 15
        %s457 = smul.addr %s454, 16
        %s458 = sadd.s32 %s456, %s457
        %s459 = smul.addr %s458, 4
        %s460 = scalar_lea.vmem %s0, %s459
        %p461 = pneg %p73
        %p462 = pneg %p70
        %s463 = sand.u32 %s88, 1
        %s464 = scalar_lea.sflag [#allocation5], %s463
        %s465 = sand.u32 %s88, 1
        %s466 = smul.addr %s465, 4096
        %s467 = scalar_lea.vmem [#allocation4], %s466
        %p468 = pneg %p101
        %p469 = pneg %p98
        %s470 = sand.u32 %s31, 1
        %s471 = scalar_lea.sflag [#allocation8], %s470
        %s472 = sand.u32 %s114, 1
        %s473 = smul.addr %s472, 8
        %s474 = scalar_lea.vmem [#allocation7], %s473
        %p475 = pneg %p127
        %p476 = pneg %p124
        %s477 = sand.u32 %s31, 1
        %s478 = scalar_lea.sflag [#allocation8], %s477
        %s479 = sand.u32 %s142, 1
        %s480 = smul.addr %s479, 4096
        %s481 = scalar_lea.vmem [#allocation9], %s480
        %p482 = pneg %p155
        %p483 = pneg %p152
        %s484 = sand.u32 %s31, 1
        %s485 = scalar_lea.sflag [#allocation11], %s484
        %s486 = sand.u32 %s168, 1
        %s487 = smul.addr %s486, 8
        %s488 = scalar_lea.vmem [#allocation10], %s487
        %p489 = pneg %p181
        %p490 = pneg %p178
        %s491 = sand.u32 %s31, 1
        %s492 = scalar_lea.sflag [#allocation11], %s491
        %s493 = sand.u32 %s194, 1
        %s494 = smul.addr %s493, 8
        %s495 = scalar_lea.vmem [#allocation12], %s494
        %p496 = pneg %p207
        %p497 = pneg %p204
        %p498 = pneg %p235
        %p499 = pneg %p232
        %s500 = smul.u32 8, %s37
        %p501 = scmp.lt.s32.totalorder %s36, 0
        %s502 = scalar_select %p501, %s36, 0
        %p503 = scmp.lt.s32.totalorder %s500, 15
        %s504 = scalar_select %p503, %s500, 15
        %s505 = smul.addr %s502, 16
        %s506 = sadd.s32 %s504, %s505
        %s507 = smul.addr %s506, 4
        %s508 = scalar_lea.vmem %s6, %s507
        %p509 = pneg %p263
        %p510 = pneg %p260
        %s511 = sand.u32 %s250, 1
        %s512 = scalar_lea.sflag [#allocation6], %s511
        %s513 = sand.u32 %s250, 1
        %s514 = smul.addr %s513, 32
        %s515 = scalar_lea.vmem [#allocation13], %s514
        %s516 = smul.u32 8, %s38
        %p517 = scmp.lt.s32.totalorder %s36, 0
        %s518 = scalar_select %p517, %s36, 0
        %p519 = scmp.lt.s32.totalorder %s516, 15
        %s520 = scalar_select %p519, %s516, 15
        %s521 = smul.addr %s518, 16
        %s522 = sadd.s32 %s520, %s521
        %s523 = smul.addr %s522, 4
        %s524 = scalar_lea.vmem %s0, %s523
        %s525 = smul.u32 8, %s38
        %s526 = smul.u32 128, %s38
        %s527 = smul.u32 8, %s37
        %s528 = smul.u32 8, %s37
        %s529 = smul.u32 128, %s38
        %s530 = smul.u32 8, %s37
        %s531 = smul.u32 8, %s37
        %s532 = smul.u32 8, %s37
        %s533 = smul.u32 8, %s37
        %p534 = scmp.lt.s32.totalorder %s36, 0
        %s535 = scalar_select %p534, %s36, 0
        %p536 = scmp.lt.s32.totalorder %s533, 15
        %s537 = scalar_select %p536, %s533, 15
        %s538 = smul.addr %s535, 16
        %s539 = sadd.s32 %s537, %s538
        %s540 = smul.addr %s539, 4
        %s541 = scalar_lea.vmem %s6, %s540
        %s542 = smul.u32 8, %s37
        %s543 = smul.u32 8, %s37
        %p544 = scmp.eq.s32.totalorder %s38, 0
        // Predicated region
        $region65: #{vae_forward.4} parent=43 // pred_check
          %p545 = pneg %p544
        $region66: #{vae_forward.4} parent=43 // pred_check_branch
          %547 = sbr.rel (%p545) target = $region68
        $region67: #{vae_forward.4} parent=43 // pred_region
          %548 = vst [vmem:[#allocation2] sm:$0xff] 0.0
          %549 = vst [vmem:[#allocation2 + $0x8] sm:$0xff] 0.0
          %550 = vst [vmem:[#allocation2 + $0x10] sm:$0xff] 0.0
          %551 = vst [vmem:[#allocation2 + $0x18] sm:$0xff] 0.0
          %552 = vst [vmem:[#allocation3] sm:$0xff] 0.0
          %553 = vst [vmem:[#allocation3 + $0x8] sm:$0xff] 0.0
          %554 = vst [vmem:[#allocation3 + $0x10] sm:$0xff] 0.0
          %555 = vst [vmem:[#allocation3 + $0x18] sm:$0xff] 0.0
        $region68: #{vae_forward.4} parent=43 // pred_fallthru
          _
        %v556 = vld [vmem:[%s524] sm:$0xff]
        %v557 = vld [vmem:[%s524 + $0x8] sm:$0xff]
        %v558 = vld [vmem:[%s524 + $0x10] sm:$0xff]
        %v559 = vld [vmem:[%s524 + $0x18] sm:$0xff]
        %v564 = vcombine.high %v556, %v556
        %v565 = vcombine.high %v557, %v557
        %v566 = vcombine.high %v558, %v558
        %v567 = vcombine.high %v559, %v559
        %v572 = vpack.c.bf16 %v556, %v556
        %v573 = vpack.c.bf16 %v564, %v564
        %v574 = vpack.c.bf16 %v557, %v557
        %v575 = vpack.c.bf16 %v565, %v565
        %v576 = vpack.c.bf16 %v558, %v558
        %v577 = vpack.c.bf16 %v566, %v566
        %v578 = vpack.c.bf16 %v559, %v559
        %v579 = vpack.c.bf16 %v567, %v567
        %v580 = vld [vmem:[#allocation2] sm:$0xff]
        %v581 = vld [vmem:[#allocation2 + $0x8] sm:$0xff]
        %v582 = vld [vmem:[#allocation2 + $0x10] sm:$0xff]
        %v583 = vld [vmem:[#allocation2 + $0x18] sm:$0xff]
        %v584 = vld [vmem:[%s411] sm:$0xff]
        %v585 = vld [vmem:[%s411 + $0x8] sm:$0xff]
        %v586 = vld [vmem:[%s411 + $0x10] sm:$0xff]
        %v587 = vld [vmem:[%s411 + $0x18] sm:$0xff]
        %v588 = vld [vmem:[%s411 + $0x20] sm:$0xff]
        %v589 = vld [vmem:[%s411 + $0x28] sm:$0xff]
        %v590 = vld [vmem:[%s411 + $0x30] sm:$0xff]
        %v591 = vld [vmem:[%s411 + $0x38] sm:$0xff]
        %v592 = vld [vmem:[%s411 + $0x40] sm:$0xff]
        %v593 = vld [vmem:[%s411 + $0x48] sm:$0xff]
        %v594 = vld [vmem:[%s411 + $0x50] sm:$0xff]
        %v595 = vld [vmem:[%s411 + $0x58] sm:$0xff]
        %v596 = vld [vmem:[%s411 + $0x60] sm:$0xff]
        %v597 = vld [vmem:[%s411 + $0x68] sm:$0xff]
        %v598 = vld [vmem:[%s411 + $0x70] sm:$0xff]
        %v599 = vld [vmem:[%s411 + $0x78] sm:$0xff]
        %v600 = vld [vmem:[%s411 + $0x80] sm:$0xff]
        %v601 = vld [vmem:[%s411 + $0x88] sm:$0xff]
        %v602 = vld [vmem:[%s411 + $0x90] sm:$0xff]
        %v603 = vld [vmem:[%s411 + $0x98] sm:$0xff]
        %v604 = vld [vmem:[%s411 + $0xa0] sm:$0xff]
        %v605 = vld [vmem:[%s411 + $0xa8] sm:$0xff]
        %v606 = vld [vmem:[%s411 + $0xb0] sm:$0xff]
        %v607 = vld [vmem:[%s411 + $0xb8] sm:$0xff]
        %v608 = vld [vmem:[%s411 + $0xc0] sm:$0xff]
        %v609 = vld [vmem:[%s411 + $0xc8] sm:$0xff]
        %v610 = vld [vmem:[%s411 + $0xd0] sm:$0xff]
        %v611 = vld [vmem:[%s411 + $0xd8] sm:$0xff]
        %v612 = vld [vmem:[%s411 + $0xe0] sm:$0xff]
        %v613 = vld [vmem:[%s411 + $0xe8] sm:$0xff]
        %v614 = vld [vmem:[%s411 + $0xf0] sm:$0xff]
        %v615 = vld [vmem:[%s411 + $0xf8] sm:$0xff]
        %v616 = vld [vmem:[%s411 + $0x100] sm:$0xff]
        %v617 = vld [vmem:[%s411 + $0x108] sm:$0xff]
        %v618 = vld [vmem:[%s411 + $0x110] sm:$0xff]
        %v619 = vld [vmem:[%s411 + $0x118] sm:$0xff]
        %v620 = vld [vmem:[%s411 + $0x120] sm:$0xff]
        %v621 = vld [vmem:[%s411 + $0x128] sm:$0xff]
        %v622 = vld [vmem:[%s411 + $0x130] sm:$0xff]
        %v623 = vld [vmem:[%s411 + $0x138] sm:$0xff]
        %v624 = vld [vmem:[%s411 + $0x140] sm:$0xff]
        %v625 = vld [vmem:[%s411 + $0x148] sm:$0xff]
        %v626 = vld [vmem:[%s411 + $0x150] sm:$0xff]
        %v627 = vld [vmem:[%s411 + $0x158] sm:$0xff]
        %v628 = vld [vmem:[%s411 + $0x160] sm:$0xff]
        %v629 = vld [vmem:[%s411 + $0x168] sm:$0xff]
        %v630 = vld [vmem:[%s411 + $0x170] sm:$0xff]
        %v631 = vld [vmem:[%s411 + $0x178] sm:$0xff]
        %v632 = vld [vmem:[%s411 + $0x180] sm:$0xff]
        %v633 = vld [vmem:[%s411 + $0x188] sm:$0xff]
        %v634 = vld [vmem:[%s411 + $0x190] sm:$0xff]
        %v635 = vld [vmem:[%s411 + $0x198] sm:$0xff]
        %v636 = vld [vmem:[%s411 + $0x1a0] sm:$0xff]
        %v637 = vld [vmem:[%s411 + $0x1a8] sm:$0xff]
        %v638 = vld [vmem:[%s411 + $0x1b0] sm:$0xff]
        %v639 = vld [vmem:[%s411 + $0x1b8] sm:$0xff]
        %v640 = vld [vmem:[%s411 + $0x1c0] sm:$0xff]
        %v641 = vld [vmem:[%s411 + $0x1c8] sm:$0xff]
        %v642 = vld [vmem:[%s411 + $0x1d0] sm:$0xff]
        %v643 = vld [vmem:[%s411 + $0x1d8] sm:$0xff]
        %v644 = vld [vmem:[%s411 + $0x1e0] sm:$0xff]
        %v645 = vld [vmem:[%s411 + $0x1e8] sm:$0xff]
        %v646 = vld [vmem:[%s411 + $0x1f0] sm:$0xff]
        %v647 = vld [vmem:[%s411 + $0x1f8] sm:$0xff]
        %v648 = vld [vmem:[%s411 + $0x200] sm:$0xff]
        %v649 = vld [vmem:[%s411 + $0x208] sm:$0xff]
        %v650 = vld [vmem:[%s411 + $0x210] sm:$0xff]
        %v651 = vld [vmem:[%s411 + $0x218] sm:$0xff]
        %v652 = vld [vmem:[%s411 + $0x220] sm:$0xff]
        %v653 = vld [vmem:[%s411 + $0x228] sm:$0xff]
        %v654 = vld [vmem:[%s411 + $0x230] sm:$0xff]
        %v655 = vld [vmem:[%s411 + $0x238] sm:$0xff]
        %v656 = vld [vmem:[%s411 + $0x240] sm:$0xff]
        %v657 = vld [vmem:[%s411 + $0x248] sm:$0xff]
        %v658 = vld [vmem:[%s411 + $0x250] sm:$0xff]
        %v659 = vld [vmem:[%s411 + $0x258] sm:$0xff]
        %v660 = vld [vmem:[%s411 + $0x260] sm:$0xff]
        %v661 = vld [vmem:[%s411 + $0x268] sm:$0xff]
        %v662 = vld [vmem:[%s411 + $0x270] sm:$0xff]
        %v663 = vld [vmem:[%s411 + $0x278] sm:$0xff]
        %v664 = vld [vmem:[%s411 + $0x280] sm:$0xff]
        %v665 = vld [vmem:[%s411 + $0x288] sm:$0xff]
        %v666 = vld [vmem:[%s411 + $0x290] sm:$0xff]
        %v667 = vld [vmem:[%s411 + $0x298] sm:$0xff]
        %v668 = vld [vmem:[%s411 + $0x2a0] sm:$0xff]
        %v669 = vld [vmem:[%s411 + $0x2a8] sm:$0xff]
        %v670 = vld [vmem:[%s411 + $0x2b0] sm:$0xff]
        %v671 = vld [vmem:[%s411 + $0x2b8] sm:$0xff]
        %v672 = vld [vmem:[%s411 + $0x2c0] sm:$0xff]
        %v673 = vld [vmem:[%s411 + $0x2c8] sm:$0xff]
        %v674 = vld [vmem:[%s411 + $0x2d0] sm:$0xff]
        %v675 = vld [vmem:[%s411 + $0x2d8] sm:$0xff]
        %v676 = vld [vmem:[%s411 + $0x2e0] sm:$0xff]
        %v677 = vld [vmem:[%s411 + $0x2e8] sm:$0xff]
        %v678 = vld [vmem:[%s411 + $0x2f0] sm:$0xff]
        %v679 = vld [vmem:[%s411 + $0x2f8] sm:$0xff]
        %v680 = vld [vmem:[%s411 + $0x300] sm:$0xff]
        %v681 = vld [vmem:[%s411 + $0x308] sm:$0xff]
        %v682 = vld [vmem:[%s411 + $0x310] sm:$0xff]
        %v683 = vld [vmem:[%s411 + $0x318] sm:$0xff]
        %v684 = vld [vmem:[%s411 + $0x320] sm:$0xff]
        %v685 = vld [vmem:[%s411 + $0x328] sm:$0xff]
        %v686 = vld [vmem:[%s411 + $0x330] sm:$0xff]
        %v687 = vld [vmem:[%s411 + $0x338] sm:$0xff]
        %v688 = vld [vmem:[%s411 + $0x340] sm:$0xff]
        %v689 = vld [vmem:[%s411 + $0x348] sm:$0xff]
        %v690 = vld [vmem:[%s411 + $0x350] sm:$0xff]
        %v691 = vld [vmem:[%s411 + $0x358] sm:$0xff]
        %v692 = vld [vmem:[%s411 + $0x360] sm:$0xff]
        %v693 = vld [vmem:[%s411 + $0x368] sm:$0xff]
        %v694 = vld [vmem:[%s411 + $0x370] sm:$0xff]
        %v695 = vld [vmem:[%s411 + $0x378] sm:$0xff]
        %v696 = vld [vmem:[%s411 + $0x380] sm:$0xff]
        %v697 = vld [vmem:[%s411 + $0x388] sm:$0xff]
        %v698 = vld [vmem:[%s411 + $0x390] sm:$0xff]
        %v699 = vld [vmem:[%s411 + $0x398] sm:$0xff]
        %v700 = vld [vmem:[%s411 + $0x3a0] sm:$0xff]
        %v701 = vld [vmem:[%s411 + $0x3a8] sm:$0xff]
        %v702 = vld [vmem:[%s411 + $0x3b0] sm:$0xff]
        %v703 = vld [vmem:[%s411 + $0x3b8] sm:$0xff]
        %v704 = vld [vmem:[%s411 + $0x3c0] sm:$0xff]
        %v705 = vld [vmem:[%s411 + $0x3c8] sm:$0xff]
        %v706 = vld [vmem:[%s411 + $0x3d0] sm:$0xff]
        %v707 = vld [vmem:[%s411 + $0x3d8] sm:$0xff]
        %v708 = vld [vmem:[%s411 + $0x3e0] sm:$0xff]
        %v709 = vld [vmem:[%s411 + $0x3e8] sm:$0xff]
        %v710 = vld [vmem:[%s411 + $0x3f0] sm:$0xff]
        %v711 = vld [vmem:[%s411 + $0x3f8] sm:$0xff]
        %v712 = vld [vmem:[%s411 + $0x400] sm:$0xff]
        %v713 = vld [vmem:[%s411 + $0x408] sm:$0xff]
        %v714 = vld [vmem:[%s411 + $0x410] sm:$0xff]
        %v715 = vld [vmem:[%s411 + $0x418] sm:$0xff]
        %v716 = vld [vmem:[%s411 + $0x420] sm:$0xff]
        %v717 = vld [vmem:[%s411 + $0x428] sm:$0xff]
        %v718 = vld [vmem:[%s411 + $0x430] sm:$0xff]
        %v719 = vld [vmem:[%s411 + $0x438] sm:$0xff]
        %v720 = vld [vmem:[%s411 + $0x440] sm:$0xff]
        %v721 = vld [vmem:[%s411 + $0x448] sm:$0xff]
        %v722 = vld [vmem:[%s411 + $0x450] sm:$0xff]
        %v723 = vld [vmem:[%s411 + $0x458] sm:$0xff]
        %v724 = vld [vmem:[%s411 + $0x460] sm:$0xff]
        %v725 = vld [vmem:[%s411 + $0x468] sm:$0xff]
        %v726 = vld [vmem:[%s411 + $0x470] sm:$0xff]
        %v727 = vld [vmem:[%s411 + $0x478] sm:$0xff]
        %v728 = vld [vmem:[%s411 + $0x480] sm:$0xff]
        %v729 = vld [vmem:[%s411 + $0x488] sm:$0xff]
        %v730 = vld [vmem:[%s411 + $0x490] sm:$0xff]
        %v731 = vld [vmem:[%s411 + $0x498] sm:$0xff]
        %v732 = vld [vmem:[%s411 + $0x4a0] sm:$0xff]
        %v733 = vld [vmem:[%s411 + $0x4a8] sm:$0xff]
        %v734 = vld [vmem:[%s411 + $0x4b0] sm:$0xff]
        %v735 = vld [vmem:[%s411 + $0x4b8] sm:$0xff]
        %v736 = vld [vmem:[%s411 + $0x4c0] sm:$0xff]
        %v737 = vld [vmem:[%s411 + $0x4c8] sm:$0xff]
        %v738 = vld [vmem:[%s411 + $0x4d0] sm:$0xff]
        %v739 = vld [vmem:[%s411 + $0x4d8] sm:$0xff]
        %v740 = vld [vmem:[%s411 + $0x4e0] sm:$0xff]
        %v741 = vld [vmem:[%s411 + $0x4e8] sm:$0xff]
        %v742 = vld [vmem:[%s411 + $0x4f0] sm:$0xff]
        %v743 = vld [vmem:[%s411 + $0x4f8] sm:$0xff]
        %v744 = vld [vmem:[%s411 + $0x500] sm:$0xff]
        %v745 = vld [vmem:[%s411 + $0x508] sm:$0xff]
        %v746 = vld [vmem:[%s411 + $0x510] sm:$0xff]
        %v747 = vld [vmem:[%s411 + $0x518] sm:$0xff]
        %v748 = vld [vmem:[%s411 + $0x520] sm:$0xff]
        %v749 = vld [vmem:[%s411 + $0x528] sm:$0xff]
        %v750 = vld [vmem:[%s411 + $0x530] sm:$0xff]
        %v751 = vld [vmem:[%s411 + $0x538] sm:$0xff]
        %v752 = vld [vmem:[%s411 + $0x540] sm:$0xff]
        %v753 = vld [vmem:[%s411 + $0x548] sm:$0xff]
        %v754 = vld [vmem:[%s411 + $0x550] sm:$0xff]
        %v755 = vld [vmem:[%s411 + $0x558] sm:$0xff]
        %v756 = vld [vmem:[%s411 + $0x560] sm:$0xff]
        %v757 = vld [vmem:[%s411 + $0x568] sm:$0xff]
        %v758 = vld [vmem:[%s411 + $0x570] sm:$0xff]
        %v759 = vld [vmem:[%s411 + $0x578] sm:$0xff]
        %v760 = vld [vmem:[%s411 + $0x580] sm:$0xff]
        %v761 = vld [vmem:[%s411 + $0x588] sm:$0xff]
        %v762 = vld [vmem:[%s411 + $0x590] sm:$0xff]
        %v763 = vld [vmem:[%s411 + $0x598] sm:$0xff]
        %v764 = vld [vmem:[%s411 + $0x5a0] sm:$0xff]
        %v765 = vld [vmem:[%s411 + $0x5a8] sm:$0xff]
        %v766 = vld [vmem:[%s411 + $0x5b0] sm:$0xff]
        %v767 = vld [vmem:[%s411 + $0x5b8] sm:$0xff]
        %v768 = vld [vmem:[%s411 + $0x5c0] sm:$0xff]
        %v769 = vld [vmem:[%s411 + $0x5c8] sm:$0xff]
        %v770 = vld [vmem:[%s411 + $0x5d0] sm:$0xff]
        %v771 = vld [vmem:[%s411 + $0x5d8] sm:$0xff]
        %v772 = vld [vmem:[%s411 + $0x5e0] sm:$0xff]
        %v773 = vld [vmem:[%s411 + $0x5e8] sm:$0xff]
        %v774 = vld [vmem:[%s411 + $0x5f0] sm:$0xff]
        %v775 = vld [vmem:[%s411 + $0x5f8] sm:$0xff]
        %v776 = vld [vmem:[%s411 + $0x600] sm:$0xff]
        %v777 = vld [vmem:[%s411 + $0x608] sm:$0xff]
        %v778 = vld [vmem:[%s411 + $0x610] sm:$0xff]
        %v779 = vld [vmem:[%s411 + $0x618] sm:$0xff]
        %v780 = vld [vmem:[%s411 + $0x620] sm:$0xff]
        %v781 = vld [vmem:[%s411 + $0x628] sm:$0xff]
        %v782 = vld [vmem:[%s411 + $0x630] sm:$0xff]
        %v783 = vld [vmem:[%s411 + $0x638] sm:$0xff]
        %v784 = vld [vmem:[%s411 + $0x640] sm:$0xff]
        %v785 = vld [vmem:[%s411 + $0x648] sm:$0xff]
        %v786 = vld [vmem:[%s411 + $0x650] sm:$0xff]
        %v787 = vld [vmem:[%s411 + $0x658] sm:$0xff]
        %v788 = vld [vmem:[%s411 + $0x660] sm:$0xff]
        %v789 = vld [vmem:[%s411 + $0x668] sm:$0xff]
        %v790 = vld [vmem:[%s411 + $0x670] sm:$0xff]
        %v791 = vld [vmem:[%s411 + $0x678] sm:$0xff]
        %v792 = vld [vmem:[%s411 + $0x680] sm:$0xff]
        %v793 = vld [vmem:[%s411 + $0x688] sm:$0xff]
        %v794 = vld [vmem:[%s411 + $0x690] sm:$0xff]
        %v795 = vld [vmem:[%s411 + $0x698] sm:$0xff]
        %v796 = vld [vmem:[%s411 + $0x6a0] sm:$0xff]
        %v797 = vld [vmem:[%s411 + $0x6a8] sm:$0xff]
        %v798 = vld [vmem:[%s411 + $0x6b0] sm:$0xff]
        %v799 = vld [vmem:[%s411 + $0x6b8] sm:$0xff]
        %v800 = vld [vmem:[%s411 + $0x6c0] sm:$0xff]
        %v801 = vld [vmem:[%s411 + $0x6c8] sm:$0xff]
        %v802 = vld [vmem:[%s411 + $0x6d0] sm:$0xff]
        %v803 = vld [vmem:[%s411 + $0x6d8] sm:$0xff]
        %v804 = vld [vmem:[%s411 + $0x6e0] sm:$0xff]
        %v805 = vld [vmem:[%s411 + $0x6e8] sm:$0xff]
        %v806 = vld [vmem:[%s411 + $0x6f0] sm:$0xff]
        %v807 = vld [vmem:[%s411 + $0x6f8] sm:$0xff]
        %v808 = vld [vmem:[%s411 + $0x700] sm:$0xff]
        %v809 = vld [vmem:[%s411 + $0x708] sm:$0xff]
        %v810 = vld [vmem:[%s411 + $0x710] sm:$0xff]
        %v811 = vld [vmem:[%s411 + $0x718] sm:$0xff]
        %v812 = vld [vmem:[%s411 + $0x720] sm:$0xff]
        %v813 = vld [vmem:[%s411 + $0x728] sm:$0xff]
        %v814 = vld [vmem:[%s411 + $0x730] sm:$0xff]
        %v815 = vld [vmem:[%s411 + $0x738] sm:$0xff]
        %v816 = vld [vmem:[%s411 + $0x740] sm:$0xff]
        %v817 = vld [vmem:[%s411 + $0x748] sm:$0xff]
        %v818 = vld [vmem:[%s411 + $0x750] sm:$0xff]
        %v819 = vld [vmem:[%s411 + $0x758] sm:$0xff]
        %v820 = vld [vmem:[%s411 + $0x760] sm:$0xff]
        %v821 = vld [vmem:[%s411 + $0x768] sm:$0xff]
        %v822 = vld [vmem:[%s411 + $0x770] sm:$0xff]
        %v823 = vld [vmem:[%s411 + $0x778] sm:$0xff]
        %v824 = vld [vmem:[%s411 + $0x780] sm:$0xff]
        %v825 = vld [vmem:[%s411 + $0x788] sm:$0xff]
        %v826 = vld [vmem:[%s411 + $0x790] sm:$0xff]
        %v827 = vld [vmem:[%s411 + $0x798] sm:$0xff]
        %v828 = vld [vmem:[%s411 + $0x7a0] sm:$0xff]
        %v829 = vld [vmem:[%s411 + $0x7a8] sm:$0xff]
        %v830 = vld [vmem:[%s411 + $0x7b0] sm:$0xff]
        %v831 = vld [vmem:[%s411 + $0x7b8] sm:$0xff]
        %v832 = vld [vmem:[%s411 + $0x7c0] sm:$0xff]
        %v833 = vld [vmem:[%s411 + $0x7c8] sm:$0xff]
        %v834 = vld [vmem:[%s411 + $0x7d0] sm:$0xff]
        %v835 = vld [vmem:[%s411 + $0x7d8] sm:$0xff]
        %v836 = vld [vmem:[%s411 + $0x7e0] sm:$0xff]
        %v837 = vld [vmem:[%s411 + $0x7e8] sm:$0xff]
        %v838 = vld [vmem:[%s411 + $0x7f0] sm:$0xff]
        %v839 = vld [vmem:[%s411 + $0x7f8] sm:$0xff]
        %v840 = vld [vmem:[%s411 + $0x800] sm:$0xff]
        %v841 = vld [vmem:[%s411 + $0x808] sm:$0xff]
        %v842 = vld [vmem:[%s411 + $0x810] sm:$0xff]
        %v843 = vld [vmem:[%s411 + $0x818] sm:$0xff]
        %v844 = vld [vmem:[%s411 + $0x820] sm:$0xff]
        %v845 = vld [vmem:[%s411 + $0x828] sm:$0xff]
        %v846 = vld [vmem:[%s411 + $0x830] sm:$0xff]
        %v847 = vld [vmem:[%s411 + $0x838] sm:$0xff]
        %v848 = vld [vmem:[%s411 + $0x840] sm:$0xff]
        %v849 = vld [vmem:[%s411 + $0x848] sm:$0xff]
        %v850 = vld [vmem:[%s411 + $0x850] sm:$0xff]
        %v851 = vld [vmem:[%s411 + $0x858] sm:$0xff]
        %v852 = vld [vmem:[%s411 + $0x860] sm:$0xff]
        %v853 = vld [vmem:[%s411 + $0x868] sm:$0xff]
        %v854 = vld [vmem:[%s411 + $0x870] sm:$0xff]
        %v855 = vld [vmem:[%s411 + $0x878] sm:$0xff]
        %v856 = vld [vmem:[%s411 + $0x880] sm:$0xff]
        %v857 = vld [vmem:[%s411 + $0x888] sm:$0xff]
        %v858 = vld [vmem:[%s411 + $0x890] sm:$0xff]
        %v859 = vld [vmem:[%s411 + $0x898] sm:$0xff]
        %v860 = vld [vmem:[%s411 + $0x8a0] sm:$0xff]
        %v861 = vld [vmem:[%s411 + $0x8a8] sm:$0xff]
        %v862 = vld [vmem:[%s411 + $0x8b0] sm:$0xff]
        %v863 = vld [vmem:[%s411 + $0x8b8] sm:$0xff]
        %v864 = vld [vmem:[%s411 + $0x8c0] sm:$0xff]
        %v865 = vld [vmem:[%s411 + $0x8c8] sm:$0xff]
        %v866 = vld [vmem:[%s411 + $0x8d0] sm:$0xff]
        %v867 = vld [vmem:[%s411 + $0x8d8] sm:$0xff]
        %v868 = vld [vmem:[%s411 + $0x8e0] sm:$0xff]
        %v869 = vld [vmem:[%s411 + $0x8e8] sm:$0xff]
        %v870 = vld [vmem:[%s411 + $0x8f0] sm:$0xff]
        %v871 = vld [vmem:[%s411 + $0x8f8] sm:$0xff]
        %v872 = vld [vmem:[%s411 + $0x900] sm:$0xff]
        %v873 = vld [vmem:[%s411 + $0x908] sm:$0xff]
        %v874 = vld [vmem:[%s411 + $0x910] sm:$0xff]
        %v875 = vld [vmem:[%s411 + $0x918] sm:$0xff]
        %v876 = vld [vmem:[%s411 + $0x920] sm:$0xff]
        %v877 = vld [vmem:[%s411 + $0x928] sm:$0xff]
        %v878 = vld [vmem:[%s411 + $0x930] sm:$0xff]
        %v879 = vld [vmem:[%s411 + $0x938] sm:$0xff]
        %v880 = vld [vmem:[%s411 + $0x940] sm:$0xff]
        %v881 = vld [vmem:[%s411 + $0x948] sm:$0xff]
        %v882 = vld [vmem:[%s411 + $0x950] sm:$0xff]
        %v883 = vld [vmem:[%s411 + $0x958] sm:$0xff]
        %v884 = vld [vmem:[%s411 + $0x960] sm:$0xff]
        %v885 = vld [vmem:[%s411 + $0x968] sm:$0xff]
        %v886 = vld [vmem:[%s411 + $0x970] sm:$0xff]
        %v887 = vld [vmem:[%s411 + $0x978] sm:$0xff]
        %v888 = vld [vmem:[%s411 + $0x980] sm:$0xff]
        %v889 = vld [vmem:[%s411 + $0x988] sm:$0xff]
        %v890 = vld [vmem:[%s411 + $0x990] sm:$0xff]
        %v891 = vld [vmem:[%s411 + $0x998] sm:$0xff]
        %v892 = vld [vmem:[%s411 + $0x9a0] sm:$0xff]
        %v893 = vld [vmem:[%s411 + $0x9a8] sm:$0xff]
        %v894 = vld [vmem:[%s411 + $0x9b0] sm:$0xff]
        %v895 = vld [vmem:[%s411 + $0x9b8] sm:$0xff]
        %v896 = vld [vmem:[%s411 + $0x9c0] sm:$0xff]
        %v897 = vld [vmem:[%s411 + $0x9c8] sm:$0xff]
        %v898 = vld [vmem:[%s411 + $0x9d0] sm:$0xff]
        %v899 = vld [vmem:[%s411 + $0x9d8] sm:$0xff]
        %v900 = vld [vmem:[%s411 + $0x9e0] sm:$0xff]
        %v901 = vld [vmem:[%s411 + $0x9e8] sm:$0xff]
        %v902 = vld [vmem:[%s411 + $0x9f0] sm:$0xff]
        %v903 = vld [vmem:[%s411 + $0x9f8] sm:$0xff]
        %v904 = vld [vmem:[%s411 + $0xa00] sm:$0xff]
        %v905 = vld [vmem:[%s411 + $0xa08] sm:$0xff]
        %v906 = vld [vmem:[%s411 + $0xa10] sm:$0xff]
        %v907 = vld [vmem:[%s411 + $0xa18] sm:$0xff]
        %v908 = vld [vmem:[%s411 + $0xa20] sm:$0xff]
        %v909 = vld [vmem:[%s411 + $0xa28] sm:$0xff]
        %v910 = vld [vmem:[%s411 + $0xa30] sm:$0xff]
        %v911 = vld [vmem:[%s411 + $0xa38] sm:$0xff]
        %v912 = vld [vmem:[%s411 + $0xa40] sm:$0xff]
        %v913 = vld [vmem:[%s411 + $0xa48] sm:$0xff]
        %v914 = vld [vmem:[%s411 + $0xa50] sm:$0xff]
        %v915 = vld [vmem:[%s411 + $0xa58] sm:$0xff]
        %v916 = vld [vmem:[%s411 + $0xa60] sm:$0xff]
        %v917 = vld [vmem:[%s411 + $0xa68] sm:$0xff]
        %v918 = vld [vmem:[%s411 + $0xa70] sm:$0xff]
        %v919 = vld [vmem:[%s411 + $0xa78] sm:$0xff]
        %v920 = vld [vmem:[%s411 + $0xa80] sm:$0xff]
        %v921 = vld [vmem:[%s411 + $0xa88] sm:$0xff]
        %v922 = vld [vmem:[%s411 + $0xa90] sm:$0xff]
        %v923 = vld [vmem:[%s411 + $0xa98] sm:$0xff]
        %v924 = vld [vmem:[%s411 + $0xaa0] sm:$0xff]
        %v925 = vld [vmem:[%s411 + $0xaa8] sm:$0xff]
        %v926 = vld [vmem:[%s411 + $0xab0] sm:$0xff]
        %v927 = vld [vmem:[%s411 + $0xab8] sm:$0xff]
        %v928 = vld [vmem:[%s411 + $0xac0] sm:$0xff]
        %v929 = vld [vmem:[%s411 + $0xac8] sm:$0xff]
        %v930 = vld [vmem:[%s411 + $0xad0] sm:$0xff]
        %v931 = vld [vmem:[%s411 + $0xad8] sm:$0xff]
        %v932 = vld [vmem:[%s411 + $0xae0] sm:$0xff]
        %v933 = vld [vmem:[%s411 + $0xae8] sm:$0xff]
        %v934 = vld [vmem:[%s411 + $0xaf0] sm:$0xff]
        %v935 = vld [vmem:[%s411 + $0xaf8] sm:$0xff]
        %v936 = vld [vmem:[%s411 + $0xb00] sm:$0xff]
        %v937 = vld [vmem:[%s411 + $0xb08] sm:$0xff]
        %v938 = vld [vmem:[%s411 + $0xb10] sm:$0xff]
        %v939 = vld [vmem:[%s411 + $0xb18] sm:$0xff]
        %v940 = vld [vmem:[%s411 + $0xb20] sm:$0xff]
        %v941 = vld [vmem:[%s411 + $0xb28] sm:$0xff]
        %v942 = vld [vmem:[%s411 + $0xb30] sm:$0xff]
        %v943 = vld [vmem:[%s411 + $0xb38] sm:$0xff]
        %v944 = vld [vmem:[%s411 + $0xb40] sm:$0xff]
        %v945 = vld [vmem:[%s411 + $0xb48] sm:$0xff]
        %v946 = vld [vmem:[%s411 + $0xb50] sm:$0xff]
        %v947 = vld [vmem:[%s411 + $0xb58] sm:$0xff]
        %v948 = vld [vmem:[%s411 + $0xb60] sm:$0xff]
        %v949 = vld [vmem:[%s411 + $0xb68] sm:$0xff]
        %v950 = vld [vmem:[%s411 + $0xb70] sm:$0xff]
        %v951 = vld [vmem:[%s411 + $0xb78] sm:$0xff]
        %v952 = vld [vmem:[%s411 + $0xb80] sm:$0xff]
        %v953 = vld [vmem:[%s411 + $0xb88] sm:$0xff]
        %v954 = vld [vmem:[%s411 + $0xb90] sm:$0xff]
        %v955 = vld [vmem:[%s411 + $0xb98] sm:$0xff]
        %v956 = vld [vmem:[%s411 + $0xba0] sm:$0xff]
        %v957 = vld [vmem:[%s411 + $0xba8] sm:$0xff]
        %v958 = vld [vmem:[%s411 + $0xbb0] sm:$0xff]
        %v959 = vld [vmem:[%s411 + $0xbb8] sm:$0xff]
        %v960 = vld [vmem:[%s411 + $0xbc0] sm:$0xff]
        %v961 = vld [vmem:[%s411 + $0xbc8] sm:$0xff]
        %v962 = vld [vmem:[%s411 + $0xbd0] sm:$0xff]
        %v963 = vld [vmem:[%s411 + $0xbd8] sm:$0xff]
        %v964 = vld [vmem:[%s411 + $0xbe0] sm:$0xff]
        %v965 = vld [vmem:[%s411 + $0xbe8] sm:$0xff]
        %v966 = vld [vmem:[%s411 + $0xbf0] sm:$0xff]
        %v967 = vld [vmem:[%s411 + $0xbf8] sm:$0xff]
        %v968 = vld [vmem:[%s411 + $0xc00] sm:$0xff]
        %v969 = vld [vmem:[%s411 + $0xc08] sm:$0xff]
        %v970 = vld [vmem:[%s411 + $0xc10] sm:$0xff]
        %v971 = vld [vmem:[%s411 + $0xc18] sm:$0xff]
        %v972 = vld [vmem:[%s411 + $0xc20] sm:$0xff]
        %v973 = vld [vmem:[%s411 + $0xc28] sm:$0xff]
        %v974 = vld [vmem:[%s411 + $0xc30] sm:$0xff]
        %v975 = vld [vmem:[%s411 + $0xc38] sm:$0xff]
        %v976 = vld [vmem:[%s411 + $0xc40] sm:$0xff]
        %v977 = vld [vmem:[%s411 + $0xc48] sm:$0xff]
        %v978 = vld [vmem:[%s411 + $0xc50] sm:$0xff]
        %v979 = vld [vmem:[%s411 + $0xc58] sm:$0xff]
        %v980 = vld [vmem:[%s411 + $0xc60] sm:$0xff]
        %v981 = vld [vmem:[%s411 + $0xc68] sm:$0xff]
        %v982 = vld [vmem:[%s411 + $0xc70] sm:$0xff]
        %v983 = vld [vmem:[%s411 + $0xc78] sm:$0xff]
        %v984 = vld [vmem:[%s411 + $0xc80] sm:$0xff]
        %v985 = vld [vmem:[%s411 + $0xc88] sm:$0xff]
        %v986 = vld [vmem:[%s411 + $0xc90] sm:$0xff]
        %v987 = vld [vmem:[%s411 + $0xc98] sm:$0xff]
        %v988 = vld [vmem:[%s411 + $0xca0] sm:$0xff]
        %v989 = vld [vmem:[%s411 + $0xca8] sm:$0xff]
        %v990 = vld [vmem:[%s411 + $0xcb0] sm:$0xff]
        %v991 = vld [vmem:[%s411 + $0xcb8] sm:$0xff]
        %v992 = vld [vmem:[%s411 + $0xcc0] sm:$0xff]
        %v993 = vld [vmem:[%s411 + $0xcc8] sm:$0xff]
        %v994 = vld [vmem:[%s411 + $0xcd0] sm:$0xff]
        %v995 = vld [vmem:[%s411 + $0xcd8] sm:$0xff]
        %v996 = vld [vmem:[%s411 + $0xce0] sm:$0xff]
        %v997 = vld [vmem:[%s411 + $0xce8] sm:$0xff]
        %v998 = vld [vmem:[%s411 + $0xcf0] sm:$0xff]
        %v999 = vld [vmem:[%s411 + $0xcf8] sm:$0xff]
        %v1000 = vld [vmem:[%s411 + $0xd00] sm:$0xff]
        %v1001 = vld [vmem:[%s411 + $0xd08] sm:$0xff]
        %v1002 = vld [vmem:[%s411 + $0xd10] sm:$0xff]
        %v1003 = vld [vmem:[%s411 + $0xd18] sm:$0xff]
        %v1004 = vld [vmem:[%s411 + $0xd20] sm:$0xff]
        %v1005 = vld [vmem:[%s411 + $0xd28] sm:$0xff]
        %v1006 = vld [vmem:[%s411 + $0xd30] sm:$0xff]
        %v1007 = vld [vmem:[%s411 + $0xd38] sm:$0xff]
        %v1008 = vld [vmem:[%s411 + $0xd40] sm:$0xff]
        %v1009 = vld [vmem:[%s411 + $0xd48] sm:$0xff]
        %v1010 = vld [vmem:[%s411 + $0xd50] sm:$0xff]
        %v1011 = vld [vmem:[%s411 + $0xd58] sm:$0xff]
        %v1012 = vld [vmem:[%s411 + $0xd60] sm:$0xff]
        %v1013 = vld [vmem:[%s411 + $0xd68] sm:$0xff]
        %v1014 = vld [vmem:[%s411 + $0xd70] sm:$0xff]
        %v1015 = vld [vmem:[%s411 + $0xd78] sm:$0xff]
        %v1016 = vld [vmem:[%s411 + $0xd80] sm:$0xff]
        %v1017 = vld [vmem:[%s411 + $0xd88] sm:$0xff]
        %v1018 = vld [vmem:[%s411 + $0xd90] sm:$0xff]
        %v1019 = vld [vmem:[%s411 + $0xd98] sm:$0xff]
        %v1020 = vld [vmem:[%s411 + $0xda0] sm:$0xff]
        %v1021 = vld [vmem:[%s411 + $0xda8] sm:$0xff]
        %v1022 = vld [vmem:[%s411 + $0xdb0] sm:$0xff]
        %v1023 = vld [vmem:[%s411 + $0xdb8] sm:$0xff]
        %v1024 = vld [vmem:[%s411 + $0xdc0] sm:$0xff]
        %v1025 = vld [vmem:[%s411 + $0xdc8] sm:$0xff]
        %v1026 = vld [vmem:[%s411 + $0xdd0] sm:$0xff]
        %v1027 = vld [vmem:[%s411 + $0xdd8] sm:$0xff]
        %v1028 = vld [vmem:[%s411 + $0xde0] sm:$0xff]
        %v1029 = vld [vmem:[%s411 + $0xde8] sm:$0xff]
        %v1030 = vld [vmem:[%s411 + $0xdf0] sm:$0xff]
        %v1031 = vld [vmem:[%s411 + $0xdf8] sm:$0xff]
        %v1032 = vld [vmem:[%s411 + $0xe00] sm:$0xff]
        %v1033 = vld [vmem:[%s411 + $0xe08] sm:$0xff]
        %v1034 = vld [vmem:[%s411 + $0xe10] sm:$0xff]
        %v1035 = vld [vmem:[%s411 + $0xe18] sm:$0xff]
        %v1036 = vld [vmem:[%s411 + $0xe20] sm:$0xff]
        %v1037 = vld [vmem:[%s411 + $0xe28] sm:$0xff]
        %v1038 = vld [vmem:[%s411 + $0xe30] sm:$0xff]
        %v1039 = vld [vmem:[%s411 + $0xe38] sm:$0xff]
        %v1040 = vld [vmem:[%s411 + $0xe40] sm:$0xff]
        %v1041 = vld [vmem:[%s411 + $0xe48] sm:$0xff]
        %v1042 = vld [vmem:[%s411 + $0xe50] sm:$0xff]
        %v1043 = vld [vmem:[%s411 + $0xe58] sm:$0xff]
        %v1044 = vld [vmem:[%s411 + $0xe60] sm:$0xff]
        %v1045 = vld [vmem:[%s411 + $0xe68] sm:$0xff]
        %v1046 = vld [vmem:[%s411 + $0xe70] sm:$0xff]
        %v1047 = vld [vmem:[%s411 + $0xe78] sm:$0xff]
        %v1048 = vld [vmem:[%s411 + $0xe80] sm:$0xff]
        %v1049 = vld [vmem:[%s411 + $0xe88] sm:$0xff]
        %v1050 = vld [vmem:[%s411 + $0xe90] sm:$0xff]
        %v1051 = vld [vmem:[%s411 + $0xe98] sm:$0xff]
        %v1052 = vld [vmem:[%s411 + $0xea0] sm:$0xff]
        %v1053 = vld [vmem:[%s411 + $0xea8] sm:$0xff]
        %v1054 = vld [vmem:[%s411 + $0xeb0] sm:$0xff]
        %v1055 = vld [vmem:[%s411 + $0xeb8] sm:$0xff]
        %v1056 = vld [vmem:[%s411 + $0xec0] sm:$0xff]
        %v1057 = vld [vmem:[%s411 + $0xec8] sm:$0xff]
        %v1058 = vld [vmem:[%s411 + $0xed0] sm:$0xff]
        %v1059 = vld [vmem:[%s411 + $0xed8] sm:$0xff]
        %v1060 = vld [vmem:[%s411 + $0xee0] sm:$0xff]
        %v1061 = vld [vmem:[%s411 + $0xee8] sm:$0xff]
        %v1062 = vld [vmem:[%s411 + $0xef0] sm:$0xff]
        %v1063 = vld [vmem:[%s411 + $0xef8] sm:$0xff]
        %v1064 = vld [vmem:[%s411 + $0xf00] sm:$0xff]
        %v1065 = vld [vmem:[%s411 + $0xf08] sm:$0xff]
        %v1066 = vld [vmem:[%s411 + $0xf10] sm:$0xff]
        %v1067 = vld [vmem:[%s411 + $0xf18] sm:$0xff]
        %v1068 = vld [vmem:[%s411 + $0xf20] sm:$0xff]
        %v1069 = vld [vmem:[%s411 + $0xf28] sm:$0xff]
        %v1070 = vld [vmem:[%s411 + $0xf30] sm:$0xff]
        %v1071 = vld [vmem:[%s411 + $0xf38] sm:$0xff]
        %v1072 = vld [vmem:[%s411 + $0xf40] sm:$0xff]
        %v1073 = vld [vmem:[%s411 + $0xf48] sm:$0xff]
        %v1074 = vld [vmem:[%s411 + $0xf50] sm:$0xff]
        %v1075 = vld [vmem:[%s411 + $0xf58] sm:$0xff]
        %v1076 = vld [vmem:[%s411 + $0xf60] sm:$0xff]
        %v1077 = vld [vmem:[%s411 + $0xf68] sm:$0xff]
        %v1078 = vld [vmem:[%s411 + $0xf70] sm:$0xff]
        %v1079 = vld [vmem:[%s411 + $0xf78] sm:$0xff]
        %v1080 = vld [vmem:[%s411 + $0xf80] sm:$0xff]
        %v1081 = vld [vmem:[%s411 + $0xf88] sm:$0xff]
        %v1082 = vld [vmem:[%s411 + $0xf90] sm:$0xff]
        %v1083 = vld [vmem:[%s411 + $0xf98] sm:$0xff]
        %v1084 = vld [vmem:[%s411 + $0xfa0] sm:$0xff]
        %v1085 = vld [vmem:[%s411 + $0xfa8] sm:$0xff]
        %v1086 = vld [vmem:[%s411 + $0xfb0] sm:$0xff]
        %v1087 = vld [vmem:[%s411 + $0xfb8] sm:$0xff]
        %v1088 = vld [vmem:[%s411 + $0xfc0] sm:$0xff]
        %v1089 = vld [vmem:[%s411 + $0xfc8] sm:$0xff]
        %v1090 = vld [vmem:[%s411 + $0xfd0] sm:$0xff]
        %v1091 = vld [vmem:[%s411 + $0xfd8] sm:$0xff]
        %v1092 = vld [vmem:[%s411 + $0xfe0] sm:$0xff]
        %v1093 = vld [vmem:[%s411 + $0xfe8] sm:$0xff]
        %v1094 = vld [vmem:[%s411 + $0xff0] sm:$0xff]
        %v1095 = vld [vmem:[%s411 + $0xff8] sm:$0xff]
        %v1608 = vunpack.c.l.b16 %v584
        %v1609 = vunpack.c.h.b16 %v584
        %v1610 = vunpack.c.l.b16 %v585
        %v1611 = vunpack.c.h.b16 %v585
        %v1612 = vunpack.c.l.b16 %v586
        %v1613 = vunpack.c.h.b16 %v586
        %v1614 = vunpack.c.l.b16 %v587
        %v1615 = vunpack.c.h.b16 %v587
        %v1616 = vunpack.c.l.b16 %v588
        %v1617 = vunpack.c.h.b16 %v588
        %v1618 = vunpack.c.l.b16 %v589
        %v1619 = vunpack.c.h.b16 %v589
        %v1620 = vunpack.c.l.b16 %v590
        %v1621 = vunpack.c.h.b16 %v590
        %v1622 = vunpack.c.l.b16 %v591
        %v1623 = vunpack.c.h.b16 %v591
        %v1624 = vunpack.c.l.b16 %v592
        %v1625 = vunpack.c.h.b16 %v592
        %v1626 = vunpack.c.l.b16 %v593
        %v1627 = vunpack.c.h.b16 %v593
        %v1628 = vunpack.c.l.b16 %v594
        %v1629 = vunpack.c.h.b16 %v594
        %v1630 = vunpack.c.l.b16 %v595
        %v1631 = vunpack.c.h.b16 %v595
        %v1632 = vunpack.c.l.b16 %v596
        %v1633 = vunpack.c.h.b16 %v596
        %v1634 = vunpack.c.l.b16 %v597
        %v1635 = vunpack.c.h.b16 %v597
        %v1636 = vunpack.c.l.b16 %v598
        %v1637 = vunpack.c.h.b16 %v598
        %v1638 = vunpack.c.l.b16 %v599
        %v1639 = vunpack.c.h.b16 %v599
        %v1640 = vunpack.c.l.b16 %v600
        %v1641 = vunpack.c.h.b16 %v600
        %v1642 = vunpack.c.l.b16 %v601
        %v1643 = vunpack.c.h.b16 %v601
        %v1644 = vunpack.c.l.b16 %v602
        %v1645 = vunpack.c.h.b16 %v602
        %v1646 = vunpack.c.l.b16 %v603
        %v1647 = vunpack.c.h.b16 %v603
        %v1648 = vunpack.c.l.b16 %v604
        %v1649 = vunpack.c.h.b16 %v604
        %v1650 = vunpack.c.l.b16 %v605
        %v1651 = vunpack.c.h.b16 %v605
        %v1652 = vunpack.c.l.b16 %v606
        %v1653 = vunpack.c.h.b16 %v606
        %v1654 = vunpack.c.l.b16 %v607
        %v1655 = vunpack.c.h.b16 %v607
        %v1656 = vunpack.c.l.b16 %v608
        %v1657 = vunpack.c.h.b16 %v608
        %v1658 = vunpack.c.l.b16 %v609
        %v1659 = vunpack.c.h.b16 %v609
        %v1660 = vunpack.c.l.b16 %v610
        %v1661 = vunpack.c.h.b16 %v610
        %v1662 = vunpack.c.l.b16 %v611
        %v1663 = vunpack.c.h.b16 %v611
        %v1664 = vunpack.c.l.b16 %v612
        %v1665 = vunpack.c.h.b16 %v612
        %v1666 = vunpack.c.l.b16 %v613
        %v1667 = vunpack.c.h.b16 %v613
        %v1668 = vunpack.c.l.b16 %v614
        %v1669 = vunpack.c.h.b16 %v614
        %v1670 = vunpack.c.l.b16 %v615
        %v1671 = vunpack.c.h.b16 %v615
        %v1672 = vunpack.c.l.b16 %v616
        %v1673 = vunpack.c.h.b16 %v616
        %v1674 = vunpack.c.l.b16 %v617
        %v1675 = vunpack.c.h.b16 %v617
        %v1676 = vunpack.c.l.b16 %v618
        %v1677 = vunpack.c.h.b16 %v618
        %v1678 = vunpack.c.l.b16 %v619
        %v1679 = vunpack.c.h.b16 %v619
        %v1680 = vunpack.c.l.b16 %v620
        %v1681 = vunpack.c.h.b16 %v620
        %v1682 = vunpack.c.l.b16 %v621
        %v1683 = vunpack.c.h.b16 %v621
        %v1684 = vunpack.c.l.b16 %v622
        %v1685 = vunpack.c.h.b16 %v622
        %v1686 = vunpack.c.l.b16 %v623
        %v1687 = vunpack.c.h.b16 %v623
        %v1688 = vunpack.c.l.b16 %v624
        %v1689 = vunpack.c.h.b16 %v624
        %v1690 = vunpack.c.l.b16 %v625
        %v1691 = vunpack.c.h.b16 %v625
        %v1692 = vunpack.c.l.b16 %v626
        %v1693 = vunpack.c.h.b16 %v626
        %v1694 = vunpack.c.l.b16 %v627
        %v1695 = vunpack.c.h.b16 %v627
        %v1696 = vunpack.c.l.b16 %v628
        %v1697 = vunpack.c.h.b16 %v628
        %v1698 = vunpack.c.l.b16 %v629
        %v1699 = vunpack.c.h.b16 %v629
        %v1700 = vunpack.c.l.b16 %v630
        %v1701 = vunpack.c.h.b16 %v630
        %v1702 = vunpack.c.l.b16 %v631
        %v1703 = vunpack.c.h.b16 %v631
        %v1704 = vunpack.c.l.b16 %v632
        %v1705 = vunpack.c.h.b16 %v632
        %v1706 = vunpack.c.l.b16 %v633
        %v1707 = vunpack.c.h.b16 %v633
        %v1708 = vunpack.c.l.b16 %v634
        %v1709 = vunpack.c.h.b16 %v634
        %v1710 = vunpack.c.l.b16 %v635
        %v1711 = vunpack.c.h.b16 %v635
        %v1712 = vunpack.c.l.b16 %v636
        %v1713 = vunpack.c.h.b16 %v636
        %v1714 = vunpack.c.l.b16 %v637
        %v1715 = vunpack.c.h.b16 %v637
        %v1716 = vunpack.c.l.b16 %v638
        %v1717 = vunpack.c.h.b16 %v638
        %v1718 = vunpack.c.l.b16 %v639
        %v1719 = vunpack.c.h.b16 %v639
        %v1720 = vunpack.c.l.b16 %v640
        %v1721 = vunpack.c.h.b16 %v640
        %v1722 = vunpack.c.l.b16 %v641
        %v1723 = vunpack.c.h.b16 %v641
        %v1724 = vunpack.c.l.b16 %v642
        %v1725 = vunpack.c.h.b16 %v642
        %v1726 = vunpack.c.l.b16 %v643
        %v1727 = vunpack.c.h.b16 %v643
        %v1728 = vunpack.c.l.b16 %v644
        %v1729 = vunpack.c.h.b16 %v644
        %v1730 = vunpack.c.l.b16 %v645
        %v1731 = vunpack.c.h.b16 %v645
        %v1732 = vunpack.c.l.b16 %v646
        %v1733 = vunpack.c.h.b16 %v646
        %v1734 = vunpack.c.l.b16 %v647
        %v1735 = vunpack.c.h.b16 %v647
        %v1736 = vunpack.c.l.b16 %v648
        %v1737 = vunpack.c.h.b16 %v648
        %v1738 = vunpack.c.l.b16 %v649
        %v1739 = vunpack.c.h.b16 %v649
        %v1740 = vunpack.c.l.b16 %v650
        %v1741 = vunpack.c.h.b16 %v650
        %v1742 = vunpack.c.l.b16 %v651
        %v1743 = vunpack.c.h.b16 %v651
        %v1744 = vunpack.c.l.b16 %v652
        %v1745 = vunpack.c.h.b16 %v652
        %v1746 = vunpack.c.l.b16 %v653
        %v1747 = vunpack.c.h.b16 %v653
        %v1748 = vunpack.c.l.b16 %v654
        %v1749 = vunpack.c.h.b16 %v654
        %v1750 = vunpack.c.l.b16 %v655
        %v1751 = vunpack.c.h.b16 %v655
        %v1752 = vunpack.c.l.b16 %v656
        %v1753 = vunpack.c.h.b16 %v656
        %v1754 = vunpack.c.l.b16 %v657
        %v1755 = vunpack.c.h.b16 %v657
        %v1756 = vunpack.c.l.b16 %v658
        %v1757 = vunpack.c.h.b16 %v658
        %v1758 = vunpack.c.l.b16 %v659
        %v1759 = vunpack.c.h.b16 %v659
        %v1760 = vunpack.c.l.b16 %v660
        %v1761 = vunpack.c.h.b16 %v660
        %v1762 = vunpack.c.l.b16 %v661
        %v1763 = vunpack.c.h.b16 %v661
        %v1764 = vunpack.c.l.b16 %v662
        %v1765 = vunpack.c.h.b16 %v662
        %v1766 = vunpack.c.l.b16 %v663
        %v1767 = vunpack.c.h.b16 %v663
        %v1768 = vunpack.c.l.b16 %v664
        %v1769 = vunpack.c.h.b16 %v664
        %v1770 = vunpack.c.l.b16 %v665
        %v1771 = vunpack.c.h.b16 %v665
        %v1772 = vunpack.c.l.b16 %v666
        %v1773 = vunpack.c.h.b16 %v666
        %v1774 = vunpack.c.l.b16 %v667
        %v1775 = vunpack.c.h.b16 %v667
        %v1776 = vunpack.c.l.b16 %v668
        %v1777 = vunpack.c.h.b16 %v668
        %v1778 = vunpack.c.l.b16 %v669
        %v1779 = vunpack.c.h.b16 %v669
        %v1780 = vunpack.c.l.b16 %v670
        %v1781 = vunpack.c.h.b16 %v670
        %v1782 = vunpack.c.l.b16 %v671
        %v1783 = vunpack.c.h.b16 %v671
        %v1784 = vunpack.c.l.b16 %v672
        %v1785 = vunpack.c.h.b16 %v672
        %v1786 = vunpack.c.l.b16 %v673
        %v1787 = vunpack.c.h.b16 %v673
        %v1788 = vunpack.c.l.b16 %v674
        %v1789 = vunpack.c.h.b16 %v674
        %v1790 = vunpack.c.l.b16 %v675
        %v1791 = vunpack.c.h.b16 %v675
        %v1792 = vunpack.c.l.b16 %v676
        %v1793 = vunpack.c.h.b16 %v676
        %v1794 = vunpack.c.l.b16 %v677
        %v1795 = vunpack.c.h.b16 %v677
        %v1796 = vunpack.c.l.b16 %v678
        %v1797 = vunpack.c.h.b16 %v678
        %v1798 = vunpack.c.l.b16 %v679
        %v1799 = vunpack.c.h.b16 %v679
        %v1800 = vunpack.c.l.b16 %v680
        %v1801 = vunpack.c.h.b16 %v680
        %v1802 = vunpack.c.l.b16 %v681
        %v1803 = vunpack.c.h.b16 %v681
        %v1804 = vunpack.c.l.b16 %v682
        %v1805 = vunpack.c.h.b16 %v682
        %v1806 = vunpack.c.l.b16 %v683
        %v1807 = vunpack.c.h.b16 %v683
        %v1808 = vunpack.c.l.b16 %v684
        %v1809 = vunpack.c.h.b16 %v684
        %v1810 = vunpack.c.l.b16 %v685
        %v1811 = vunpack.c.h.b16 %v685
        %v1812 = vunpack.c.l.b16 %v686
        %v1813 = vunpack.c.h.b16 %v686
        %v1814 = vunpack.c.l.b16 %v687
        %v1815 = vunpack.c.h.b16 %v687
        %v1816 = vunpack.c.l.b16 %v688
        %v1817 = vunpack.c.h.b16 %v688
        %v1818 = vunpack.c.l.b16 %v689
        %v1819 = vunpack.c.h.b16 %v689
        %v1820 = vunpack.c.l.b16 %v690
        %v1821 = vunpack.c.h.b16 %v690
        %v1822 = vunpack.c.l.b16 %v691
        %v1823 = vunpack.c.h.b16 %v691
        %v1824 = vunpack.c.l.b16 %v692
        %v1825 = vunpack.c.h.b16 %v692
        %v1826 = vunpack.c.l.b16 %v693
        %v1827 = vunpack.c.h.b16 %v693
        %v1828 = vunpack.c.l.b16 %v694
        %v1829 = vunpack.c.h.b16 %v694
        %v1830 = vunpack.c.l.b16 %v695
        %v1831 = vunpack.c.h.b16 %v695
        %v1832 = vunpack.c.l.b16 %v696
        %v1833 = vunpack.c.h.b16 %v696
        %v1834 = vunpack.c.l.b16 %v697
        %v1835 = vunpack.c.h.b16 %v697
        %v1836 = vunpack.c.l.b16 %v698
        %v1837 = vunpack.c.h.b16 %v698
        %v1838 = vunpack.c.l.b16 %v699
        %v1839 = vunpack.c.h.b16 %v699
        %v1840 = vunpack.c.l.b16 %v700
        %v1841 = vunpack.c.h.b16 %v700
        %v1842 = vunpack.c.l.b16 %v701
        %v1843 = vunpack.c.h.b16 %v701
        %v1844 = vunpack.c.l.b16 %v702
        %v1845 = vunpack.c.h.b16 %v702
        %v1846 = vunpack.c.l.b16 %v703
        %v1847 = vunpack.c.h.b16 %v703
        %v1848 = vunpack.c.l.b16 %v704
        %v1849 = vunpack.c.h.b16 %v704
        %v1850 = vunpack.c.l.b16 %v705
        %v1851 = vunpack.c.h.b16 %v705
        %v1852 = vunpack.c.l.b16 %v706
        %v1853 = vunpack.c.h.b16 %v706
        %v1854 = vunpack.c.l.b16 %v707
        %v1855 = vunpack.c.h.b16 %v707
        %v1856 = vunpack.c.l.b16 %v708
        %v1857 = vunpack.c.h.b16 %v708
        %v1858 = vunpack.c.l.b16 %v709
        %v1859 = vunpack.c.h.b16 %v709
        %v1860 = vunpack.c.l.b16 %v710
        %v1861 = vunpack.c.h.b16 %v710
        %v1862 = vunpack.c.l.b16 %v711
        %v1863 = vunpack.c.h.b16 %v711
        %v1864 = vunpack.c.l.b16 %v712
        %v1865 = vunpack.c.h.b16 %v712
        %v1866 = vunpack.c.l.b16 %v713
        %v1867 = vunpack.c.h.b16 %v713
        %v1868 = vunpack.c.l.b16 %v714
        %v1869 = vunpack.c.h.b16 %v714
        %v1870 = vunpack.c.l.b16 %v715
        %v1871 = vunpack.c.h.b16 %v715
        %v1872 = vunpack.c.l.b16 %v716
        %v1873 = vunpack.c.h.b16 %v716
        %v1874 = vunpack.c.l.b16 %v717
        %v1875 = vunpack.c.h.b16 %v717
        %v1876 = vunpack.c.l.b16 %v718
        %v1877 = vunpack.c.h.b16 %v718
        %v1878 = vunpack.c.l.b16 %v719
        %v1879 = vunpack.c.h.b16 %v719
        %v1880 = vunpack.c.l.b16 %v720
        %v1881 = vunpack.c.h.b16 %v720
        %v1882 = vunpack.c.l.b16 %v721
        %v1883 = vunpack.c.h.b16 %v721
        %v1884 = vunpack.c.l.b16 %v722
        %v1885 = vunpack.c.h.b16 %v722
        %v1886 = vunpack.c.l.b16 %v723
        %v1887 = vunpack.c.h.b16 %v723
        %v1888 = vunpack.c.l.b16 %v724
        %v1889 = vunpack.c.h.b16 %v724
        %v1890 = vunpack.c.l.b16 %v725
        %v1891 = vunpack.c.h.b16 %v725
        %v1892 = vunpack.c.l.b16 %v726
        %v1893 = vunpack.c.h.b16 %v726
        %v1894 = vunpack.c.l.b16 %v727
        %v1895 = vunpack.c.h.b16 %v727
        %v1896 = vunpack.c.l.b16 %v728
        %v1897 = vunpack.c.h.b16 %v728
        %v1898 = vunpack.c.l.b16 %v729
        %v1899 = vunpack.c.h.b16 %v729
        %v1900 = vunpack.c.l.b16 %v730
        %v1901 = vunpack.c.h.b16 %v730
        %v1902 = vunpack.c.l.b16 %v731
        %v1903 = vunpack.c.h.b16 %v731
        %v1904 = vunpack.c.l.b16 %v732
        %v1905 = vunpack.c.h.b16 %v732
        %v1906 = vunpack.c.l.b16 %v733
        %v1907 = vunpack.c.h.b16 %v733
        %v1908 = vunpack.c.l.b16 %v734
        %v1909 = vunpack.c.h.b16 %v734
        %v1910 = vunpack.c.l.b16 %v735
        %v1911 = vunpack.c.h.b16 %v735
        %v1912 = vunpack.c.l.b16 %v736
        %v1913 = vunpack.c.h.b16 %v736
        %v1914 = vunpack.c.l.b16 %v737
        %v1915 = vunpack.c.h.b16 %v737
        %v1916 = vunpack.c.l.b16 %v738
        %v1917 = vunpack.c.h.b16 %v738
        %v1918 = vunpack.c.l.b16 %v739
        %v1919 = vunpack.c.h.b16 %v739
        %v1920 = vunpack.c.l.b16 %v740
        %v1921 = vunpack.c.h.b16 %v740
        %v1922 = vunpack.c.l.b16 %v741
        %v1923 = vunpack.c.h.b16 %v741
        %v1924 = vunpack.c.l.b16 %v742
        %v1925 = vunpack.c.h.b16 %v742
        %v1926 = vunpack.c.l.b16 %v743
        %v1927 = vunpack.c.h.b16 %v743
        %v1928 = vunpack.c.l.b16 %v744
        %v1929 = vunpack.c.h.b16 %v744
        %v1930 = vunpack.c.l.b16 %v745
        %v1931 = vunpack.c.h.b16 %v745
        %v1932 = vunpack.c.l.b16 %v746
        %v1933 = vunpack.c.h.b16 %v746
        %v1934 = vunpack.c.l.b16 %v747
        %v1935 = vunpack.c.h.b16 %v747
        %v1936 = vunpack.c.l.b16 %v748
        %v1937 = vunpack.c.h.b16 %v748
        %v1938 = vunpack.c.l.b16 %v749
        %v1939 = vunpack.c.h.b16 %v749
        %v1940 = vunpack.c.l.b16 %v750
        %v1941 = vunpack.c.h.b16 %v750
        %v1942 = vunpack.c.l.b16 %v751
        %v1943 = vunpack.c.h.b16 %v751
        %v1944 = vunpack.c.l.b16 %v752
        %v1945 = vunpack.c.h.b16 %v752
        %v1946 = vunpack.c.l.b16 %v753
        %v1947 = vunpack.c.h.b16 %v753
        %v1948 = vunpack.c.l.b16 %v754
        %v1949 = vunpack.c.h.b16 %v754
        %v1950 = vunpack.c.l.b16 %v755
        %v1951 = vunpack.c.h.b16 %v755
        %v1952 = vunpack.c.l.b16 %v756
        %v1953 = vunpack.c.h.b16 %v756
        %v1954 = vunpack.c.l.b16 %v757
        %v1955 = vunpack.c.h.b16 %v757
        %v1956 = vunpack.c.l.b16 %v758
        %v1957 = vunpack.c.h.b16 %v758
        %v1958 = vunpack.c.l.b16 %v759
        %v1959 = vunpack.c.h.b16 %v759
        %v1960 = vunpack.c.l.b16 %v760
        %v1961 = vunpack.c.h.b16 %v760
        %v1962 = vunpack.c.l.b16 %v761
        %v1963 = vunpack.c.h.b16 %v761
        %v1964 = vunpack.c.l.b16 %v762
        %v1965 = vunpack.c.h.b16 %v762
        %v1966 = vunpack.c.l.b16 %v763
        %v1967 = vunpack.c.h.b16 %v763
        %v1968 = vunpack.c.l.b16 %v764
        %v1969 = vunpack.c.h.b16 %v764
        %v1970 = vunpack.c.l.b16 %v765
        %v1971 = vunpack.c.h.b16 %v765
        %v1972 = vunpack.c.l.b16 %v766
        %v1973 = vunpack.c.h.b16 %v766
        %v1974 = vunpack.c.l.b16 %v767
        %v1975 = vunpack.c.h.b16 %v767
        %v1976 = vunpack.c.l.b16 %v768
        %v1977 = vunpack.c.h.b16 %v768
        %v1978 = vunpack.c.l.b16 %v769
        %v1979 = vunpack.c.h.b16 %v769
        %v1980 = vunpack.c.l.b16 %v770
        %v1981 = vunpack.c.h.b16 %v770
        %v1982 = vunpack.c.l.b16 %v771
        %v1983 = vunpack.c.h.b16 %v771
        %v1984 = vunpack.c.l.b16 %v772
        %v1985 = vunpack.c.h.b16 %v772
        %v1986 = vunpack.c.l.b16 %v773
        %v1987 = vunpack.c.h.b16 %v773
        %v1988 = vunpack.c.l.b16 %v774
        %v1989 = vunpack.c.h.b16 %v774
        %v1990 = vunpack.c.l.b16 %v775
        %v1991 = vunpack.c.h.b16 %v775
        %v1992 = vunpack.c.l.b16 %v776
        %v1993 = vunpack.c.h.b16 %v776
        %v1994 = vunpack.c.l.b16 %v777
        %v1995 = vunpack.c.h.b16 %v777
        %v1996 = vunpack.c.l.b16 %v778
        %v1997 = vunpack.c.h.b16 %v778
        %v1998 = vunpack.c.l.b16 %v779
        %v1999 = vunpack.c.h.b16 %v779
        %v2000 = vunpack.c.l.b16 %v780
        %v2001 = vunpack.c.h.b16 %v780
        %v2002 = vunpack.c.l.b16 %v781
        %v2003 = vunpack.c.h.b16 %v781
        %v2004 = vunpack.c.l.b16 %v782
        %v2005 = vunpack.c.h.b16 %v782
        %v2006 = vunpack.c.l.b16 %v783
        %v2007 = vunpack.c.h.b16 %v783
        %v2008 = vunpack.c.l.b16 %v784
        %v2009 = vunpack.c.h.b16 %v784
        %v2010 = vunpack.c.l.b16 %v785
        %v2011 = vunpack.c.h.b16 %v785
        %v2012 = vunpack.c.l.b16 %v786
        %v2013 = vunpack.c.h.b16 %v786
        %v2014 = vunpack.c.l.b16 %v787
        %v2015 = vunpack.c.h.b16 %v787
        %v2016 = vunpack.c.l.b16 %v788
        %v2017 = vunpack.c.h.b16 %v788
        %v2018 = vunpack.c.l.b16 %v789
        %v2019 = vunpack.c.h.b16 %v789
        %v2020 = vunpack.c.l.b16 %v790
        %v2021 = vunpack.c.h.b16 %v790
        %v2022 = vunpack.c.l.b16 %v791
        %v2023 = vunpack.c.h.b16 %v791
        %v2024 = vunpack.c.l.b16 %v792
        %v2025 = vunpack.c.h.b16 %v792
        %v2026 = vunpack.c.l.b16 %v793
        %v2027 = vunpack.c.h.b16 %v793
        %v2028 = vunpack.c.l.b16 %v794
        %v2029 = vunpack.c.h.b16 %v794
        %v2030 = vunpack.c.l.b16 %v795
        %v2031 = vunpack.c.h.b16 %v795
        %v2032 = vunpack.c.l.b16 %v796
        %v2033 = vunpack.c.h.b16 %v796
        %v2034 = vunpack.c.l.b16 %v797
        %v2035 = vunpack.c.h.b16 %v797
        %v2036 = vunpack.c.l.b16 %v798
        %v2037 = vunpack.c.h.b16 %v798
        %v2038 = vunpack.c.l.b16 %v799
        %v2039 = vunpack.c.h.b16 %v799
        %v2040 = vunpack.c.l.b16 %v800
        %v2041 = vunpack.c.h.b16 %v800
        %v2042 = vunpack.c.l.b16 %v801
        %v2043 = vunpack.c.h.b16 %v801
        %v2044 = vunpack.c.l.b16 %v802
        %v2045 = vunpack.c.h.b16 %v802
        %v2046 = vunpack.c.l.b16 %v803
        %v2047 = vunpack.c.h.b16 %v803
        %v2048 = vunpack.c.l.b16 %v804
        %v2049 = vunpack.c.h.b16 %v804
        %v2050 = vunpack.c.l.b16 %v805
        %v2051 = vunpack.c.h.b16 %v805
        %v2052 = vunpack.c.l.b16 %v806
        %v2053 = vunpack.c.h.b16 %v806
        %v2054 = vunpack.c.l.b16 %v807
        %v2055 = vunpack.c.h.b16 %v807
        %v2056 = vunpack.c.l.b16 %v808
        %v2057 = vunpack.c.h.b16 %v808
        %v2058 = vunpack.c.l.b16 %v809
        %v2059 = vunpack.c.h.b16 %v809
        %v2060 = vunpack.c.l.b16 %v810
        %v2061 = vunpack.c.h.b16 %v810
        %v2062 = vunpack.c.l.b16 %v811
        %v2063 = vunpack.c.h.b16 %v811
        %v2064 = vunpack.c.l.b16 %v812
        %v2065 = vunpack.c.h.b16 %v812
        %v2066 = vunpack.c.l.b16 %v813
        %v2067 = vunpack.c.h.b16 %v813
        %v2068 = vunpack.c.l.b16 %v814
        %v2069 = vunpack.c.h.b16 %v814
        %v2070 = vunpack.c.l.b16 %v815
        %v2071 = vunpack.c.h.b16 %v815
        %v2072 = vunpack.c.l.b16 %v816
        %v2073 = vunpack.c.h.b16 %v816
        %v2074 = vunpack.c.l.b16 %v817
        %v2075 = vunpack.c.h.b16 %v817
        %v2076 = vunpack.c.l.b16 %v818
        %v2077 = vunpack.c.h.b16 %v818
        %v2078 = vunpack.c.l.b16 %v819
        %v2079 = vunpack.c.h.b16 %v819
        %v2080 = vunpack.c.l.b16 %v820
        %v2081 = vunpack.c.h.b16 %v820
        %v2082 = vunpack.c.l.b16 %v821
        %v2083 = vunpack.c.h.b16 %v821
        %v2084 = vunpack.c.l.b16 %v822
        %v2085 = vunpack.c.h.b16 %v822
        %v2086 = vunpack.c.l.b16 %v823
        %v2087 = vunpack.c.h.b16 %v823
        %v2088 = vunpack.c.l.b16 %v824
        %v2089 = vunpack.c.h.b16 %v824
        %v2090 = vunpack.c.l.b16 %v825
        %v2091 = vunpack.c.h.b16 %v825
        %v2092 = vunpack.c.l.b16 %v826
        %v2093 = vunpack.c.h.b16 %v826
        %v2094 = vunpack.c.l.b16 %v827
        %v2095 = vunpack.c.h.b16 %v827
        %v2096 = vunpack.c.l.b16 %v828
        %v2097 = vunpack.c.h.b16 %v828
        %v2098 = vunpack.c.l.b16 %v829
        %v2099 = vunpack.c.h.b16 %v829
        %v2100 = vunpack.c.l.b16 %v830
        %v2101 = vunpack.c.h.b16 %v830
        %v2102 = vunpack.c.l.b16 %v831
        %v2103 = vunpack.c.h.b16 %v831
        %v2104 = vunpack.c.l.b16 %v832
        %v2105 = vunpack.c.h.b16 %v832
        %v2106 = vunpack.c.l.b16 %v833
        %v2107 = vunpack.c.h.b16 %v833
        %v2108 = vunpack.c.l.b16 %v834
        %v2109 = vunpack.c.h.b16 %v834
        %v2110 = vunpack.c.l.b16 %v835
        %v2111 = vunpack.c.h.b16 %v835
        %v2112 = vunpack.c.l.b16 %v836
        %v2113 = vunpack.c.h.b16 %v836
        %v2114 = vunpack.c.l.b16 %v837
        %v2115 = vunpack.c.h.b16 %v837
        %v2116 = vunpack.c.l.b16 %v838
        %v2117 = vunpack.c.h.b16 %v838
        %v2118 = vunpack.c.l.b16 %v839
        %v2119 = vunpack.c.h.b16 %v839
        %v2120 = vunpack.c.l.b16 %v840
        %v2121 = vunpack.c.h.b16 %v840
        %v2122 = vunpack.c.l.b16 %v841
        %v2123 = vunpack.c.h.b16 %v841
        %v2124 = vunpack.c.l.b16 %v842
        %v2125 = vunpack.c.h.b16 %v842
        %v2126 = vunpack.c.l.b16 %v843
        %v2127 = vunpack.c.h.b16 %v843
        %v2128 = vunpack.c.l.b16 %v844
        %v2129 = vunpack.c.h.b16 %v844
        %v2130 = vunpack.c.l.b16 %v845
        %v2131 = vunpack.c.h.b16 %v845
        %v2132 = vunpack.c.l.b16 %v846
        %v2133 = vunpack.c.h.b16 %v846
        %v2134 = vunpack.c.l.b16 %v847
        %v2135 = vunpack.c.h.b16 %v847
        %v2136 = vunpack.c.l.b16 %v848
        %v2137 = vunpack.c.h.b16 %v848
        %v2138 = vunpack.c.l.b16 %v849
        %v2139 = vunpack.c.h.b16 %v849
        %v2140 = vunpack.c.l.b16 %v850
        %v2141 = vunpack.c.h.b16 %v850
        %v2142 = vunpack.c.l.b16 %v851
        %v2143 = vunpack.c.h.b16 %v851
        %v2144 = vunpack.c.l.b16 %v852
        %v2145 = vunpack.c.h.b16 %v852
        %v2146 = vunpack.c.l.b16 %v853
        %v2147 = vunpack.c.h.b16 %v853
        %v2148 = vunpack.c.l.b16 %v854
        %v2149 = vunpack.c.h.b16 %v854
        %v2150 = vunpack.c.l.b16 %v855
        %v2151 = vunpack.c.h.b16 %v855
        %v2152 = vunpack.c.l.b16 %v856
        %v2153 = vunpack.c.h.b16 %v856
        %v2154 = vunpack.c.l.b16 %v857
        %v2155 = vunpack.c.h.b16 %v857
        %v2156 = vunpack.c.l.b16 %v858
        %v2157 = vunpack.c.h.b16 %v858
        %v2158 = vunpack.c.l.b16 %v859
        %v2159 = vunpack.c.h.b16 %v859
        %v2160 = vunpack.c.l.b16 %v860
        %v2161 = vunpack.c.h.b16 %v860
        %v2162 = vunpack.c.l.b16 %v861
        %v2163 = vunpack.c.h.b16 %v861
        %v2164 = vunpack.c.l.b16 %v862
        %v2165 = vunpack.c.h.b16 %v862
        %v2166 = vunpack.c.l.b16 %v863
        %v2167 = vunpack.c.h.b16 %v863
        %v2168 = vunpack.c.l.b16 %v864
        %v2169 = vunpack.c.h.b16 %v864
        %v2170 = vunpack.c.l.b16 %v865
        %v2171 = vunpack.c.h.b16 %v865
        %v2172 = vunpack.c.l.b16 %v866
        %v2173 = vunpack.c.h.b16 %v866
        %v2174 = vunpack.c.l.b16 %v867
        %v2175 = vunpack.c.h.b16 %v867
        %v2176 = vunpack.c.l.b16 %v868
        %v2177 = vunpack.c.h.b16 %v868
        %v2178 = vunpack.c.l.b16 %v869
        %v2179 = vunpack.c.h.b16 %v869
        %v2180 = vunpack.c.l.b16 %v870
        %v2181 = vunpack.c.h.b16 %v870
        %v2182 = vunpack.c.l.b16 %v871
        %v2183 = vunpack.c.h.b16 %v871
        %v2184 = vunpack.c.l.b16 %v872
        %v2185 = vunpack.c.h.b16 %v872
        %v2186 = vunpack.c.l.b16 %v873
        %v2187 = vunpack.c.h.b16 %v873
        %v2188 = vunpack.c.l.b16 %v874
        %v2189 = vunpack.c.h.b16 %v874
        %v2190 = vunpack.c.l.b16 %v875
        %v2191 = vunpack.c.h.b16 %v875
        %v2192 = vunpack.c.l.b16 %v876
        %v2193 = vunpack.c.h.b16 %v876
        %v2194 = vunpack.c.l.b16 %v877
        %v2195 = vunpack.c.h.b16 %v877
        %v2196 = vunpack.c.l.b16 %v878
        %v2197 = vunpack.c.h.b16 %v878
        %v2198 = vunpack.c.l.b16 %v879
        %v2199 = vunpack.c.h.b16 %v879
        %v2200 = vunpack.c.l.b16 %v880
        %v2201 = vunpack.c.h.b16 %v880
        %v2202 = vunpack.c.l.b16 %v881
        %v2203 = vunpack.c.h.b16 %v881
        %v2204 = vunpack.c.l.b16 %v882
        %v2205 = vunpack.c.h.b16 %v882
        %v2206 = vunpack.c.l.b16 %v883
        %v2207 = vunpack.c.h.b16 %v883
        %v2208 = vunpack.c.l.b16 %v884
        %v2209 = vunpack.c.h.b16 %v884
        %v2210 = vunpack.c.l.b16 %v885
        %v2211 = vunpack.c.h.b16 %v885
        %v2212 = vunpack.c.l.b16 %v886
        %v2213 = vunpack.c.h.b16 %v886
        %v2214 = vunpack.c.l.b16 %v887
        %v2215 = vunpack.c.h.b16 %v887
        %v2216 = vunpack.c.l.b16 %v888
        %v2217 = vunpack.c.h.b16 %v888
        %v2218 = vunpack.c.l.b16 %v889
        %v2219 = vunpack.c.h.b16 %v889
        %v2220 = vunpack.c.l.b16 %v890
        %v2221 = vunpack.c.h.b16 %v890
        %v2222 = vunpack.c.l.b16 %v891
        %v2223 = vunpack.c.h.b16 %v891
        %v2224 = vunpack.c.l.b16 %v892
        %v2225 = vunpack.c.h.b16 %v892
        %v2226 = vunpack.c.l.b16 %v893
        %v2227 = vunpack.c.h.b16 %v893
        %v2228 = vunpack.c.l.b16 %v894
        %v2229 = vunpack.c.h.b16 %v894
        %v2230 = vunpack.c.l.b16 %v895
        %v2231 = vunpack.c.h.b16 %v895
        %v2232 = vunpack.c.l.b16 %v896
        %v2233 = vunpack.c.h.b16 %v896
        %v2234 = vunpack.c.l.b16 %v897
        %v2235 = vunpack.c.h.b16 %v897
        %v2236 = vunpack.c.l.b16 %v898
        %v2237 = vunpack.c.h.b16 %v898
        %v2238 = vunpack.c.l.b16 %v899
        %v2239 = vunpack.c.h.b16 %v899
        %v2240 = vunpack.c.l.b16 %v900
        %v2241 = vunpack.c.h.b16 %v900
        %v2242 = vunpack.c.l.b16 %v901
        %v2243 = vunpack.c.h.b16 %v901
        %v2244 = vunpack.c.l.b16 %v902
        %v2245 = vunpack.c.h.b16 %v902
        %v2246 = vunpack.c.l.b16 %v903
        %v2247 = vunpack.c.h.b16 %v903
        %v2248 = vunpack.c.l.b16 %v904
        %v2249 = vunpack.c.h.b16 %v904
        %v2250 = vunpack.c.l.b16 %v905
        %v2251 = vunpack.c.h.b16 %v905
        %v2252 = vunpack.c.l.b16 %v906
        %v2253 = vunpack.c.h.b16 %v906
        %v2254 = vunpack.c.l.b16 %v907
        %v2255 = vunpack.c.h.b16 %v907
        %v2256 = vunpack.c.l.b16 %v908
        %v2257 = vunpack.c.h.b16 %v908
        %v2258 = vunpack.c.l.b16 %v909
        %v2259 = vunpack.c.h.b16 %v909
        %v2260 = vunpack.c.l.b16 %v910
        %v2261 = vunpack.c.h.b16 %v910
        %v2262 = vunpack.c.l.b16 %v911
        %v2263 = vunpack.c.h.b16 %v911
        %v2264 = vunpack.c.l.b16 %v912
        %v2265 = vunpack.c.h.b16 %v912
        %v2266 = vunpack.c.l.b16 %v913
        %v2267 = vunpack.c.h.b16 %v913
        %v2268 = vunpack.c.l.b16 %v914
        %v2269 = vunpack.c.h.b16 %v914
        %v2270 = vunpack.c.l.b16 %v915
        %v2271 = vunpack.c.h.b16 %v915
        %v2272 = vunpack.c.l.b16 %v916
        %v2273 = vunpack.c.h.b16 %v916
        %v2274 = vunpack.c.l.b16 %v917
        %v2275 = vunpack.c.h.b16 %v917
        %v2276 = vunpack.c.l.b16 %v918
        %v2277 = vunpack.c.h.b16 %v918
        %v2278 = vunpack.c.l.b16 %v919
        %v2279 = vunpack.c.h.b16 %v919
        %v2280 = vunpack.c.l.b16 %v920
        %v2281 = vunpack.c.h.b16 %v920
        %v2282 = vunpack.c.l.b16 %v921
        %v2283 = vunpack.c.h.b16 %v921
        %v2284 = vunpack.c.l.b16 %v922
        %v2285 = vunpack.c.h.b16 %v922
        %v2286 = vunpack.c.l.b16 %v923
        %v2287 = vunpack.c.h.b16 %v923
        %v2288 = vunpack.c.l.b16 %v924
        %v2289 = vunpack.c.h.b16 %v924
        %v2290 = vunpack.c.l.b16 %v925
        %v2291 = vunpack.c.h.b16 %v925
        %v2292 = vunpack.c.l.b16 %v926
        %v2293 = vunpack.c.h.b16 %v926
        %v2294 = vunpack.c.l.b16 %v927
        %v2295 = vunpack.c.h.b16 %v927
        %v2296 = vunpack.c.l.b16 %v928
        %v2297 = vunpack.c.h.b16 %v928
        %v2298 = vunpack.c.l.b16 %v929
        %v2299 = vunpack.c.h.b16 %v929
        %v2300 = vunpack.c.l.b16 %v930
        %v2301 = vunpack.c.h.b16 %v930
        %v2302 = vunpack.c.l.b16 %v931
        %v2303 = vunpack.c.h.b16 %v931
        %v2304 = vunpack.c.l.b16 %v932
        %v2305 = vunpack.c.h.b16 %v932
        %v2306 = vunpack.c.l.b16 %v933
        %v2307 = vunpack.c.h.b16 %v933
        %v2308 = vunpack.c.l.b16 %v934
        %v2309 = vunpack.c.h.b16 %v934
        %v2310 = vunpack.c.l.b16 %v935
        %v2311 = vunpack.c.h.b16 %v935
        %v2312 = vunpack.c.l.b16 %v936
        %v2313 = vunpack.c.h.b16 %v936
        %v2314 = vunpack.c.l.b16 %v937
        %v2315 = vunpack.c.h.b16 %v937
        %v2316 = vunpack.c.l.b16 %v938
        %v2317 = vunpack.c.h.b16 %v938
        %v2318 = vunpack.c.l.b16 %v939
        %v2319 = vunpack.c.h.b16 %v939
        %v2320 = vunpack.c.l.b16 %v940
        %v2321 = vunpack.c.h.b16 %v940
        %v2322 = vunpack.c.l.b16 %v941
        %v2323 = vunpack.c.h.b16 %v941
        %v2324 = vunpack.c.l.b16 %v942
        %v2325 = vunpack.c.h.b16 %v942
        %v2326 = vunpack.c.l.b16 %v943
        %v2327 = vunpack.c.h.b16 %v943
        %v2328 = vunpack.c.l.b16 %v944
        %v2329 = vunpack.c.h.b16 %v944
        %v2330 = vunpack.c.l.b16 %v945
        %v2331 = vunpack.c.h.b16 %v945
        %v2332 = vunpack.c.l.b16 %v946
        %v2333 = vunpack.c.h.b16 %v946
        %v2334 = vunpack.c.l.b16 %v947
        %v2335 = vunpack.c.h.b16 %v947
        %v2336 = vunpack.c.l.b16 %v948
        %v2337 = vunpack.c.h.b16 %v948
        %v2338 = vunpack.c.l.b16 %v949
        %v2339 = vunpack.c.h.b16 %v949
        %v2340 = vunpack.c.l.b16 %v950
        %v2341 = vunpack.c.h.b16 %v950
        %v2342 = vunpack.c.l.b16 %v951
        %v2343 = vunpack.c.h.b16 %v951
        %v2344 = vunpack.c.l.b16 %v952
        %v2345 = vunpack.c.h.b16 %v952
        %v2346 = vunpack.c.l.b16 %v953
        %v2347 = vunpack.c.h.b16 %v953
        %v2348 = vunpack.c.l.b16 %v954
        %v2349 = vunpack.c.h.b16 %v954
        %v2350 = vunpack.c.l.b16 %v955
        %v2351 = vunpack.c.h.b16 %v955
        %v2352 = vunpack.c.l.b16 %v956
        %v2353 = vunpack.c.h.b16 %v956
        %v2354 = vunpack.c.l.b16 %v957
        %v2355 = vunpack.c.h.b16 %v957
        %v2356 = vunpack.c.l.b16 %v958
        %v2357 = vunpack.c.h.b16 %v958
        %v2358 = vunpack.c.l.b16 %v959
        %v2359 = vunpack.c.h.b16 %v959
        %v2360 = vunpack.c.l.b16 %v960
        %v2361 = vunpack.c.h.b16 %v960
        %v2362 = vunpack.c.l.b16 %v961
        %v2363 = vunpack.c.h.b16 %v961
        %v2364 = vunpack.c.l.b16 %v962
        %v2365 = vunpack.c.h.b16 %v962
        %v2366 = vunpack.c.l.b16 %v963
        %v2367 = vunpack.c.h.b16 %v963
        %v2368 = vunpack.c.l.b16 %v964
        %v2369 = vunpack.c.h.b16 %v964
        %v2370 = vunpack.c.l.b16 %v965
        %v2371 = vunpack.c.h.b16 %v965
        %v2372 = vunpack.c.l.b16 %v966
        %v2373 = vunpack.c.h.b16 %v966
        %v2374 = vunpack.c.l.b16 %v967
        %v2375 = vunpack.c.h.b16 %v967
        %v2376 = vunpack.c.l.b16 %v968
        %v2377 = vunpack.c.h.b16 %v968
        %v2378 = vunpack.c.l.b16 %v969
        %v2379 = vunpack.c.h.b16 %v969
        %v2380 = vunpack.c.l.b16 %v970
        %v2381 = vunpack.c.h.b16 %v970
        %v2382 = vunpack.c.l.b16 %v971
        %v2383 = vunpack.c.h.b16 %v971
        %v2384 = vunpack.c.l.b16 %v972
        %v2385 = vunpack.c.h.b16 %v972
        %v2386 = vunpack.c.l.b16 %v973
        %v2387 = vunpack.c.h.b16 %v973
        %v2388 = vunpack.c.l.b16 %v974
        %v2389 = vunpack.c.h.b16 %v974
        %v2390 = vunpack.c.l.b16 %v975
        %v2391 = vunpack.c.h.b16 %v975
        %v2392 = vunpack.c.l.b16 %v976
        %v2393 = vunpack.c.h.b16 %v976
        %v2394 = vunpack.c.l.b16 %v977
        %v2395 = vunpack.c.h.b16 %v977
        %v2396 = vunpack.c.l.b16 %v978
        %v2397 = vunpack.c.h.b16 %v978
        %v2398 = vunpack.c.l.b16 %v979
        %v2399 = vunpack.c.h.b16 %v979
        %v2400 = vunpack.c.l.b16 %v980
        %v2401 = vunpack.c.h.b16 %v980
        %v2402 = vunpack.c.l.b16 %v981
        %v2403 = vunpack.c.h.b16 %v981
        %v2404 = vunpack.c.l.b16 %v982
        %v2405 = vunpack.c.h.b16 %v982
        %v2406 = vunpack.c.l.b16 %v983
        %v2407 = vunpack.c.h.b16 %v983
        %v2408 = vunpack.c.l.b16 %v984
        %v2409 = vunpack.c.h.b16 %v984
        %v2410 = vunpack.c.l.b16 %v985
        %v2411 = vunpack.c.h.b16 %v985
        %v2412 = vunpack.c.l.b16 %v986
        %v2413 = vunpack.c.h.b16 %v986
        %v2414 = vunpack.c.l.b16 %v987
        %v2415 = vunpack.c.h.b16 %v987
        %v2416 = vunpack.c.l.b16 %v988
        %v2417 = vunpack.c.h.b16 %v988
        %v2418 = vunpack.c.l.b16 %v989
        %v2419 = vunpack.c.h.b16 %v989
        %v2420 = vunpack.c.l.b16 %v990
        %v2421 = vunpack.c.h.b16 %v990
        %v2422 = vunpack.c.l.b16 %v991
        %v2423 = vunpack.c.h.b16 %v991
        %v2424 = vunpack.c.l.b16 %v992
        %v2425 = vunpack.c.h.b16 %v992
        %v2426 = vunpack.c.l.b16 %v993
        %v2427 = vunpack.c.h.b16 %v993
        %v2428 = vunpack.c.l.b16 %v994
        %v2429 = vunpack.c.h.b16 %v994
        %v2430 = vunpack.c.l.b16 %v995
        %v2431 = vunpack.c.h.b16 %v995
        %v2432 = vunpack.c.l.b16 %v996
        %v2433 = vunpack.c.h.b16 %v996
        %v2434 = vunpack.c.l.b16 %v997
        %v2435 = vunpack.c.h.b16 %v997
        %v2436 = vunpack.c.l.b16 %v998
        %v2437 = vunpack.c.h.b16 %v998
        %v2438 = vunpack.c.l.b16 %v999
        %v2439 = vunpack.c.h.b16 %v999
        %v2440 = vunpack.c.l.b16 %v1000
        %v2441 = vunpack.c.h.b16 %v1000
        %v2442 = vunpack.c.l.b16 %v1001
        %v2443 = vunpack.c.h.b16 %v1001
        %v2444 = vunpack.c.l.b16 %v1002
        %v2445 = vunpack.c.h.b16 %v1002
        %v2446 = vunpack.c.l.b16 %v1003
        %v2447 = vunpack.c.h.b16 %v1003
        %v2448 = vunpack.c.l.b16 %v1004
        %v2449 = vunpack.c.h.b16 %v1004
        %v2450 = vunpack.c.l.b16 %v1005
        %v2451 = vunpack.c.h.b16 %v1005
        %v2452 = vunpack.c.l.b16 %v1006
        %v2453 = vunpack.c.h.b16 %v1006
        %v2454 = vunpack.c.l.b16 %v1007
        %v2455 = vunpack.c.h.b16 %v1007
        %v2456 = vunpack.c.l.b16 %v1008
        %v2457 = vunpack.c.h.b16 %v1008
        %v2458 = vunpack.c.l.b16 %v1009
        %v2459 = vunpack.c.h.b16 %v1009
        %v2460 = vunpack.c.l.b16 %v1010
        %v2461 = vunpack.c.h.b16 %v1010
        %v2462 = vunpack.c.l.b16 %v1011
        %v2463 = vunpack.c.h.b16 %v1011
        %v2464 = vunpack.c.l.b16 %v1012
        %v2465 = vunpack.c.h.b16 %v1012
        %v2466 = vunpack.c.l.b16 %v1013
        %v2467 = vunpack.c.h.b16 %v1013
        %v2468 = vunpack.c.l.b16 %v1014
        %v2469 = vunpack.c.h.b16 %v1014
        %v2470 = vunpack.c.l.b16 %v1015
        %v2471 = vunpack.c.h.b16 %v1015
        %v2472 = vunpack.c.l.b16 %v1016
        %v2473 = vunpack.c.h.b16 %v1016
        %v2474 = vunpack.c.l.b16 %v1017
        %v2475 = vunpack.c.h.b16 %v1017
        %v2476 = vunpack.c.l.b16 %v1018
        %v2477 = vunpack.c.h.b16 %v1018
        %v2478 = vunpack.c.l.b16 %v1019
        %v2479 = vunpack.c.h.b16 %v1019
        %v2480 = vunpack.c.l.b16 %v1020
        %v2481 = vunpack.c.h.b16 %v1020
        %v2482 = vunpack.c.l.b16 %v1021
        %v2483 = vunpack.c.h.b16 %v1021
        %v2484 = vunpack.c.l.b16 %v1022
        %v2485 = vunpack.c.h.b16 %v1022
        %v2486 = vunpack.c.l.b16 %v1023
        %v2487 = vunpack.c.h.b16 %v1023
        %v2488 = vunpack.c.l.b16 %v1024
        %v2489 = vunpack.c.h.b16 %v1024
        %v2490 = vunpack.c.l.b16 %v1025
        %v2491 = vunpack.c.h.b16 %v1025
        %v2492 = vunpack.c.l.b16 %v1026
        %v2493 = vunpack.c.h.b16 %v1026
        %v2494 = vunpack.c.l.b16 %v1027
        %v2495 = vunpack.c.h.b16 %v1027
        %v2496 = vunpack.c.l.b16 %v1028
        %v2497 = vunpack.c.h.b16 %v1028
        %v2498 = vunpack.c.l.b16 %v1029
        %v2499 = vunpack.c.h.b16 %v1029
        %v2500 = vunpack.c.l.b16 %v1030
        %v2501 = vunpack.c.h.b16 %v1030
        %v2502 = vunpack.c.l.b16 %v1031
        %v2503 = vunpack.c.h.b16 %v1031
        %v2504 = vunpack.c.l.b16 %v1032
        %v2505 = vunpack.c.h.b16 %v1032
        %v2506 = vunpack.c.l.b16 %v1033
        %v2507 = vunpack.c.h.b16 %v1033
        %v2508 = vunpack.c.l.b16 %v1034
        %v2509 = vunpack.c.h.b16 %v1034
        %v2510 = vunpack.c.l.b16 %v1035
        %v2511 = vunpack.c.h.b16 %v1035
        %v2512 = vunpack.c.l.b16 %v1036
        %v2513 = vunpack.c.h.b16 %v1036
        %v2514 = vunpack.c.l.b16 %v1037
        %v2515 = vunpack.c.h.b16 %v1037
        %v2516 = vunpack.c.l.b16 %v1038
        %v2517 = vunpack.c.h.b16 %v1038
        %v2518 = vunpack.c.l.b16 %v1039
        %v2519 = vunpack.c.h.b16 %v1039
        %v2520 = vunpack.c.l.b16 %v1040
        %v2521 = vunpack.c.h.b16 %v1040
        %v2522 = vunpack.c.l.b16 %v1041
        %v2523 = vunpack.c.h.b16 %v1041
        %v2524 = vunpack.c.l.b16 %v1042
        %v2525 = vunpack.c.h.b16 %v1042
        %v2526 = vunpack.c.l.b16 %v1043
        %v2527 = vunpack.c.h.b16 %v1043
        %v2528 = vunpack.c.l.b16 %v1044
        %v2529 = vunpack.c.h.b16 %v1044
        %v2530 = vunpack.c.l.b16 %v1045
        %v2531 = vunpack.c.h.b16 %v1045
        %v2532 = vunpack.c.l.b16 %v1046
        %v2533 = vunpack.c.h.b16 %v1046
        %v2534 = vunpack.c.l.b16 %v1047
        %v2535 = vunpack.c.h.b16 %v1047
        %v2536 = vunpack.c.l.b16 %v1048
        %v2537 = vunpack.c.h.b16 %v1048
        %v2538 = vunpack.c.l.b16 %v1049
        %v2539 = vunpack.c.h.b16 %v1049
        %v2540 = vunpack.c.l.b16 %v1050
        %v2541 = vunpack.c.h.b16 %v1050
        %v2542 = vunpack.c.l.b16 %v1051
        %v2543 = vunpack.c.h.b16 %v1051
        %v2544 = vunpack.c.l.b16 %v1052
        %v2545 = vunpack.c.h.b16 %v1052
        %v2546 = vunpack.c.l.b16 %v1053
        %v2547 = vunpack.c.h.b16 %v1053
        %v2548 = vunpack.c.l.b16 %v1054
        %v2549 = vunpack.c.h.b16 %v1054
        %v2550 = vunpack.c.l.b16 %v1055
        %v2551 = vunpack.c.h.b16 %v1055
        %v2552 = vunpack.c.l.b16 %v1056
        %v2553 = vunpack.c.h.b16 %v1056
        %v2554 = vunpack.c.l.b16 %v1057
        %v2555 = vunpack.c.h.b16 %v1057
        %v2556 = vunpack.c.l.b16 %v1058
        %v2557 = vunpack.c.h.b16 %v1058
        %v2558 = vunpack.c.l.b16 %v1059
        %v2559 = vunpack.c.h.b16 %v1059
        %v2560 = vunpack.c.l.b16 %v1060
        %v2561 = vunpack.c.h.b16 %v1060
        %v2562 = vunpack.c.l.b16 %v1061
        %v2563 = vunpack.c.h.b16 %v1061
        %v2564 = vunpack.c.l.b16 %v1062
        %v2565 = vunpack.c.h.b16 %v1062
        %v2566 = vunpack.c.l.b16 %v1063
        %v2567 = vunpack.c.h.b16 %v1063
        %v2568 = vunpack.c.l.b16 %v1064
        %v2569 = vunpack.c.h.b16 %v1064
        %v2570 = vunpack.c.l.b16 %v1065
        %v2571 = vunpack.c.h.b16 %v1065
        %v2572 = vunpack.c.l.b16 %v1066
        %v2573 = vunpack.c.h.b16 %v1066
        %v2574 = vunpack.c.l.b16 %v1067
        %v2575 = vunpack.c.h.b16 %v1067
        %v2576 = vunpack.c.l.b16 %v1068
        %v2577 = vunpack.c.h.b16 %v1068
        %v2578 = vunpack.c.l.b16 %v1069
        %v2579 = vunpack.c.h.b16 %v1069
        %v2580 = vunpack.c.l.b16 %v1070
        %v2581 = vunpack.c.h.b16 %v1070
        %v2582 = vunpack.c.l.b16 %v1071
        %v2583 = vunpack.c.h.b16 %v1071
        %v2584 = vunpack.c.l.b16 %v1072
        %v2585 = vunpack.c.h.b16 %v1072
        %v2586 = vunpack.c.l.b16 %v1073
        %v2587 = vunpack.c.h.b16 %v1073
        %v2588 = vunpack.c.l.b16 %v1074
        %v2589 = vunpack.c.h.b16 %v1074
        %v2590 = vunpack.c.l.b16 %v1075
        %v2591 = vunpack.c.h.b16 %v1075
        %v2592 = vunpack.c.l.b16 %v1076
        %v2593 = vunpack.c.h.b16 %v1076
        %v2594 = vunpack.c.l.b16 %v1077
        %v2595 = vunpack.c.h.b16 %v1077
        %v2596 = vunpack.c.l.b16 %v1078
        %v2597 = vunpack.c.h.b16 %v1078
        %v2598 = vunpack.c.l.b16 %v1079
        %v2599 = vunpack.c.h.b16 %v1079
        %v2600 = vunpack.c.l.b16 %v1080
        %v2601 = vunpack.c.h.b16 %v1080
        %v2602 = vunpack.c.l.b16 %v1081
        %v2603 = vunpack.c.h.b16 %v1081
        %v2604 = vunpack.c.l.b16 %v1082
        %v2605 = vunpack.c.h.b16 %v1082
        %v2606 = vunpack.c.l.b16 %v1083
        %v2607 = vunpack.c.h.b16 %v1083
        %v2608 = vunpack.c.l.b16 %v1084
        %v2609 = vunpack.c.h.b16 %v1084
        %v2610 = vunpack.c.l.b16 %v1085
        %v2611 = vunpack.c.h.b16 %v1085
        %v2612 = vunpack.c.l.b16 %v1086
        %v2613 = vunpack.c.h.b16 %v1086
        %v2614 = vunpack.c.l.b16 %v1087
        %v2615 = vunpack.c.h.b16 %v1087
        %v2616 = vunpack.c.l.b16 %v1088
        %v2617 = vunpack.c.h.b16 %v1088
        %v2618 = vunpack.c.l.b16 %v1089
        %v2619 = vunpack.c.h.b16 %v1089
        %v2620 = vunpack.c.l.b16 %v1090
        %v2621 = vunpack.c.h.b16 %v1090
        %v2622 = vunpack.c.l.b16 %v1091
        %v2623 = vunpack.c.h.b16 %v1091
        %v2624 = vunpack.c.l.b16 %v1092
        %v2625 = vunpack.c.h.b16 %v1092
        %v2626 = vunpack.c.l.b16 %v1093
        %v2627 = vunpack.c.h.b16 %v1093
        %v2628 = vunpack.c.l.b16 %v1094
        %v2629 = vunpack.c.h.b16 %v1094
        %v2630 = vunpack.c.l.b16 %v1095
        %v2631 = vunpack.c.h.b16 %v1095
        %v2632 = vpack.c.b16 %v1616, %v1608
        %v2633 = vpack.c.b16 %v1617, %v1609
        %v2634 = vpack.c.b16 %v1618, %v1610
        %v2635 = vpack.c.b16 %v1619, %v1611
        %v2636 = vpack.c.b16 %v1620, %v1612
        %v2637 = vpack.c.b16 %v1621, %v1613
        %v2638 = vpack.c.b16 %v1622, %v1614
        %v2639 = vpack.c.b16 %v1623, %v1615
        %v2640 = vpack.c.b16 %v1632, %v1624
        %v2641 = vpack.c.b16 %v1633, %v1625
        %v2642 = vpack.c.b16 %v1634, %v1626
        %v2643 = vpack.c.b16 %v1635, %v1627
        %v2644 = vpack.c.b16 %v1636, %v1628
        %v2645 = vpack.c.b16 %v1637, %v1629
        %v2646 = vpack.c.b16 %v1638, %v1630
        %v2647 = vpack.c.b16 %v1639, %v1631
        %v2648 = vpack.c.b16 %v1648, %v1640
        %v2649 = vpack.c.b16 %v1649, %v1641
        %v2650 = vpack.c.b16 %v1650, %v1642
        %v2651 = vpack.c.b16 %v1651, %v1643
        %v2652 = vpack.c.b16 %v1652, %v1644
        %v2653 = vpack.c.b16 %v1653, %v1645
        %v2654 = vpack.c.b16 %v1654, %v1646
        %v2655 = vpack.c.b16 %v1655, %v1647
        %v2656 = vpack.c.b16 %v1664, %v1656
        %v2657 = vpack.c.b16 %v1665, %v1657
        %v2658 = vpack.c.b16 %v1666, %v1658
        %v2659 = vpack.c.b16 %v1667, %v1659
        %v2660 = vpack.c.b16 %v1668, %v1660
        %v2661 = vpack.c.b16 %v1669, %v1661
        %v2662 = vpack.c.b16 %v1670, %v1662
        %v2663 = vpack.c.b16 %v1671, %v1663
        %v2664 = vpack.c.b16 %v1680, %v1672
        %v2665 = vpack.c.b16 %v1681, %v1673
        %v2666 = vpack.c.b16 %v1682, %v1674
        %v2667 = vpack.c.b16 %v1683, %v1675
        %v2668 = vpack.c.b16 %v1684, %v1676
        %v2669 = vpack.c.b16 %v1685, %v1677
        %v2670 = vpack.c.b16 %v1686, %v1678
        %v2671 = vpack.c.b16 %v1687, %v1679
        %v2672 = vpack.c.b16 %v1696, %v1688
        %v2673 = vpack.c.b16 %v1697, %v1689
        %v2674 = vpack.c.b16 %v1698, %v1690
        %v2675 = vpack.c.b16 %v1699, %v1691
        %v2676 = vpack.c.b16 %v1700, %v1692
        %v2677 = vpack.c.b16 %v1701, %v1693
        %v2678 = vpack.c.b16 %v1702, %v1694
        %v2679 = vpack.c.b16 %v1703, %v1695
        %v2680 = vpack.c.b16 %v1712, %v1704
        %v2681 = vpack.c.b16 %v1713, %v1705
        %v2682 = vpack.c.b16 %v1714, %v1706
        %v2683 = vpack.c.b16 %v1715, %v1707
        %v2684 = vpack.c.b16 %v1716, %v1708
        %v2685 = vpack.c.b16 %v1717, %v1709
        %v2686 = vpack.c.b16 %v1718, %v1710
        %v2687 = vpack.c.b16 %v1719, %v1711
        %v2688 = vpack.c.b16 %v1728, %v1720
        %v2689 = vpack.c.b16 %v1729, %v1721
        %v2690 = vpack.c.b16 %v1730, %v1722
        %v2691 = vpack.c.b16 %v1731, %v1723
        %v2692 = vpack.c.b16 %v1732, %v1724
        %v2693 = vpack.c.b16 %v1733, %v1725
        %v2694 = vpack.c.b16 %v1734, %v1726
        %v2695 = vpack.c.b16 %v1735, %v1727
        %v2696 = vpack.c.b16 %v1744, %v1736
        %v2697 = vpack.c.b16 %v1745, %v1737
        %v2698 = vpack.c.b16 %v1746, %v1738
        %v2699 = vpack.c.b16 %v1747, %v1739
        %v2700 = vpack.c.b16 %v1748, %v1740
        %v2701 = vpack.c.b16 %v1749, %v1741
        %v2702 = vpack.c.b16 %v1750, %v1742
        %v2703 = vpack.c.b16 %v1751, %v1743
        %v2704 = vpack.c.b16 %v1760, %v1752
        %v2705 = vpack.c.b16 %v1761, %v1753
        %v2706 = vpack.c.b16 %v1762, %v1754
        %v2707 = vpack.c.b16 %v1763, %v1755
        %v2708 = vpack.c.b16 %v1764, %v1756
        %v2709 = vpack.c.b16 %v1765, %v1757
        %v2710 = vpack.c.b16 %v1766, %v1758
        %v2711 = vpack.c.b16 %v1767, %v1759
        %v2712 = vpack.c.b16 %v1776, %v1768
        %v2713 = vpack.c.b16 %v1777, %v1769
        %v2714 = vpack.c.b16 %v1778, %v1770
        %v2715 = vpack.c.b16 %v1779, %v1771
        %v2716 = vpack.c.b16 %v1780, %v1772
        %v2717 = vpack.c.b16 %v1781, %v1773
        %v2718 = vpack.c.b16 %v1782, %v1774
        %v2719 = vpack.c.b16 %v1783, %v1775
        %v2720 = vpack.c.b16 %v1792, %v1784
        %v2721 = vpack.c.b16 %v1793, %v1785
        %v2722 = vpack.c.b16 %v1794, %v1786
        %v2723 = vpack.c.b16 %v1795, %v1787
        %v2724 = vpack.c.b16 %v1796, %v1788
        %v2725 = vpack.c.b16 %v1797, %v1789
        %v2726 = vpack.c.b16 %v1798, %v1790
        %v2727 = vpack.c.b16 %v1799, %v1791
        %v2728 = vpack.c.b16 %v1808, %v1800
        %v2729 = vpack.c.b16 %v1809, %v1801
        %v2730 = vpack.c.b16 %v1810, %v1802
        %v2731 = vpack.c.b16 %v1811, %v1803
        %v2732 = vpack.c.b16 %v1812, %v1804
        %v2733 = vpack.c.b16 %v1813, %v1805
        %v2734 = vpack.c.b16 %v1814, %v1806
        %v2735 = vpack.c.b16 %v1815, %v1807
        %v2736 = vpack.c.b16 %v1824, %v1816
        %v2737 = vpack.c.b16 %v1825, %v1817
        %v2738 = vpack.c.b16 %v1826, %v1818
        %v2739 = vpack.c.b16 %v1827, %v1819
        %v2740 = vpack.c.b16 %v1828, %v1820
        %v2741 = vpack.c.b16 %v1829, %v1821
        %v2742 = vpack.c.b16 %v1830, %v1822
        %v2743 = vpack.c.b16 %v1831, %v1823
        %v2744 = vpack.c.b16 %v1840, %v1832
        %v2745 = vpack.c.b16 %v1841, %v1833
        %v2746 = vpack.c.b16 %v1842, %v1834
        %v2747 = vpack.c.b16 %v1843, %v1835
        %v2748 = vpack.c.b16 %v1844, %v1836
        %v2749 = vpack.c.b16 %v1845, %v1837
        %v2750 = vpack.c.b16 %v1846, %v1838
        %v2751 = vpack.c.b16 %v1847, %v1839
        %v2752 = vpack.c.b16 %v1856, %v1848
        %v2753 = vpack.c.b16 %v1857, %v1849
        %v2754 = vpack.c.b16 %v1858, %v1850
        %v2755 = vpack.c.b16 %v1859, %v1851
        %v2756 = vpack.c.b16 %v1860, %v1852
        %v2757 = vpack.c.b16 %v1861, %v1853
        %v2758 = vpack.c.b16 %v1862, %v1854
        %v2759 = vpack.c.b16 %v1863, %v1855
        %v2760 = vpack.c.b16 %v1872, %v1864
        %v2761 = vpack.c.b16 %v1873, %v1865
        %v2762 = vpack.c.b16 %v1874, %v1866
        %v2763 = vpack.c.b16 %v1875, %v1867
        %v2764 = vpack.c.b16 %v1876, %v1868
        %v2765 = vpack.c.b16 %v1877, %v1869
        %v2766 = vpack.c.b16 %v1878, %v1870
        %v2767 = vpack.c.b16 %v1879, %v1871
        %v2768 = vpack.c.b16 %v1888, %v1880
        %v2769 = vpack.c.b16 %v1889, %v1881
        %v2770 = vpack.c.b16 %v1890, %v1882
        %v2771 = vpack.c.b16 %v1891, %v1883
        %v2772 = vpack.c.b16 %v1892, %v1884
        %v2773 = vpack.c.b16 %v1893, %v1885
        %v2774 = vpack.c.b16 %v1894, %v1886
        %v2775 = vpack.c.b16 %v1895, %v1887
        %v2776 = vpack.c.b16 %v1904, %v1896
        %v2777 = vpack.c.b16 %v1905, %v1897
        %v2778 = vpack.c.b16 %v1906, %v1898
        %v2779 = vpack.c.b16 %v1907, %v1899
        %v2780 = vpack.c.b16 %v1908, %v1900
        %v2781 = vpack.c.b16 %v1909, %v1901
        %v2782 = vpack.c.b16 %v1910, %v1902
        %v2783 = vpack.c.b16 %v1911, %v1903
        %v2784 = vpack.c.b16 %v1920, %v1912
        %v2785 = vpack.c.b16 %v1921, %v1913
        %v2786 = vpack.c.b16 %v1922, %v1914
        %v2787 = vpack.c.b16 %v1923, %v1915
        %v2788 = vpack.c.b16 %v1924, %v1916
        %v2789 = vpack.c.b16 %v1925, %v1917
        %v2790 = vpack.c.b16 %v1926, %v1918
        %v2791 = vpack.c.b16 %v1927, %v1919
        %v2792 = vpack.c.b16 %v1936, %v1928
        %v2793 = vpack.c.b16 %v1937, %v1929
        %v2794 = vpack.c.b16 %v1938, %v1930
        %v2795 = vpack.c.b16 %v1939, %v1931
        %v2796 = vpack.c.b16 %v1940, %v1932
        %v2797 = vpack.c.b16 %v1941, %v1933
        %v2798 = vpack.c.b16 %v1942, %v1934
        %v2799 = vpack.c.b16 %v1943, %v1935
        %v2800 = vpack.c.b16 %v1952, %v1944
        %v2801 = vpack.c.b16 %v1953, %v1945
        %v2802 = vpack.c.b16 %v1954, %v1946
        %v2803 = vpack.c.b16 %v1955, %v1947
        %v2804 = vpack.c.b16 %v1956, %v1948
        %v2805 = vpack.c.b16 %v1957, %v1949
        %v2806 = vpack.c.b16 %v1958, %v1950
        %v2807 = vpack.c.b16 %v1959, %v1951
        %v2808 = vpack.c.b16 %v1968, %v1960
        %v2809 = vpack.c.b16 %v1969, %v1961
        %v2810 = vpack.c.b16 %v1970, %v1962
        %v2811 = vpack.c.b16 %v1971, %v1963
        %v2812 = vpack.c.b16 %v1972, %v1964
        %v2813 = vpack.c.b16 %v1973, %v1965
        %v2814 = vpack.c.b16 %v1974, %v1966
        %v2815 = vpack.c.b16 %v1975, %v1967
        %v2816 = vpack.c.b16 %v1984, %v1976
        %v2817 = vpack.c.b16 %v1985, %v1977
        %v2818 = vpack.c.b16 %v1986, %v1978
        %v2819 = vpack.c.b16 %v1987, %v1979
        %v2820 = vpack.c.b16 %v1988, %v1980
        %v2821 = vpack.c.b16 %v1989, %v1981
        %v2822 = vpack.c.b16 %v1990, %v1982
        %v2823 = vpack.c.b16 %v1991, %v1983
        %v2824 = vpack.c.b16 %v2000, %v1992
        %v2825 = vpack.c.b16 %v2001, %v1993
        %v2826 = vpack.c.b16 %v2002, %v1994
        %v2827 = vpack.c.b16 %v2003, %v1995
        %v2828 = vpack.c.b16 %v2004, %v1996
        %v2829 = vpack.c.b16 %v2005, %v1997
        %v2830 = vpack.c.b16 %v2006, %v1998
        %v2831 = vpack.c.b16 %v2007, %v1999
        %v2832 = vpack.c.b16 %v2016, %v2008
        %v2833 = vpack.c.b16 %v2017, %v2009
        %v2834 = vpack.c.b16 %v2018, %v2010
        %v2835 = vpack.c.b16 %v2019, %v2011
        %v2836 = vpack.c.b16 %v2020, %v2012
        %v2837 = vpack.c.b16 %v2021, %v2013
        %v2838 = vpack.c.b16 %v2022, %v2014
        %v2839 = vpack.c.b16 %v2023, %v2015
        %v2840 = vpack.c.b16 %v2032, %v2024
        %v2841 = vpack.c.b16 %v2033, %v2025
        %v2842 = vpack.c.b16 %v2034, %v2026
        %v2843 = vpack.c.b16 %v2035, %v2027
        %v2844 = vpack.c.b16 %v2036, %v2028
        %v2845 = vpack.c.b16 %v2037, %v2029
        %v2846 = vpack.c.b16 %v2038, %v2030
        %v2847 = vpack.c.b16 %v2039, %v2031
        %v2848 = vpack.c.b16 %v2048, %v2040
        %v2849 = vpack.c.b16 %v2049, %v2041
        %v2850 = vpack.c.b16 %v2050, %v2042
        %v2851 = vpack.c.b16 %v2051, %v2043
        %v2852 = vpack.c.b16 %v2052, %v2044
        %v2853 = vpack.c.b16 %v2053, %v2045
        %v2854 = vpack.c.b16 %v2054, %v2046
        %v2855 = vpack.c.b16 %v2055, %v2047
        %v2856 = vpack.c.b16 %v2064, %v2056
        %v2857 = vpack.c.b16 %v2065, %v2057
        %v2858 = vpack.c.b16 %v2066, %v2058
        %v2859 = vpack.c.b16 %v2067, %v2059
        %v2860 = vpack.c.b16 %v2068, %v2060
        %v2861 = vpack.c.b16 %v2069, %v2061
        %v2862 = vpack.c.b16 %v2070, %v2062
        %v2863 = vpack.c.b16 %v2071, %v2063
        %v2864 = vpack.c.b16 %v2080, %v2072
        %v2865 = vpack.c.b16 %v2081, %v2073
        %v2866 = vpack.c.b16 %v2082, %v2074
        %v2867 = vpack.c.b16 %v2083, %v2075
        %v2868 = vpack.c.b16 %v2084, %v2076
        %v2869 = vpack.c.b16 %v2085, %v2077
        %v2870 = vpack.c.b16 %v2086, %v2078
        %v2871 = vpack.c.b16 %v2087, %v2079
        %v2872 = vpack.c.b16 %v2096, %v2088
        %v2873 = vpack.c.b16 %v2097, %v2089
        %v2874 = vpack.c.b16 %v2098, %v2090
        %v2875 = vpack.c.b16 %v2099, %v2091
        %v2876 = vpack.c.b16 %v2100, %v2092
        %v2877 = vpack.c.b16 %v2101, %v2093
        %v2878 = vpack.c.b16 %v2102, %v2094
        %v2879 = vpack.c.b16 %v2103, %v2095
        %v2880 = vpack.c.b16 %v2112, %v2104
        %v2881 = vpack.c.b16 %v2113, %v2105
        %v2882 = vpack.c.b16 %v2114, %v2106
        %v2883 = vpack.c.b16 %v2115, %v2107
        %v2884 = vpack.c.b16 %v2116, %v2108
        %v2885 = vpack.c.b16 %v2117, %v2109
        %v2886 = vpack.c.b16 %v2118, %v2110
        %v2887 = vpack.c.b16 %v2119, %v2111
        %v2888 = vpack.c.b16 %v2128, %v2120
        %v2889 = vpack.c.b16 %v2129, %v2121
        %v2890 = vpack.c.b16 %v2130, %v2122
        %v2891 = vpack.c.b16 %v2131, %v2123
        %v2892 = vpack.c.b16 %v2132, %v2124
        %v2893 = vpack.c.b16 %v2133, %v2125
        %v2894 = vpack.c.b16 %v2134, %v2126
        %v2895 = vpack.c.b16 %v2135, %v2127
        %v2896 = vpack.c.b16 %v2144, %v2136
        %v2897 = vpack.c.b16 %v2145, %v2137
        %v2898 = vpack.c.b16 %v2146, %v2138
        %v2899 = vpack.c.b16 %v2147, %v2139
        %v2900 = vpack.c.b16 %v2148, %v2140
        %v2901 = vpack.c.b16 %v2149, %v2141
        %v2902 = vpack.c.b16 %v2150, %v2142
        %v2903 = vpack.c.b16 %v2151, %v2143
        %v2904 = vpack.c.b16 %v2160, %v2152
        %v2905 = vpack.c.b16 %v2161, %v2153
        %v2906 = vpack.c.b16 %v2162, %v2154
        %v2907 = vpack.c.b16 %v2163, %v2155
        %v2908 = vpack.c.b16 %v2164, %v2156
        %v2909 = vpack.c.b16 %v2165, %v2157
        %v2910 = vpack.c.b16 %v2166, %v2158
        %v2911 = vpack.c.b16 %v2167, %v2159
        %v2912 = vpack.c.b16 %v2176, %v2168
        %v2913 = vpack.c.b16 %v2177, %v2169
        %v2914 = vpack.c.b16 %v2178, %v2170
        %v2915 = vpack.c.b16 %v2179, %v2171
        %v2916 = vpack.c.b16 %v2180, %v2172
        %v2917 = vpack.c.b16 %v2181, %v2173
        %v2918 = vpack.c.b16 %v2182, %v2174
        %v2919 = vpack.c.b16 %v2183, %v2175
        %v2920 = vpack.c.b16 %v2192, %v2184
        %v2921 = vpack.c.b16 %v2193, %v2185
        %v2922 = vpack.c.b16 %v2194, %v2186
        %v2923 = vpack.c.b16 %v2195, %v2187
        %v2924 = vpack.c.b16 %v2196, %v2188
        %v2925 = vpack.c.b16 %v2197, %v2189
        %v2926 = vpack.c.b16 %v2198, %v2190
        %v2927 = vpack.c.b16 %v2199, %v2191
        %v2928 = vpack.c.b16 %v2208, %v2200
        %v2929 = vpack.c.b16 %v2209, %v2201
        %v2930 = vpack.c.b16 %v2210, %v2202
        %v2931 = vpack.c.b16 %v2211, %v2203
        %v2932 = vpack.c.b16 %v2212, %v2204
        %v2933 = vpack.c.b16 %v2213, %v2205
        %v2934 = vpack.c.b16 %v2214, %v2206
        %v2935 = vpack.c.b16 %v2215, %v2207
        %v2936 = vpack.c.b16 %v2224, %v2216
        %v2937 = vpack.c.b16 %v2225, %v2217
        %v2938 = vpack.c.b16 %v2226, %v2218
        %v2939 = vpack.c.b16 %v2227, %v2219
        %v2940 = vpack.c.b16 %v2228, %v2220
        %v2941 = vpack.c.b16 %v2229, %v2221
        %v2942 = vpack.c.b16 %v2230, %v2222
        %v2943 = vpack.c.b16 %v2231, %v2223
        %v2944 = vpack.c.b16 %v2240, %v2232
        %v2945 = vpack.c.b16 %v2241, %v2233
        %v2946 = vpack.c.b16 %v2242, %v2234
        %v2947 = vpack.c.b16 %v2243, %v2235
        %v2948 = vpack.c.b16 %v2244, %v2236
        %v2949 = vpack.c.b16 %v2245, %v2237
        %v2950 = vpack.c.b16 %v2246, %v2238
        %v2951 = vpack.c.b16 %v2247, %v2239
        %v2952 = vpack.c.b16 %v2256, %v2248
        %v2953 = vpack.c.b16 %v2257, %v2249
        %v2954 = vpack.c.b16 %v2258, %v2250
        %v2955 = vpack.c.b16 %v2259, %v2251
        %v2956 = vpack.c.b16 %v2260, %v2252
        %v2957 = vpack.c.b16 %v2261, %v2253
        %v2958 = vpack.c.b16 %v2262, %v2254
        %v2959 = vpack.c.b16 %v2263, %v2255
        %v2960 = vpack.c.b16 %v2272, %v2264
        %v2961 = vpack.c.b16 %v2273, %v2265
        %v2962 = vpack.c.b16 %v2274, %v2266
        %v2963 = vpack.c.b16 %v2275, %v2267
        %v2964 = vpack.c.b16 %v2276, %v2268
        %v2965 = vpack.c.b16 %v2277, %v2269
        %v2966 = vpack.c.b16 %v2278, %v2270
        %v2967 = vpack.c.b16 %v2279, %v2271
        %v2968 = vpack.c.b16 %v2288, %v2280
        %v2969 = vpack.c.b16 %v2289, %v2281
        %v2970 = vpack.c.b16 %v2290, %v2282
        %v2971 = vpack.c.b16 %v2291, %v2283
        %v2972 = vpack.c.b16 %v2292, %v2284
        %v2973 = vpack.c.b16 %v2293, %v2285
        %v2974 = vpack.c.b16 %v2294, %v2286
        %v2975 = vpack.c.b16 %v2295, %v2287
        %v2976 = vpack.c.b16 %v2304, %v2296
        %v2977 = vpack.c.b16 %v2305, %v2297
        %v2978 = vpack.c.b16 %v2306, %v2298
        %v2979 = vpack.c.b16 %v2307, %v2299
        %v2980 = vpack.c.b16 %v2308, %v2300
        %v2981 = vpack.c.b16 %v2309, %v2301
        %v2982 = vpack.c.b16 %v2310, %v2302
        %v2983 = vpack.c.b16 %v2311, %v2303
        %v2984 = vpack.c.b16 %v2320, %v2312
        %v2985 = vpack.c.b16 %v2321, %v2313
        %v2986 = vpack.c.b16 %v2322, %v2314
        %v2987 = vpack.c.b16 %v2323, %v2315
        %v2988 = vpack.c.b16 %v2324, %v2316
        %v2989 = vpack.c.b16 %v2325, %v2317
        %v2990 = vpack.c.b16 %v2326, %v2318
        %v2991 = vpack.c.b16 %v2327, %v2319
        %v2992 = vpack.c.b16 %v2336, %v2328
        %v2993 = vpack.c.b16 %v2337, %v2329
        %v2994 = vpack.c.b16 %v2338, %v2330
        %v2995 = vpack.c.b16 %v2339, %v2331
        %v2996 = vpack.c.b16 %v2340, %v2332
        %v2997 = vpack.c.b16 %v2341, %v2333
        %v2998 = vpack.c.b16 %v2342, %v2334
        %v2999 = vpack.c.b16 %v2343, %v2335
        %v3000 = vpack.c.b16 %v2352, %v2344
        %v3001 = vpack.c.b16 %v2353, %v2345
        %v3002 = vpack.c.b16 %v2354, %v2346
        %v3003 = vpack.c.b16 %v2355, %v2347
        %v3004 = vpack.c.b16 %v2356, %v2348
        %v3005 = vpack.c.b16 %v2357, %v2349
        %v3006 = vpack.c.b16 %v2358, %v2350
        %v3007 = vpack.c.b16 %v2359, %v2351
        %v3008 = vpack.c.b16 %v2368, %v2360
        %v3009 = vpack.c.b16 %v2369, %v2361
        %v3010 = vpack.c.b16 %v2370, %v2362
        %v3011 = vpack.c.b16 %v2371, %v2363
        %v3012 = vpack.c.b16 %v2372, %v2364
        %v3013 = vpack.c.b16 %v2373, %v2365
        %v3014 = vpack.c.b16 %v2374, %v2366
        %v3015 = vpack.c.b16 %v2375, %v2367
        %v3016 = vpack.c.b16 %v2384, %v2376
        %v3017 = vpack.c.b16 %v2385, %v2377
        %v3018 = vpack.c.b16 %v2386, %v2378
        %v3019 = vpack.c.b16 %v2387, %v2379
        %v3020 = vpack.c.b16 %v2388, %v2380
        %v3021 = vpack.c.b16 %v2389, %v2381
        %v3022 = vpack.c.b16 %v2390, %v2382
        %v3023 = vpack.c.b16 %v2391, %v2383
        %v3024 = vpack.c.b16 %v2400, %v2392
        %v3025 = vpack.c.b16 %v2401, %v2393
        %v3026 = vpack.c.b16 %v2402, %v2394
        %v3027 = vpack.c.b16 %v2403, %v2395
        %v3028 = vpack.c.b16 %v2404, %v2396
        %v3029 = vpack.c.b16 %v2405, %v2397
        %v3030 = vpack.c.b16 %v2406, %v2398
        %v3031 = vpack.c.b16 %v2407, %v2399
        %v3032 = vpack.c.b16 %v2416, %v2408
        %v3033 = vpack.c.b16 %v2417, %v2409
        %v3034 = vpack.c.b16 %v2418, %v2410
        %v3035 = vpack.c.b16 %v2419, %v2411
        %v3036 = vpack.c.b16 %v2420, %v2412
        %v3037 = vpack.c.b16 %v2421, %v2413
        %v3038 = vpack.c.b16 %v2422, %v2414
        %v3039 = vpack.c.b16 %v2423, %v2415
        %v3040 = vpack.c.b16 %v2432, %v2424
        %v3041 = vpack.c.b16 %v2433, %v2425
        %v3042 = vpack.c.b16 %v2434, %v2426
        %v3043 = vpack.c.b16 %v2435, %v2427
        %v3044 = vpack.c.b16 %v2436, %v2428
        %v3045 = vpack.c.b16 %v2437, %v2429
        %v3046 = vpack.c.b16 %v2438, %v2430
        %v3047 = vpack.c.b16 %v2439, %v2431
        %v3048 = vpack.c.b16 %v2448, %v2440
        %v3049 = vpack.c.b16 %v2449, %v2441
        %v3050 = vpack.c.b16 %v2450, %v2442
        %v3051 = vpack.c.b16 %v2451, %v2443
        %v3052 = vpack.c.b16 %v2452, %v2444
        %v3053 = vpack.c.b16 %v2453, %v2445
        %v3054 = vpack.c.b16 %v2454, %v2446
        %v3055 = vpack.c.b16 %v2455, %v2447
        %v3056 = vpack.c.b16 %v2464, %v2456
        %v3057 = vpack.c.b16 %v2465, %v2457
        %v3058 = vpack.c.b16 %v2466, %v2458
        %v3059 = vpack.c.b16 %v2467, %v2459
        %v3060 = vpack.c.b16 %v2468, %v2460
        %v3061 = vpack.c.b16 %v2469, %v2461
        %v3062 = vpack.c.b16 %v2470, %v2462
        %v3063 = vpack.c.b16 %v2471, %v2463
        %v3064 = vpack.c.b16 %v2480, %v2472
        %v3065 = vpack.c.b16 %v2481, %v2473
        %v3066 = vpack.c.b16 %v2482, %v2474
        %v3067 = vpack.c.b16 %v2483, %v2475
        %v3068 = vpack.c.b16 %v2484, %v2476
        %v3069 = vpack.c.b16 %v2485, %v2477
        %v3070 = vpack.c.b16 %v2486, %v2478
        %v3071 = vpack.c.b16 %v2487, %v2479
        %v3072 = vpack.c.b16 %v2496, %v2488
        %v3073 = vpack.c.b16 %v2497, %v2489
        %v3074 = vpack.c.b16 %v2498, %v2490
        %v3075 = vpack.c.b16 %v2499, %v2491
        %v3076 = vpack.c.b16 %v2500, %v2492
        %v3077 = vpack.c.b16 %v2501, %v2493
        %v3078 = vpack.c.b16 %v2502, %v2494
        %v3079 = vpack.c.b16 %v2503, %v2495
        %v3080 = vpack.c.b16 %v2512, %v2504
        %v3081 = vpack.c.b16 %v2513, %v2505
        %v3082 = vpack.c.b16 %v2514, %v2506
        %v3083 = vpack.c.b16 %v2515, %v2507
        %v3084 = vpack.c.b16 %v2516, %v2508
        %v3085 = vpack.c.b16 %v2517, %v2509
        %v3086 = vpack.c.b16 %v2518, %v2510
        %v3087 = vpack.c.b16 %v2519, %v2511
        %v3088 = vpack.c.b16 %v2528, %v2520
        %v3089 = vpack.c.b16 %v2529, %v2521
        %v3090 = vpack.c.b16 %v2530, %v2522
        %v3091 = vpack.c.b16 %v2531, %v2523
        %v3092 = vpack.c.b16 %v2532, %v2524
        %v3093 = vpack.c.b16 %v2533, %v2525
        %v3094 = vpack.c.b16 %v2534, %v2526
        %v3095 = vpack.c.b16 %v2535, %v2527
        %v3096 = vpack.c.b16 %v2544, %v2536
        %v3097 = vpack.c.b16 %v2545, %v2537
        %v3098 = vpack.c.b16 %v2546, %v2538
        %v3099 = vpack.c.b16 %v2547, %v2539
        %v3100 = vpack.c.b16 %v2548, %v2540
        %v3101 = vpack.c.b16 %v2549, %v2541
        %v3102 = vpack.c.b16 %v2550, %v2542
        %v3103 = vpack.c.b16 %v2551, %v2543
        %v3104 = vpack.c.b16 %v2560, %v2552
        %v3105 = vpack.c.b16 %v2561, %v2553
        %v3106 = vpack.c.b16 %v2562, %v2554
        %v3107 = vpack.c.b16 %v2563, %v2555
        %v3108 = vpack.c.b16 %v2564, %v2556
        %v3109 = vpack.c.b16 %v2565, %v2557
        %v3110 = vpack.c.b16 %v2566, %v2558
        %v3111 = vpack.c.b16 %v2567, %v2559
        %v3112 = vpack.c.b16 %v2576, %v2568
        %v3113 = vpack.c.b16 %v2577, %v2569
        %v3114 = vpack.c.b16 %v2578, %v2570
        %v3115 = vpack.c.b16 %v2579, %v2571
        %v3116 = vpack.c.b16 %v2580, %v2572
        %v3117 = vpack.c.b16 %v2581, %v2573
        %v3118 = vpack.c.b16 %v2582, %v2574
        %v3119 = vpack.c.b16 %v2583, %v2575
        %v3120 = vpack.c.b16 %v2592, %v2584
        %v3121 = vpack.c.b16 %v2593, %v2585
        %v3122 = vpack.c.b16 %v2594, %v2586
        %v3123 = vpack.c.b16 %v2595, %v2587
        %v3124 = vpack.c.b16 %v2596, %v2588
        %v3125 = vpack.c.b16 %v2597, %v2589
        %v3126 = vpack.c.b16 %v2598, %v2590
        %v3127 = vpack.c.b16 %v2599, %v2591
        %v3128 = vpack.c.b16 %v2608, %v2600
        %v3129 = vpack.c.b16 %v2609, %v2601
        %v3130 = vpack.c.b16 %v2610, %v2602
        %v3131 = vpack.c.b16 %v2611, %v2603
        %v3132 = vpack.c.b16 %v2612, %v2604
        %v3133 = vpack.c.b16 %v2613, %v2605
        %v3134 = vpack.c.b16 %v2614, %v2606
        %v3135 = vpack.c.b16 %v2615, %v2607
        %v3136 = vpack.c.b16 %v2624, %v2616
        %v3137 = vpack.c.b16 %v2625, %v2617
        %v3138 = vpack.c.b16 %v2626, %v2618
        %v3139 = vpack.c.b16 %v2627, %v2619
        %v3140 = vpack.c.b16 %v2628, %v2620
        %v3141 = vpack.c.b16 %v2629, %v2621
        %v3142 = vpack.c.b16 %v2630, %v2622
        %v3143 = vpack.c.b16 %v2631, %v2623
        %3656 = vmatprep.subr.bf16.mxu0 %v2633
        %3657 = vmatpush1.bf16.msra.mxu0 %v2632
        %3658 = vmatprep.subr.bf16.mxu0 %v2641
        %3659 = vmatpush1.bf16.msra.mxu0 %v2640
        %3660 = vmatprep.subr.bf16.mxu0 %v2649
        %3661 = vmatpush1.bf16.msra.mxu0 %v2648
        %3662 = vmatprep.subr.bf16.mxu0 %v2657
        %3663 = vmatpush1.bf16.msra.mxu0 %v2656
        %3664 = vmatprep.subr.bf16.mxu0 %v2665
        %3665 = vmatpush1.bf16.msra.mxu0 %v2664
        %3666 = vmatprep.subr.bf16.mxu0 %v2673
        %3667 = vmatpush1.bf16.msra.mxu0 %v2672
        %3668 = vmatprep.subr.bf16.mxu0 %v2681
        %3669 = vmatpush1.bf16.msra.mxu0 %v2680
        %3670 = vmatprep.subr.bf16.mxu0 %v2689
        %3671 = vmatpush1.bf16.msra.mxu0 %v2688
        %3672 = vmatprep.subr.bf16.mxu0 %v2697
        %3673 = vmatpush1.bf16.msra.mxu0 %v2696
        %3674 = vmatprep.subr.bf16.mxu0 %v2705
        %3675 = vmatpush1.bf16.msra.mxu0 %v2704
        %3676 = vmatprep.subr.bf16.mxu0 %v2713
        %3677 = vmatpush1.bf16.msra.mxu0 %v2712
        %3678 = vmatprep.subr.bf16.mxu0 %v2721
        %3679 = vmatpush1.bf16.msra.mxu0 %v2720
        %3680 = vmatprep.subr.bf16.mxu0 %v2729
        %3681 = vmatpush1.bf16.msra.mxu0 %v2728
        %3682 = vmatprep.subr.bf16.mxu0 %v2737
        %3683 = vmatpush1.bf16.msra.mxu0 %v2736
        %3684 = vmatprep.subr.bf16.mxu0 %v2745
        %3685 = vmatpush1.bf16.msra.mxu0 %v2744
        %3686 = vmatprep.subr.bf16.mxu0 %v2753
        %3687 = vmatpush1.bf16.msra.mxu0 %v2752
        %3688 = vmatprep.mubr.bf16.mxu0 %v573
        %3689 = vmatmul.mubr.bf16.gmra.mrb[0].mxu0 %v572
        %v3690 = vpop.f32.mrb[0].mxu0
        %v3691 = vadd.f32 0.0, %v3690
        %v3692 = vpop.f32.mrb[0].mxu0
        %v3693 = vadd.f32 0.0, %v3692
        %v3694 = vpop.f32.mrb[0].mxu0
        %v3695 = vpop.f32.mrb[0].mxu0
        %3696 = vdwg.mxu0
        %3697 = vmatprep.subr.bf16.mxu0 %v2761
        %3698 = vmatpush1.bf16.msra.mxu0 %v2760
        %3699 = vmatprep.subr.bf16.mxu0 %v2769
        %3700 = vmatpush1.bf16.msra.mxu0 %v2768
        %3701 = vmatprep.subr.bf16.mxu0 %v2777
        %3702 = vmatpush1.bf16.msra.mxu0 %v2776
        %3703 = vmatprep.subr.bf16.mxu0 %v2785
        %3704 = vmatpush1.bf16.msra.mxu0 %v2784
        %3705 = vmatprep.subr.bf16.mxu0 %v2793
        %3706 = vmatpush1.bf16.msra.mxu0 %v2792
        %3707 = vmatprep.subr.bf16.mxu0 %v2801
        %3708 = vmatpush1.bf16.msra.mxu0 %v2800
        %3709 = vmatprep.subr.bf16.mxu0 %v2809
        %3710 = vmatpush1.bf16.msra.mxu0 %v2808
        %3711 = vmatprep.subr.bf16.mxu0 %v2817
        %3712 = vmatpush1.bf16.msra.mxu0 %v2816
        %3713 = vmatprep.subr.bf16.mxu0 %v2825
        %3714 = vmatpush1.bf16.msra.mxu0 %v2824
        %3715 = vmatprep.subr.bf16.mxu0 %v2833
        %3716 = vmatpush1.bf16.msra.mxu0 %v2832
        %3717 = vmatprep.subr.bf16.mxu0 %v2841
        %3718 = vmatpush1.bf16.msra.mxu0 %v2840
        %3719 = vmatprep.subr.bf16.mxu0 %v2849
        %3720 = vmatpush1.bf16.msra.mxu0 %v2848
        %3721 = vmatprep.subr.bf16.mxu0 %v2857
        %3722 = vmatpush1.bf16.msra.mxu0 %v2856
        %3723 = vmatprep.subr.bf16.mxu0 %v2865
        %3724 = vmatpush1.bf16.msra.mxu0 %v2864
        %3725 = vmatprep.subr.bf16.mxu0 %v2873
        %3726 = vmatpush1.bf16.msra.mxu0 %v2872
        %3727 = vmatprep.subr.bf16.mxu0 %v2881
        %3728 = vmatpush1.bf16.msra.mxu0 %v2880
        %3729 = vmatprep.mubr.bf16.mxu0 %v575
        %3730 = vmatmul.mubr.bf16.gmra.mrb[0].mxu0 %v574
        %v3731 = vpop.f32.mrb[0].mxu0
        %v3732 = vadd.f32 %v3691, %v3731
        %v3733 = vpop.f32.mrb[0].mxu0
        %v3734 = vadd.f32 %v3693, %v3733
        %v3735 = vpop.f32.mrb[0].mxu0
        %v3736 = vpop.f32.mrb[0].mxu0
        %3737 = vdwg.mxu0
        %3738 = vmatprep.subr.bf16.mxu0 %v2889
        %3739 = vmatpush1.bf16.msra.mxu0 %v2888
        %3740 = vmatprep.subr.bf16.mxu0 %v2897
        %3741 = vmatpush1.bf16.msra.mxu0 %v2896
        %3742 = vmatprep.subr.bf16.mxu0 %v2905
        %3743 = vmatpush1.bf16.msra.mxu0 %v2904
        %3744 = vmatprep.subr.bf16.mxu0 %v2913
        %3745 = vmatpush1.bf16.msra.mxu0 %v2912
        %3746 = vmatprep.subr.bf16.mxu0 %v2921
        %3747 = vmatpush1.bf16.msra.mxu0 %v2920
        %3748 = vmatprep.subr.bf16.mxu0 %v2929
        %3749 = vmatpush1.bf16.msra.mxu0 %v2928
        %3750 = vmatprep.subr.bf16.mxu0 %v2937
        %3751 = vmatpush1.bf16.msra.mxu0 %v2936
        %3752 = vmatprep.subr.bf16.mxu0 %v2945
        %3753 = vmatpush1.bf16.msra.mxu0 %v2944
        %3754 = vmatprep.subr.bf16.mxu0 %v2953
        %3755 = vmatpush1.bf16.msra.mxu0 %v2952
        %3756 = vmatprep.subr.bf16.mxu0 %v2961
        %3757 = vmatpush1.bf16.msra.mxu0 %v2960
        %3758 = vmatprep.subr.bf16.mxu0 %v2969
        %3759 = vmatpush1.bf16.msra.mxu0 %v2968
        %3760 = vmatprep.subr.bf16.mxu0 %v2977
        %3761 = vmatpush1.bf16.msra.mxu0 %v2976
        %3762 = vmatprep.subr.bf16.mxu0 %v2985
        %3763 = vmatpush1.bf16.msra.mxu0 %v2984
        %3764 = vmatprep.subr.bf16.mxu0 %v2993
        %3765 = vmatpush1.bf16.msra.mxu0 %v2992
        %3766 = vmatprep.subr.bf16.mxu0 %v3001
        %3767 = vmatpush1.bf16.msra.mxu0 %v3000
        %3768 = vmatprep.subr.bf16.mxu0 %v3009
        %3769 = vmatpush1.bf16.msra.mxu0 %v3008
        %3770 = vmatprep.mubr.bf16.mxu0 %v577
        %3771 = vmatmul.mubr.bf16.gmra.mrb[0].mxu0 %v576
        %v3772 = vpop.f32.mrb[0].mxu0
        %v3773 = vadd.f32 %v3732, %v3772
        %v3774 = vpop.f32.mrb[0].mxu0
        %v3775 = vadd.f32 %v3734, %v3774
        %v3776 = vpop.f32.mrb[0].mxu0
        %v3777 = vpop.f32.mrb[0].mxu0
        %3778 = vdwg.mxu0
        %3779 = vmatprep.subr.bf16.mxu0 %v3017
        %3780 = vmatpush1.bf16.msra.mxu0 %v3016
        %3781 = vmatprep.subr.bf16.mxu0 %v3025
        %3782 = vmatpush1.bf16.msra.mxu0 %v3024
        %3783 = vmatprep.subr.bf16.mxu0 %v3033
        %3784 = vmatpush1.bf16.msra.mxu0 %v3032
        %3785 = vmatprep.subr.bf16.mxu0 %v3041
        %3786 = vmatpush1.bf16.msra.mxu0 %v3040
        %3787 = vmatprep.subr.bf16.mxu0 %v3049
        %3788 = vmatpush1.bf16.msra.mxu0 %v3048
        %3789 = vmatprep.subr.bf16.mxu0 %v3057
        %3790 = vmatpush1.bf16.msra.mxu0 %v3056
        %3791 = vmatprep.subr.bf16.mxu0 %v3065
        %3792 = vmatpush1.bf16.msra.mxu0 %v3064
        %3793 = vmatprep.subr.bf16.mxu0 %v3073
        %3794 = vmatpush1.bf16.msra.mxu0 %v3072
        %3795 = vmatprep.subr.bf16.mxu0 %v3081
        %3796 = vmatpush1.bf16.msra.mxu0 %v3080
        %3797 = vmatprep.subr.bf16.mxu0 %v3089
        %3798 = vmatpush1.bf16.msra.mxu0 %v3088
        %3799 = vmatprep.subr.bf16.mxu0 %v3097
        %3800 = vmatpush1.bf16.msra.mxu0 %v3096
        %3801 = vmatprep.subr.bf16.mxu0 %v3105
        %3802 = vmatpush1.bf16.msra.mxu0 %v3104
        %3803 = vmatprep.subr.bf16.mxu0 %v3113
        %3804 = vmatpush1.bf16.msra.mxu0 %v3112
        %3805 = vmatprep.subr.bf16.mxu0 %v3121
        %3806 = vmatpush1.bf16.msra.mxu0 %v3120
        %3807 = vmatprep.subr.bf16.mxu0 %v3129
        %3808 = vmatpush1.bf16.msra.mxu0 %v3128
        %3809 = vmatprep.subr.bf16.mxu0 %v3137
        %3810 = vmatpush1.bf16.msra.mxu0 %v3136
        %3811 = vmatprep.mubr.bf16.mxu0 %v579
        %3812 = vmatmul.mubr.bf16.gmra.mrb[0].mxu0 %v578
        %v3813 = vpop.f32.mrb[0].mxu0
        %v3814 = vadd.f32 %v3773, %v3813
        %v3815 = vpop.f32.mrb[0].mxu0
        %v3816 = vadd.f32 %v3775, %v3815
        %v3817 = vpop.f32.mrb[0].mxu0
        %v3818 = vpop.f32.mrb[0].mxu0
        %3819 = vdwg.mxu0
        %3820 = vmatprep.subr.bf16.mxu0 %v2635
        %3821 = vmatpush1.bf16.msra.mxu0 %v2634
        %3822 = vmatprep.subr.bf16.mxu0 %v2643
        %3823 = vmatpush1.bf16.msra.mxu0 %v2642
        %3824 = vmatprep.subr.bf16.mxu0 %v2651
        %3825 = vmatpush1.bf16.msra.mxu0 %v2650
        %3826 = vmatprep.subr.bf16.mxu0 %v2659
        %3827 = vmatpush1.bf16.msra.mxu0 %v2658
        %3828 = vmatprep.subr.bf16.mxu0 %v2667
        %3829 = vmatpush1.bf16.msra.mxu0 %v2666
        %3830 = vmatprep.subr.bf16.mxu0 %v2675
        %3831 = vmatpush1.bf16.msra.mxu0 %v2674
        %3832 = vmatprep.subr.bf16.mxu0 %v2683
        %3833 = vmatpush1.bf16.msra.mxu0 %v2682
        %3834 = vmatprep.subr.bf16.mxu0 %v2691
        %3835 = vmatpush1.bf16.msra.mxu0 %v2690
        %3836 = vmatprep.subr.bf16.mxu0 %v2699
        %3837 = vmatpush1.bf16.msra.mxu0 %v2698
        %3838 = vmatprep.subr.bf16.mxu0 %v2707
        %3839 = vmatpush1.bf16.msra.mxu0 %v2706
        %3840 = vmatprep.subr.bf16.mxu0 %v2715
        %3841 = vmatpush1.bf16.msra.mxu0 %v2714
        %3842 = vmatprep.subr.bf16.mxu0 %v2723
        %3843 = vmatpush1.bf16.msra.mxu0 %v2722
        %3844 = vmatprep.subr.bf16.mxu0 %v2731
        %3845 = vmatpush1.bf16.msra.mxu0 %v2730
        %3846 = vmatprep.subr.bf16.mxu0 %v2739
        %3847 = vmatpush1.bf16.msra.mxu0 %v2738
        %3848 = vmatprep.subr.bf16.mxu0 %v2747
        %3849 = vmatpush1.bf16.msra.mxu0 %v2746
        %3850 = vmatprep.subr.bf16.mxu0 %v2755
        %3851 = vmatpush1.bf16.msra.mxu0 %v2754
        %3852 = vmatprep.mubr.bf16.mxu0 %v573
        %3853 = vmatmul.mubr.bf16.gmra.mrb[0].mxu0 %v572
        %v3854 = vpop.f32.mrb[0].mxu0
        %v3855 = vadd.f32 0.0, %v3854
        %v3856 = vpop.f32.mrb[0].mxu0
        %v3857 = vadd.f32 0.0, %v3856
        %v3858 = vpop.f32.mrb[0].mxu0
        %v3859 = vpop.f32.mrb[0].mxu0
        %3860 = vdwg.mxu0
        %3861 = vmatprep.subr.bf16.mxu0 %v2763
        %3862 = vmatpush1.bf16.msra.mxu0 %v2762
        %3863 = vmatprep.subr.bf16.mxu0 %v2771
        %3864 = vmatpush1.bf16.msra.mxu0 %v2770
        %3865 = vmatprep.subr.bf16.mxu0 %v2779
        %3866 = vmatpush1.bf16.msra.mxu0 %v2778
        %3867 = vmatprep.subr.bf16.mxu0 %v2787
        %3868 = vmatpush1.bf16.msra.mxu0 %v2786
        %3869 = vmatprep.subr.bf16.mxu0 %v2795
        %3870 = vmatpush1.bf16.msra.mxu0 %v2794
        %3871 = vmatprep.subr.bf16.mxu0 %v2803
        %3872 = vmatpush1.bf16.msra.mxu0 %v2802
        %3873 = vmatprep.subr.bf16.mxu0 %v2811
        %3874 = vmatpush1.bf16.msra.mxu0 %v2810
        %3875 = vmatprep.subr.bf16.mxu0 %v2819
        %3876 = vmatpush1.bf16.msra.mxu0 %v2818
        %3877 = vmatprep.subr.bf16.mxu0 %v2827
        %3878 = vmatpush1.bf16.msra.mxu0 %v2826
        %3879 = vmatprep.subr.bf16.mxu0 %v2835
        %3880 = vmatpush1.bf16.msra.mxu0 %v2834
        %3881 = vmatprep.subr.bf16.mxu0 %v2843
        %3882 = vmatpush1.bf16.msra.mxu0 %v2842
        %3883 = vmatprep.subr.bf16.mxu0 %v2851
        %3884 = vmatpush1.bf16.msra.mxu0 %v2850
        %3885 = vmatprep.subr.bf16.mxu0 %v2859
        %3886 = vmatpush1.bf16.msra.mxu0 %v2858
        %3887 = vmatprep.subr.bf16.mxu0 %v2867
        %3888 = vmatpush1.bf16.msra.mxu0 %v2866
        %3889 = vmatprep.subr.bf16.mxu0 %v2875
        %3890 = vmatpush1.bf16.msra.mxu0 %v2874
        %3891 = vmatprep.subr.bf16.mxu0 %v2883
        %3892 = vmatpush1.bf16.msra.mxu0 %v2882
        %3893 = vmatprep.mubr.bf16.mxu0 %v575
        %3894 = vmatmul.mubr.bf16.gmra.mrb[0].mxu0 %v574
        %v3895 = vpop.f32.mrb[0].mxu0
        %v3896 = vadd.f32 %v3855, %v3895
        %v3897 = vpop.f32.mrb[0].mxu0
        %v3898 = vadd.f32 %v3857, %v3897
        %v3899 = vpop.f32.mrb[0].mxu0
        %v3900 = vpop.f32.mrb[0].mxu0
        %3901 = vdwg.mxu0
        %3902 = vmatprep.subr.bf16.mxu0 %v2891
        %3903 = vmatpush1.bf16.msra.mxu0 %v2890
        %3904 = vmatprep.subr.bf16.mxu0 %v2899
        %3905 = vmatpush1.bf16.msra.mxu0 %v2898
        %3906 = vmatprep.subr.bf16.mxu0 %v2907
        %3907 = vmatpush1.bf16.msra.mxu0 %v2906
        %3908 = vmatprep.subr.bf16.mxu0 %v2915
        %3909 = vmatpush1.bf16.msra.mxu0 %v2914
        %3910 = vmatprep.subr.bf16.mxu0 %v2923
        %3911 = vmatpush1.bf16.msra.mxu0 %v2922
        %3912 = vmatprep.subr.bf16.mxu0 %v2931
        %3913 = vmatpush1.bf16.msra.mxu0 %v2930
        %3914 = vmatprep.subr.bf16.mxu0 %v2939
        %3915 = vmatpush1.bf16.msra.mxu0 %v2938
        %3916 = vmatprep.subr.bf16.mxu0 %v2947
        %3917 = vmatpush1.bf16.msra.mxu0 %v2946
        %3918 = vmatprep.subr.bf16.mxu0 %v2955
        %3919 = vmatpush1.bf16.msra.mxu0 %v2954
        %3920 = vmatprep.subr.bf16.mxu0 %v2963
        %3921 = vmatpush1.bf16.msra.mxu0 %v2962
        %3922 = vmatprep.subr.bf16.mxu0 %v2971
        %3923 = vmatpush1.bf16.msra.mxu0 %v2970
        %3924 = vmatprep.subr.bf16.mxu0 %v2979
        %3925 = vmatpush1.bf16.msra.mxu0 %v2978
        %3926 = vmatprep.subr.bf16.mxu0 %v2987
        %3927 = vmatpush1.bf16.msra.mxu0 %v2986
        %3928 = vmatprep.subr.bf16.mxu0 %v2995
        %3929 = vmatpush1.bf16.msra.mxu0 %v2994
        %3930 = vmatprep.subr.bf16.mxu0 %v3003
        %3931 = vmatpush1.bf16.msra.mxu0 %v3002
        %3932 = vmatprep.subr.bf16.mxu0 %v3011
        %3933 = vmatpush1.bf16.msra.mxu0 %v3010
        %3934 = vmatprep.mubr.bf16.mxu0 %v577
        %3935 = vmatmul.mubr.bf16.gmra.mrb[0].mxu0 %v576
        %v3936 = vpop.f32.mrb[0].mxu0
        %v3937 = vadd.f32 %v3896, %v3936
        %v3938 = vpop.f32.mrb[0].mxu0
        %v3939 = vadd.f32 %v3898, %v3938
        %v3940 = vpop.f32.mrb[0].mxu0
        %v3941 = vpop.f32.mrb[0].mxu0
        %3942 = vdwg.mxu0
        %3943 = vmatprep.subr.bf16.mxu0 %v3019
        %3944 = vmatpush1.bf16.msra.mxu0 %v3018
        %3945 = vmatprep.subr.bf16.mxu0 %v3027
        %3946 = vmatpush1.bf16.msra.mxu0 %v3026
        %3947 = vmatprep.subr.bf16.mxu0 %v3035
        %3948 = vmatpush1.bf16.msra.mxu0 %v3034
        %3949 = vmatprep.subr.bf16.mxu0 %v3043
        %3950 = vmatpush1.bf16.msra.mxu0 %v3042
        %3951 = vmatprep.subr.bf16.mxu0 %v3051
        %3952 = vmatpush1.bf16.msra.mxu0 %v3050
        %3953 = vmatprep.subr.bf16.mxu0 %v3059
        %3954 = vmatpush1.bf16.msra.mxu0 %v3058
        %3955 = vmatprep.subr.bf16.mxu0 %v3067
        %3956 = vmatpush1.bf16.msra.mxu0 %v3066
        %3957 = vmatprep.subr.bf16.mxu0 %v3075
        %3958 = vmatpush1.bf16.msra.mxu0 %v3074
        %3959 = vmatprep.subr.bf16.mxu0 %v3083
        %3960 = vmatpush1.bf16.msra.mxu0 %v3082
        %3961 = vmatprep.subr.bf16.mxu0 %v3091
        %3962 = vmatpush1.bf16.msra.mxu0 %v3090
        %3963 = vmatprep.subr.bf16.mxu0 %v3099
        %3964 = vmatpush1.bf16.msra.mxu0 %v3098
        %3965 = vmatprep.subr.bf16.mxu0 %v3107
        %3966 = vmatpush1.bf16.msra.mxu0 %v3106
        %3967 = vmatprep.subr.bf16.mxu0 %v3115
        %3968 = vmatpush1.bf16.msra.mxu0 %v3114
        %3969 = vmatprep.subr.bf16.mxu0 %v3123
        %3970 = vmatpush1.bf16.msra.mxu0 %v3122
        %3971 = vmatprep.subr.bf16.mxu0 %v3131
        %3972 = vmatpush1.bf16.msra.mxu0 %v3130
        %3973 = vmatprep.subr.bf16.mxu0 %v3139
        %3974 = vmatpush1.bf16.msra.mxu0 %v3138
        %3975 = vmatprep.mubr.bf16.mxu0 %v579
        %3976 = vmatmul.mubr.bf16.gmra.mrb[0].mxu0 %v578
        %v3977 = vpop.f32.mrb[0].mxu0
        %v3978 = vadd.f32 %v3937, %v3977
        %v3979 = vpop.f32.mrb[0].mxu0
        %v3980 = vadd.f32 %v3939, %v3979
        %v3981 = vpop.f32.mrb[0].mxu0
        %v3982 = vpop.f32.mrb[0].mxu0
        %3983 = vdwg.mxu0
        %3984 = vmatprep.subr.bf16.mxu0 %v2637
        %3985 = vmatpush1.bf16.msra.mxu0 %v2636
        %3986 = vmatprep.subr.bf16.mxu0 %v2645
        %3987 = vmatpush1.bf16.msra.mxu0 %v2644
        %3988 = vmatprep.subr.bf16.mxu0 %v2653
        %3989 = vmatpush1.bf16.msra.mxu0 %v2652
        %3990 = vmatprep.subr.bf16.mxu0 %v2661
        %3991 = vmatpush1.bf16.msra.mxu0 %v2660
        %3992 = vmatprep.subr.bf16.mxu0 %v2669
        %3993 = vmatpush1.bf16.msra.mxu0 %v2668
        %3994 = vmatprep.subr.bf16.mxu0 %v2677
        %3995 = vmatpush1.bf16.msra.mxu0 %v2676
        %3996 = vmatprep.subr.bf16.mxu0 %v2685
        %3997 = vmatpush1.bf16.msra.mxu0 %v2684
        %3998 = vmatprep.subr.bf16.mxu0 %v2693
        %3999 = vmatpush1.bf16.msra.mxu0 %v2692
        %4000 = vmatprep.subr.bf16.mxu0 %v2701
        %4001 = vmatpush1.bf16.msra.mxu0 %v2700
        %4002 = vmatprep.subr.bf16.mxu0 %v2709
        %4003 = vmatpush1.bf16.msra.mxu0 %v2708
        %4004 = vmatprep.subr.bf16.mxu0 %v2717
        %4005 = vmatpush1.bf16.msra.mxu0 %v2716
        %4006 = vmatprep.subr.bf16.mxu0 %v2725
        %4007 = vmatpush1.bf16.msra.mxu0 %v2724
        %4008 = vmatprep.subr.bf16.mxu0 %v2733
        %4009 = vmatpush1.bf16.msra.mxu0 %v2732
        %4010 = vmatprep.subr.bf16.mxu0 %v2741
        %4011 = vmatpush1.bf16.msra.mxu0 %v2740
        %4012 = vmatprep.subr.bf16.mxu0 %v2749
        %4013 = vmatpush1.bf16.msra.mxu0 %v2748
        %4014 = vmatprep.subr.bf16.mxu0 %v2757
        %4015 = vmatpush1.bf16.msra.mxu0 %v2756
        %4016 = vmatprep.mubr.bf16.mxu0 %v573
        %4017 = vmatmul.mubr.bf16.gmra.mrb[0].mxu0 %v572
        %v4018 = vpop.f32.mrb[0].mxu0
        %v4019 = vadd.f32 0.0, %v4018
        %v4020 = vpop.f32.mrb[0].mxu0
        %v4021 = vadd.f32 0.0, %v4020
        %v4022 = vpop.f32.mrb[0].mxu0
        %v4023 = vpop.f32.mrb[0].mxu0
        %4024 = vdwg.mxu0
        %4025 = vmatprep.subr.bf16.mxu0 %v2765
        %4026 = vmatpush1.bf16.msra.mxu0 %v2764
        %4027 = vmatprep.subr.bf16.mxu0 %v2773
        %4028 = vmatpush1.bf16.msra.mxu0 %v2772
        %4029 = vmatprep.subr.bf16.mxu0 %v2781
        %4030 = vmatpush1.bf16.msra.mxu0 %v2780
        %4031 = vmatprep.subr.bf16.mxu0 %v2789
        %4032 = vmatpush1.bf16.msra.mxu0 %v2788
        %4033 = vmatprep.subr.bf16.mxu0 %v2797
        %4034 = vmatpush1.bf16.msra.mxu0 %v2796
        %4035 = vmatprep.subr.bf16.mxu0 %v2805
        %4036 = vmatpush1.bf16.msra.mxu0 %v2804
        %4037 = vmatprep.subr.bf16.mxu0 %v2813
        %4038 = vmatpush1.bf16.msra.mxu0 %v2812
        %4039 = vmatprep.subr.bf16.mxu0 %v2821
        %4040 = vmatpush1.bf16.msra.mxu0 %v2820
        %4041 = vmatprep.subr.bf16.mxu0 %v2829
        %4042 = vmatpush1.bf16.msra.mxu0 %v2828
        %4043 = vmatprep.subr.bf16.mxu0 %v2837
        %4044 = vmatpush1.bf16.msra.mxu0 %v2836
        %4045 = vmatprep.subr.bf16.mxu0 %v2845
        %4046 = vmatpush1.bf16.msra.mxu0 %v2844
        %4047 = vmatprep.subr.bf16.mxu0 %v2853
        %4048 = vmatpush1.bf16.msra.mxu0 %v2852
        %4049 = vmatprep.subr.bf16.mxu0 %v2861
        %4050 = vmatpush1.bf16.msra.mxu0 %v2860
        %4051 = vmatprep.subr.bf16.mxu0 %v2869
        %4052 = vmatpush1.bf16.msra.mxu0 %v2868
        %4053 = vmatprep.subr.bf16.mxu0 %v2877
        %4054 = vmatpush1.bf16.msra.mxu0 %v2876
        %4055 = vmatprep.subr.bf16.mxu0 %v2885
        %4056 = vmatpush1.bf16.msra.mxu0 %v2884
        %4057 = vmatprep.mubr.bf16.mxu0 %v575
        %4058 = vmatmul.mubr.bf16.gmra.mrb[0].mxu0 %v574
        %v4059 = vpop.f32.mrb[0].mxu0
        %v4060 = vadd.f32 %v4019, %v4059
        %v4061 = vpop.f32.mrb[0].mxu0
        %v4062 = vadd.f32 %v4021, %v4061
        %v4063 = vpop.f32.mrb[0].mxu0
        %v4064 = vpop.f32.mrb[0].mxu0
        %4065 = vdwg.mxu0
        %4066 = vmatprep.subr.bf16.mxu0 %v2893
        %4067 = vmatpush1.bf16.msra.mxu0 %v2892
        %4068 = vmatprep.subr.bf16.mxu0 %v2901
        %4069 = vmatpush1.bf16.msra.mxu0 %v2900
        %4070 = vmatprep.subr.bf16.mxu0 %v2909
        %4071 = vmatpush1.bf16.msra.mxu0 %v2908
        %4072 = vmatprep.subr.bf16.mxu0 %v2917
        %4073 = vmatpush1.bf16.msra.mxu0 %v2916
        %4074 = vmatprep.subr.bf16.mxu0 %v2925
        %4075 = vmatpush1.bf16.msra.mxu0 %v2924
        %4076 = vmatprep.subr.bf16.mxu0 %v2933
        %4077 = vmatpush1.bf16.msra.mxu0 %v2932
        %4078 = vmatprep.subr.bf16.mxu0 %v2941
        %4079 = vmatpush1.bf16.msra.mxu0 %v2940
        %4080 = vmatprep.subr.bf16.mxu0 %v2949
        %4081 = vmatpush1.bf16.msra.mxu0 %v2948
        %4082 = vmatprep.subr.bf16.mxu0 %v2957
        %4083 = vmatpush1.bf16.msra.mxu0 %v2956
        %4084 = vmatprep.subr.bf16.mxu0 %v2965
        %4085 = vmatpush1.bf16.msra.mxu0 %v2964
        %4086 = vmatprep.subr.bf16.mxu0 %v2973
        %4087 = vmatpush1.bf16.msra.mxu0 %v2972
        %4088 = vmatprep.subr.bf16.mxu0 %v2981
        %4089 = vmatpush1.bf16.msra.mxu0 %v2980
        %4090 = vmatprep.subr.bf16.mxu0 %v2989
        %4091 = vmatpush1.bf16.msra.mxu0 %v2988
        %4092 = vmatprep.subr.bf16.mxu0 %v2997
        %4093 = vmatpush1.bf16.msra.mxu0 %v2996
        %4094 = vmatprep.subr.bf16.mxu0 %v3005
        %4095 = vmatpush1.bf16.msra.mxu0 %v3004
        %4096 = vmatprep.subr.bf16.mxu0 %v3013
        %4097 = vmatpush1.bf16.msra.mxu0 %v3012
        %4098 = vmatprep.mubr.bf16.mxu0 %v577
        %4099 = vmatmul.mubr.bf16.gmra.mrb[0].mxu0 %v576
        %v4100 = vpop.f32.mrb[0].mxu0
        %v4101 = vadd.f32 %v4060, %v4100
        %v4102 = vpop.f32.mrb[0].mxu0
        %v4103 = vadd.f32 %v4062, %v4102
        %v4104 = vpop.f32.mrb[0].mxu0
        %v4105 = vpop.f32.mrb[0].mxu0
        %4106 = vdwg.mxu0
        %4107 = vmatprep.subr.bf16.mxu0 %v3021
        %4108 = vmatpush1.bf16.msra.mxu0 %v3020
        %4109 = vmatprep.subr.bf16.mxu0 %v3029
        %4110 = vmatpush1.bf16.msra.mxu0 %v3028
        %4111 = vmatprep.subr.bf16.mxu0 %v3037
        %4112 = vmatpush1.bf16.msra.mxu0 %v3036
        %4113 = vmatprep.subr.bf16.mxu0 %v3045
        %4114 = vmatpush1.bf16.msra.mxu0 %v3044
        %4115 = vmatprep.subr.bf16.mxu0 %v3053
        %4116 = vmatpush1.bf16.msra.mxu0 %v3052
        %4117 = vmatprep.subr.bf16.mxu0 %v3061
        %4118 = vmatpush1.bf16.msra.mxu0 %v3060
        %4119 = vmatprep.subr.bf16.mxu0 %v3069
        %4120 = vmatpush1.bf16.msra.mxu0 %v3068
        %4121 = vmatprep.subr.bf16.mxu0 %v3077
        %4122 = vmatpush1.bf16.msra.mxu0 %v3076
        %4123 = vmatprep.subr.bf16.mxu0 %v3085
        %4124 = vmatpush1.bf16.msra.mxu0 %v3084
        %4125 = vmatprep.subr.bf16.mxu0 %v3093
        %4126 = vmatpush1.bf16.msra.mxu0 %v3092
        %4127 = vmatprep.subr.bf16.mxu0 %v3101
        %4128 = vmatpush1.bf16.msra.mxu0 %v3100
        %4129 = vmatprep.subr.bf16.mxu0 %v3109
        %4130 = vmatpush1.bf16.msra.mxu0 %v3108
        %4131 = vmatprep.subr.bf16.mxu0 %v3117
        %4132 = vmatpush1.bf16.msra.mxu0 %v3116
        %4133 = vmatprep.subr.bf16.mxu0 %v3125
        %4134 = vmatpush1.bf16.msra.mxu0 %v3124
        %4135 = vmatprep.subr.bf16.mxu0 %v3133
        %4136 = vmatpush1.bf16.msra.mxu0 %v3132
        %4137 = vmatprep.subr.bf16.mxu0 %v3141
        %4138 = vmatpush1.bf16.msra.mxu0 %v3140
        %4139 = vmatprep.mubr.bf16.mxu0 %v579
        %4140 = vmatmul.mubr.bf16.gmra.mrb[0].mxu0 %v578
        %v4141 = vpop.f32.mrb[0].mxu0
        %v4142 = vadd.f32 %v4101, %v4141
        %v4143 = vpop.f32.mrb[0].mxu0
        %v4144 = vadd.f32 %v4103, %v4143
        %v4145 = vpop.f32.mrb[0].mxu0
        %v4146 = vpop.f32.mrb[0].mxu0
        %4147 = vdwg.mxu0
        %4148 = vmatprep.subr.bf16.mxu0 %v2639
        %4149 = vmatpush1.bf16.msra.mxu0 %v2638
        %4150 = vmatprep.subr.bf16.mxu0 %v2647
        %4151 = vmatpush1.bf16.msra.mxu0 %v2646
        %4152 = vmatprep.subr.bf16.mxu0 %v2655
        %4153 = vmatpush1.bf16.msra.mxu0 %v2654
        %4154 = vmatprep.subr.bf16.mxu0 %v2663
        %4155 = vmatpush1.bf16.msra.mxu0 %v2662
        %4156 = vmatprep.subr.bf16.mxu0 %v2671
        %4157 = vmatpush1.bf16.msra.mxu0 %v2670
        %4158 = vmatprep.subr.bf16.mxu0 %v2679
        %4159 = vmatpush1.bf16.msra.mxu0 %v2678
        %4160 = vmatprep.subr.bf16.mxu0 %v2687
        %4161 = vmatpush1.bf16.msra.mxu0 %v2686
        %4162 = vmatprep.subr.bf16.mxu0 %v2695
        %4163 = vmatpush1.bf16.msra.mxu0 %v2694
        %4164 = vmatprep.subr.bf16.mxu0 %v2703
        %4165 = vmatpush1.bf16.msra.mxu0 %v2702
        %4166 = vmatprep.subr.bf16.mxu0 %v2711
        %4167 = vmatpush1.bf16.msra.mxu0 %v2710
        %4168 = vmatprep.subr.bf16.mxu0 %v2719
        %4169 = vmatpush1.bf16.msra.mxu0 %v2718
        %4170 = vmatprep.subr.bf16.mxu0 %v2727
        %4171 = vmatpush1.bf16.msra.mxu0 %v2726
        %4172 = vmatprep.subr.bf16.mxu0 %v2735
        %4173 = vmatpush1.bf16.msra.mxu0 %v2734
        %4174 = vmatprep.subr.bf16.mxu0 %v2743
        %4175 = vmatpush1.bf16.msra.mxu0 %v2742
        %4176 = vmatprep.subr.bf16.mxu0 %v2751
        %4177 = vmatpush1.bf16.msra.mxu0 %v2750
        %4178 = vmatprep.subr.bf16.mxu0 %v2759
        %4179 = vmatpush1.bf16.msra.mxu0 %v2758
        %4180 = vmatprep.mubr.bf16.mxu0 %v573
        %4181 = vmatmul.mubr.bf16.gmra.mrb[0].mxu0 %v572
        %v4182 = vpop.f32.mrb[0].mxu0
        %v4183 = vadd.f32 0.0, %v4182
        %v4184 = vpop.f32.mrb[0].mxu0
        %v4185 = vadd.f32 0.0, %v4184
        %v4186 = vpop.f32.mrb[0].mxu0
        %v4187 = vpop.f32.mrb[0].mxu0
        %4188 = vdwg.mxu0
        %4189 = vmatprep.subr.bf16.mxu0 %v2767
        %4190 = vmatpush1.bf16.msra.mxu0 %v2766
        %4191 = vmatprep.subr.bf16.mxu0 %v2775
        %4192 = vmatpush1.bf16.msra.mxu0 %v2774
        %4193 = vmatprep.subr.bf16.mxu0 %v2783
        %4194 = vmatpush1.bf16.msra.mxu0 %v2782
        %4195 = vmatprep.subr.bf16.mxu0 %v2791
        %4196 = vmatpush1.bf16.msra.mxu0 %v2790
        %4197 = vmatprep.subr.bf16.mxu0 %v2799
        %4198 = vmatpush1.bf16.msra.mxu0 %v2798
        %4199 = vmatprep.subr.bf16.mxu0 %v2807
        %4200 = vmatpush1.bf16.msra.mxu0 %v2806
        %4201 = vmatprep.subr.bf16.mxu0 %v2815
        %4202 = vmatpush1.bf16.msra.mxu0 %v2814
        %4203 = vmatprep.subr.bf16.mxu0 %v2823
        %4204 = vmatpush1.bf16.msra.mxu0 %v2822
        %4205 = vmatprep.subr.bf16.mxu0 %v2831
        %4206 = vmatpush1.bf16.msra.mxu0 %v2830
        %4207 = vmatprep.subr.bf16.mxu0 %v2839
        %4208 = vmatpush1.bf16.msra.mxu0 %v2838
        %4209 = vmatprep.subr.bf16.mxu0 %v2847
        %4210 = vmatpush1.bf16.msra.mxu0 %v2846
        %4211 = vmatprep.subr.bf16.mxu0 %v2855
        %4212 = vmatpush1.bf16.msra.mxu0 %v2854
        %4213 = vmatprep.subr.bf16.mxu0 %v2863
        %4214 = vmatpush1.bf16.msra.mxu0 %v2862
        %4215 = vmatprep.subr.bf16.mxu0 %v2871
        %4216 = vmatpush1.bf16.msra.mxu0 %v2870
        %4217 = vmatprep.subr.bf16.mxu0 %v2879
        %4218 = vmatpush1.bf16.msra.mxu0 %v2878
        %4219 = vmatprep.subr.bf16.mxu0 %v2887
        %4220 = vmatpush1.bf16.msra.mxu0 %v2886
        %4221 = vmatprep.mubr.bf16.mxu0 %v575
        %4222 = vmatmul.mubr.bf16.gmra.mrb[0].mxu0 %v574
        %v4223 = vpop.f32.mrb[0].mxu0
        %v4224 = vadd.f32 %v4183, %v4223
        %v4225 = vpop.f32.mrb[0].mxu0
        %v4226 = vadd.f32 %v4185, %v4225
        %v4227 = vpop.f32.mrb[0].mxu0
        %v4228 = vpop.f32.mrb[0].mxu0
        %4229 = vdwg.mxu0
        %4230 = vmatprep.subr.bf16.mxu0 %v2895
        %4231 = vmatpush1.bf16.msra.mxu0 %v2894
        %4232 = vmatprep.subr.bf16.mxu0 %v2903
        %4233 = vmatpush1.bf16.msra.mxu0 %v2902
        %4234 = vmatprep.subr.bf16.mxu0 %v2911
        %4235 = vmatpush1.bf16.msra.mxu0 %v2910
        %4236 = vmatprep.subr.bf16.mxu0 %v2919
        %4237 = vmatpush1.bf16.msra.mxu0 %v2918
        %4238 = vmatprep.subr.bf16.mxu0 %v2927
        %4239 = vmatpush1.bf16.msra.mxu0 %v2926
        %4240 = vmatprep.subr.bf16.mxu0 %v2935
        %4241 = vmatpush1.bf16.msra.mxu0 %v2934
        %4242 = vmatprep.subr.bf16.mxu0 %v2943
        %4243 = vmatpush1.bf16.msra.mxu0 %v2942
        %4244 = vmatprep.subr.bf16.mxu0 %v2951
        %4245 = vmatpush1.bf16.msra.mxu0 %v2950
        %4246 = vmatprep.subr.bf16.mxu0 %v2959
        %4247 = vmatpush1.bf16.msra.mxu0 %v2958
        %4248 = vmatprep.subr.bf16.mxu0 %v2967
        %4249 = vmatpush1.bf16.msra.mxu0 %v2966
        %4250 = vmatprep.subr.bf16.mxu0 %v2975
        %4251 = vmatpush1.bf16.msra.mxu0 %v2974
        %4252 = vmatprep.subr.bf16.mxu0 %v2983
        %4253 = vmatpush1.bf16.msra.mxu0 %v2982
        %4254 = vmatprep.subr.bf16.mxu0 %v2991
        %4255 = vmatpush1.bf16.msra.mxu0 %v2990
        %4256 = vmatprep.subr.bf16.mxu0 %v2999
        %4257 = vmatpush1.bf16.msra.mxu0 %v2998
        %4258 = vmatprep.subr.bf16.mxu0 %v3007
        %4259 = vmatpush1.bf16.msra.mxu0 %v3006
        %4260 = vmatprep.subr.bf16.mxu0 %v3015
        %4261 = vmatpush1.bf16.msra.mxu0 %v3014
        %4262 = vmatprep.mubr.bf16.mxu0 %v577
        %4263 = vmatmul.mubr.bf16.gmra.mrb[0].mxu0 %v576
        %v4264 = vpop.f32.mrb[0].mxu0
        %v4265 = vadd.f32 %v4224, %v4264
        %v4266 = vpop.f32.mrb[0].mxu0
        %v4267 = vadd.f32 %v4226, %v4266
        %v4268 = vpop.f32.mrb[0].mxu0
        %v4269 = vpop.f32.mrb[0].mxu0
        %4270 = vdwg.mxu0
        %4271 = vmatprep.subr.bf16.mxu0 %v3023
        %4272 = vmatpush1.bf16.msra.mxu0 %v3022
        %4273 = vmatprep.subr.bf16.mxu0 %v3031
        %4274 = vmatpush1.bf16.msra.mxu0 %v3030
        %4275 = vmatprep.subr.bf16.mxu0 %v3039
        %4276 = vmatpush1.bf16.msra.mxu0 %v3038
        %4277 = vmatprep.subr.bf16.mxu0 %v3047
        %4278 = vmatpush1.bf16.msra.mxu0 %v3046
        %4279 = vmatprep.subr.bf16.mxu0 %v3055
        %4280 = vmatpush1.bf16.msra.mxu0 %v3054
        %4281 = vmatprep.subr.bf16.mxu0 %v3063
        %4282 = vmatpush1.bf16.msra.mxu0 %v3062
        %4283 = vmatprep.subr.bf16.mxu0 %v3071
        %4284 = vmatpush1.bf16.msra.mxu0 %v3070
        %4285 = vmatprep.subr.bf16.mxu0 %v3079
        %4286 = vmatpush1.bf16.msra.mxu0 %v3078
        %4287 = vmatprep.subr.bf16.mxu0 %v3087
        %4288 = vmatpush1.bf16.msra.mxu0 %v3086
        %4289 = vmatprep.subr.bf16.mxu0 %v3095
        %4290 = vmatpush1.bf16.msra.mxu0 %v3094
        %4291 = vmatprep.subr.bf16.mxu0 %v3103
        %4292 = vmatpush1.bf16.msra.mxu0 %v3102
        %4293 = vmatprep.subr.bf16.mxu0 %v3111
        %4294 = vmatpush1.bf16.msra.mxu0 %v3110
        %4295 = vmatprep.subr.bf16.mxu0 %v3119
        %4296 = vmatpush1.bf16.msra.mxu0 %v3118
        %4297 = vmatprep.subr.bf16.mxu0 %v3127
        %4298 = vmatpush1.bf16.msra.mxu0 %v3126
        %4299 = vmatprep.subr.bf16.mxu0 %v3135
        %4300 = vmatpush1.bf16.msra.mxu0 %v3134
        %4301 = vmatprep.subr.bf16.mxu0 %v3143
        %4302 = vmatpush1.bf16.msra.mxu0 %v3142
        %4303 = vmatprep.mubr.bf16.mxu0 %v579
        %4304 = vmatmul.mubr.bf16.gmra.mrb[0].mxu0 %v578
        %v4305 = vpop.f32.mrb[0].mxu0
        %v4306 = vadd.f32 %v4265, %v4305
        %v4307 = vpop.f32.mrb[0].mxu0
        %v4308 = vadd.f32 %v4267, %v4307
        %v4309 = vpop.f32.mrb[0].mxu0
        %v4310 = vpop.f32.mrb[0].mxu0
        %4311 = vdwg.mxu0
        %v4320 = vcombine.low %v3814, %v3816
        %v4321 = vcombine.low %v3978, %v3980
        %v4322 = vcombine.low %v4142, %v4144
        %v4323 = vcombine.low %v4306, %v4308
        %v4328 = vadd.f32 %v580, %v4320
        %v4329 = vadd.f32 %v581, %v4321
        %v4330 = vadd.f32 %v582, %v4322
        %v4331 = vadd.f32 %v583, %v4323
        %4332 = vst [vmem:[#allocation2] sm:$0xff] %v4328
        %4333 = vst [vmem:[#allocation2 + $0x8] sm:$0xff] %v4329
        %4334 = vst [vmem:[#allocation2 + $0x10] sm:$0xff] %v4330
        %4335 = vst [vmem:[#allocation2 + $0x18] sm:$0xff] %v4331
        %v4336 = vld [vmem:[#allocation3] sm:$0xff]
        %v4337 = vld [vmem:[#allocation3 + $0x8] sm:$0xff]
        %v4338 = vld [vmem:[#allocation3 + $0x10] sm:$0xff]
        %v4339 = vld [vmem:[#allocation3 + $0x18] sm:$0xff]
        %v4340 = vld [vmem:[%s429] sm:$0xff]
        %v4341 = vld [vmem:[%s429 + $0x8] sm:$0xff]
        %v4342 = vld [vmem:[%s429 + $0x10] sm:$0xff]
        %v4343 = vld [vmem:[%s429 + $0x18] sm:$0xff]
        %v4344 = vld [vmem:[%s429 + $0x20] sm:$0xff]
        %v4345 = vld [vmem:[%s429 + $0x28] sm:$0xff]
        %v4346 = vld [vmem:[%s429 + $0x30] sm:$0xff]
        %v4347 = vld [vmem:[%s429 + $0x38] sm:$0xff]
        %v4348 = vld [vmem:[%s429 + $0x40] sm:$0xff]
        %v4349 = vld [vmem:[%s429 + $0x48] sm:$0xff]
        %v4350 = vld [vmem:[%s429 + $0x50] sm:$0xff]
        %v4351 = vld [vmem:[%s429 + $0x58] sm:$0xff]
        %v4352 = vld [vmem:[%s429 + $0x60] sm:$0xff]
        %v4353 = vld [vmem:[%s429 + $0x68] sm:$0xff]
        %v4354 = vld [vmem:[%s429 + $0x70] sm:$0xff]
        %v4355 = vld [vmem:[%s429 + $0x78] sm:$0xff]
        %v4356 = vld [vmem:[%s429 + $0x80] sm:$0xff]
        %v4357 = vld [vmem:[%s429 + $0x88] sm:$0xff]
        %v4358 = vld [vmem:[%s429 + $0x90] sm:$0xff]
        %v4359 = vld [vmem:[%s429 + $0x98] sm:$0xff]
        %v4360 = vld [vmem:[%s429 + $0xa0] sm:$0xff]
        %v4361 = vld [vmem:[%s429 + $0xa8] sm:$0xff]
        %v4362 = vld [vmem:[%s429 + $0xb0] sm:$0xff]
        %v4363 = vld [vmem:[%s429 + $0xb8] sm:$0xff]
        %v4364 = vld [vmem:[%s429 + $0xc0] sm:$0xff]
        %v4365 = vld [vmem:[%s429 + $0xc8] sm:$0xff]
        %v4366 = vld [vmem:[%s429 + $0xd0] sm:$0xff]
        %v4367 = vld [vmem:[%s429 + $0xd8] sm:$0xff]
        %v4368 = vld [vmem:[%s429 + $0xe0] sm:$0xff]
        %v4369 = vld [vmem:[%s429 + $0xe8] sm:$0xff]
        %v4370 = vld [vmem:[%s429 + $0xf0] sm:$0xff]
        %v4371 = vld [vmem:[%s429 + $0xf8] sm:$0xff]
        %v4372 = vld [vmem:[%s429 + $0x100] sm:$0xff]
        %v4373 = vld [vmem:[%s429 + $0x108] sm:$0xff]
        %v4374 = vld [vmem:[%s429 + $0x110] sm:$0xff]
        %v4375 = vld [vmem:[%s429 + $0x118] sm:$0xff]
        %v4376 = vld [vmem:[%s429 + $0x120] sm:$0xff]
        %v4377 = vld [vmem:[%s429 + $0x128] sm:$0xff]
        %v4378 = vld [vmem:[%s429 + $0x130] sm:$0xff]
        %v4379 = vld [vmem:[%s429 + $0x138] sm:$0xff]
        %v4380 = vld [vmem:[%s429 + $0x140] sm:$0xff]
        %v4381 = vld [vmem:[%s429 + $0x148] sm:$0xff]
        %v4382 = vld [vmem:[%s429 + $0x150] sm:$0xff]
        %v4383 = vld [vmem:[%s429 + $0x158] sm:$0xff]
        %v4384 = vld [vmem:[%s429 + $0x160] sm:$0xff]
        %v4385 = vld [vmem:[%s429 + $0x168] sm:$0xff]
        %v4386 = vld [vmem:[%s429 + $0x170] sm:$0xff]
        %v4387 = vld [vmem:[%s429 + $0x178] sm:$0xff]
        %v4388 = vld [vmem:[%s429 + $0x180] sm:$0xff]
        %v4389 = vld [vmem:[%s429 + $0x188] sm:$0xff]
        %v4390 = vld [vmem:[%s429 + $0x190] sm:$0xff]
        %v4391 = vld [vmem:[%s429 + $0x198] sm:$0xff]
        %v4392 = vld [vmem:[%s429 + $0x1a0] sm:$0xff]
        %v4393 = vld [vmem:[%s429 + $0x1a8] sm:$0xff]
        %v4394 = vld [vmem:[%s429 + $0x1b0] sm:$0xff]
        %v4395 = vld [vmem:[%s429 + $0x1b8] sm:$0xff]
        %v4396 = vld [vmem:[%s429 + $0x1c0] sm:$0xff]
        %v4397 = vld [vmem:[%s429 + $0x1c8] sm:$0xff]
        %v4398 = vld [vmem:[%s429 + $0x1d0] sm:$0xff]
        %v4399 = vld [vmem:[%s429 + $0x1d8] sm:$0xff]
        %v4400 = vld [vmem:[%s429 + $0x1e0] sm:$0xff]
        %v4401 = vld [vmem:[%s429 + $0x1e8] sm:$0xff]
        %v4402 = vld [vmem:[%s429 + $0x1f0] sm:$0xff]
        %v4403 = vld [vmem:[%s429 + $0x1f8] sm:$0xff]
        %v4404 = vld [vmem:[%s429 + $0x200] sm:$0xff]
        %v4405 = vld [vmem:[%s429 + $0x208] sm:$0xff]
        %v4406 = vld [vmem:[%s429 + $0x210] sm:$0xff]
        %v4407 = vld [vmem:[%s429 + $0x218] sm:$0xff]
        %v4408 = vld [vmem:[%s429 + $0x220] sm:$0xff]
        %v4409 = vld [vmem:[%s429 + $0x228] sm:$0xff]
        %v4410 = vld [vmem:[%s429 + $0x230] sm:$0xff]
        %v4411 = vld [vmem:[%s429 + $0x238] sm:$0xff]
        %v4412 = vld [vmem:[%s429 + $0x240] sm:$0xff]
        %v4413 = vld [vmem:[%s429 + $0x248] sm:$0xff]
        %v4414 = vld [vmem:[%s429 + $0x250] sm:$0xff]
        %v4415 = vld [vmem:[%s429 + $0x258] sm:$0xff]
        %v4416 = vld [vmem:[%s429 + $0x260] sm:$0xff]
        %v4417 = vld [vmem:[%s429 + $0x268] sm:$0xff]
        %v4418 = vld [vmem:[%s429 + $0x270] sm:$0xff]
        %v4419 = vld [vmem:[%s429 + $0x278] sm:$0xff]
        %v4420 = vld [vmem:[%s429 + $0x280] sm:$0xff]
        %v4421 = vld [vmem:[%s429 + $0x288] sm:$0xff]
        %v4422 = vld [vmem:[%s429 + $0x290] sm:$0xff]
        %v4423 = vld [vmem:[%s429 + $0x298] sm:$0xff]
        %v4424 = vld [vmem:[%s429 + $0x2a0] sm:$0xff]
        %v4425 = vld [vmem:[%s429 + $0x2a8] sm:$0xff]
        %v4426 = vld [vmem:[%s429 + $0x2b0] sm:$0xff]
        %v4427 = vld [vmem:[%s429 + $0x2b8] sm:$0xff]
        %v4428 = vld [vmem:[%s429 + $0x2c0] sm:$0xff]
        %v4429 = vld [vmem:[%s429 + $0x2c8] sm:$0xff]
        %v4430 = vld [vmem:[%s429 + $0x2d0] sm:$0xff]
        %v4431 = vld [vmem:[%s429 + $0x2d8] sm:$0xff]
        %v4432 = vld [vmem:[%s429 + $0x2e0] sm:$0xff]
        %v4433 = vld [vmem:[%s429 + $0x2e8] sm:$0xff]
        %v4434 = vld [vmem:[%s429 + $0x2f0] sm:$0xff]
        %v4435 = vld [vmem:[%s429 + $0x2f8] sm:$0xff]
        %v4436 = vld [vmem:[%s429 + $0x300] sm:$0xff]
        %v4437 = vld [vmem:[%s429 + $0x308] sm:$0xff]
        %v4438 = vld [vmem:[%s429 + $0x310] sm:$0xff]
        %v4439 = vld [vmem:[%s429 + $0x318] sm:$0xff]
        %v4440 = vld [vmem:[%s429 + $0x320] sm:$0xff]
        %v4441 = vld [vmem:[%s429 + $0x328] sm:$0xff]
        %v4442 = vld [vmem:[%s429 + $0x330] sm:$0xff]
        %v4443 = vld [vmem:[%s429 + $0x338] sm:$0xff]
        %v4444 = vld [vmem:[%s429 + $0x340] sm:$0xff]
        %v4445 = vld [vmem:[%s429 + $0x348] sm:$0xff]
        %v4446 = vld [vmem:[%s429 + $0x350] sm:$0xff]
        %v4447 = vld [vmem:[%s429 + $0x358] sm:$0xff]
        %v4448 = vld [vmem:[%s429 + $0x360] sm:$0xff]
        %v4449 = vld [vmem:[%s429 + $0x368] sm:$0xff]
        %v4450 = vld [vmem:[%s429 + $0x370] sm:$0xff]
        %v4451 = vld [vmem:[%s429 + $0x378] sm:$0xff]
        %v4452 = vld [vmem:[%s429 + $0x380] sm:$0xff]
        %v4453 = vld [vmem:[%s429 + $0x388] sm:$0xff]
        %v4454 = vld [vmem:[%s429 + $0x390] sm:$0xff]
        %v4455 = vld [vmem:[%s429 + $0x398] sm:$0xff]
        %v4456 = vld [vmem:[%s429 + $0x3a0] sm:$0xff]
        %v4457 = vld [vmem:[%s429 + $0x3a8] sm:$0xff]
        %v4458 = vld [vmem:[%s429 + $0x3b0] sm:$0xff]
        %v4459 = vld [vmem:[%s429 + $0x3b8] sm:$0xff]
        %v4460 = vld [vmem:[%s429 + $0x3c0] sm:$0xff]
        %v4461 = vld [vmem:[%s429 + $0x3c8] sm:$0xff]
        %v4462 = vld [vmem:[%s429 + $0x3d0] sm:$0xff]
        %v4463 = vld [vmem:[%s429 + $0x3d8] sm:$0xff]
        %v4464 = vld [vmem:[%s429 + $0x3e0] sm:$0xff]
        %v4465 = vld [vmem:[%s429 + $0x3e8] sm:$0xff]
        %v4466 = vld [vmem:[%s429 + $0x3f0] sm:$0xff]
        %v4467 = vld [vmem:[%s429 + $0x3f8] sm:$0xff]
        %v4468 = vld [vmem:[%s429 + $0x400] sm:$0xff]
        %v4469 = vld [vmem:[%s429 + $0x408] sm:$0xff]
        %v4470 = vld [vmem:[%s429 + $0x410] sm:$0xff]
        %v4471 = vld [vmem:[%s429 + $0x418] sm:$0xff]
        %v4472 = vld [vmem:[%s429 + $0x420] sm:$0xff]
        %v4473 = vld [vmem:[%s429 + $0x428] sm:$0xff]
        %v4474 = vld [vmem:[%s429 + $0x430] sm:$0xff]
        %v4475 = vld [vmem:[%s429 + $0x438] sm:$0xff]
        %v4476 = vld [vmem:[%s429 + $0x440] sm:$0xff]
        %v4477 = vld [vmem:[%s429 + $0x448] sm:$0xff]
        %v4478 = vld [vmem:[%s429 + $0x450] sm:$0xff]
        %v4479 = vld [vmem:[%s429 + $0x458] sm:$0xff]
        %v4480 = vld [vmem:[%s429 + $0x460] sm:$0xff]
        %v4481 = vld [vmem:[%s429 + $0x468] sm:$0xff]
        %v4482 = vld [vmem:[%s429 + $0x470] sm:$0xff]
        %v4483 = vld [vmem:[%s429 + $0x478] sm:$0xff]
        %v4484 = vld [vmem:[%s429 + $0x480] sm:$0xff]
        %v4485 = vld [vmem:[%s429 + $0x488] sm:$0xff]
        %v4486 = vld [vmem:[%s429 + $0x490] sm:$0xff]
        %v4487 = vld [vmem:[%s429 + $0x498] sm:$0xff]
        %v4488 = vld [vmem:[%s429 + $0x4a0] sm:$0xff]
        %v4489 = vld [vmem:[%s429 + $0x4a8] sm:$0xff]
        %v4490 = vld [vmem:[%s429 + $0x4b0] sm:$0xff]
        %v4491 = vld [vmem:[%s429 + $0x4b8] sm:$0xff]
        %v4492 = vld [vmem:[%s429 + $0x4c0] sm:$0xff]
        %v4493 = vld [vmem:[%s429 + $0x4c8] sm:$0xff]
        %v4494 = vld [vmem:[%s429 + $0x4d0] sm:$0xff]
        %v4495 = vld [vmem:[%s429 + $0x4d8] sm:$0xff]
        %v4496 = vld [vmem:[%s429 + $0x4e0] sm:$0xff]
        %v4497 = vld [vmem:[%s429 + $0x4e8] sm:$0xff]
        %v4498 = vld [vmem:[%s429 + $0x4f0] sm:$0xff]
        %v4499 = vld [vmem:[%s429 + $0x4f8] sm:$0xff]
        %v4500 = vld [vmem:[%s429 + $0x500] sm:$0xff]
        %v4501 = vld [vmem:[%s429 + $0x508] sm:$0xff]
        %v4502 = vld [vmem:[%s429 + $0x510] sm:$0xff]
        %v4503 = vld [vmem:[%s429 + $0x518] sm:$0xff]
        %v4504 = vld [vmem:[%s429 + $0x520] sm:$0xff]
        %v4505 = vld [vmem:[%s429 + $0x528] sm:$0xff]
        %v4506 = vld [vmem:[%s429 + $0x530] sm:$0xff]
        %v4507 = vld [vmem:[%s429 + $0x538] sm:$0xff]
        %v4508 = vld [vmem:[%s429 + $0x540] sm:$0xff]
        %v4509 = vld [vmem:[%s429 + $0x548] sm:$0xff]
        %v4510 = vld [vmem:[%s429 + $0x550] sm:$0xff]
        %v4511 = vld [vmem:[%s429 + $0x558] sm:$0xff]
        %v4512 = vld [vmem:[%s429 + $0x560] sm:$0xff]
        %v4513 = vld [vmem:[%s429 + $0x568] sm:$0xff]
        %v4514 = vld [vmem:[%s429 + $0x570] sm:$0xff]
        %v4515 = vld [vmem:[%s429 + $0x578] sm:$0xff]
        %v4516 = vld [vmem:[%s429 + $0x580] sm:$0xff]
        %v4517 = vld [vmem:[%s429 + $0x588] sm:$0xff]
        %v4518 = vld [vmem:[%s429 + $0x590] sm:$0xff]
        %v4519 = vld [vmem:[%s429 + $0x598] sm:$0xff]
        %v4520 = vld [vmem:[%s429 + $0x5a0] sm:$0xff]
        %v4521 = vld [vmem:[%s429 + $0x5a8] sm:$0xff]
        %v4522 = vld [vmem:[%s429 + $0x5b0] sm:$0xff]
        %v4523 = vld [vmem:[%s429 + $0x5b8] sm:$0xff]
        %v4524 = vld [vmem:[%s429 + $0x5c0] sm:$0xff]
        %v4525 = vld [vmem:[%s429 + $0x5c8] sm:$0xff]
        %v4526 = vld [vmem:[%s429 + $0x5d0] sm:$0xff]
        %v4527 = vld [vmem:[%s429 + $0x5d8] sm:$0xff]
        %v4528 = vld [vmem:[%s429 + $0x5e0] sm:$0xff]
        %v4529 = vld [vmem:[%s429 + $0x5e8] sm:$0xff]
        %v4530 = vld [vmem:[%s429 + $0x5f0] sm:$0xff]
        %v4531 = vld [vmem:[%s429 + $0x5f8] sm:$0xff]
        %v4532 = vld [vmem:[%s429 + $0x600] sm:$0xff]
        %v4533 = vld [vmem:[%s429 + $0x608] sm:$0xff]
        %v4534 = vld [vmem:[%s429 + $0x610] sm:$0xff]
        %v4535 = vld [vmem:[%s429 + $0x618] sm:$0xff]
        %v4536 = vld [vmem:[%s429 + $0x620] sm:$0xff]
        %v4537 = vld [vmem:[%s429 + $0x628] sm:$0xff]
        %v4538 = vld [vmem:[%s429 + $0x630] sm:$0xff]
        %v4539 = vld [vmem:[%s429 + $0x638] sm:$0xff]
        %v4540 = vld [vmem:[%s429 + $0x640] sm:$0xff]
        %v4541 = vld [vmem:[%s429 + $0x648] sm:$0xff]
        %v4542 = vld [vmem:[%s429 + $0x650] sm:$0xff]
        %v4543 = vld [vmem:[%s429 + $0x658] sm:$0xff]
        %v4544 = vld [vmem:[%s429 + $0x660] sm:$0xff]
        %v4545 = vld [vmem:[%s429 + $0x668] sm:$0xff]
        %v4546 = vld [vmem:[%s429 + $0x670] sm:$0xff]
        %v4547 = vld [vmem:[%s429 + $0x678] sm:$0xff]
        %v4548 = vld [vmem:[%s429 + $0x680] sm:$0xff]
        %v4549 = vld [vmem:[%s429 + $0x688] sm:$0xff]
        %v4550 = vld [vmem:[%s429 + $0x690] sm:$0xff]
        %v4551 = vld [vmem:[%s429 + $0x698] sm:$0xff]
        %v4552 = vld [vmem:[%s429 + $0x6a0] sm:$0xff]
        %v4553 = vld [vmem:[%s429 + $0x6a8] sm:$0xff]
        %v4554 = vld [vmem:[%s429 + $0x6b0] sm:$0xff]
        %v4555 = vld [vmem:[%s429 + $0x6b8] sm:$0xff]
        %v4556 = vld [vmem:[%s429 + $0x6c0] sm:$0xff]
        %v4557 = vld [vmem:[%s429 + $0x6c8] sm:$0xff]
        %v4558 = vld [vmem:[%s429 + $0x6d0] sm:$0xff]
        %v4559 = vld [vmem:[%s429 + $0x6d8] sm:$0xff]
        %v4560 = vld [vmem:[%s429 + $0x6e0] sm:$0xff]
        %v4561 = vld [vmem:[%s429 + $0x6e8] sm:$0xff]
        %v4562 = vld [vmem:[%s429 + $0x6f0] sm:$0xff]
        %v4563 = vld [vmem:[%s429 + $0x6f8] sm:$0xff]
        %v4564 = vld [vmem:[%s429 + $0x700] sm:$0xff]
        %v4565 = vld [vmem:[%s429 + $0x708] sm:$0xff]
        %v4566 = vld [vmem:[%s429 + $0x710] sm:$0xff]
        %v4567 = vld [vmem:[%s429 + $0x718] sm:$0xff]
        %v4568 = vld [vmem:[%s429 + $0x720] sm:$0xff]
        %v4569 = vld [vmem:[%s429 + $0x728] sm:$0xff]
        %v4570 = vld [vmem:[%s429 + $0x730] sm:$0xff]
        %v4571 = vld [vmem:[%s429 + $0x738] sm:$0xff]
        %v4572 = vld [vmem:[%s429 + $0x740] sm:$0xff]
        %v4573 = vld [vmem:[%s429 + $0x748] sm:$0xff]
        %v4574 = vld [vmem:[%s429 + $0x750] sm:$0xff]
        %v4575 = vld [vmem:[%s429 + $0x758] sm:$0xff]
        %v4576 = vld [vmem:[%s429 + $0x760] sm:$0xff]
        %v4577 = vld [vmem:[%s429 + $0x768] sm:$0xff]
        %v4578 = vld [vmem:[%s429 + $0x770] sm:$0xff]
        %v4579 = vld [vmem:[%s429 + $0x778] sm:$0xff]
        %v4580 = vld [vmem:[%s429 + $0x780] sm:$0xff]
        %v4581 = vld [vmem:[%s429 + $0x788] sm:$0xff]
        %v4582 = vld [vmem:[%s429 + $0x790] sm:$0xff]
        %v4583 = vld [vmem:[%s429 + $0x798] sm:$0xff]
        %v4584 = vld [vmem:[%s429 + $0x7a0] sm:$0xff]
        %v4585 = vld [vmem:[%s429 + $0x7a8] sm:$0xff]
        %v4586 = vld [vmem:[%s429 + $0x7b0] sm:$0xff]
        %v4587 = vld [vmem:[%s429 + $0x7b8] sm:$0xff]
        %v4588 = vld [vmem:[%s429 + $0x7c0] sm:$0xff]
        %v4589 = vld [vmem:[%s429 + $0x7c8] sm:$0xff]
        %v4590 = vld [vmem:[%s429 + $0x7d0] sm:$0xff]
        %v4591 = vld [vmem:[%s429 + $0x7d8] sm:$0xff]
        %v4592 = vld [vmem:[%s429 + $0x7e0] sm:$0xff]
        %v4593 = vld [vmem:[%s429 + $0x7e8] sm:$0xff]
        %v4594 = vld [vmem:[%s429 + $0x7f0] sm:$0xff]
        %v4595 = vld [vmem:[%s429 + $0x7f8] sm:$0xff]
        %v4596 = vld [vmem:[%s429 + $0x800] sm:$0xff]
        %v4597 = vld [vmem:[%s429 + $0x808] sm:$0xff]
        %v4598 = vld [vmem:[%s429 + $0x810] sm:$0xff]
        %v4599 = vld [vmem:[%s429 + $0x818] sm:$0xff]
        %v4600 = vld [vmem:[%s429 + $0x820] sm:$0xff]
        %v4601 = vld [vmem:[%s429 + $0x828] sm:$0xff]
        %v4602 = vld [vmem:[%s429 + $0x830] sm:$0xff]
        %v4603 = vld [vmem:[%s429 + $0x838] sm:$0xff]
        %v4604 = vld [vmem:[%s429 + $0x840] sm:$0xff]
        %v4605 = vld [vmem:[%s429 + $0x848] sm:$0xff]
        %v4606 = vld [vmem:[%s429 + $0x850] sm:$0xff]
        %v4607 = vld [vmem:[%s429 + $0x858] sm:$0xff]
        %v4608 = vld [vmem:[%s429 + $0x860] sm:$0xff]
        %v4609 = vld [vmem:[%s429 + $0x868] sm:$0xff]
        %v4610 = vld [vmem:[%s429 + $0x870] sm:$0xff]
        %v4611 = vld [vmem:[%s429 + $0x878] sm:$0xff]
        %v4612 = vld [vmem:[%s429 + $0x880] sm:$0xff]
        %v4613 = vld [vmem:[%s429 + $0x888] sm:$0xff]
        %v4614 = vld [vmem:[%s429 + $0x890] sm:$0xff]
        %v4615 = vld [vmem:[%s429 + $0x898] sm:$0xff]
        %v4616 = vld [vmem:[%s429 + $0x8a0] sm:$0xff]
        %v4617 = vld [vmem:[%s429 + $0x8a8] sm:$0xff]
        %v4618 = vld [vmem:[%s429 + $0x8b0] sm:$0xff]
        %v4619 = vld [vmem:[%s429 + $0x8b8] sm:$0xff]
        %v4620 = vld [vmem:[%s429 + $0x8c0] sm:$0xff]
        %v4621 = vld [vmem:[%s429 + $0x8c8] sm:$0xff]
        %v4622 = vld [vmem:[%s429 + $0x8d0] sm:$0xff]
        %v4623 = vld [vmem:[%s429 + $0x8d8] sm:$0xff]
        %v4624 = vld [vmem:[%s429 + $0x8e0] sm:$0xff]
        %v4625 = vld [vmem:[%s429 + $0x8e8] sm:$0xff]
        %v4626 = vld [vmem:[%s429 + $0x8f0] sm:$0xff]
        %v4627 = vld [vmem:[%s429 + $0x8f8] sm:$0xff]
        %v4628 = vld [vmem:[%s429 + $0x900] sm:$0xff]
        %v4629 = vld [vmem:[%s429 + $0x908] sm:$0xff]
        %v4630 = vld [vmem:[%s429 + $0x910] sm:$0xff]
        %v4631 = vld [vmem:[%s429 + $0x918] sm:$0xff]
        %v4632 = vld [vmem:[%s429 + $0x920] sm:$0xff]
        %v4633 = vld [vmem:[%s429 + $0x928] sm:$0xff]
        %v4634 = vld [vmem:[%s429 + $0x930] sm:$0xff]
        %v4635 = vld [vmem:[%s429 + $0x938] sm:$0xff]
        %v4636 = vld [vmem:[%s429 + $0x940] sm:$0xff]
        %v4637 = vld [vmem:[%s429 + $0x948] sm:$0xff]
        %v4638 = vld [vmem:[%s429 + $0x950] sm:$0xff]
        %v4639 = vld [vmem:[%s429 + $0x958] sm:$0xff]
        %v4640 = vld [vmem:[%s429 + $0x960] sm:$0xff]
        %v4641 = vld [vmem:[%s429 + $0x968] sm:$0xff]
        %v4642 = vld [vmem:[%s429 + $0x970] sm:$0xff]
        %v4643 = vld [vmem:[%s429 + $0x978] sm:$0xff]
        %v4644 = vld [vmem:[%s429 + $0x980] sm:$0xff]
        %v4645 = vld [vmem:[%s429 + $0x988] sm:$0xff]
        %v4646 = vld [vmem:[%s429 + $0x990] sm:$0xff]
        %v4647 = vld [vmem:[%s429 + $0x998] sm:$0xff]
        %v4648 = vld [vmem:[%s429 + $0x9a0] sm:$0xff]
        %v4649 = vld [vmem:[%s429 + $0x9a8] sm:$0xff]
        %v4650 = vld [vmem:[%s429 + $0x9b0] sm:$0xff]
        %v4651 = vld [vmem:[%s429 + $0x9b8] sm:$0xff]
        %v4652 = vld [vmem:[%s429 + $0x9c0] sm:$0xff]
        %v4653 = vld [vmem:[%s429 + $0x9c8] sm:$0xff]
        %v4654 = vld [vmem:[%s429 + $0x9d0] sm:$0xff]
        %v4655 = vld [vmem:[%s429 + $0x9d8] sm:$0xff]
        %v4656 = vld [vmem:[%s429 + $0x9e0] sm:$0xff]
        %v4657 = vld [vmem:[%s429 + $0x9e8] sm:$0xff]
        %v4658 = vld [vmem:[%s429 + $0x9f0] sm:$0xff]
        %v4659 = vld [vmem:[%s429 + $0x9f8] sm:$0xff]
        %v4660 = vld [vmem:[%s429 + $0xa00] sm:$0xff]
        %v4661 = vld [vmem:[%s429 + $0xa08] sm:$0xff]
        %v4662 = vld [vmem:[%s429 + $0xa10] sm:$0xff]
        %v4663 = vld [vmem:[%s429 + $0xa18] sm:$0xff]
        %v4664 = vld [vmem:[%s429 + $0xa20] sm:$0xff]
        %v4665 = vld [vmem:[%s429 + $0xa28] sm:$0xff]
        %v4666 = vld [vmem:[%s429 + $0xa30] sm:$0xff]
        %v4667 = vld [vmem:[%s429 + $0xa38] sm:$0xff]
        %v4668 = vld [vmem:[%s429 + $0xa40] sm:$0xff]
        %v4669 = vld [vmem:[%s429 + $0xa48] sm:$0xff]
        %v4670 = vld [vmem:[%s429 + $0xa50] sm:$0xff]
        %v4671 = vld [vmem:[%s429 + $0xa58] sm:$0xff]
        %v4672 = vld [vmem:[%s429 + $0xa60] sm:$0xff]
        %v4673 = vld [vmem:[%s429 + $0xa68] sm:$0xff]
        %v4674 = vld [vmem:[%s429 + $0xa70] sm:$0xff]
        %v4675 = vld [vmem:[%s429 + $0xa78] sm:$0xff]
        %v4676 = vld [vmem:[%s429 + $0xa80] sm:$0xff]
        %v4677 = vld [vmem:[%s429 + $0xa88] sm:$0xff]
        %v4678 = vld [vmem:[%s429 + $0xa90] sm:$0xff]
        %v4679 = vld [vmem:[%s429 + $0xa98] sm:$0xff]
        %v4680 = vld [vmem:[%s429 + $0xaa0] sm:$0xff]
        %v4681 = vld [vmem:[%s429 + $0xaa8] sm:$0xff]
        %v4682 = vld [vmem:[%s429 + $0xab0] sm:$0xff]
        %v4683 = vld [vmem:[%s429 + $0xab8] sm:$0xff]
        %v4684 = vld [vmem:[%s429 + $0xac0] sm:$0xff]
        %v4685 = vld [vmem:[%s429 + $0xac8] sm:$0xff]
        %v4686 = vld [vmem:[%s429 + $0xad0] sm:$0xff]
        %v4687 = vld [vmem:[%s429 + $0xad8] sm:$0xff]
        %v4688 = vld [vmem:[%s429 + $0xae0] sm:$0xff]
        %v4689 = vld [vmem:[%s429 + $0xae8] sm:$0xff]
        %v4690 = vld [vmem:[%s429 + $0xaf0] sm:$0xff]
        %v4691 = vld [vmem:[%s429 + $0xaf8] sm:$0xff]
        %v4692 = vld [vmem:[%s429 + $0xb00] sm:$0xff]
        %v4693 = vld [vmem:[%s429 + $0xb08] sm:$0xff]
        %v4694 = vld [vmem:[%s429 + $0xb10] sm:$0xff]
        %v4695 = vld [vmem:[%s429 + $0xb18] sm:$0xff]
        %v4696 = vld [vmem:[%s429 + $0xb20] sm:$0xff]
        %v4697 = vld [vmem:[%s429 + $0xb28] sm:$0xff]
        %v4698 = vld [vmem:[%s429 + $0xb30] sm:$0xff]
        %v4699 = vld [vmem:[%s429 + $0xb38] sm:$0xff]
        %v4700 = vld [vmem:[%s429 + $0xb40] sm:$0xff]
        %v4701 = vld [vmem:[%s429 + $0xb48] sm:$0xff]
        %v4702 = vld [vmem:[%s429 + $0xb50] sm:$0xff]
        %v4703 = vld [vmem:[%s429 + $0xb58] sm:$0xff]
        %v4704 = vld [vmem:[%s429 + $0xb60] sm:$0xff]
        %v4705 = vld [vmem:[%s429 + $0xb68] sm:$0xff]
        %v4706 = vld [vmem:[%s429 + $0xb70] sm:$0xff]
        %v4707 = vld [vmem:[%s429 + $0xb78] sm:$0xff]
        %v4708 = vld [vmem:[%s429 + $0xb80] sm:$0xff]
        %v4709 = vld [vmem:[%s429 + $0xb88] sm:$0xff]
        %v4710 = vld [vmem:[%s429 + $0xb90] sm:$0xff]
        %v4711 = vld [vmem:[%s429 + $0xb98] sm:$0xff]
        %v4712 = vld [vmem:[%s429 + $0xba0] sm:$0xff]
        %v4713 = vld [vmem:[%s429 + $0xba8] sm:$0xff]
        %v4714 = vld [vmem:[%s429 + $0xbb0] sm:$0xff]
        %v4715 = vld [vmem:[%s429 + $0xbb8] sm:$0xff]
        %v4716 = vld [vmem:[%s429 + $0xbc0] sm:$0xff]
        %v4717 = vld [vmem:[%s429 + $0xbc8] sm:$0xff]
        %v4718 = vld [vmem:[%s429 + $0xbd0] sm:$0xff]
        %v4719 = vld [vmem:[%s429 + $0xbd8] sm:$0xff]
        %v4720 = vld [vmem:[%s429 + $0xbe0] sm:$0xff]
        %v4721 = vld [vmem:[%s429 + $0xbe8] sm:$0xff]
        %v4722 = vld [vmem:[%s429 + $0xbf0] sm:$0xff]
        %v4723 = vld [vmem:[%s429 + $0xbf8] sm:$0xff]
        %v4724 = vld [vmem:[%s429 + $0xc00] sm:$0xff]
        %v4725 = vld [vmem:[%s429 + $0xc08] sm:$0xff]
        %v4726 = vld [vmem:[%s429 + $0xc10] sm:$0xff]
        %v4727 = vld [vmem:[%s429 + $0xc18] sm:$0xff]
        %v4728 = vld [vmem:[%s429 + $0xc20] sm:$0xff]
        %v4729 = vld [vmem:[%s429 + $0xc28] sm:$0xff]
        %v4730 = vld [vmem:[%s429 + $0xc30] sm:$0xff]
        %v4731 = vld [vmem:[%s429 + $0xc38] sm:$0xff]
        %v4732 = vld [vmem:[%s429 + $0xc40] sm:$0xff]
        %v4733 = vld [vmem:[%s429 + $0xc48] sm:$0xff]
        %v4734 = vld [vmem:[%s429 + $0xc50] sm:$0xff]
        %v4735 = vld [vmem:[%s429 + $0xc58] sm:$0xff]
        %v4736 = vld [vmem:[%s429 + $0xc60] sm:$0xff]
        %v4737 = vld [vmem:[%s429 + $0xc68] sm:$0xff]
        %v4738 = vld [vmem:[%s429 + $0xc70] sm:$0xff]
        %v4739 = vld [vmem:[%s429 + $0xc78] sm:$0xff]
        %v4740 = vld [vmem:[%s429 + $0xc80] sm:$0xff]
        %v4741 = vld [vmem:[%s429 + $0xc88] sm:$0xff]
        %v4742 = vld [vmem:[%s429 + $0xc90] sm:$0xff]
        %v4743 = vld [vmem:[%s429 + $0xc98] sm:$0xff]
        %v4744 = vld [vmem:[%s429 + $0xca0] sm:$0xff]
        %v4745 = vld [vmem:[%s429 + $0xca8] sm:$0xff]
        %v4746 = vld [vmem:[%s429 + $0xcb0] sm:$0xff]
        %v4747 = vld [vmem:[%s429 + $0xcb8] sm:$0xff]
        %v4748 = vld [vmem:[%s429 + $0xcc0] sm:$0xff]
        %v4749 = vld [vmem:[%s429 + $0xcc8] sm:$0xff]
        %v4750 = vld [vmem:[%s429 + $0xcd0] sm:$0xff]
        %v4751 = vld [vmem:[%s429 + $0xcd8] sm:$0xff]
        %v4752 = vld [vmem:[%s429 + $0xce0] sm:$0xff]
        %v4753 = vld [vmem:[%s429 + $0xce8] sm:$0xff]
        %v4754 = vld [vmem:[%s429 + $0xcf0] sm:$0xff]
        %v4755 = vld [vmem:[%s429 + $0xcf8] sm:$0xff]
        %v4756 = vld [vmem:[%s429 + $0xd00] sm:$0xff]
        %v4757 = vld [vmem:[%s429 + $0xd08] sm:$0xff]
        %v4758 = vld [vmem:[%s429 + $0xd10] sm:$0xff]
        %v4759 = vld [vmem:[%s429 + $0xd18] sm:$0xff]
        %v4760 = vld [vmem:[%s429 + $0xd20] sm:$0xff]
        %v4761 = vld [vmem:[%s429 + $0xd28] sm:$0xff]
        %v4762 = vld [vmem:[%s429 + $0xd30] sm:$0xff]
        %v4763 = vld [vmem:[%s429 + $0xd38] sm:$0xff]
        %v4764 = vld [vmem:[%s429 + $0xd40] sm:$0xff]
        %v4765 = vld [vmem:[%s429 + $0xd48] sm:$0xff]
        %v4766 = vld [vmem:[%s429 + $0xd50] sm:$0xff]
        %v4767 = vld [vmem:[%s429 + $0xd58] sm:$0xff]
        %v4768 = vld [vmem:[%s429 + $0xd60] sm:$0xff]
        %v4769 = vld [vmem:[%s429 + $0xd68] sm:$0xff]
        %v4770 = vld [vmem:[%s429 + $0xd70] sm:$0xff]
        %v4771 = vld [vmem:[%s429 + $0xd78] sm:$0xff]
        %v4772 = vld [vmem:[%s429 + $0xd80] sm:$0xff]
        %v4773 = vld [vmem:[%s429 + $0xd88] sm:$0xff]
        %v4774 = vld [vmem:[%s429 + $0xd90] sm:$0xff]
        %v4775 = vld [vmem:[%s429 + $0xd98] sm:$0xff]
        %v4776 = vld [vmem:[%s429 + $0xda0] sm:$0xff]
        %v4777 = vld [vmem:[%s429 + $0xda8] sm:$0xff]
        %v4778 = vld [vmem:[%s429 + $0xdb0] sm:$0xff]
        %v4779 = vld [vmem:[%s429 + $0xdb8] sm:$0xff]
        %v4780 = vld [vmem:[%s429 + $0xdc0] sm:$0xff]
        %v4781 = vld [vmem:[%s429 + $0xdc8] sm:$0xff]
        %v4782 = vld [vmem:[%s429 + $0xdd0] sm:$0xff]
        %v4783 = vld [vmem:[%s429 + $0xdd8] sm:$0xff]
        %v4784 = vld [vmem:[%s429 + $0xde0] sm:$0xff]
        %v4785 = vld [vmem:[%s429 + $0xde8] sm:$0xff]
        %v4786 = vld [vmem:[%s429 + $0xdf0] sm:$0xff]
        %v4787 = vld [vmem:[%s429 + $0xdf8] sm:$0xff]
        %v4788 = vld [vmem:[%s429 + $0xe00] sm:$0xff]
        %v4789 = vld [vmem:[%s429 + $0xe08] sm:$0xff]
        %v4790 = vld [vmem:[%s429 + $0xe10] sm:$0xff]
        %v4791 = vld [vmem:[%s429 + $0xe18] sm:$0xff]
        %v4792 = vld [vmem:[%s429 + $0xe20] sm:$0xff]
        %v4793 = vld [vmem:[%s429 + $0xe28] sm:$0xff]
        %v4794 = vld [vmem:[%s429 + $0xe30] sm:$0xff]
        %v4795 = vld [vmem:[%s429 + $0xe38] sm:$0xff]
        %v4796 = vld [vmem:[%s429 + $0xe40] sm:$0xff]
        %v4797 = vld [vmem:[%s429 + $0xe48] sm:$0xff]
        %v4798 = vld [vmem:[%s429 + $0xe50] sm:$0xff]
        %v4799 = vld [vmem:[%s429 + $0xe58] sm:$0xff]
        %v4800 = vld [vmem:[%s429 + $0xe60] sm:$0xff]
        %v4801 = vld [vmem:[%s429 + $0xe68] sm:$0xff]
        %v4802 = vld [vmem:[%s429 + $0xe70] sm:$0xff]
        %v4803 = vld [vmem:[%s429 + $0xe78] sm:$0xff]
        %v4804 = vld [vmem:[%s429 + $0xe80] sm:$0xff]
        %v4805 = vld [vmem:[%s429 + $0xe88] sm:$0xff]
        %v4806 = vld [vmem:[%s429 + $0xe90] sm:$0xff]
        %v4807 = vld [vmem:[%s429 + $0xe98] sm:$0xff]
        %v4808 = vld [vmem:[%s429 + $0xea0] sm:$0xff]
        %v4809 = vld [vmem:[%s429 + $0xea8] sm:$0xff]
        %v4810 = vld [vmem:[%s429 + $0xeb0] sm:$0xff]
        %v4811 = vld [vmem:[%s429 + $0xeb8] sm:$0xff]
        %v4812 = vld [vmem:[%s429 + $0xec0] sm:$0xff]
        %v4813 = vld [vmem:[%s429 + $0xec8] sm:$0xff]
        %v4814 = vld [vmem:[%s429 + $0xed0] sm:$0xff]
        %v4815 = vld [vmem:[%s429 + $0xed8] sm:$0xff]
        %v4816 = vld [vmem:[%s429 + $0xee0] sm:$0xff]
        %v4817 = vld [vmem:[%s429 + $0xee8] sm:$0xff]
        %v4818 = vld [vmem:[%s429 + $0xef0] sm:$0xff]
        %v4819 = vld [vmem:[%s429 + $0xef8] sm:$0xff]
        %v4820 = vld [vmem:[%s429 + $0xf00] sm:$0xff]
        %v4821 = vld [vmem:[%s429 + $0xf08] sm:$0xff]
        %v4822 = vld [vmem:[%s429 + $0xf10] sm:$0xff]
        %v4823 = vld [vmem:[%s429 + $0xf18] sm:$0xff]
        %v4824 = vld [vmem:[%s429 + $0xf20] sm:$0xff]
        %v4825 = vld [vmem:[%s429 + $0xf28] sm:$0xff]
        %v4826 = vld [vmem:[%s429 + $0xf30] sm:$0xff]
        %v4827 = vld [vmem:[%s429 + $0xf38] sm:$0xff]
        %v4828 = vld [vmem:[%s429 + $0xf40] sm:$0xff]
        %v4829 = vld [vmem:[%s429 + $0xf48] sm:$0xff]
        %v4830 = vld [vmem:[%s429 + $0xf50] sm:$0xff]
        %v4831 = vld [vmem:[%s429 + $0xf58] sm:$0xff]
        %v4832 = vld [vmem:[%s429 + $0xf60] sm:$0xff]
        %v4833 = vld [vmem:[%s429 + $0xf68] sm:$0xff]
        %v4834 = vld [vmem:[%s429 + $0xf70] sm:$0xff]
        %v4835 = vld [vmem:[%s429 + $0xf78] sm:$0xff]
        %v4836 = vld [vmem:[%s429 + $0xf80] sm:$0xff]
        %v4837 = vld [vmem:[%s429 + $0xf88] sm:$0xff]
        %v4838 = vld [vmem:[%s429 + $0xf90] sm:$0xff]
        %v4839 = vld [vmem:[%s429 + $0xf98] sm:$0xff]
        %v4840 = vld [vmem:[%s429 + $0xfa0] sm:$0xff]
        %v4841 = vld [vmem:[%s429 + $0xfa8] sm:$0xff]
        %v4842 = vld [vmem:[%s429 + $0xfb0] sm:$0xff]
        %v4843 = vld [vmem:[%s429 + $0xfb8] sm:$0xff]
        %v4844 = vld [vmem:[%s429 + $0xfc0] sm:$0xff]
        %v4845 = vld [vmem:[%s429 + $0xfc8] sm:$0xff]
        %v4846 = vld [vmem:[%s429 + $0xfd0] sm:$0xff]
        %v4847 = vld [vmem:[%s429 + $0xfd8] sm:$0xff]
        %v4848 = vld [vmem:[%s429 + $0xfe0] sm:$0xff]
        %v4849 = vld [vmem:[%s429 + $0xfe8] sm:$0xff]
        %v4850 = vld [vmem:[%s429 + $0xff0] sm:$0xff]
        %v4851 = vld [vmem:[%s429 + $0xff8] sm:$0xff]
        %v5364 = vunpack.c.l.b16 %v4340
        %v5365 = vunpack.c.h.b16 %v4340
        %v5366 = vunpack.c.l.b16 %v4341
        %v5367 = vunpack.c.h.b16 %v4341
        %v5368 = vunpack.c.l.b16 %v4342
        %v5369 = vunpack.c.h.b16 %v4342
        %v5370 = vunpack.c.l.b16 %v4343
        %v5371 = vunpack.c.h.b16 %v4343
        %v5372 = vunpack.c.l.b16 %v4344
        %v5373 = vunpack.c.h.b16 %v4344
        %v5374 = vunpack.c.l.b16 %v4345
        %v5375 = vunpack.c.h.b16 %v4345
        %v5376 = vunpack.c.l.b16 %v4346
        %v5377 = vunpack.c.h.b16 %v4346
        %v5378 = vunpack.c.l.b16 %v4347
        %v5379 = vunpack.c.h.b16 %v4347
        %v5380 = vunpack.c.l.b16 %v4348
        %v5381 = vunpack.c.h.b16 %v4348
        %v5382 = vunpack.c.l.b16 %v4349
        %v5383 = vunpack.c.h.b16 %v4349
        %v5384 = vunpack.c.l.b16 %v4350
        %v5385 = vunpack.c.h.b16 %v4350
        %v5386 = vunpack.c.l.b16 %v4351
        %v5387 = vunpack.c.h.b16 %v4351
        %v5388 = vunpack.c.l.b16 %v4352
        %v5389 = vunpack.c.h.b16 %v4352
        %v5390 = vunpack.c.l.b16 %v4353
        %v5391 = vunpack.c.h.b16 %v4353
        %v5392 = vunpack.c.l.b16 %v4354
        %v5393 = vunpack.c.h.b16 %v4354
        %v5394 = vunpack.c.l.b16 %v4355
        %v5395 = vunpack.c.h.b16 %v4355
        %v5396 = vunpack.c.l.b16 %v4356
        %v5397 = vunpack.c.h.b16 %v4356
        %v5398 = vunpack.c.l.b16 %v4357
        %v5399 = vunpack.c.h.b16 %v4357
        %v5400 = vunpack.c.l.b16 %v4358
        %v5401 = vunpack.c.h.b16 %v4358
        %v5402 = vunpack.c.l.b16 %v4359
        %v5403 = vunpack.c.h.b16 %v4359
        %v5404 = vunpack.c.l.b16 %v4360
        %v5405 = vunpack.c.h.b16 %v4360
        %v5406 = vunpack.c.l.b16 %v4361
        %v5407 = vunpack.c.h.b16 %v4361
        %v5408 = vunpack.c.l.b16 %v4362
        %v5409 = vunpack.c.h.b16 %v4362
        %v5410 = vunpack.c.l.b16 %v4363
        %v5411 = vunpack.c.h.b16 %v4363
        %v5412 = vunpack.c.l.b16 %v4364
        %v5413 = vunpack.c.h.b16 %v4364
        %v5414 = vunpack.c.l.b16 %v4365
        %v5415 = vunpack.c.h.b16 %v4365
        %v5416 = vunpack.c.l.b16 %v4366
        %v5417 = vunpack.c.h.b16 %v4366
        %v5418 = vunpack.c.l.b16 %v4367
        %v5419 = vunpack.c.h.b16 %v4367
        %v5420 = vunpack.c.l.b16 %v4368
        %v5421 = vunpack.c.h.b16 %v4368
        %v5422 = vunpack.c.l.b16 %v4369
        %v5423 = vunpack.c.h.b16 %v4369
        %v5424 = vunpack.c.l.b16 %v4370
        %v5425 = vunpack.c.h.b16 %v4370
        %v5426 = vunpack.c.l.b16 %v4371
        %v5427 = vunpack.c.h.b16 %v4371
        %v5428 = vunpack.c.l.b16 %v4372
        %v5429 = vunpack.c.h.b16 %v4372
        %v5430 = vunpack.c.l.b16 %v4373
        %v5431 = vunpack.c.h.b16 %v4373
        %v5432 = vunpack.c.l.b16 %v4374
        %v5433 = vunpack.c.h.b16 %v4374
        %v5434 = vunpack.c.l.b16 %v4375
        %v5435 = vunpack.c.h.b16 %v4375
        %v5436 = vunpack.c.l.b16 %v4376
        %v5437 = vunpack.c.h.b16 %v4376
        %v5438 = vunpack.c.l.b16 %v4377
        %v5439 = vunpack.c.h.b16 %v4377
        %v5440 = vunpack.c.l.b16 %v4378
        %v5441 = vunpack.c.h.b16 %v4378
        %v5442 = vunpack.c.l.b16 %v4379
        %v5443 = vunpack.c.h.b16 %v4379
        %v5444 = vunpack.c.l.b16 %v4380
        %v5445 = vunpack.c.h.b16 %v4380
        %v5446 = vunpack.c.l.b16 %v4381
        %v5447 = vunpack.c.h.b16 %v4381
        %v5448 = vunpack.c.l.b16 %v4382
        %v5449 = vunpack.c.h.b16 %v4382
        %v5450 = vunpack.c.l.b16 %v4383
        %v5451 = vunpack.c.h.b16 %v4383
        %v5452 = vunpack.c.l.b16 %v4384
        %v5453 = vunpack.c.h.b16 %v4384
        %v5454 = vunpack.c.l.b16 %v4385
        %v5455 = vunpack.c.h.b16 %v4385
        %v5456 = vunpack.c.l.b16 %v4386
        %v5457 = vunpack.c.h.b16 %v4386
        %v5458 = vunpack.c.l.b16 %v4387
        %v5459 = vunpack.c.h.b16 %v4387
        %v5460 = vunpack.c.l.b16 %v4388
        %v5461 = vunpack.c.h.b16 %v4388
        %v5462 = vunpack.c.l.b16 %v4389
        %v5463 = vunpack.c.h.b16 %v4389
        %v5464 = vunpack.c.l.b16 %v4390
        %v5465 = vunpack.c.h.b16 %v4390
        %v5466 = vunpack.c.l.b16 %v4391
        %v5467 = vunpack.c.h.b16 %v4391
        %v5468 = vunpack.c.l.b16 %v4392
        %v5469 = vunpack.c.h.b16 %v4392
        %v5470 = vunpack.c.l.b16 %v4393
        %v5471 = vunpack.c.h.b16 %v4393
        %v5472 = vunpack.c.l.b16 %v4394
        %v5473 = vunpack.c.h.b16 %v4394
        %v5474 = vunpack.c.l.b16 %v4395
        %v5475 = vunpack.c.h.b16 %v4395
        %v5476 = vunpack.c.l.b16 %v4396
        %v5477 = vunpack.c.h.b16 %v4396
        %v5478 = vunpack.c.l.b16 %v4397
        %v5479 = vunpack.c.h.b16 %v4397
        %v5480 = vunpack.c.l.b16 %v4398
        %v5481 = vunpack.c.h.b16 %v4398
        %v5482 = vunpack.c.l.b16 %v4399
        %v5483 = vunpack.c.h.b16 %v4399
        %v5484 = vunpack.c.l.b16 %v4400
        %v5485 = vunpack.c.h.b16 %v4400
        %v5486 = vunpack.c.l.b16 %v4401
        %v5487 = vunpack.c.h.b16 %v4401
        %v5488 = vunpack.c.l.b16 %v4402
        %v5489 = vunpack.c.h.b16 %v4402
        %v5490 = vunpack.c.l.b16 %v4403
        %v5491 = vunpack.c.h.b16 %v4403
        %v5492 = vunpack.c.l.b16 %v4404
        %v5493 = vunpack.c.h.b16 %v4404
        %v5494 = vunpack.c.l.b16 %v4405
        %v5495 = vunpack.c.h.b16 %v4405
        %v5496 = vunpack.c.l.b16 %v4406
        %v5497 = vunpack.c.h.b16 %v4406
        %v5498 = vunpack.c.l.b16 %v4407
        %v5499 = vunpack.c.h.b16 %v4407
        %v5500 = vunpack.c.l.b16 %v4408
        %v5501 = vunpack.c.h.b16 %v4408
        %v5502 = vunpack.c.l.b16 %v4409
        %v5503 = vunpack.c.h.b16 %v4409
        %v5504 = vunpack.c.l.b16 %v4410
        %v5505 = vunpack.c.h.b16 %v4410
        %v5506 = vunpack.c.l.b16 %v4411
        %v5507 = vunpack.c.h.b16 %v4411
        %v5508 = vunpack.c.l.b16 %v4412
        %v5509 = vunpack.c.h.b16 %v4412
        %v5510 = vunpack.c.l.b16 %v4413
        %v5511 = vunpack.c.h.b16 %v4413
        %v5512 = vunpack.c.l.b16 %v4414
        %v5513 = vunpack.c.h.b16 %v4414
        %v5514 = vunpack.c.l.b16 %v4415
        %v5515 = vunpack.c.h.b16 %v4415
        %v5516 = vunpack.c.l.b16 %v4416
        %v5517 = vunpack.c.h.b16 %v4416
        %v5518 = vunpack.c.l.b16 %v4417
        %v5519 = vunpack.c.h.b16 %v4417
        %v5520 = vunpack.c.l.b16 %v4418
        %v5521 = vunpack.c.h.b16 %v4418
        %v5522 = vunpack.c.l.b16 %v4419
        %v5523 = vunpack.c.h.b16 %v4419
        %v5524 = vunpack.c.l.b16 %v4420
        %v5525 = vunpack.c.h.b16 %v4420
        %v5526 = vunpack.c.l.b16 %v4421
        %v5527 = vunpack.c.h.b16 %v4421
        %v5528 = vunpack.c.l.b16 %v4422
        %v5529 = vunpack.c.h.b16 %v4422
        %v5530 = vunpack.c.l.b16 %v4423
        %v5531 = vunpack.c.h.b16 %v4423
        %v5532 = vunpack.c.l.b16 %v4424
        %v5533 = vunpack.c.h.b16 %v4424
        %v5534 = vunpack.c.l.b16 %v4425
        %v5535 = vunpack.c.h.b16 %v4425
        %v5536 = vunpack.c.l.b16 %v4426
        %v5537 = vunpack.c.h.b16 %v4426
        %v5538 = vunpack.c.l.b16 %v4427
        %v5539 = vunpack.c.h.b16 %v4427
        %v5540 = vunpack.c.l.b16 %v4428
        %v5541 = vunpack.c.h.b16 %v4428
        %v5542 = vunpack.c.l.b16 %v4429
        %v5543 = vunpack.c.h.b16 %v4429
        %v5544 = vunpack.c.l.b16 %v4430
        %v5545 = vunpack.c.h.b16 %v4430
        %v5546 = vunpack.c.l.b16 %v4431
        %v5547 = vunpack.c.h.b16 %v4431
        %v5548 = vunpack.c.l.b16 %v4432
        %v5549 = vunpack.c.h.b16 %v4432
        %v5550 = vunpack.c.l.b16 %v4433
        %v5551 = vunpack.c.h.b16 %v4433
        %v5552 = vunpack.c.l.b16 %v4434
        %v5553 = vunpack.c.h.b16 %v4434
        %v5554 = vunpack.c.l.b16 %v4435
        %v5555 = vunpack.c.h.b16 %v4435
        %v5556 = vunpack.c.l.b16 %v4436
        %v5557 = vunpack.c.h.b16 %v4436
        %v5558 = vunpack.c.l.b16 %v4437
        %v5559 = vunpack.c.h.b16 %v4437
        %v5560 = vunpack.c.l.b16 %v4438
        %v5561 = vunpack.c.h.b16 %v4438
        %v5562 = vunpack.c.l.b16 %v4439
        %v5563 = vunpack.c.h.b16 %v4439
        %v5564 = vunpack.c.l.b16 %v4440
        %v5565 = vunpack.c.h.b16 %v4440
        %v5566 = vunpack.c.l.b16 %v4441
        %v5567 = vunpack.c.h.b16 %v4441
        %v5568 = vunpack.c.l.b16 %v4442
        %v5569 = vunpack.c.h.b16 %v4442
        %v5570 = vunpack.c.l.b16 %v4443
        %v5571 = vunpack.c.h.b16 %v4443
        %v5572 = vunpack.c.l.b16 %v4444
        %v5573 = vunpack.c.h.b16 %v4444
        %v5574 = vunpack.c.l.b16 %v4445
        %v5575 = vunpack.c.h.b16 %v4445
        %v5576 = vunpack.c.l.b16 %v4446
        %v5577 = vunpack.c.h.b16 %v4446
        %v5578 = vunpack.c.l.b16 %v4447
        %v5579 = vunpack.c.h.b16 %v4447
        %v5580 = vunpack.c.l.b16 %v4448
        %v5581 = vunpack.c.h.b16 %v4448
        %v5582 = vunpack.c.l.b16 %v4449
        %v5583 = vunpack.c.h.b16 %v4449
        %v5584 = vunpack.c.l.b16 %v4450
        %v5585 = vunpack.c.h.b16 %v4450
        %v5586 = vunpack.c.l.b16 %v4451
        %v5587 = vunpack.c.h.b16 %v4451
        %v5588 = vunpack.c.l.b16 %v4452
        %v5589 = vunpack.c.h.b16 %v4452
        %v5590 = vunpack.c.l.b16 %v4453
        %v5591 = vunpack.c.h.b16 %v4453
        %v5592 = vunpack.c.l.b16 %v4454
        %v5593 = vunpack.c.h.b16 %v4454
        %v5594 = vunpack.c.l.b16 %v4455
        %v5595 = vunpack.c.h.b16 %v4455
        %v5596 = vunpack.c.l.b16 %v4456
        %v5597 = vunpack.c.h.b16 %v4456
        %v5598 = vunpack.c.l.b16 %v4457
        %v5599 = vunpack.c.h.b16 %v4457
        %v5600 = vunpack.c.l.b16 %v4458
        %v5601 = vunpack.c.h.b16 %v4458
        %v5602 = vunpack.c.l.b16 %v4459
        %v5603 = vunpack.c.h.b16 %v4459
        %v5604 = vunpack.c.l.b16 %v4460
        %v5605 = vunpack.c.h.b16 %v4460
        %v5606 = vunpack.c.l.b16 %v4461
        %v5607 = vunpack.c.h.b16 %v4461
        %v5608 = vunpack.c.l.b16 %v4462
        %v5609 = vunpack.c.h.b16 %v4462
        %v5610 = vunpack.c.l.b16 %v4463
        %v5611 = vunpack.c.h.b16 %v4463
        %v5612 = vunpack.c.l.b16 %v4464
        %v5613 = vunpack.c.h.b16 %v4464
        %v5614 = vunpack.c.l.b16 %v4465
        %v5615 = vunpack.c.h.b16 %v4465
        %v5616 = vunpack.c.l.b16 %v4466
        %v5617 = vunpack.c.h.b16 %v4466
        %v5618 = vunpack.c.l.b16 %v4467
        %v5619 = vunpack.c.h.b16 %v4467
        %v5620 = vunpack.c.l.b16 %v4468
        %v5621 = vunpack.c.h.b16 %v4468
        %v5622 = vunpack.c.l.b16 %v4469
        %v5623 = vunpack.c.h.b16 %v4469
        %v5624 = vunpack.c.l.b16 %v4470
        %v5625 = vunpack.c.h.b16 %v4470
        %v5626 = vunpack.c.l.b16 %v4471
        %v5627 = vunpack.c.h.b16 %v4471
        %v5628 = vunpack.c.l.b16 %v4472
        %v5629 = vunpack.c.h.b16 %v4472
        %v5630 = vunpack.c.l.b16 %v4473
        %v5631 = vunpack.c.h.b16 %v4473
        %v5632 = vunpack.c.l.b16 %v4474
        %v5633 = vunpack.c.h.b16 %v4474
        %v5634 = vunpack.c.l.b16 %v4475
        %v5635 = vunpack.c.h.b16 %v4475
        %v5636 = vunpack.c.l.b16 %v4476
        %v5637 = vunpack.c.h.b16 %v4476
        %v5638 = vunpack.c.l.b16 %v4477
        %v5639 = vunpack.c.h.b16 %v4477
        %v5640 = vunpack.c.l.b16 %v4478
        %v5641 = vunpack.c.h.b16 %v4478
        %v5642 = vunpack.c.l.b16 %v4479
        %v5643 = vunpack.c.h.b16 %v4479
        %v5644 = vunpack.c.l.b16 %v4480
        %v5645 = vunpack.c.h.b16 %v4480
        %v5646 = vunpack.c.l.b16 %v4481
        %v5647 = vunpack.c.h.b16 %v4481
        %v5648 = vunpack.c.l.b16 %v4482
        %v5649 = vunpack.c.h.b16 %v4482
        %v5650 = vunpack.c.l.b16 %v4483
        %v5651 = vunpack.c.h.b16 %v4483
        %v5652 = vunpack.c.l.b16 %v4484
        %v5653 = vunpack.c.h.b16 %v4484
        %v5654 = vunpack.c.l.b16 %v4485
        %v5655 = vunpack.c.h.b16 %v4485
        %v5656 = vunpack.c.l.b16 %v4486
        %v5657 = vunpack.c.h.b16 %v4486
        %v5658 = vunpack.c.l.b16 %v4487
        %v5659 = vunpack.c.h.b16 %v4487
        %v5660 = vunpack.c.l.b16 %v4488
        %v5661 = vunpack.c.h.b16 %v4488
        %v5662 = vunpack.c.l.b16 %v4489
        %v5663 = vunpack.c.h.b16 %v4489
        %v5664 = vunpack.c.l.b16 %v4490
        %v5665 = vunpack.c.h.b16 %v4490
        %v5666 = vunpack.c.l.b16 %v4491
        %v5667 = vunpack.c.h.b16 %v4491
        %v5668 = vunpack.c.l.b16 %v4492
        %v5669 = vunpack.c.h.b16 %v4492
        %v5670 = vunpack.c.l.b16 %v4493
        %v5671 = vunpack.c.h.b16 %v4493
        %v5672 = vunpack.c.l.b16 %v4494
        %v5673 = vunpack.c.h.b16 %v4494
        %v5674 = vunpack.c.l.b16 %v4495
        %v5675 = vunpack.c.h.b16 %v4495
        %v5676 = vunpack.c.l.b16 %v4496
        %v5677 = vunpack.c.h.b16 %v4496
        %v5678 = vunpack.c.l.b16 %v4497
        %v5679 = vunpack.c.h.b16 %v4497
        %v5680 = vunpack.c.l.b16 %v4498
        %v5681 = vunpack.c.h.b16 %v4498
        %v5682 = vunpack.c.l.b16 %v4499
        %v5683 = vunpack.c.h.b16 %v4499
        %v5684 = vunpack.c.l.b16 %v4500
        %v5685 = vunpack.c.h.b16 %v4500
        %v5686 = vunpack.c.l.b16 %v4501
        %v5687 = vunpack.c.h.b16 %v4501
        %v5688 = vunpack.c.l.b16 %v4502
        %v5689 = vunpack.c.h.b16 %v4502
        %v5690 = vunpack.c.l.b16 %v4503
        %v5691 = vunpack.c.h.b16 %v4503
        %v5692 = vunpack.c.l.b16 %v4504
        %v5693 = vunpack.c.h.b16 %v4504
        %v5694 = vunpack.c.l.b16 %v4505
        %v5695 = vunpack.c.h.b16 %v4505
        %v5696 = vunpack.c.l.b16 %v4506
        %v5697 = vunpack.c.h.b16 %v4506
        %v5698 = vunpack.c.l.b16 %v4507
        %v5699 = vunpack.c.h.b16 %v4507
        %v5700 = vunpack.c.l.b16 %v4508
        %v5701 = vunpack.c.h.b16 %v4508
        %v5702 = vunpack.c.l.b16 %v4509
        %v5703 = vunpack.c.h.b16 %v4509
        %v5704 = vunpack.c.l.b16 %v4510
        %v5705 = vunpack.c.h.b16 %v4510
        %v5706 = vunpack.c.l.b16 %v4511
        %v5707 = vunpack.c.h.b16 %v4511
        %v5708 = vunpack.c.l.b16 %v4512
        %v5709 = vunpack.c.h.b16 %v4512
        %v5710 = vunpack.c.l.b16 %v4513
        %v5711 = vunpack.c.h.b16 %v4513
        %v5712 = vunpack.c.l.b16 %v4514
        %v5713 = vunpack.c.h.b16 %v4514
        %v5714 = vunpack.c.l.b16 %v4515
        %v5715 = vunpack.c.h.b16 %v4515
        %v5716 = vunpack.c.l.b16 %v4516
        %v5717 = vunpack.c.h.b16 %v4516
        %v5718 = vunpack.c.l.b16 %v4517
        %v5719 = vunpack.c.h.b16 %v4517
        %v5720 = vunpack.c.l.b16 %v4518
        %v5721 = vunpack.c.h.b16 %v4518
        %v5722 = vunpack.c.l.b16 %v4519
        %v5723 = vunpack.c.h.b16 %v4519
        %v5724 = vunpack.c.l.b16 %v4520
        %v5725 = vunpack.c.h.b16 %v4520
        %v5726 = vunpack.c.l.b16 %v4521
        %v5727 = vunpack.c.h.b16 %v4521
        %v5728 = vunpack.c.l.b16 %v4522
        %v5729 = vunpack.c.h.b16 %v4522
        %v5730 = vunpack.c.l.b16 %v4523
        %v5731 = vunpack.c.h.b16 %v4523
        %v5732 = vunpack.c.l.b16 %v4524
        %v5733 = vunpack.c.h.b16 %v4524
        %v5734 = vunpack.c.l.b16 %v4525
        %v5735 = vunpack.c.h.b16 %v4525
        %v5736 = vunpack.c.l.b16 %v4526
        %v5737 = vunpack.c.h.b16 %v4526
        %v5738 = vunpack.c.l.b16 %v4527
        %v5739 = vunpack.c.h.b16 %v4527
        %v5740 = vunpack.c.l.b16 %v4528
        %v5741 = vunpack.c.h.b16 %v4528
        %v5742 = vunpack.c.l.b16 %v4529
        %v5743 = vunpack.c.h.b16 %v4529
        %v5744 = vunpack.c.l.b16 %v4530
        %v5745 = vunpack.c.h.b16 %v4530
        %v5746 = vunpack.c.l.b16 %v4531
        %v5747 = vunpack.c.h.b16 %v4531
        %v5748 = vunpack.c.l.b16 %v4532
        %v5749 = vunpack.c.h.b16 %v4532
        %v5750 = vunpack.c.l.b16 %v4533
        %v5751 = vunpack.c.h.b16 %v4533
        %v5752 = vunpack.c.l.b16 %v4534
        %v5753 = vunpack.c.h.b16 %v4534
        %v5754 = vunpack.c.l.b16 %v4535
        %v5755 = vunpack.c.h.b16 %v4535
        %v5756 = vunpack.c.l.b16 %v4536
        %v5757 = vunpack.c.h.b16 %v4536
        %v5758 = vunpack.c.l.b16 %v4537
        %v5759 = vunpack.c.h.b16 %v4537
        %v5760 = vunpack.c.l.b16 %v4538
        %v5761 = vunpack.c.h.b16 %v4538
        %v5762 = vunpack.c.l.b16 %v4539
        %v5763 = vunpack.c.h.b16 %v4539
        %v5764 = vunpack.c.l.b16 %v4540
        %v5765 = vunpack.c.h.b16 %v4540
        %v5766 = vunpack.c.l.b16 %v4541
        %v5767 = vunpack.c.h.b16 %v4541
        %v5768 = vunpack.c.l.b16 %v4542
        %v5769 = vunpack.c.h.b16 %v4542
        %v5770 = vunpack.c.l.b16 %v4543
        %v5771 = vunpack.c.h.b16 %v4543
        %v5772 = vunpack.c.l.b16 %v4544
        %v5773 = vunpack.c.h.b16 %v4544
        %v5774 = vunpack.c.l.b16 %v4545
        %v5775 = vunpack.c.h.b16 %v4545
        %v5776 = vunpack.c.l.b16 %v4546
        %v5777 = vunpack.c.h.b16 %v4546
        %v5778 = vunpack.c.l.b16 %v4547
        %v5779 = vunpack.c.h.b16 %v4547
        %v5780 = vunpack.c.l.b16 %v4548
        %v5781 = vunpack.c.h.b16 %v4548
        %v5782 = vunpack.c.l.b16 %v4549
        %v5783 = vunpack.c.h.b16 %v4549
        %v5784 = vunpack.c.l.b16 %v4550
        %v5785 = vunpack.c.h.b16 %v4550
        %v5786 = vunpack.c.l.b16 %v4551
        %v5787 = vunpack.c.h.b16 %v4551
        %v5788 = vunpack.c.l.b16 %v4552
        %v5789 = vunpack.c.h.b16 %v4552
        %v5790 = vunpack.c.l.b16 %v4553
        %v5791 = vunpack.c.h.b16 %v4553
        %v5792 = vunpack.c.l.b16 %v4554
        %v5793 = vunpack.c.h.b16 %v4554
        %v5794 = vunpack.c.l.b16 %v4555
        %v5795 = vunpack.c.h.b16 %v4555
        %v5796 = vunpack.c.l.b16 %v4556
        %v5797 = vunpack.c.h.b16 %v4556
        %v5798 = vunpack.c.l.b16 %v4557
        %v5799 = vunpack.c.h.b16 %v4557
        %v5800 = vunpack.c.l.b16 %v4558
        %v5801 = vunpack.c.h.b16 %v4558
        %v5802 = vunpack.c.l.b16 %v4559
        %v5803 = vunpack.c.h.b16 %v4559
        %v5804 = vunpack.c.l.b16 %v4560
        %v5805 = vunpack.c.h.b16 %v4560
        %v5806 = vunpack.c.l.b16 %v4561
        %v5807 = vunpack.c.h.b16 %v4561
        %v5808 = vunpack.c.l.b16 %v4562
        %v5809 = vunpack.c.h.b16 %v4562
        %v5810 = vunpack.c.l.b16 %v4563
        %v5811 = vunpack.c.h.b16 %v4563
        %v5812 = vunpack.c.l.b16 %v4564
        %v5813 = vunpack.c.h.b16 %v4564
        %v5814 = vunpack.c.l.b16 %v4565
        %v5815 = vunpack.c.h.b16 %v4565
        %v5816 = vunpack.c.l.b16 %v4566
        %v5817 = vunpack.c.h.b16 %v4566
        %v5818 = vunpack.c.l.b16 %v4567
        %v5819 = vunpack.c.h.b16 %v4567
        %v5820 = vunpack.c.l.b16 %v4568
        %v5821 = vunpack.c.h.b16 %v4568
        %v5822 = vunpack.c.l.b16 %v4569
        %v5823 = vunpack.c.h.b16 %v4569
        %v5824 = vunpack.c.l.b16 %v4570
        %v5825 = vunpack.c.h.b16 %v4570
        %v5826 = vunpack.c.l.b16 %v4571
        %v5827 = vunpack.c.h.b16 %v4571
        %v5828 = vunpack.c.l.b16 %v4572
        %v5829 = vunpack.c.h.b16 %v4572
        %v5830 = vunpack.c.l.b16 %v4573
        %v5831 = vunpack.c.h.b16 %v4573
        %v5832 = vunpack.c.l.b16 %v4574
        %v5833 = vunpack.c.h.b16 %v4574
        %v5834 = vunpack.c.l.b16 %v4575
        %v5835 = vunpack.c.h.b16 %v4575
        %v5836 = vunpack.c.l.b16 %v4576
        %v5837 = vunpack.c.h.b16 %v4576
        %v5838 = vunpack.c.l.b16 %v4577
        %v5839 = vunpack.c.h.b16 %v4577
        %v5840 = vunpack.c.l.b16 %v4578
        %v5841 = vunpack.c.h.b16 %v4578
        %v5842 = vunpack.c.l.b16 %v4579
        %v5843 = vunpack.c.h.b16 %v4579
        %v5844 = vunpack.c.l.b16 %v4580
        %v5845 = vunpack.c.h.b16 %v4580
        %v5846 = vunpack.c.l.b16 %v4581
        %v5847 = vunpack.c.h.b16 %v4581
        %v5848 = vunpack.c.l.b16 %v4582
        %v5849 = vunpack.c.h.b16 %v4582
        %v5850 = vunpack.c.l.b16 %v4583
        %v5851 = vunpack.c.h.b16 %v4583
        %v5852 = vunpack.c.l.b16 %v4584
        %v5853 = vunpack.c.h.b16 %v4584
        %v5854 = vunpack.c.l.b16 %v4585
        %v5855 = vunpack.c.h.b16 %v4585
        %v5856 = vunpack.c.l.b16 %v4586
        %v5857 = vunpack.c.h.b16 %v4586
        %v5858 = vunpack.c.l.b16 %v4587
        %v5859 = vunpack.c.h.b16 %v4587
        %v5860 = vunpack.c.l.b16 %v4588
        %v5861 = vunpack.c.h.b16 %v4588
        %v5862 = vunpack.c.l.b16 %v4589
        %v5863 = vunpack.c.h.b16 %v4589
        %v5864 = vunpack.c.l.b16 %v4590
        %v5865 = vunpack.c.h.b16 %v4590
        %v5866 = vunpack.c.l.b16 %v4591
        %v5867 = vunpack.c.h.b16 %v4591
        %v5868 = vunpack.c.l.b16 %v4592
        %v5869 = vunpack.c.h.b16 %v4592
        %v5870 = vunpack.c.l.b16 %v4593
        %v5871 = vunpack.c.h.b16 %v4593
        %v5872 = vunpack.c.l.b16 %v4594
        %v5873 = vunpack.c.h.b16 %v4594
        %v5874 = vunpack.c.l.b16 %v4595
        %v5875 = vunpack.c.h.b16 %v4595
        %v5876 = vunpack.c.l.b16 %v4596
        %v5877 = vunpack.c.h.b16 %v4596
        %v5878 = vunpack.c.l.b16 %v4597
        %v5879 = vunpack.c.h.b16 %v4597
        %v5880 = vunpack.c.l.b16 %v4598
        %v5881 = vunpack.c.h.b16 %v4598
        %v5882 = vunpack.c.l.b16 %v4599
        %v5883 = vunpack.c.h.b16 %v4599
        %v5884 = vunpack.c.l.b16 %v4600
        %v5885 = vunpack.c.h.b16 %v4600
        %v5886 = vunpack.c.l.b16 %v4601
        %v5887 = vunpack.c.h.b16 %v4601
        %v5888 = vunpack.c.l.b16 %v4602
        %v5889 = vunpack.c.h.b16 %v4602
        %v5890 = vunpack.c.l.b16 %v4603
        %v5891 = vunpack.c.h.b16 %v4603
        %v5892 = vunpack.c.l.b16 %v4604
        %v5893 = vunpack.c.h.b16 %v4604
        %v5894 = vunpack.c.l.b16 %v4605
        %v5895 = vunpack.c.h.b16 %v4605
        %v5896 = vunpack.c.l.b16 %v4606
        %v5897 = vunpack.c.h.b16 %v4606
        %v5898 = vunpack.c.l.b16 %v4607
        %v5899 = vunpack.c.h.b16 %v4607
        %v5900 = vunpack.c.l.b16 %v4608
        %v5901 = vunpack.c.h.b16 %v4608
        %v5902 = vunpack.c.l.b16 %v4609
        %v5903 = vunpack.c.h.b16 %v4609
        %v5904 = vunpack.c.l.b16 %v4610
        %v5905 = vunpack.c.h.b16 %v4610
        %v5906 = vunpack.c.l.b16 %v4611
        %v5907 = vunpack.c.h.b16 %v4611
        %v5908 = vunpack.c.l.b16 %v4612
        %v5909 = vunpack.c.h.b16 %v4612
        %v5910 = vunpack.c.l.b16 %v4613
        %v5911 = vunpack.c.h.b16 %v4613
        %v5912 = vunpack.c.l.b16 %v4614
        %v5913 = vunpack.c.h.b16 %v4614
        %v5914 = vunpack.c.l.b16 %v4615
        %v5915 = vunpack.c.h.b16 %v4615
        %v5916 = vunpack.c.l.b16 %v4616
        %v5917 = vunpack.c.h.b16 %v4616
        %v5918 = vunpack.c.l.b16 %v4617
        %v5919 = vunpack.c.h.b16 %v4617
        %v5920 = vunpack.c.l.b16 %v4618
        %v5921 = vunpack.c.h.b16 %v4618
        %v5922 = vunpack.c.l.b16 %v4619
        %v5923 = vunpack.c.h.b16 %v4619
        %v5924 = vunpack.c.l.b16 %v4620
        %v5925 = vunpack.c.h.b16 %v4620
        %v5926 = vunpack.c.l.b16 %v4621
        %v5927 = vunpack.c.h.b16 %v4621
        %v5928 = vunpack.c.l.b16 %v4622
        %v5929 = vunpack.c.h.b16 %v4622
        %v5930 = vunpack.c.l.b16 %v4623
        %v5931 = vunpack.c.h.b16 %v4623
        %v5932 = vunpack.c.l.b16 %v4624
        %v5933 = vunpack.c.h.b16 %v4624
        %v5934 = vunpack.c.l.b16 %v4625
        %v5935 = vunpack.c.h.b16 %v4625
        %v5936 = vunpack.c.l.b16 %v4626
        %v5937 = vunpack.c.h.b16 %v4626
        %v5938 = vunpack.c.l.b16 %v4627
        %v5939 = vunpack.c.h.b16 %v4627
        %v5940 = vunpack.c.l.b16 %v4628
        %v5941 = vunpack.c.h.b16 %v4628
        %v5942 = vunpack.c.l.b16 %v4629
        %v5943 = vunpack.c.h.b16 %v4629
        %v5944 = vunpack.c.l.b16 %v4630
        %v5945 = vunpack.c.h.b16 %v4630
        %v5946 = vunpack.c.l.b16 %v4631
        %v5947 = vunpack.c.h.b16 %v4631
        %v5948 = vunpack.c.l.b16 %v4632
        %v5949 = vunpack.c.h.b16 %v4632
        %v5950 = vunpack.c.l.b16 %v4633
        %v5951 = vunpack.c.h.b16 %v4633
        %v5952 = vunpack.c.l.b16 %v4634
        %v5953 = vunpack.c.h.b16 %v4634
        %v5954 = vunpack.c.l.b16 %v4635
        %v5955 = vunpack.c.h.b16 %v4635
        %v5956 = vunpack.c.l.b16 %v4636
        %v5957 = vunpack.c.h.b16 %v4636
        %v5958 = vunpack.c.l.b16 %v4637
        %v5959 = vunpack.c.h.b16 %v4637
        %v5960 = vunpack.c.l.b16 %v4638
        %v5961 = vunpack.c.h.b16 %v4638
        %v5962 = vunpack.c.l.b16 %v4639
        %v5963 = vunpack.c.h.b16 %v4639
        %v5964 = vunpack.c.l.b16 %v4640
        %v5965 = vunpack.c.h.b16 %v4640
        %v5966 = vunpack.c.l.b16 %v4641
        %v5967 = vunpack.c.h.b16 %v4641
        %v5968 = vunpack.c.l.b16 %v4642
        %v5969 = vunpack.c.h.b16 %v4642
        %v5970 = vunpack.c.l.b16 %v4643
        %v5971 = vunpack.c.h.b16 %v4643
        %v5972 = vunpack.c.l.b16 %v4644
        %v5973 = vunpack.c.h.b16 %v4644
        %v5974 = vunpack.c.l.b16 %v4645
        %v5975 = vunpack.c.h.b16 %v4645
        %v5976 = vunpack.c.l.b16 %v4646
        %v5977 = vunpack.c.h.b16 %v4646
        %v5978 = vunpack.c.l.b16 %v4647
        %v5979 = vunpack.c.h.b16 %v4647
        %v5980 = vunpack.c.l.b16 %v4648
        %v5981 = vunpack.c.h.b16 %v4648
        %v5982 = vunpack.c.l.b16 %v4649
        %v5983 = vunpack.c.h.b16 %v4649
        %v5984 = vunpack.c.l.b16 %v4650
        %v5985 = vunpack.c.h.b16 %v4650
        %v5986 = vunpack.c.l.b16 %v4651
        %v5987 = vunpack.c.h.b16 %v4651
        %v5988 = vunpack.c.l.b16 %v4652
        %v5989 = vunpack.c.h.b16 %v4652
        %v5990 = vunpack.c.l.b16 %v4653
        %v5991 = vunpack.c.h.b16 %v4653
        %v5992 = vunpack.c.l.b16 %v4654
        %v5993 = vunpack.c.h.b16 %v4654
        %v5994 = vunpack.c.l.b16 %v4655
        %v5995 = vunpack.c.h.b16 %v4655
        %v5996 = vunpack.c.l.b16 %v4656
        %v5997 = vunpack.c.h.b16 %v4656
        %v5998 = vunpack.c.l.b16 %v4657
        %v5999 = vunpack.c.h.b16 %v4657
        %v6000 = vunpack.c.l.b16 %v4658
        %v6001 = vunpack.c.h.b16 %v4658
        %v6002 = vunpack.c.l.b16 %v4659
        %v6003 = vunpack.c.h.b16 %v4659
        %v6004 = vunpack.c.l.b16 %v4660
        %v6005 = vunpack.c.h.b16 %v4660
        %v6006 = vunpack.c.l.b16 %v4661
        %v6007 = vunpack.c.h.b16 %v4661
        %v6008 = vunpack.c.l.b16 %v4662
        %v6009 = vunpack.c.h.b16 %v4662
        %v6010 = vunpack.c.l.b16 %v4663
        %v6011 = vunpack.c.h.b16 %v4663
        %v6012 = vunpack.c.l.b16 %v4664
        %v6013 = vunpack.c.h.b16 %v4664
        %v6014 = vunpack.c.l.b16 %v4665
        %v6015 = vunpack.c.h.b16 %v4665
        %v6016 = vunpack.c.l.b16 %v4666
        %v6017 = vunpack.c.h.b16 %v4666
        %v6018 = vunpack.c.l.b16 %v4667
        %v6019 = vunpack.c.h.b16 %v4667
        %v6020 = vunpack.c.l.b16 %v4668
        %v6021 = vunpack.c.h.b16 %v4668
        %v6022 = vunpack.c.l.b16 %v4669
        %v6023 = vunpack.c.h.b16 %v4669
        %v6024 = vunpack.c.l.b16 %v4670
        %v6025 = vunpack.c.h.b16 %v4670
        %v6026 = vunpack.c.l.b16 %v4671
        %v6027 = vunpack.c.h.b16 %v4671
        %v6028 = vunpack.c.l.b16 %v4672
        %v6029 = vunpack.c.h.b16 %v4672
        %v6030 = vunpack.c.l.b16 %v4673
        %v6031 = vunpack.c.h.b16 %v4673
        %v6032 = vunpack.c.l.b16 %v4674
        %v6033 = vunpack.c.h.b16 %v4674
        %v6034 = vunpack.c.l.b16 %v4675
        %v6035 = vunpack.c.h.b16 %v4675
        %v6036 = vunpack.c.l.b16 %v4676
        %v6037 = vunpack.c.h.b16 %v4676
        %v6038 = vunpack.c.l.b16 %v4677
        %v6039 = vunpack.c.h.b16 %v4677
        %v6040 = vunpack.c.l.b16 %v4678
        %v6041 = vunpack.c.h.b16 %v4678
        %v6042 = vunpack.c.l.b16 %v4679
        %v6043 = vunpack.c.h.b16 %v4679
        %v6044 = vunpack.c.l.b16 %v4680
        %v6045 = vunpack.c.h.b16 %v4680
        %v6046 = vunpack.c.l.b16 %v4681
        %v6047 = vunpack.c.h.b16 %v4681
        %v6048 = vunpack.c.l.b16 %v4682
        %v6049 = vunpack.c.h.b16 %v4682
        %v6050 = vunpack.c.l.b16 %v4683
        %v6051 = vunpack.c.h.b16 %v4683
        %v6052 = vunpack.c.l.b16 %v4684
        %v6053 = vunpack.c.h.b16 %v4684
        %v6054 = vunpack.c.l.b16 %v4685
        %v6055 = vunpack.c.h.b16 %v4685
        %v6056 = vunpack.c.l.b16 %v4686
        %v6057 = vunpack.c.h.b16 %v4686
        %v6058 = vunpack.c.l.b16 %v4687
        %v6059 = vunpack.c.h.b16 %v4687
        %v6060 = vunpack.c.l.b16 %v4688
        %v6061 = vunpack.c.h.b16 %v4688
        %v6062 = vunpack.c.l.b16 %v4689
        %v6063 = vunpack.c.h.b16 %v4689
        %v6064 = vunpack.c.l.b16 %v4690
        %v6065 = vunpack.c.h.b16 %v4690
        %v6066 = vunpack.c.l.b16 %v4691
        %v6067 = vunpack.c.h.b16 %v4691
        %v6068 = vunpack.c.l.b16 %v4692
        %v6069 = vunpack.c.h.b16 %v4692
        %v6070 = vunpack.c.l.b16 %v4693
        %v6071 = vunpack.c.h.b16 %v4693
        %v6072 = vunpack.c.l.b16 %v4694
        %v6073 = vunpack.c.h.b16 %v4694
        %v6074 = vunpack.c.l.b16 %v4695
        %v6075 = vunpack.c.h.b16 %v4695
        %v6076 = vunpack.c.l.b16 %v4696
        %v6077 = vunpack.c.h.b16 %v4696
        %v6078 = vunpack.c.l.b16 %v4697
        %v6079 = vunpack.c.h.b16 %v4697
        %v6080 = vunpack.c.l.b16 %v4698
        %v6081 = vunpack.c.h.b16 %v4698
        %v6082 = vunpack.c.l.b16 %v4699
        %v6083 = vunpack.c.h.b16 %v4699
        %v6084 = vunpack.c.l.b16 %v4700
        %v6085 = vunpack.c.h.b16 %v4700
        %v6086 = vunpack.c.l.b16 %v4701
        %v6087 = vunpack.c.h.b16 %v4701
        %v6088 = vunpack.c.l.b16 %v4702
        %v6089 = vunpack.c.h.b16 %v4702
        %v6090 = vunpack.c.l.b16 %v4703
        %v6091 = vunpack.c.h.b16 %v4703
        %v6092 = vunpack.c.l.b16 %v4704
        %v6093 = vunpack.c.h.b16 %v4704
        %v6094 = vunpack.c.l.b16 %v4705
        %v6095 = vunpack.c.h.b16 %v4705
        %v6096 = vunpack.c.l.b16 %v4706
        %v6097 = vunpack.c.h.b16 %v4706
        %v6098 = vunpack.c.l.b16 %v4707
        %v6099 = vunpack.c.h.b16 %v4707
        %v6100 = vunpack.c.l.b16 %v4708
        %v6101 = vunpack.c.h.b16 %v4708
        %v6102 = vunpack.c.l.b16 %v4709
        %v6103 = vunpack.c.h.b16 %v4709
        %v6104 = vunpack.c.l.b16 %v4710
        %v6105 = vunpack.c.h.b16 %v4710
        %v6106 = vunpack.c.l.b16 %v4711
        %v6107 = vunpack.c.h.b16 %v4711
        %v6108 = vunpack.c.l.b16 %v4712
        %v6109 = vunpack.c.h.b16 %v4712
        %v6110 = vunpack.c.l.b16 %v4713
        %v6111 = vunpack.c.h.b16 %v4713
        %v6112 = vunpack.c.l.b16 %v4714
        %v6113 = vunpack.c.h.b16 %v4714
        %v6114 = vunpack.c.l.b16 %v4715
        %v6115 = vunpack.c.h.b16 %v4715
        %v6116 = vunpack.c.l.b16 %v4716
        %v6117 = vunpack.c.h.b16 %v4716
        %v6118 = vunpack.c.l.b16 %v4717
        %v6119 = vunpack.c.h.b16 %v4717
        %v6120 = vunpack.c.l.b16 %v4718
        %v6121 = vunpack.c.h.b16 %v4718
        %v6122 = vunpack.c.l.b16 %v4719
        %v6123 = vunpack.c.h.b16 %v4719
        %v6124 = vunpack.c.l.b16 %v4720
        %v6125 = vunpack.c.h.b16 %v4720
        %v6126 = vunpack.c.l.b16 %v4721
        %v6127 = vunpack.c.h.b16 %v4721
        %v6128 = vunpack.c.l.b16 %v4722
        %v6129 = vunpack.c.h.b16 %v4722
        %v6130 = vunpack.c.l.b16 %v4723
        %v6131 = vunpack.c.h.b16 %v4723
        %v6132 = vunpack.c.l.b16 %v4724
        %v6133 = vunpack.c.h.b16 %v4724
        %v6134 = vunpack.c.l.b16 %v4725
        %v6135 = vunpack.c.h.b16 %v4725
        %v6136 = vunpack.c.l.b16 %v4726
        %v6137 = vunpack.c.h.b16 %v4726
        %v6138 = vunpack.c.l.b16 %v4727
        %v6139 = vunpack.c.h.b16 %v4727
        %v6140 = vunpack.c.l.b16 %v4728
        %v6141 = vunpack.c.h.b16 %v4728
        %v6142 = vunpack.c.l.b16 %v4729
        %v6143 = vunpack.c.h.b16 %v4729
        %v6144 = vunpack.c.l.b16 %v4730
        %v6145 = vunpack.c.h.b16 %v4730
        %v6146 = vunpack.c.l.b16 %v4731
        %v6147 = vunpack.c.h.b16 %v4731
        %v6148 = vunpack.c.l.b16 %v4732
        %v6149 = vunpack.c.h.b16 %v4732
        %v6150 = vunpack.c.l.b16 %v4733
        %v6151 = vunpack.c.h.b16 %v4733
        %v6152 = vunpack.c.l.b16 %v4734
        %v6153 = vunpack.c.h.b16 %v4734
        %v6154 = vunpack.c.l.b16 %v4735
        %v6155 = vunpack.c.h.b16 %v4735
        %v6156 = vunpack.c.l.b16 %v4736
        %v6157 = vunpack.c.h.b16 %v4736
        %v6158 = vunpack.c.l.b16 %v4737
        %v6159 = vunpack.c.h.b16 %v4737
        %v6160 = vunpack.c.l.b16 %v4738
        %v6161 = vunpack.c.h.b16 %v4738
        %v6162 = vunpack.c.l.b16 %v4739
        %v6163 = vunpack.c.h.b16 %v4739
        %v6164 = vunpack.c.l.b16 %v4740
        %v6165 = vunpack.c.h.b16 %v4740
        %v6166 = vunpack.c.l.b16 %v4741
        %v6167 = vunpack.c.h.b16 %v4741
        %v6168 = vunpack.c.l.b16 %v4742
        %v6169 = vunpack.c.h.b16 %v4742
        %v6170 = vunpack.c.l.b16 %v4743
        %v6171 = vunpack.c.h.b16 %v4743
        %v6172 = vunpack.c.l.b16 %v4744
        %v6173 = vunpack.c.h.b16 %v4744
        %v6174 = vunpack.c.l.b16 %v4745
        %v6175 = vunpack.c.h.b16 %v4745
        %v6176 = vunpack.c.l.b16 %v4746
        %v6177 = vunpack.c.h.b16 %v4746
        %v6178 = vunpack.c.l.b16 %v4747
        %v6179 = vunpack.c.h.b16 %v4747
        %v6180 = vunpack.c.l.b16 %v4748
        %v6181 = vunpack.c.h.b16 %v4748
        %v6182 = vunpack.c.l.b16 %v4749
        %v6183 = vunpack.c.h.b16 %v4749
        %v6184 = vunpack.c.l.b16 %v4750
        %v6185 = vunpack.c.h.b16 %v4750
        %v6186 = vunpack.c.l.b16 %v4751
        %v6187 = vunpack.c.h.b16 %v4751
        %v6188 = vunpack.c.l.b16 %v4752
        %v6189 = vunpack.c.h.b16 %v4752
        %v6190 = vunpack.c.l.b16 %v4753
        %v6191 = vunpack.c.h.b16 %v4753
        %v6192 = vunpack.c.l.b16 %v4754
        %v6193 = vunpack.c.h.b16 %v4754
        %v6194 = vunpack.c.l.b16 %v4755
        %v6195 = vunpack.c.h.b16 %v4755
        %v6196 = vunpack.c.l.b16 %v4756
        %v6197 = vunpack.c.h.b16 %v4756
        %v6198 = vunpack.c.l.b16 %v4757
        %v6199 = vunpack.c.h.b16 %v4757
        %v6200 = vunpack.c.l.b16 %v4758
        %v6201 = vunpack.c.h.b16 %v4758
        %v6202 = vunpack.c.l.b16 %v4759
        %v6203 = vunpack.c.h.b16 %v4759
        %v6204 = vunpack.c.l.b16 %v4760
        %v6205 = vunpack.c.h.b16 %v4760
        %v6206 = vunpack.c.l.b16 %v4761
        %v6207 = vunpack.c.h.b16 %v4761
        %v6208 = vunpack.c.l.b16 %v4762
        %v6209 = vunpack.c.h.b16 %v4762
        %v6210 = vunpack.c.l.b16 %v4763
        %v6211 = vunpack.c.h.b16 %v4763
        %v6212 = vunpack.c.l.b16 %v4764
        %v6213 = vunpack.c.h.b16 %v4764
        %v6214 = vunpack.c.l.b16 %v4765
        %v6215 = vunpack.c.h.b16 %v4765
        %v6216 = vunpack.c.l.b16 %v4766
        %v6217 = vunpack.c.h.b16 %v4766
        %v6218 = vunpack.c.l.b16 %v4767
        %v6219 = vunpack.c.h.b16 %v4767
        %v6220 = vunpack.c.l.b16 %v4768
        %v6221 = vunpack.c.h.b16 %v4768
        %v6222 = vunpack.c.l.b16 %v4769
        %v6223 = vunpack.c.h.b16 %v4769
        %v6224 = vunpack.c.l.b16 %v4770
        %v6225 = vunpack.c.h.b16 %v4770
        %v6226 = vunpack.c.l.b16 %v4771
        %v6227 = vunpack.c.h.b16 %v4771
        %v6228 = vunpack.c.l.b16 %v4772
        %v6229 = vunpack.c.h.b16 %v4772
        %v6230 = vunpack.c.l.b16 %v4773
        %v6231 = vunpack.c.h.b16 %v4773
        %v6232 = vunpack.c.l.b16 %v4774
        %v6233 = vunpack.c.h.b16 %v4774
        %v6234 = vunpack.c.l.b16 %v4775
        %v6235 = vunpack.c.h.b16 %v4775
        %v6236 = vunpack.c.l.b16 %v4776
        %v6237 = vunpack.c.h.b16 %v4776
        %v6238 = vunpack.c.l.b16 %v4777
        %v6239 = vunpack.c.h.b16 %v4777
        %v6240 = vunpack.c.l.b16 %v4778
        %v6241 = vunpack.c.h.b16 %v4778
        %v6242 = vunpack.c.l.b16 %v4779
        %v6243 = vunpack.c.h.b16 %v4779
        %v6244 = vunpack.c.l.b16 %v4780
        %v6245 = vunpack.c.h.b16 %v4780
        %v6246 = vunpack.c.l.b16 %v4781
        %v6247 = vunpack.c.h.b16 %v4781
        %v6248 = vunpack.c.l.b16 %v4782
        %v6249 = vunpack.c.h.b16 %v4782
        %v6250 = vunpack.c.l.b16 %v4783
        %v6251 = vunpack.c.h.b16 %v4783
        %v6252 = vunpack.c.l.b16 %v4784
        %v6253 = vunpack.c.h.b16 %v4784
        %v6254 = vunpack.c.l.b16 %v4785
        %v6255 = vunpack.c.h.b16 %v4785
        %v6256 = vunpack.c.l.b16 %v4786
        %v6257 = vunpack.c.h.b16 %v4786
        %v6258 = vunpack.c.l.b16 %v4787
        %v6259 = vunpack.c.h.b16 %v4787
        %v6260 = vunpack.c.l.b16 %v4788
        %v6261 = vunpack.c.h.b16 %v4788
        %v6262 = vunpack.c.l.b16 %v4789
        %v6263 = vunpack.c.h.b16 %v4789
        %v6264 = vunpack.c.l.b16 %v4790
        %v6265 = vunpack.c.h.b16 %v4790
        %v6266 = vunpack.c.l.b16 %v4791
        %v6267 = vunpack.c.h.b16 %v4791
        %v6268 = vunpack.c.l.b16 %v4792
        %v6269 = vunpack.c.h.b16 %v4792
        %v6270 = vunpack.c.l.b16 %v4793
        %v6271 = vunpack.c.h.b16 %v4793
        %v6272 = vunpack.c.l.b16 %v4794
        %v6273 = vunpack.c.h.b16 %v4794
        %v6274 = vunpack.c.l.b16 %v4795
        %v6275 = vunpack.c.h.b16 %v4795
        %v6276 = vunpack.c.l.b16 %v4796
        %v6277 = vunpack.c.h.b16 %v4796
        %v6278 = vunpack.c.l.b16 %v4797
        %v6279 = vunpack.c.h.b16 %v4797
        %v6280 = vunpack.c.l.b16 %v4798
        %v6281 = vunpack.c.h.b16 %v4798
        %v6282 = vunpack.c.l.b16 %v4799
        %v6283 = vunpack.c.h.b16 %v4799
        %v6284 = vunpack.c.l.b16 %v4800
        %v6285 = vunpack.c.h.b16 %v4800
        %v6286 = vunpack.c.l.b16 %v4801
        %v6287 = vunpack.c.h.b16 %v4801
        %v6288 = vunpack.c.l.b16 %v4802
        %v6289 = vunpack.c.h.b16 %v4802
        %v6290 = vunpack.c.l.b16 %v4803
        %v6291 = vunpack.c.h.b16 %v4803
        %v6292 = vunpack.c.l.b16 %v4804
        %v6293 = vunpack.c.h.b16 %v4804
        %v6294 = vunpack.c.l.b16 %v4805
        %v6295 = vunpack.c.h.b16 %v4805
        %v6296 = vunpack.c.l.b16 %v4806
        %v6297 = vunpack.c.h.b16 %v4806
        %v6298 = vunpack.c.l.b16 %v4807
        %v6299 = vunpack.c.h.b16 %v4807
        %v6300 = vunpack.c.l.b16 %v4808
        %v6301 = vunpack.c.h.b16 %v4808
        %v6302 = vunpack.c.l.b16 %v4809
        %v6303 = vunpack.c.h.b16 %v4809
        %v6304 = vunpack.c.l.b16 %v4810
        %v6305 = vunpack.c.h.b16 %v4810
        %v6306 = vunpack.c.l.b16 %v4811
        %v6307 = vunpack.c.h.b16 %v4811
        %v6308 = vunpack.c.l.b16 %v4812
        %v6309 = vunpack.c.h.b16 %v4812
        %v6310 = vunpack.c.l.b16 %v4813
        %v6311 = vunpack.c.h.b16 %v4813
        %v6312 = vunpack.c.l.b16 %v4814
        %v6313 = vunpack.c.h.b16 %v4814
        %v6314 = vunpack.c.l.b16 %v4815
        %v6315 = vunpack.c.h.b16 %v4815
        %v6316 = vunpack.c.l.b16 %v4816
        %v6317 = vunpack.c.h.b16 %v4816
        %v6318 = vunpack.c.l.b16 %v4817
        %v6319 = vunpack.c.h.b16 %v4817
        %v6320 = vunpack.c.l.b16 %v4818
        %v6321 = vunpack.c.h.b16 %v4818
        %v6322 = vunpack.c.l.b16 %v4819
        %v6323 = vunpack.c.h.b16 %v4819
        %v6324 = vunpack.c.l.b16 %v4820
        %v6325 = vunpack.c.h.b16 %v4820
        %v6326 = vunpack.c.l.b16 %v4821
        %v6327 = vunpack.c.h.b16 %v4821
        %v6328 = vunpack.c.l.b16 %v4822
        %v6329 = vunpack.c.h.b16 %v4822
        %v6330 = vunpack.c.l.b16 %v4823
        %v6331 = vunpack.c.h.b16 %v4823
        %v6332 = vunpack.c.l.b16 %v4824
        %v6333 = vunpack.c.h.b16 %v4824
        %v6334 = vunpack.c.l.b16 %v4825
        %v6335 = vunpack.c.h.b16 %v4825
        %v6336 = vunpack.c.l.b16 %v4826
        %v6337 = vunpack.c.h.b16 %v4826
        %v6338 = vunpack.c.l.b16 %v4827
        %v6339 = vunpack.c.h.b16 %v4827
        %v6340 = vunpack.c.l.b16 %v4828
        %v6341 = vunpack.c.h.b16 %v4828
        %v6342 = vunpack.c.l.b16 %v4829
        %v6343 = vunpack.c.h.b16 %v4829
        %v6344 = vunpack.c.l.b16 %v4830
        %v6345 = vunpack.c.h.b16 %v4830
        %v6346 = vunpack.c.l.b16 %v4831
        %v6347 = vunpack.c.h.b16 %v4831
        %v6348 = vunpack.c.l.b16 %v4832
        %v6349 = vunpack.c.h.b16 %v4832
        %v6350 = vunpack.c.l.b16 %v4833
        %v6351 = vunpack.c.h.b16 %v4833
        %v6352 = vunpack.c.l.b16 %v4834
        %v6353 = vunpack.c.h.b16 %v4834
        %v6354 = vunpack.c.l.b16 %v4835
        %v6355 = vunpack.c.h.b16 %v4835
        %v6356 = vunpack.c.l.b16 %v4836
        %v6357 = vunpack.c.h.b16 %v4836
        %v6358 = vunpack.c.l.b16 %v4837
        %v6359 = vunpack.c.h.b16 %v4837
        %v6360 = vunpack.c.l.b16 %v4838
        %v6361 = vunpack.c.h.b16 %v4838
        %v6362 = vunpack.c.l.b16 %v4839
        %v6363 = vunpack.c.h.b16 %v4839
        %v6364 = vunpack.c.l.b16 %v4840
        %v6365 = vunpack.c.h.b16 %v4840
        %v6366 = vunpack.c.l.b16 %v4841
        %v6367 = vunpack.c.h.b16 %v4841
        %v6368 = vunpack.c.l.b16 %v4842
        %v6369 = vunpack.c.h.b16 %v4842
        %v6370 = vunpack.c.l.b16 %v4843
        %v6371 = vunpack.c.h.b16 %v4843
        %v6372 = vunpack.c.l.b16 %v4844
        %v6373 = vunpack.c.h.b16 %v4844
        %v6374 = vunpack.c.l.b16 %v4845
        %v6375 = vunpack.c.h.b16 %v4845
        %v6376 = vunpack.c.l.b16 %v4846
        %v6377 = vunpack.c.h.b16 %v4846
        %v6378 = vunpack.c.l.b16 %v4847
        %v6379 = vunpack.c.h.b16 %v4847
        %v6380 = vunpack.c.l.b16 %v4848
        %v6381 = vunpack.c.h.b16 %v4848
        %v6382 = vunpack.c.l.b16 %v4849
        %v6383 = vunpack.c.h.b16 %v4849
        %v6384 = vunpack.c.l.b16 %v4850
        %v6385 = vunpack.c.h.b16 %v4850
        %v6386 = vunpack.c.l.b16 %v4851
        %v6387 = vunpack.c.h.b16 %v4851
        %v6388 = vpack.c.b16 %v5372, %v5364
        %v6389 = vpack.c.b16 %v5373, %v5365
        %v6390 = vpack.c.b16 %v5374, %v5366
        %v6391 = vpack.c.b16 %v5375, %v5367
        %v6392 = vpack.c.b16 %v5376, %v5368
        %v6393 = vpack.c.b16 %v5377, %v5369
        %v6394 = vpack.c.b16 %v5378, %v5370
        %v6395 = vpack.c.b16 %v5379, %v5371
        %v6396 = vpack.c.b16 %v5388, %v5380
        %v6397 = vpack.c.b16 %v5389, %v5381
        %v6398 = vpack.c.b16 %v5390, %v5382
        %v6399 = vpack.c.b16 %v5391, %v5383
        %v6400 = vpack.c.b16 %v5392, %v5384
        %v6401 = vpack.c.b16 %v5393, %v5385
        %v6402 = vpack.c.b16 %v5394, %v5386
        %v6403 = vpack.c.b16 %v5395, %v5387
        %v6404 = vpack.c.b16 %v5404, %v5396
        %v6405 = vpack.c.b16 %v5405, %v5397
        %v6406 = vpack.c.b16 %v5406, %v5398
        %v6407 = vpack.c.b16 %v5407, %v5399
        %v6408 = vpack.c.b16 %v5408, %v5400
        %v6409 = vpack.c.b16 %v5409, %v5401
        %v6410 = vpack.c.b16 %v5410, %v5402
        %v6411 = vpack.c.b16 %v5411, %v5403
        %v6412 = vpack.c.b16 %v5420, %v5412
        %v6413 = vpack.c.b16 %v5421, %v5413
        %v6414 = vpack.c.b16 %v5422, %v5414
        %v6415 = vpack.c.b16 %v5423, %v5415
        %v6416 = vpack.c.b16 %v5424, %v5416
        %v6417 = vpack.c.b16 %v5425, %v5417
        %v6418 = vpack.c.b16 %v5426, %v5418
        %v6419 = vpack.c.b16 %v5427, %v5419
        %v6420 = vpack.c.b16 %v5436, %v5428
        %v6421 = vpack.c.b16 %v5437, %v5429
        %v6422 = vpack.c.b16 %v5438, %v5430
        %v6423 = vpack.c.b16 %v5439, %v5431
        %v6424 = vpack.c.b16 %v5440, %v5432
        %v6425 = vpack.c.b16 %v5441, %v5433
        %v6426 = vpack.c.b16 %v5442, %v5434
        %v6427 = vpack.c.b16 %v5443, %v5435
        %v6428 = vpack.c.b16 %v5452, %v5444
        %v6429 = vpack.c.b16 %v5453, %v5445
        %v6430 = vpack.c.b16 %v5454, %v5446
        %v6431 = vpack.c.b16 %v5455, %v5447
        %v6432 = vpack.c.b16 %v5456, %v5448
        %v6433 = vpack.c.b16 %v5457, %v5449
        %v6434 = vpack.c.b16 %v5458, %v5450
        %v6435 = vpack.c.b16 %v5459, %v5451
        %v6436 = vpack.c.b16 %v5468, %v5460
        %v6437 = vpack.c.b16 %v5469, %v5461
        %v6438 = vpack.c.b16 %v5470, %v5462
        %v6439 = vpack.c.b16 %v5471, %v5463
        %v6440 = vpack.c.b16 %v5472, %v5464
        %v6441 = vpack.c.b16 %v5473, %v5465
        %v6442 = vpack.c.b16 %v5474, %v5466
        %v6443 = vpack.c.b16 %v5475, %v5467
        %v6444 = vpack.c.b16 %v5484, %v5476
        %v6445 = vpack.c.b16 %v5485, %v5477
        %v6446 = vpack.c.b16 %v5486, %v5478
        %v6447 = vpack.c.b16 %v5487, %v5479
        %v6448 = vpack.c.b16 %v5488, %v5480
        %v6449 = vpack.c.b16 %v5489, %v5481
        %v6450 = vpack.c.b16 %v5490, %v5482
        %v6451 = vpack.c.b16 %v5491, %v5483
        %v6452 = vpack.c.b16 %v5500, %v5492
        %v6453 = vpack.c.b16 %v5501, %v5493
        %v6454 = vpack.c.b16 %v5502, %v5494
        %v6455 = vpack.c.b16 %v5503, %v5495
        %v6456 = vpack.c.b16 %v5504, %v5496
        %v6457 = vpack.c.b16 %v5505, %v5497
        %v6458 = vpack.c.b16 %v5506, %v5498
        %v6459 = vpack.c.b16 %v5507, %v5499
        %v6460 = vpack.c.b16 %v5516, %v5508
        %v6461 = vpack.c.b16 %v5517, %v5509
        %v6462 = vpack.c.b16 %v5518, %v5510
        %v6463 = vpack.c.b16 %v5519, %v5511
        %v6464 = vpack.c.b16 %v5520, %v5512
        %v6465 = vpack.c.b16 %v5521, %v5513
        %v6466 = vpack.c.b16 %v5522, %v5514
        %v6467 = vpack.c.b16 %v5523, %v5515
        %v6468 = vpack.c.b16 %v5532, %v5524
        %v6469 = vpack.c.b16 %v5533, %v5525
        %v6470 = vpack.c.b16 %v5534, %v5526
        %v6471 = vpack.c.b16 %v5535, %v5527
        %v6472 = vpack.c.b16 %v5536, %v5528
        %v6473 = vpack.c.b16 %v5537, %v5529
        %v6474 = vpack.c.b16 %v5538, %v5530
        %v6475 = vpack.c.b16 %v5539, %v5531
        %v6476 = vpack.c.b16 %v5548, %v5540
        %v6477 = vpack.c.b16 %v5549, %v5541
        %v6478 = vpack.c.b16 %v5550, %v5542
        %v6479 = vpack.c.b16 %v5551, %v5543
        %v6480 = vpack.c.b16 %v5552, %v5544
        %v6481 = vpack.c.b16 %v5553, %v5545
        %v6482 = vpack.c.b16 %v5554, %v5546
        %v6483 = vpack.c.b16 %v5555, %v5547
        %v6484 = vpack.c.b16 %v5564, %v5556
        %v6485 = vpack.c.b16 %v5565, %v5557
        %v6486 = vpack.c.b16 %v5566, %v5558
        %v6487 = vpack.c.b16 %v5567, %v5559
        %v6488 = vpack.c.b16 %v5568, %v5560
        %v6489 = vpack.c.b16 %v5569, %v5561
        %v6490 = vpack.c.b16 %v5570, %v5562
        %v6491 = vpack.c.b16 %v5571, %v5563
        %v6492 = vpack.c.b16 %v5580, %v5572
        %v6493 = vpack.c.b16 %v5581, %v5573
        %v6494 = vpack.c.b16 %v5582, %v5574
        %v6495 = vpack.c.b16 %v5583, %v5575
        %v6496 = vpack.c.b16 %v5584, %v5576
        %v6497 = vpack.c.b16 %v5585, %v5577
        %v6498 = vpack.c.b16 %v5586, %v5578
        %v6499 = vpack.c.b16 %v5587, %v5579
        %v6500 = vpack.c.b16 %v5596, %v5588
        %v6501 = vpack.c.b16 %v5597, %v5589
        %v6502 = vpack.c.b16 %v5598, %v5590
        %v6503 = vpack.c.b16 %v5599, %v5591
        %v6504 = vpack.c.b16 %v5600, %v5592
        %v6505 = vpack.c.b16 %v5601, %v5593
        %v6506 = vpack.c.b16 %v5602, %v5594
        %v6507 = vpack.c.b16 %v5603, %v5595
        %v6508 = vpack.c.b16 %v5612, %v5604
        %v6509 = vpack.c.b16 %v5613, %v5605
        %v6510 = vpack.c.b16 %v5614, %v5606
        %v6511 = vpack.c.b16 %v5615, %v5607
        %v6512 = vpack.c.b16 %v5616, %v5608
        %v6513 = vpack.c.b16 %v5617, %v5609
        %v6514 = vpack.c.b16 %v5618, %v5610
        %v6515 = vpack.c.b16 %v5619, %v5611
        %v6516 = vpack.c.b16 %v5628, %v5620
        %v6517 = vpack.c.b16 %v5629, %v5621
        %v6518 = vpack.c.b16 %v5630, %v5622
        %v6519 = vpack.c.b16 %v5631, %v5623
        %v6520 = vpack.c.b16 %v5632, %v5624
        %v6521 = vpack.c.b16 %v5633, %v5625
        %v6522 = vpack.c.b16 %v5634, %v5626
        %v6523 = vpack.c.b16 %v5635, %v5627
        %v6524 = vpack.c.b16 %v5644, %v5636
        %v6525 = vpack.c.b16 %v5645, %v5637
        %v6526 = vpack.c.b16 %v5646, %v5638
        %v6527 = vpack.c.b16 %v5647, %v5639
        %v6528 = vpack.c.b16 %v5648, %v5640
        %v6529 = vpack.c.b16 %v5649, %v5641
        %v6530 = vpack.c.b16 %v5650, %v5642
        %v6531 = vpack.c.b16 %v5651, %v5643
        %v6532 = vpack.c.b16 %v5660, %v5652
        %v6533 = vpack.c.b16 %v5661, %v5653
        %v6534 = vpack.c.b16 %v5662, %v5654
        %v6535 = vpack.c.b16 %v5663, %v5655
        %v6536 = vpack.c.b16 %v5664, %v5656
        %v6537 = vpack.c.b16 %v5665, %v5657
        %v6538 = vpack.c.b16 %v5666, %v5658
        %v6539 = vpack.c.b16 %v5667, %v5659
        %v6540 = vpack.c.b16 %v5676, %v5668
        %v6541 = vpack.c.b16 %v5677, %v5669
        %v6542 = vpack.c.b16 %v5678, %v5670
        %v6543 = vpack.c.b16 %v5679, %v5671
        %v6544 = vpack.c.b16 %v5680, %v5672
        %v6545 = vpack.c.b16 %v5681, %v5673
        %v6546 = vpack.c.b16 %v5682, %v5674
        %v6547 = vpack.c.b16 %v5683, %v5675
        %v6548 = vpack.c.b16 %v5692, %v5684
        %v6549 = vpack.c.b16 %v5693, %v5685
        %v6550 = vpack.c.b16 %v5694, %v5686
        %v6551 = vpack.c.b16 %v5695, %v5687
        %v6552 = vpack.c.b16 %v5696, %v5688
        %v6553 = vpack.c.b16 %v5697, %v5689
        %v6554 = vpack.c.b16 %v5698, %v5690
        %v6555 = vpack.c.b16 %v5699, %v5691
        %v6556 = vpack.c.b16 %v5708, %v5700
        %v6557 = vpack.c.b16 %v5709, %v5701
        %v6558 = vpack.c.b16 %v5710, %v5702
        %v6559 = vpack.c.b16 %v5711, %v5703
        %v6560 = vpack.c.b16 %v5712, %v5704
        %v6561 = vpack.c.b16 %v5713, %v5705
        %v6562 = vpack.c.b16 %v5714, %v5706
        %v6563 = vpack.c.b16 %v5715, %v5707
        %v6564 = vpack.c.b16 %v5724, %v5716
        %v6565 = vpack.c.b16 %v5725, %v5717
        %v6566 = vpack.c.b16 %v5726, %v5718
        %v6567 = vpack.c.b16 %v5727, %v5719
        %v6568 = vpack.c.b16 %v5728, %v5720
        %v6569 = vpack.c.b16 %v5729, %v5721
        %v6570 = vpack.c.b16 %v5730, %v5722
        %v6571 = vpack.c.b16 %v5731, %v5723
        %v6572 = vpack.c.b16 %v5740, %v5732
        %v6573 = vpack.c.b16 %v5741, %v5733
        %v6574 = vpack.c.b16 %v5742, %v5734
        %v6575 = vpack.c.b16 %v5743, %v5735
        %v6576 = vpack.c.b16 %v5744, %v5736
        %v6577 = vpack.c.b16 %v5745, %v5737
        %v6578 = vpack.c.b16 %v5746, %v5738
        %v6579 = vpack.c.b16 %v5747, %v5739
        %v6580 = vpack.c.b16 %v5756, %v5748
        %v6581 = vpack.c.b16 %v5757, %v5749
        %v6582 = vpack.c.b16 %v5758, %v5750
        %v6583 = vpack.c.b16 %v5759, %v5751
        %v6584 = vpack.c.b16 %v5760, %v5752
        %v6585 = vpack.c.b16 %v5761, %v5753
        %v6586 = vpack.c.b16 %v5762, %v5754
        %v6587 = vpack.c.b16 %v5763, %v5755
        %v6588 = vpack.c.b16 %v5772, %v5764
        %v6589 = vpack.c.b16 %v5773, %v5765
        %v6590 = vpack.c.b16 %v5774, %v5766
        %v6591 = vpack.c.b16 %v5775, %v5767
        %v6592 = vpack.c.b16 %v5776, %v5768
        %v6593 = vpack.c.b16 %v5777, %v5769
        %v6594 = vpack.c.b16 %v5778, %v5770
        %v6595 = vpack.c.b16 %v5779, %v5771
        %v6596 = vpack.c.b16 %v5788, %v5780
        %v6597 = vpack.c.b16 %v5789, %v5781
        %v6598 = vpack.c.b16 %v5790, %v5782
        %v6599 = vpack.c.b16 %v5791, %v5783
        %v6600 = vpack.c.b16 %v5792, %v5784
        %v6601 = vpack.c.b16 %v5793, %v5785
        %v6602 = vpack.c.b16 %v5794, %v5786
        %v6603 = vpack.c.b16 %v5795, %v5787
        %v6604 = vpack.c.b16 %v5804, %v5796
        %v6605 = vpack.c.b16 %v5805, %v5797
        %v6606 = vpack.c.b16 %v5806, %v5798
        %v6607 = vpack.c.b16 %v5807, %v5799
        %v6608 = vpack.c.b16 %v5808, %v5800
        %v6609 = vpack.c.b16 %v5809, %v5801
        %v6610 = vpack.c.b16 %v5810, %v5802
        %v6611 = vpack.c.b16 %v5811, %v5803
        %v6612 = vpack.c.b16 %v5820, %v5812
        %v6613 = vpack.c.b16 %v5821, %v5813
        %v6614 = vpack.c.b16 %v5822, %v5814
        %v6615 = vpack.c.b16 %v5823, %v5815
        %v6616 = vpack.c.b16 %v5824, %v5816
        %v6617 = vpack.c.b16 %v5825, %v5817
        %v6618 = vpack.c.b16 %v5826, %v5818
        %v6619 = vpack.c.b16 %v5827, %v5819
        %v6620 = vpack.c.b16 %v5836, %v5828
        %v6621 = vpack.c.b16 %v5837, %v5829
        %v6622 = vpack.c.b16 %v5838, %v5830
        %v6623 = vpack.c.b16 %v5839, %v5831
        %v6624 = vpack.c.b16 %v5840, %v5832
        %v6625 = vpack.c.b16 %v5841, %v5833
        %v6626 = vpack.c.b16 %v5842, %v5834
        %v6627 = vpack.c.b16 %v5843, %v5835
        %v6628 = vpack.c.b16 %v5852, %v5844
        %v6629 = vpack.c.b16 %v5853, %v5845
        %v6630 = vpack.c.b16 %v5854, %v5846
        %v6631 = vpack.c.b16 %v5855, %v5847
        %v6632 = vpack.c.b16 %v5856, %v5848
        %v6633 = vpack.c.b16 %v5857, %v5849
        %v6634 = vpack.c.b16 %v5858, %v5850
        %v6635 = vpack.c.b16 %v5859, %v5851
        %v6636 = vpack.c.b16 %v5868, %v5860
        %v6637 = vpack.c.b16 %v5869, %v5861
        %v6638 = vpack.c.b16 %v5870, %v5862
        %v6639 = vpack.c.b16 %v5871, %v5863
        %v6640 = vpack.c.b16 %v5872, %v5864
        %v6641 = vpack.c.b16 %v5873, %v5865
        %v6642 = vpack.c.b16 %v5874, %v5866
        %v6643 = vpack.c.b16 %v5875, %v5867
        %v6644 = vpack.c.b16 %v5884, %v5876
        %v6645 = vpack.c.b16 %v5885, %v5877
        %v6646 = vpack.c.b16 %v5886, %v5878
        %v6647 = vpack.c.b16 %v5887, %v5879
        %v6648 = vpack.c.b16 %v5888, %v5880
        %v6649 = vpack.c.b16 %v5889, %v5881
        %v6650 = vpack.c.b16 %v5890, %v5882
        %v6651 = vpack.c.b16 %v5891, %v5883
        %v6652 = vpack.c.b16 %v5900, %v5892
        %v6653 = vpack.c.b16 %v5901, %v5893
        %v6654 = vpack.c.b16 %v5902, %v5894
        %v6655 = vpack.c.b16 %v5903, %v5895
        %v6656 = vpack.c.b16 %v5904, %v5896
        %v6657 = vpack.c.b16 %v5905, %v5897
        %v6658 = vpack.c.b16 %v5906, %v5898
        %v6659 = vpack.c.b16 %v5907, %v5899
        %v6660 = vpack.c.b16 %v5916, %v5908
        %v6661 = vpack.c.b16 %v5917, %v5909
        %v6662 = vpack.c.b16 %v5918, %v5910
        %v6663 = vpack.c.b16 %v5919, %v5911
        %v6664 = vpack.c.b16 %v5920, %v5912
        %v6665 = vpack.c.b16 %v5921, %v5913
        %v6666 = vpack.c.b16 %v5922, %v5914
        %v6667 = vpack.c.b16 %v5923, %v5915
        %v6668 = vpack.c.b16 %v5932, %v5924
        %v6669 = vpack.c.b16 %v5933, %v5925
        %v6670 = vpack.c.b16 %v5934, %v5926
        %v6671 = vpack.c.b16 %v5935, %v5927
        %v6672 = vpack.c.b16 %v5936, %v5928
        %v6673 = vpack.c.b16 %v5937, %v5929
        %v6674 = vpack.c.b16 %v5938, %v5930
        %v6675 = vpack.c.b16 %v5939, %v5931
        %v6676 = vpack.c.b16 %v5948, %v5940
        %v6677 = vpack.c.b16 %v5949, %v5941
        %v6678 = vpack.c.b16 %v5950, %v5942
        %v6679 = vpack.c.b16 %v5951, %v5943
        %v6680 = vpack.c.b16 %v5952, %v5944
        %v6681 = vpack.c.b16 %v5953, %v5945
        %v6682 = vpack.c.b16 %v5954, %v5946
        %v6683 = vpack.c.b16 %v5955, %v5947
        %v6684 = vpack.c.b16 %v5964, %v5956
        %v6685 = vpack.c.b16 %v5965, %v5957
        %v6686 = vpack.c.b16 %v5966, %v5958
        %v6687 = vpack.c.b16 %v5967, %v5959
        %v6688 = vpack.c.b16 %v5968, %v5960
        %v6689 = vpack.c.b16 %v5969, %v5961
        %v6690 = vpack.c.b16 %v5970, %v5962
        %v6691 = vpack.c.b16 %v5971, %v5963
        %v6692 = vpack.c.b16 %v5980, %v5972
        %v6693 = vpack.c.b16 %v5981, %v5973
        %v6694 = vpack.c.b16 %v5982, %v5974
        %v6695 = vpack.c.b16 %v5983, %v5975
        %v6696 = vpack.c.b16 %v5984, %v5976
        %v6697 = vpack.c.b16 %v5985, %v5977
        %v6698 = vpack.c.b16 %v5986, %v5978
        %v6699 = vpack.c.b16 %v5987, %v5979
        %v6700 = vpack.c.b16 %v5996, %v5988
        %v6701 = vpack.c.b16 %v5997, %v5989
        %v6702 = vpack.c.b16 %v5998, %v5990
        %v6703 = vpack.c.b16 %v5999, %v5991
        %v6704 = vpack.c.b16 %v6000, %v5992
        %v6705 = vpack.c.b16 %v6001, %v5993
        %v6706 = vpack.c.b16 %v6002, %v5994
        %v6707 = vpack.c.b16 %v6003, %v5995
        %v6708 = vpack.c.b16 %v6012, %v6004
        %v6709 = vpack.c.b16 %v6013, %v6005
        %v6710 = vpack.c.b16 %v6014, %v6006
        %v6711 = vpack.c.b16 %v6015, %v6007
        %v6712 = vpack.c.b16 %v6016, %v6008
        %v6713 = vpack.c.b16 %v6017, %v6009
        %v6714 = vpack.c.b16 %v6018, %v6010
        %v6715 = vpack.c.b16 %v6019, %v6011
        %v6716 = vpack.c.b16 %v6028, %v6020
        %v6717 = vpack.c.b16 %v6029, %v6021
        %v6718 = vpack.c.b16 %v6030, %v6022
        %v6719 = vpack.c.b16 %v6031, %v6023
        %v6720 = vpack.c.b16 %v6032, %v6024
        %v6721 = vpack.c.b16 %v6033, %v6025
        %v6722 = vpack.c.b16 %v6034, %v6026
        %v6723 = vpack.c.b16 %v6035, %v6027
        %v6724 = vpack.c.b16 %v6044, %v6036
        %v6725 = vpack.c.b16 %v6045, %v6037
        %v6726 = vpack.c.b16 %v6046, %v6038
        %v6727 = vpack.c.b16 %v6047, %v6039
        %v6728 = vpack.c.b16 %v6048, %v6040
        %v6729 = vpack.c.b16 %v6049, %v6041
        %v6730 = vpack.c.b16 %v6050, %v6042
        %v6731 = vpack.c.b16 %v6051, %v6043
        %v6732 = vpack.c.b16 %v6060, %v6052
        %v6733 = vpack.c.b16 %v6061, %v6053
        %v6734 = vpack.c.b16 %v6062, %v6054
        %v6735 = vpack.c.b16 %v6063, %v6055
        %v6736 = vpack.c.b16 %v6064, %v6056
        %v6737 = vpack.c.b16 %v6065, %v6057
        %v6738 = vpack.c.b16 %v6066, %v6058
        %v6739 = vpack.c.b16 %v6067, %v6059
        %v6740 = vpack.c.b16 %v6076, %v6068
        %v6741 = vpack.c.b16 %v6077, %v6069
        %v6742 = vpack.c.b16 %v6078, %v6070
        %v6743 = vpack.c.b16 %v6079, %v6071
        %v6744 = vpack.c.b16 %v6080, %v6072
        %v6745 = vpack.c.b16 %v6081, %v6073
        %v6746 = vpack.c.b16 %v6082, %v6074
        %v6747 = vpack.c.b16 %v6083, %v6075
        %v6748 = vpack.c.b16 %v6092, %v6084
        %v6749 = vpack.c.b16 %v6093, %v6085
        %v6750 = vpack.c.b16 %v6094, %v6086
        %v6751 = vpack.c.b16 %v6095, %v6087
        %v6752 = vpack.c.b16 %v6096, %v6088
        %v6753 = vpack.c.b16 %v6097, %v6089
        %v6754 = vpack.c.b16 %v6098, %v6090
        %v6755 = vpack.c.b16 %v6099, %v6091
        %v6756 = vpack.c.b16 %v6108, %v6100
        %v6757 = vpack.c.b16 %v6109, %v6101
        %v6758 = vpack.c.b16 %v6110, %v6102
        %v6759 = vpack.c.b16 %v6111, %v6103
        %v6760 = vpack.c.b16 %v6112, %v6104
        %v6761 = vpack.c.b16 %v6113, %v6105
        %v6762 = vpack.c.b16 %v6114, %v6106
        %v6763 = vpack.c.b16 %v6115, %v6107
        %v6764 = vpack.c.b16 %v6124, %v6116
        %v6765 = vpack.c.b16 %v6125, %v6117
        %v6766 = vpack.c.b16 %v6126, %v6118
        %v6767 = vpack.c.b16 %v6127, %v6119
        %v6768 = vpack.c.b16 %v6128, %v6120
        %v6769 = vpack.c.b16 %v6129, %v6121
        %v6770 = vpack.c.b16 %v6130, %v6122
        %v6771 = vpack.c.b16 %v6131, %v6123
        %v6772 = vpack.c.b16 %v6140, %v6132
        %v6773 = vpack.c.b16 %v6141, %v6133
        %v6774 = vpack.c.b16 %v6142, %v6134
        %v6775 = vpack.c.b16 %v6143, %v6135
        %v6776 = vpack.c.b16 %v6144, %v6136
        %v6777 = vpack.c.b16 %v6145, %v6137
        %v6778 = vpack.c.b16 %v6146, %v6138
        %v6779 = vpack.c.b16 %v6147, %v6139
        %v6780 = vpack.c.b16 %v6156, %v6148
        %v6781 = vpack.c.b16 %v6157, %v6149
        %v6782 = vpack.c.b16 %v6158, %v6150
        %v6783 = vpack.c.b16 %v6159, %v6151
        %v6784 = vpack.c.b16 %v6160, %v6152
        %v6785 = vpack.c.b16 %v6161, %v6153
        %v6786 = vpack.c.b16 %v6162, %v6154
        %v6787 = vpack.c.b16 %v6163, %v6155
        %v6788 = vpack.c.b16 %v6172, %v6164
        %v6789 = vpack.c.b16 %v6173, %v6165
        %v6790 = vpack.c.b16 %v6174, %v6166
        %v6791 = vpack.c.b16 %v6175, %v6167
        %v6792 = vpack.c.b16 %v6176, %v6168
        %v6793 = vpack.c.b16 %v6177, %v6169
        %v6794 = vpack.c.b16 %v6178, %v6170
        %v6795 = vpack.c.b16 %v6179, %v6171
        %v6796 = vpack.c.b16 %v6188, %v6180
        %v6797 = vpack.c.b16 %v6189, %v6181
        %v6798 = vpack.c.b16 %v6190, %v6182
        %v6799 = vpack.c.b16 %v6191, %v6183
        %v6800 = vpack.c.b16 %v6192, %v6184
        %v6801 = vpack.c.b16 %v6193, %v6185
        %v6802 = vpack.c.b16 %v6194, %v6186
        %v6803 = vpack.c.b16 %v6195, %v6187
        %v6804 = vpack.c.b16 %v6204, %v6196
        %v6805 = vpack.c.b16 %v6205, %v6197
        %v6806 = vpack.c.b16 %v6206, %v6198
        %v6807 = vpack.c.b16 %v6207, %v6199
        %v6808 = vpack.c.b16 %v6208, %v6200
        %v6809 = vpack.c.b16 %v6209, %v6201
        %v6810 = vpack.c.b16 %v6210, %v6202
        %v6811 = vpack.c.b16 %v6211, %v6203
        %v6812 = vpack.c.b16 %v6220, %v6212
        %v6813 = vpack.c.b16 %v6221, %v6213
        %v6814 = vpack.c.b16 %v6222, %v6214
        %v6815 = vpack.c.b16 %v6223, %v6215
        %v6816 = vpack.c.b16 %v6224, %v6216
        %v6817 = vpack.c.b16 %v6225, %v6217
        %v6818 = vpack.c.b16 %v6226, %v6218
        %v6819 = vpack.c.b16 %v6227, %v6219
        %v6820 = vpack.c.b16 %v6236, %v6228
        %v6821 = vpack.c.b16 %v6237, %v6229
        %v6822 = vpack.c.b16 %v6238, %v6230
        %v6823 = vpack.c.b16 %v6239, %v6231
        %v6824 = vpack.c.b16 %v6240, %v6232
        %v6825 = vpack.c.b16 %v6241, %v6233
        %v6826 = vpack.c.b16 %v6242, %v6234
        %v6827 = vpack.c.b16 %v6243, %v6235
        %v6828 = vpack.c.b16 %v6252, %v6244
        %v6829 = vpack.c.b16 %v6253, %v6245
        %v6830 = vpack.c.b16 %v6254, %v6246
        %v6831 = vpack.c.b16 %v6255, %v6247
        %v6832 = vpack.c.b16 %v6256, %v6248
        %v6833 = vpack.c.b16 %v6257, %v6249
        %v6834 = vpack.c.b16 %v6258, %v6250
        %v6835 = vpack.c.b16 %v6259, %v6251
        %v6836 = vpack.c.b16 %v6268, %v6260
        %v6837 = vpack.c.b16 %v6269, %v6261
        %v6838 = vpack.c.b16 %v6270, %v6262
        %v6839 = vpack.c.b16 %v6271, %v6263
        %v6840 = vpack.c.b16 %v6272, %v6264
        %v6841 = vpack.c.b16 %v6273, %v6265
        %v6842 = vpack.c.b16 %v6274, %v6266
        %v6843 = vpack.c.b16 %v6275, %v6267
        %v6844 = vpack.c.b16 %v6284, %v6276
        %v6845 = vpack.c.b16 %v6285, %v6277
        %v6846 = vpack.c.b16 %v6286, %v6278
        %v6847 = vpack.c.b16 %v6287, %v6279
        %v6848 = vpack.c.b16 %v6288, %v6280
        %v6849 = vpack.c.b16 %v6289, %v6281
        %v6850 = vpack.c.b16 %v6290, %v6282
        %v6851 = vpack.c.b16 %v6291, %v6283
        %v6852 = vpack.c.b16 %v6300, %v6292
        %v6853 = vpack.c.b16 %v6301, %v6293
        %v6854 = vpack.c.b16 %v6302, %v6294
        %v6855 = vpack.c.b16 %v6303, %v6295
        %v6856 = vpack.c.b16 %v6304, %v6296
        %v6857 = vpack.c.b16 %v6305, %v6297
        %v6858 = vpack.c.b16 %v6306, %v6298
        %v6859 = vpack.c.b16 %v6307, %v6299
        %v6860 = vpack.c.b16 %v6316, %v6308
        %v6861 = vpack.c.b16 %v6317, %v6309
        %v6862 = vpack.c.b16 %v6318, %v6310
        %v6863 = vpack.c.b16 %v6319, %v6311
        %v6864 = vpack.c.b16 %v6320, %v6312
        %v6865 = vpack.c.b16 %v6321, %v6313
        %v6866 = vpack.c.b16 %v6322, %v6314
        %v6867 = vpack.c.b16 %v6323, %v6315
        %v6868 = vpack.c.b16 %v6332, %v6324
        %v6869 = vpack.c.b16 %v6333, %v6325
        %v6870 = vpack.c.b16 %v6334, %v6326
        %v6871 = vpack.c.b16 %v6335, %v6327
        %v6872 = vpack.c.b16 %v6336, %v6328
        %v6873 = vpack.c.b16 %v6337, %v6329
        %v6874 = vpack.c.b16 %v6338, %v6330
        %v6875 = vpack.c.b16 %v6339, %v6331
        %v6876 = vpack.c.b16 %v6348, %v6340
        %v6877 = vpack.c.b16 %v6349, %v6341
        %v6878 = vpack.c.b16 %v6350, %v6342
        %v6879 = vpack.c.b16 %v6351, %v6343
        %v6880 = vpack.c.b16 %v6352, %v6344
        %v6881 = vpack.c.b16 %v6353, %v6345
        %v6882 = vpack.c.b16 %v6354, %v6346
        %v6883 = vpack.c.b16 %v6355, %v6347
        %v6884 = vpack.c.b16 %v6364, %v6356
        %v6885 = vpack.c.b16 %v6365, %v6357
        %v6886 = vpack.c.b16 %v6366, %v6358
        %v6887 = vpack.c.b16 %v6367, %v6359
        %v6888 = vpack.c.b16 %v6368, %v6360
        %v6889 = vpack.c.b16 %v6369, %v6361
        %v6890 = vpack.c.b16 %v6370, %v6362
        %v6891 = vpack.c.b16 %v6371, %v6363
        %v6892 = vpack.c.b16 %v6380, %v6372
        %v6893 = vpack.c.b16 %v6381, %v6373
        %v6894 = vpack.c.b16 %v6382, %v6374
        %v6895 = vpack.c.b16 %v6383, %v6375
        %v6896 = vpack.c.b16 %v6384, %v6376
        %v6897 = vpack.c.b16 %v6385, %v6377
        %v6898 = vpack.c.b16 %v6386, %v6378
        %v6899 = vpack.c.b16 %v6387, %v6379
        %7412 = vmatprep.subr.bf16.mxu0 %v6389
        %7413 = vmatpush1.bf16.msra.mxu0 %v6388
        %7414 = vmatprep.subr.bf16.mxu0 %v6397
        %7415 = vmatpush1.bf16.msra.mxu0 %v6396
        %7416 = vmatprep.subr.bf16.mxu0 %v6405
        %7417 = vmatpush1.bf16.msra.mxu0 %v6404
        %7418 = vmatprep.subr.bf16.mxu0 %v6413
        %7419 = vmatpush1.bf16.msra.mxu0 %v6412
        %7420 = vmatprep.subr.bf16.mxu0 %v6421
        %7421 = vmatpush1.bf16.msra.mxu0 %v6420
        %7422 = vmatprep.subr.bf16.mxu0 %v6429
        %7423 = vmatpush1.bf16.msra.mxu0 %v6428
        %7424 = vmatprep.subr.bf16.mxu0 %v6437
        %7425 = vmatpush1.bf16.msra.mxu0 %v6436
        %7426 = vmatprep.subr.bf16.mxu0 %v6445
        %7427 = vmatpush1.bf16.msra.mxu0 %v6444
        %7428 = vmatprep.subr.bf16.mxu0 %v6453
        %7429 = vmatpush1.bf16.msra.mxu0 %v6452
        %7430 = vmatprep.subr.bf16.mxu0 %v6461
        %7431 = vmatpush1.bf16.msra.mxu0 %v6460
        %7432 = vmatprep.subr.bf16.mxu0 %v6469
        %7433 = vmatpush1.bf16.msra.mxu0 %v6468
        %7434 = vmatprep.subr.bf16.mxu0 %v6477
        %7435 = vmatpush1.bf16.msra.mxu0 %v6476
        %7436 = vmatprep.subr.bf16.mxu0 %v6485
        %7437 = vmatpush1.bf16.msra.mxu0 %v6484
        %7438 = vmatprep.subr.bf16.mxu0 %v6493
        %7439 = vmatpush1.bf16.msra.mxu0 %v6492
        %7440 = vmatprep.subr.bf16.mxu0 %v6501
        %7441 = vmatpush1.bf16.msra.mxu0 %v6500
        %7442 = vmatprep.subr.bf16.mxu0 %v6509
        %7443 = vmatpush1.bf16.msra.mxu0 %v6508
        %7444 = vmatprep.mubr.bf16.mxu0 %v573
        %7445 = vmatmul.mubr.bf16.gmra.mrb[0].mxu0 %v572
        %v7446 = vpop.f32.mrb[0].mxu0
        %v7447 = vadd.f32 0.0, %v7446
        %v7448 = vpop.f32.mrb[0].mxu0
        %v7449 = vadd.f32 0.0, %v7448
        %v7450 = vpop.f32.mrb[0].mxu0
        %v7451 = vpop.f32.mrb[0].mxu0
        %7452 = vdwg.mxu0
        %7453 = vmatprep.subr.bf16.mxu0 %v6517
        %7454 = vmatpush1.bf16.msra.mxu0 %v6516
        %7455 = vmatprep.subr.bf16.mxu0 %v6525
        %7456 = vmatpush1.bf16.msra.mxu0 %v6524
        %7457 = vmatprep.subr.bf16.mxu0 %v6533
        %7458 = vmatpush1.bf16.msra.mxu0 %v6532
        %7459 = vmatprep.subr.bf16.mxu0 %v6541
        %7460 = vmatpush1.bf16.msra.mxu0 %v6540
        %7461 = vmatprep.subr.bf16.mxu0 %v6549
        %7462 = vmatpush1.bf16.msra.mxu0 %v6548
        %7463 = vmatprep.subr.bf16.mxu0 %v6557
        %7464 = vmatpush1.bf16.msra.mxu0 %v6556
        %7465 = vmatprep.subr.bf16.mxu0 %v6565
        %7466 = vmatpush1.bf16.msra.mxu0 %v6564
        %7467 = vmatprep.subr.bf16.mxu0 %v6573
        %7468 = vmatpush1.bf16.msra.mxu0 %v6572
        %7469 = vmatprep.subr.bf16.mxu0 %v6581
        %7470 = vmatpush1.bf16.msra.mxu0 %v6580
        %7471 = vmatprep.subr.bf16.mxu0 %v6589
        %7472 = vmatpush1.bf16.msra.mxu0 %v6588
        %7473 = vmatprep.subr.bf16.mxu0 %v6597
        %7474 = vmatpush1.bf16.msra.mxu0 %v6596
        %7475 = vmatprep.subr.bf16.mxu0 %v6605
        %7476 = vmatpush1.bf16.msra.mxu0 %v6604
        %7477 = vmatprep.subr.bf16.mxu0 %v6613
        %7478 = vmatpush1.bf16.msra.mxu0 %v6612
        %7479 = vmatprep.subr.bf16.mxu0 %v6621
        %7480 = vmatpush1.bf16.msra.mxu0 %v6620
        %7481 = vmatprep.subr.bf16.mxu0 %v6629
        %7482 = vmatpush1.bf16.msra.mxu0 %v6628
        %7483 = vmatprep.subr.bf16.mxu0 %v6637
        %7484 = vmatpush1.bf16.msra.mxu0 %v6636
        %7485 = vmatprep.mubr.bf16.mxu0 %v575
        %7486 = vmatmul.mubr.bf16.gmra.mrb[0].mxu0 %v574
        %v7487 = vpop.f32.mrb[0].mxu0
        %v7488 = vadd.f32 %v7447, %v7487
        %v7489 = vpop.f32.mrb[0].mxu0
        %v7490 = vadd.f32 %v7449, %v7489
        %v7491 = vpop.f32.mrb[0].mxu0
        %v7492 = vpop.f32.mrb[0].mxu0
        %7493 = vdwg.mxu0
        %7494 = vmatprep.subr.bf16.mxu0 %v6645
        %7495 = vmatpush1.bf16.msra.mxu0 %v6644
        %7496 = vmatprep.subr.bf16.mxu0 %v6653
        %7497 = vmatpush1.bf16.msra.mxu0 %v6652
        %7498 = vmatprep.subr.bf16.mxu0 %v6661
        %7499 = vmatpush1.bf16.msra.mxu0 %v6660
        %7500 = vmatprep.subr.bf16.mxu0 %v6669
        %7501 = vmatpush1.bf16.msra.mxu0 %v6668
        %7502 = vmatprep.subr.bf16.mxu0 %v6677
        %7503 = vmatpush1.bf16.msra.mxu0 %v6676
        %7504 = vmatprep.subr.bf16.mxu0 %v6685
        %7505 = vmatpush1.bf16.msra.mxu0 %v6684
        %7506 = vmatprep.subr.bf16.mxu0 %v6693
        %7507 = vmatpush1.bf16.msra.mxu0 %v6692
        %7508 = vmatprep.subr.bf16.mxu0 %v6701
        %7509 = vmatpush1.bf16.msra.mxu0 %v6700
        %7510 = vmatprep.subr.bf16.mxu0 %v6709
        %7511 = vmatpush1.bf16.msra.mxu0 %v6708
        %7512 = vmatprep.subr.bf16.mxu0 %v6717
        %7513 = vmatpush1.bf16.msra.mxu0 %v6716
        %7514 = vmatprep.subr.bf16.mxu0 %v6725
        %7515 = vmatpush1.bf16.msra.mxu0 %v6724
        %7516 = vmatprep.subr.bf16.mxu0 %v6733
        %7517 = vmatpush1.bf16.msra.mxu0 %v6732
        %7518 = vmatprep.subr.bf16.mxu0 %v6741
        %7519 = vmatpush1.bf16.msra.mxu0 %v6740
        %7520 = vmatprep.subr.bf16.mxu0 %v6749
        %7521 = vmatpush1.bf16.msra.mxu0 %v6748
        %7522 = vmatprep.subr.bf16.mxu0 %v6757
        %7523 = vmatpush1.bf16.msra.mxu0 %v6756
        %7524 = vmatprep.subr.bf16.mxu0 %v6765
        %7525 = vmatpush1.bf16.msra.mxu0 %v6764
        %7526 = vmatprep.mubr.bf16.mxu0 %v577
        %7527 = vmatmul.mubr.bf16.gmra.mrb[0].mxu0 %v576
        %v7528 = vpop.f32.mrb[0].mxu0
        %v7529 = vadd.f32 %v7488, %v7528
        %v7530 = vpop.f32.mrb[0].mxu0
        %v7531 = vadd.f32 %v7490, %v7530
        %v7532 = vpop.f32.mrb[0].mxu0
        %v7533 = vpop.f32.mrb[0].mxu0
        %7534 = vdwg.mxu0
        %7535 = vmatprep.subr.bf16.mxu0 %v6773
        %7536 = vmatpush1.bf16.msra.mxu0 %v6772
        %7537 = vmatprep.subr.bf16.mxu0 %v6781
        %7538 = vmatpush1.bf16.msra.mxu0 %v6780
        %7539 = vmatprep.subr.bf16.mxu0 %v6789
        %7540 = vmatpush1.bf16.msra.mxu0 %v6788
        %7541 = vmatprep.subr.bf16.mxu0 %v6797
        %7542 = vmatpush1.bf16.msra.mxu0 %v6796
        %7543 = vmatprep.subr.bf16.mxu0 %v6805
        %7544 = vmatpush1.bf16.msra.mxu0 %v6804
        %7545 = vmatprep.subr.bf16.mxu0 %v6813
        %7546 = vmatpush1.bf16.msra.mxu0 %v6812
        %7547 = vmatprep.subr.bf16.mxu0 %v6821
        %7548 = vmatpush1.bf16.msra.mxu0 %v6820
        %7549 = vmatprep.subr.bf16.mxu0 %v6829
        %7550 = vmatpush1.bf16.msra.mxu0 %v6828
        %7551 = vmatprep.subr.bf16.mxu0 %v6837
        %7552 = vmatpush1.bf16.msra.mxu0 %v6836
        %7553 = vmatprep.subr.bf16.mxu0 %v6845
        %7554 = vmatpush1.bf16.msra.mxu0 %v6844
        %7555 = vmatprep.subr.bf16.mxu0 %v6853
        %7556 = vmatpush1.bf16.msra.mxu0 %v6852
        %7557 = vmatprep.subr.bf16.mxu0 %v6861
        %7558 = vmatpush1.bf16.msra.mxu0 %v6860
        %7559 = vmatprep.subr.bf16.mxu0 %v6869
        %7560 = vmatpush1.bf16.msra.mxu0 %v6868
        %7561 = vmatprep.subr.bf16.mxu0 %v6877
        %7562 = vmatpush1.bf16.msra.mxu0 %v6876
        %7563 = vmatprep.subr.bf16.mxu0 %v6885
        %7564 = vmatpush1.bf16.msra.mxu0 %v6884
        %7565 = vmatprep.subr.bf16.mxu0 %v6893
        %7566 = vmatpush1.bf16.msra.mxu0 %v6892
        %7567 = vmatprep.mubr.bf16.mxu0 %v579
        %7568 = vmatmul.mubr.bf16.gmra.mrb[0].mxu0 %v578
        %v7569 = vpop.f32.mrb[0].mxu0
        %v7570 = vadd.f32 %v7529, %v7569
        %v7571 = vpop.f32.mrb[0].mxu0
        %v7572 = vadd.f32 %v7531, %v7571
        %v7573 = vpop.f32.mrb[0].mxu0
        %v7574 = vpop.f32.mrb[0].mxu0
        %7575 = vdwg.mxu0
        %7576 = vmatprep.subr.bf16.mxu0 %v6391
        %7577 = vmatpush1.bf16.msra.mxu0 %v6390
        %7578 = vmatprep.subr.bf16.mxu0 %v6399
        %7579 = vmatpush1.bf16.msra.mxu0 %v6398
        %7580 = vmatprep.subr.bf16.mxu0 %v6407
        %7581 = vmatpush1.bf16.msra.mxu0 %v6406
        %7582 = vmatprep.subr.bf16.mxu0 %v6415
        %7583 = vmatpush1.bf16.msra.mxu0 %v6414
        %7584 = vmatprep.subr.bf16.mxu0 %v6423
        %7585 = vmatpush1.bf16.msra.mxu0 %v6422
        %7586 = vmatprep.subr.bf16.mxu0 %v6431
        %7587 = vmatpush1.bf16.msra.mxu0 %v6430
        %7588 = vmatprep.subr.bf16.mxu0 %v6439
        %7589 = vmatpush1.bf16.msra.mxu0 %v6438
        %7590 = vmatprep.subr.bf16.mxu0 %v6447
        %7591 = vmatpush1.bf16.msra.mxu0 %v6446
        %7592 = vmatprep.subr.bf16.mxu0 %v6455
        %7593 = vmatpush1.bf16.msra.mxu0 %v6454
        %7594 = vmatprep.subr.bf16.mxu0 %v6463
        %7595 = vmatpush1.bf16.msra.mxu0 %v6462
        %7596 = vmatprep.subr.bf16.mxu0 %v6471
        %7597 = vmatpush1.bf16.msra.mxu0 %v6470
        %7598 = vmatprep.subr.bf16.mxu0 %v6479
        %7599 = vmatpush1.bf16.msra.mxu0 %v6478
        %7600 = vmatprep.subr.bf16.mxu0 %v6487
        %7601 = vmatpush1.bf16.msra.mxu0 %v6486
        %7602 = vmatprep.subr.bf16.mxu0 %v6495
        %7603 = vmatpush1.bf16.msra.mxu0 %v6494
        %7604 = vmatprep.subr.bf16.mxu0 %v6503
        %7605 = vmatpush1.bf16.msra.mxu0 %v6502
        %7606 = vmatprep.subr.bf16.mxu0 %v6511
        %7607 = vmatpush1.bf16.msra.mxu0 %v6510
        %7608 = vmatprep.mubr.bf16.mxu0 %v573
        %7609 = vmatmul.mubr.bf16.gmra.mrb[0].mxu0 %v572
        %v7610 = vpop.f32.mrb[0].mxu0
        %v7611 = vadd.f32 0.0, %v7610
        %v7612 = vpop.f32.mrb[0].mxu0
        %v7613 = vadd.f32 0.0, %v7612
        %v7614 = vpop.f32.mrb[0].mxu0
        %v7615 = vpop.f32.mrb[0].mxu0
        %7616 = vdwg.mxu0
        %7617 = vmatprep.subr.bf16.mxu0 %v6519
        %7618 = vmatpush1.bf16.msra.mxu0 %v6518
        %7619 = vmatprep.subr.bf16.mxu0 %v6527
        %7620 = vmatpush1.bf16.msra.mxu0 %v6526
        %7621 = vmatprep.subr.bf16.mxu0 %v6535
        %7622 = vmatpush1.bf16.msra.mxu0 %v6534
        %7623 = vmatprep.subr.bf16.mxu0 %v6543
        %7624 = vmatpush1.bf16.msra.mxu0 %v6542
        %7625 = vmatprep.subr.bf16.mxu0 %v6551
        %7626 = vmatpush1.bf16.msra.mxu0 %v6550
        %7627 = vmatprep.subr.bf16.mxu0 %v6559
        %7628 = vmatpush1.bf16.msra.mxu0 %v6558
        %7629 = vmatprep.subr.bf16.mxu0 %v6567
        %7630 = vmatpush1.bf16.msra.mxu0 %v6566
        %7631 = vmatprep.subr.bf16.mxu0 %v6575
        %7632 = vmatpush1.bf16.msra.mxu0 %v6574
        %7633 = vmatprep.subr.bf16.mxu0 %v6583
        %7634 = vmatpush1.bf16.msra.mxu0 %v6582
        %7635 = vmatprep.subr.bf16.mxu0 %v6591
        %7636 = vmatpush1.bf16.msra.mxu0 %v6590
        %7637 = vmatprep.subr.bf16.mxu0 %v6599
        %7638 = vmatpush1.bf16.msra.mxu0 %v6598
        %7639 = vmatprep.subr.bf16.mxu0 %v6607
        %7640 = vmatpush1.bf16.msra.mxu0 %v6606
        %7641 = vmatprep.subr.bf16.mxu0 %v6615
        %7642 = vmatpush1.bf16.msra.mxu0 %v6614
        %7643 = vmatprep.subr.bf16.mxu0 %v6623
        %7644 = vmatpush1.bf16.msra.mxu0 %v6622
        %7645 = vmatprep.subr.bf16.mxu0 %v6631
        %7646 = vmatpush1.bf16.msra.mxu0 %v6630
        %7647 = vmatprep.subr.bf16.mxu0 %v6639
        %7648 = vmatpush1.bf16.msra.mxu0 %v6638
        %7649 = vmatprep.mubr.bf16.mxu0 %v575
        %7650 = vmatmul.mubr.bf16.gmra.mrb[0].mxu0 %v574
        %v7651 = vpop.f32.mrb[0].mxu0
        %v7652 = vadd.f32 %v7611, %v7651
        %v7653 = vpop.f32.mrb[0].mxu0
        %v7654 = vadd.f32 %v7613, %v7653
        %v7655 = vpop.f32.mrb[0].mxu0
        %v7656 = vpop.f32.mrb[0].mxu0
        %7657 = vdwg.mxu0
        %7658 = vmatprep.subr.bf16.mxu0 %v6647
        %7659 = vmatpush1.bf16.msra.mxu0 %v6646
        %7660 = vmatprep.subr.bf16.mxu0 %v6655
        %7661 = vmatpush1.bf16.msra.mxu0 %v6654
        %7662 = vmatprep.subr.bf16.mxu0 %v6663
        %7663 = vmatpush1.bf16.msra.mxu0 %v6662
        %7664 = vmatprep.subr.bf16.mxu0 %v6671
        %7665 = vmatpush1.bf16.msra.mxu0 %v6670
        %7666 = vmatprep.subr.bf16.mxu0 %v6679
        %7667 = vmatpush1.bf16.msra.mxu0 %v6678
        %7668 = vmatprep.subr.bf16.mxu0 %v6687
        %7669 = vmatpush1.bf16.msra.mxu0 %v6686
        %7670 = vmatprep.subr.bf16.mxu0 %v6695
        %7671 = vmatpush1.bf16.msra.mxu0 %v6694
        %7672 = vmatprep.subr.bf16.mxu0 %v6703
        %7673 = vmatpush1.bf16.msra.mxu0 %v6702
        %7674 = vmatprep.subr.bf16.mxu0 %v6711
        %7675 = vmatpush1.bf16.msra.mxu0 %v6710
        %7676 = vmatprep.subr.bf16.mxu0 %v6719
        %7677 = vmatpush1.bf16.msra.mxu0 %v6718
        %7678 = vmatprep.subr.bf16.mxu0 %v6727
        %7679 = vmatpush1.bf16.msra.mxu0 %v6726
        %7680 = vmatprep.subr.bf16.mxu0 %v6735
        %7681 = vmatpush1.bf16.msra.mxu0 %v6734
        %7682 = vmatprep.subr.bf16.mxu0 %v6743
        %7683 = vmatpush1.bf16.msra.mxu0 %v6742
        %7684 = vmatprep.subr.bf16.mxu0 %v6751
        %7685 = vmatpush1.bf16.msra.mxu0 %v6750
        %7686 = vmatprep.subr.bf16.mxu0 %v6759
        %7687 = vmatpush1.bf16.msra.mxu0 %v6758
        %7688 = vmatprep.subr.bf16.mxu0 %v6767
        %7689 = vmatpush1.bf16.msra.mxu0 %v6766
        %7690 = vmatprep.mubr.bf16.mxu0 %v577
        %7691 = vmatmul.mubr.bf16.gmra.mrb[0].mxu0 %v576
        %v7692 = vpop.f32.mrb[0].mxu0
        %v7693 = vadd.f32 %v7652, %v7692
        %v7694 = vpop.f32.mrb[0].mxu0
        %v7695 = vadd.f32 %v7654, %v7694
        %v7696 = vpop.f32.mrb[0].mxu0
        %v7697 = vpop.f32.mrb[0].mxu0
        %7698 = vdwg.mxu0
        %7699 = vmatprep.subr.bf16.mxu0 %v6775
        %7700 = vmatpush1.bf16.msra.mxu0 %v6774
        %7701 = vmatprep.subr.bf16.mxu0 %v6783
        %7702 = vmatpush1.bf16.msra.mxu0 %v6782
        %7703 = vmatprep.subr.bf16.mxu0 %v6791
        %7704 = vmatpush1.bf16.msra.mxu0 %v6790
        %7705 = vmatprep.subr.bf16.mxu0 %v6799
        %7706 = vmatpush1.bf16.msra.mxu0 %v6798
        %7707 = vmatprep.subr.bf16.mxu0 %v6807
        %7708 = vmatpush1.bf16.msra.mxu0 %v6806
        %7709 = vmatprep.subr.bf16.mxu0 %v6815
        %7710 = vmatpush1.bf16.msra.mxu0 %v6814
        %7711 = vmatprep.subr.bf16.mxu0 %v6823
        %7712 = vmatpush1.bf16.msra.mxu0 %v6822
        %7713 = vmatprep.subr.bf16.mxu0 %v6831
        %7714 = vmatpush1.bf16.msra.mxu0 %v6830
        %7715 = vmatprep.subr.bf16.mxu0 %v6839
        %7716 = vmatpush1.bf16.msra.mxu0 %v6838
        %7717 = vmatprep.subr.bf16.mxu0 %v6847
        %7718 = vmatpush1.bf16.msra.mxu0 %v6846
        %7719 = vmatprep.subr.bf16.mxu0 %v6855
        %7720 = vmatpush1.bf16.msra.mxu0 %v6854
        %7721 = vmatprep.subr.bf16.mxu0 %v6863
        %7722 = vmatpush1.bf16.msra.mxu0 %v6862
        %7723 = vmatprep.subr.bf16.mxu0 %v6871
        %7724 = vmatpush1.bf16.msra.mxu0 %v6870
        %7725 = vmatprep.subr.bf16.mxu0 %v6879
        %7726 = vmatpush1.bf16.msra.mxu0 %v6878
        %7727 = vmatprep.subr.bf16.mxu0 %v6887
        %7728 = vmatpush1.bf16.msra.mxu0 %v6886
        %7729 = vmatprep.subr.bf16.mxu0 %v6895
        %7730 = vmatpush1.bf16.msra.mxu0 %v6894
        %7731 = vmatprep.mubr.bf16.mxu0 %v579
        %7732 = vmatmul.mubr.bf16.gmra.mrb[0].mxu0 %v578
        %v7733 = vpop.f32.mrb[0].mxu0
        %v7734 = vadd.f32 %v7693, %v7733
        %v7735 = vpop.f32.mrb[0].mxu0
        %v7736 = vadd.f32 %v7695, %v7735
        %v7737 = vpop.f32.mrb[0].mxu0
        %v7738 = vpop.f32.mrb[0].mxu0
        %7739 = vdwg.mxu0
        %7740 = vmatprep.subr.bf16.mxu0 %v6393
        %7741 = vmatpush1.bf16.msra.mxu0 %v6392
        %7742 = vmatprep.subr.bf16.mxu0 %v6401
        %7743 = vmatpush1.bf16.msra.mxu0 %v6400
        %7744 = vmatprep.subr.bf16.mxu0 %v6409
        %7745 = vmatpush1.bf16.msra.mxu0 %v6408
        %7746 = vmatprep.subr.bf16.mxu0 %v6417
        %7747 = vmatpush1.bf16.msra.mxu0 %v6416
        %7748 = vmatprep.subr.bf16.mxu0 %v6425
        %7749 = vmatpush1.bf16.msra.mxu0 %v6424
        %7750 = vmatprep.subr.bf16.mxu0 %v6433
        %7751 = vmatpush1.bf16.msra.mxu0 %v6432
        %7752 = vmatprep.subr.bf16.mxu0 %v6441
        %7753 = vmatpush1.bf16.msra.mxu0 %v6440
        %7754 = vmatprep.subr.bf16.mxu0 %v6449
        %7755 = vmatpush1.bf16.msra.mxu0 %v6448
        %7756 = vmatprep.subr.bf16.mxu0 %v6457
        %7757 = vmatpush1.bf16.msra.mxu0 %v6456
        %7758 = vmatprep.subr.bf16.mxu0 %v6465
        %7759 = vmatpush1.bf16.msra.mxu0 %v6464
        %7760 = vmatprep.subr.bf16.mxu0 %v6473
        %7761 = vmatpush1.bf16.msra.mxu0 %v6472
        %7762 = vmatprep.subr.bf16.mxu0 %v6481
        %7763 = vmatpush1.bf16.msra.mxu0 %v6480
        %7764 = vmatprep.subr.bf16.mxu0 %v6489
        %7765 = vmatpush1.bf16.msra.mxu0 %v6488
        %7766 = vmatprep.subr.bf16.mxu0 %v6497
        %7767 = vmatpush1.bf16.msra.mxu0 %v6496
        %7768 = vmatprep.subr.bf16.mxu0 %v6505
        %7769 = vmatpush1.bf16.msra.mxu0 %v6504
        %7770 = vmatprep.subr.bf16.mxu0 %v6513
        %7771 = vmatpush1.bf16.msra.mxu0 %v6512
        %7772 = vmatprep.mubr.bf16.mxu0 %v573
        %7773 = vmatmul.mubr.bf16.gmra.mrb[0].mxu0 %v572
        %v7774 = vpop.f32.mrb[0].mxu0
        %v7775 = vadd.f32 0.0, %v7774
        %v7776 = vpop.f32.mrb[0].mxu0
        %v7777 = vadd.f32 0.0, %v7776
        %v7778 = vpop.f32.mrb[0].mxu0
        %v7779 = vpop.f32.mrb[0].mxu0
        %7780 = vdwg.mxu0
        %7781 = vmatprep.subr.bf16.mxu0 %v6521
        %7782 = vmatpush1.bf16.msra.mxu0 %v6520
        %7783 = vmatprep.subr.bf16.mxu0 %v6529
        %7784 = vmatpush1.bf16.msra.mxu0 %v6528
        %7785 = vmatprep.subr.bf16.mxu0 %v6537
        %7786 = vmatpush1.bf16.msra.mxu0 %v6536
        %7787 = vmatprep.subr.bf16.mxu0 %v6545
        %7788 = vmatpush1.bf16.msra.mxu0 %v6544
        %7789 = vmatprep.subr.bf16.mxu0 %v6553
        %7790 = vmatpush1.bf16.msra.mxu0 %v6552
        %7791 = vmatprep.subr.bf16.mxu0 %v6561
        %7792 = vmatpush1.bf16.msra.mxu0 %v6560
        %7793 = vmatprep.subr.bf16.mxu0 %v6569
        %7794 = vmatpush1.bf16.msra.mxu0 %v6568
        %7795 = vmatprep.subr.bf16.mxu0 %v6577
        %7796 = vmatpush1.bf16.msra.mxu0 %v6576
        %7797 = vmatprep.subr.bf16.mxu0 %v6585
        %7798 = vmatpush1.bf16.msra.mxu0 %v6584
        %7799 = vmatprep.subr.bf16.mxu0 %v6593
        %7800 = vmatpush1.bf16.msra.mxu0 %v6592
        %7801 = vmatprep.subr.bf16.mxu0 %v6601
        %7802 = vmatpush1.bf16.msra.mxu0 %v6600
        %7803 = vmatprep.subr.bf16.mxu0 %v6609
        %7804 = vmatpush1.bf16.msra.mxu0 %v6608
        %7805 = vmatprep.subr.bf16.mxu0 %v6617
        %7806 = vmatpush1.bf16.msra.mxu0 %v6616
        %7807 = vmatprep.subr.bf16.mxu0 %v6625
        %7808 = vmatpush1.bf16.msra.mxu0 %v6624
        %7809 = vmatprep.subr.bf16.mxu0 %v6633
        %7810 = vmatpush1.bf16.msra.mxu0 %v6632
        %7811 = vmatprep.subr.bf16.mxu0 %v6641
        %7812 = vmatpush1.bf16.msra.mxu0 %v6640
        %7813 = vmatprep.mubr.bf16.mxu0 %v575
        %7814 = vmatmul.mubr.bf16.gmra.mrb[0].mxu0 %v574
        %v7815 = vpop.f32.mrb[0].mxu0
        %v7816 = vadd.f32 %v7775, %v7815
        %v7817 = vpop.f32.mrb[0].mxu0
        %v7818 = vadd.f32 %v7777, %v7817
        %v7819 = vpop.f32.mrb[0].mxu0
        %v7820 = vpop.f32.mrb[0].mxu0
        %7821 = vdwg.mxu0
        %7822 = vmatprep.subr.bf16.mxu0 %v6649
        %7823 = vmatpush1.bf16.msra.mxu0 %v6648
        %7824 = vmatprep.subr.bf16.mxu0 %v6657
        %7825 = vmatpush1.bf16.msra.mxu0 %v6656
        %7826 = vmatprep.subr.bf16.mxu0 %v6665
        %7827 = vmatpush1.bf16.msra.mxu0 %v6664
        %7828 = vmatprep.subr.bf16.mxu0 %v6673
        %7829 = vmatpush1.bf16.msra.mxu0 %v6672
        %7830 = vmatprep.subr.bf16.mxu0 %v6681
        %7831 = vmatpush1.bf16.msra.mxu0 %v6680
        %7832 = vmatprep.subr.bf16.mxu0 %v6689
        %7833 = vmatpush1.bf16.msra.mxu0 %v6688
        %7834 = vmatprep.subr.bf16.mxu0 %v6697
        %7835 = vmatpush1.bf16.msra.mxu0 %v6696
        %7836 = vmatprep.subr.bf16.mxu0 %v6705
        %7837 = vmatpush1.bf16.msra.mxu0 %v6704
        %7838 = vmatprep.subr.bf16.mxu0 %v6713
        %7839 = vmatpush1.bf16.msra.mxu0 %v6712
        %7840 = vmatprep.subr.bf16.mxu0 %v6721
        %7841 = vmatpush1.bf16.msra.mxu0 %v6720
        %7842 = vmatprep.subr.bf16.mxu0 %v6729
        %7843 = vmatpush1.bf16.msra.mxu0 %v6728
        %7844 = vmatprep.subr.bf16.mxu0 %v6737
        %7845 = vmatpush1.bf16.msra.mxu0 %v6736
        %7846 = vmatprep.subr.bf16.mxu0 %v6745
        %7847 = vmatpush1.bf16.msra.mxu0 %v6744
        %7848 = vmatprep.subr.bf16.mxu0 %v6753
        %7849 = vmatpush1.bf16.msra.mxu0 %v6752
        %7850 = vmatprep.subr.bf16.mxu0 %v6761
        %7851 = vmatpush1.bf16.msra.mxu0 %v6760
        %7852 = vmatprep.subr.bf16.mxu0 %v6769
        %7853 = vmatpush1.bf16.msra.mxu0 %v6768
        %7854 = vmatprep.mubr.bf16.mxu0 %v577
        %7855 = vmatmul.mubr.bf16.gmra.mrb[0].mxu0 %v576
        %v7856 = vpop.f32.mrb[0].mxu0
        %v7857 = vadd.f32 %v7816, %v7856
        %v7858 = vpop.f32.mrb[0].mxu0
        %v7859 = vadd.f32 %v7818, %v7858
        %v7860 = vpop.f32.mrb[0].mxu0
        %v7861 = vpop.f32.mrb[0].mxu0
        %7862 = vdwg.mxu0
        %7863 = vmatprep.subr.bf16.mxu0 %v6777
        %7864 = vmatpush1.bf16.msra.mxu0 %v6776
        %7865 = vmatprep.subr.bf16.mxu0 %v6785
        %7866 = vmatpush1.bf16.msra.mxu0 %v6784
        %7867 = vmatprep.subr.bf16.mxu0 %v6793
        %7868 = vmatpush1.bf16.msra.mxu0 %v6792
        %7869 = vmatprep.subr.bf16.mxu0 %v6801
        %7870 = vmatpush1.bf16.msra.mxu0 %v6800
        %7871 = vmatprep.subr.bf16.mxu0 %v6809
        %7872 = vmatpush1.bf16.msra.mxu0 %v6808
        %7873 = vmatprep.subr.bf16.mxu0 %v6817
        %7874 = vmatpush1.bf16.msra.mxu0 %v6816
        %7875 = vmatprep.subr.bf16.mxu0 %v6825
        %7876 = vmatpush1.bf16.msra.mxu0 %v6824
        %7877 = vmatprep.subr.bf16.mxu0 %v6833
        %7878 = vmatpush1.bf16.msra.mxu0 %v6832
        %7879 = vmatprep.subr.bf16.mxu0 %v6841
        %7880 = vmatpush1.bf16.msra.mxu0 %v6840
        %7881 = vmatprep.subr.bf16.mxu0 %v6849
        %7882 = vmatpush1.bf16.msra.mxu0 %v6848
        %7883 = vmatprep.subr.bf16.mxu0 %v6857
        %7884 = vmatpush1.bf16.msra.mxu0 %v6856
        %7885 = vmatprep.subr.bf16.mxu0 %v6865
        %7886 = vmatpush1.bf16.msra.mxu0 %v6864
        %7887 = vmatprep.subr.bf16.mxu0 %v6873
        %7888 = vmatpush1.bf16.msra.mxu0 %v6872
        %7889 = vmatprep.subr.bf16.mxu0 %v6881
        %7890 = vmatpush1.bf16.msra.mxu0 %v6880
        %7891 = vmatprep.subr.bf16.mxu0 %v6889
        %7892 = vmatpush1.bf16.msra.mxu0 %v6888
        %7893 = vmatprep.subr.bf16.mxu0 %v6897
        %7894 = vmatpush1.bf16.msra.mxu0 %v6896
        %7895 = vmatprep.mubr.bf16.mxu0 %v579
        %7896 = vmatmul.mubr.bf16.gmra.mrb[0].mxu0 %v578
        %v7897 = vpop.f32.mrb[0].mxu0
        %v7898 = vadd.f32 %v7857, %v7897
        %v7899 = vpop.f32.mrb[0].mxu0
        %v7900 = vadd.f32 %v7859, %v7899
        %v7901 = vpop.f32.mrb[0].mxu0
        %v7902 = vpop.f32.mrb[0].mxu0
        %7903 = vdwg.mxu0
        %7904 = vmatprep.subr.bf16.mxu0 %v6395
        %7905 = vmatpush1.bf16.msra.mxu0 %v6394
        %7906 = vmatprep.subr.bf16.mxu0 %v6403
        %7907 = vmatpush1.bf16.msra.mxu0 %v6402
        %7908 = vmatprep.subr.bf16.mxu0 %v6411
        %7909 = vmatpush1.bf16.msra.mxu0 %v6410
        %7910 = vmatprep.subr.bf16.mxu0 %v6419
        %7911 = vmatpush1.bf16.msra.mxu0 %v6418
        %7912 = vmatprep.subr.bf16.mxu0 %v6427
        %7913 = vmatpush1.bf16.msra.mxu0 %v6426
        %7914 = vmatprep.subr.bf16.mxu0 %v6435
        %7915 = vmatpush1.bf16.msra.mxu0 %v6434
        %7916 = vmatprep.subr.bf16.mxu0 %v6443
        %7917 = vmatpush1.bf16.msra.mxu0 %v6442
        %7918 = vmatprep.subr.bf16.mxu0 %v6451
        %7919 = vmatpush1.bf16.msra.mxu0 %v6450
        %7920 = vmatprep.subr.bf16.mxu0 %v6459
        %7921 = vmatpush1.bf16.msra.mxu0 %v6458
        %7922 = vmatprep.subr.bf16.mxu0 %v6467
        %7923 = vmatpush1.bf16.msra.mxu0 %v6466
        %7924 = vmatprep.subr.bf16.mxu0 %v6475
        %7925 = vmatpush1.bf16.msra.mxu0 %v6474
        %7926 = vmatprep.subr.bf16.mxu0 %v6483
        %7927 = vmatpush1.bf16.msra.mxu0 %v6482
        %7928 = vmatprep.subr.bf16.mxu0 %v6491
        %7929 = vmatpush1.bf16.msra.mxu0 %v6490
        %7930 = vmatprep.subr.bf16.mxu0 %v6499
        %7931 = vmatpush1.bf16.msra.mxu0 %v6498
        %7932 = vmatprep.subr.bf16.mxu0 %v6507
        %7933 = vmatpush1.bf16.msra.mxu0 %v6506
        %7934 = vmatprep.subr.bf16.mxu0 %v6515
        %7935 = vmatpush1.bf16.msra.mxu0 %v6514
        %7936 = vmatprep.mubr.bf16.mxu0 %v573
        %7937 = vmatmul.mubr.bf16.gmra.mrb[0].mxu0 %v572
        %v7938 = vpop.f32.mrb[0].mxu0
        %v7939 = vadd.f32 0.0, %v7938
        %v7940 = vpop.f32.mrb[0].mxu0
        %v7941 = vadd.f32 0.0, %v7940
        %v7942 = vpop.f32.mrb[0].mxu0
        %v7943 = vpop.f32.mrb[0].mxu0
        %7944 = vdwg.mxu0
        %7945 = vmatprep.subr.bf16.mxu0 %v6523
        %7946 = vmatpush1.bf16.msra.mxu0 %v6522
        %7947 = vmatprep.subr.bf16.mxu0 %v6531
        %7948 = vmatpush1.bf16.msra.mxu0 %v6530
        %7949 = vmatprep.subr.bf16.mxu0 %v6539
        %7950 = vmatpush1.bf16.msra.mxu0 %v6538
        %7951 = vmatprep.subr.bf16.mxu0 %v6547
        %7952 = vmatpush1.bf16.msra.mxu0 %v6546
        %7953 = vmatprep.subr.bf16.mxu0 %v6555
        %7954 = vmatpush1.bf16.msra.mxu0 %v6554
        %7955 = vmatprep.subr.bf16.mxu0 %v6563
        %7956 = vmatpush1.bf16.msra.mxu0 %v6562
        %7957 = vmatprep.subr.bf16.mxu0 %v6571
        %7958 = vmatpush1.bf16.msra.mxu0 %v6570
        %7959 = vmatprep.subr.bf16.mxu0 %v6579
        %7960 = vmatpush1.bf16.msra.mxu0 %v6578
        %7961 = vmatprep.subr.bf16.mxu0 %v6587
        %7962 = vmatpush1.bf16.msra.mxu0 %v6586
        %7963 = vmatprep.subr.bf16.mxu0 %v6595
        %7964 = vmatpush1.bf16.msra.mxu0 %v6594
        %7965 = vmatprep.subr.bf16.mxu0 %v6603
        %7966 = vmatpush1.bf16.msra.mxu0 %v6602
        %7967 = vmatprep.subr.bf16.mxu0 %v6611
        %7968 = vmatpush1.bf16.msra.mxu0 %v6610
        %7969 = vmatprep.subr.bf16.mxu0 %v6619
        %7970 = vmatpush1.bf16.msra.mxu0 %v6618
        %7971 = vmatprep.subr.bf16.mxu0 %v6627
        %7972 = vmatpush1.bf16.msra.mxu0 %v6626
        %7973 = vmatprep.subr.bf16.mxu0 %v6635
        %7974 = vmatpush1.bf16.msra.mxu0 %v6634
        %7975 = vmatprep.subr.bf16.mxu0 %v6643
        %7976 = vmatpush1.bf16.msra.mxu0 %v6642
        %7977 = vmatprep.mubr.bf16.mxu0 %v575
        %7978 = vmatmul.mubr.bf16.gmra.mrb[0].mxu0 %v574
        %v7979 = vpop.f32.mrb[0].mxu0
        %v7980 = vadd.f32 %v7939, %v7979
        %v7981 = vpop.f32.mrb[0].mxu0
        %v7982 = vadd.f32 %v7941, %v7981
        %v7983 = vpop.f32.mrb[0].mxu0
        %v7984 = vpop.f32.mrb[0].mxu0
        %7985 = vdwg.mxu0
        %7986 = vmatprep.subr.bf16.mxu0 %v6651
        %7987 = vmatpush1.bf16.msra.mxu0 %v6650
        %7988 = vmatprep.subr.bf16.mxu0 %v6659
        %7989 = vmatpush1.bf16.msra.mxu0 %v6658
        %7990 = vmatprep.subr.bf16.mxu0 %v6667
        %7991 = vmatpush1.bf16.msra.mxu0 %v6666
        %7992 = vmatprep.subr.bf16.mxu0 %v6675
        %7993 = vmatpush1.bf16.msra.mxu0 %v6674
        %7994 = vmatprep.subr.bf16.mxu0 %v6683
        %7995 = vmatpush1.bf16.msra.mxu0 %v6682
        %7996 = vmatprep.subr.bf16.mxu0 %v6691
        %7997 = vmatpush1.bf16.msra.mxu0 %v6690
        %7998 = vmatprep.subr.bf16.mxu0 %v6699
        %7999 = vmatpush1.bf16.msra.mxu0 %v6698
        %8000 = vmatprep.subr.bf16.mxu0 %v6707
        %8001 = vmatpush1.bf16.msra.mxu0 %v6706
        %8002 = vmatprep.subr.bf16.mxu0 %v6715
        %8003 = vmatpush1.bf16.msra.mxu0 %v6714
        %8004 = vmatprep.subr.bf16.mxu0 %v6723
        %8005 = vmatpush1.bf16.msra.mxu0 %v6722
        %8006 = vmatprep.subr.bf16.mxu0 %v6731
        %8007 = vmatpush1.bf16.msra.mxu0 %v6730
        %8008 = vmatprep.subr.bf16.mxu0 %v6739
        %8009 = vmatpush1.bf16.msra.mxu0 %v6738
        %8010 = vmatprep.subr.bf16.mxu0 %v6747
        %8011 = vmatpush1.bf16.msra.mxu0 %v6746
        %8012 = vmatprep.subr.bf16.mxu0 %v6755
        %8013 = vmatpush1.bf16.msra.mxu0 %v6754
        %8014 = vmatprep.subr.bf16.mxu0 %v6763
        %8015 = vmatpush1.bf16.msra.mxu0 %v6762
        %8016 = vmatprep.subr.bf16.mxu0 %v6771
        %8017 = vmatpush1.bf16.msra.mxu0 %v6770
        %8018 = vmatprep.mubr.bf16.mxu0 %v577
        %8019 = vmatmul.mubr.bf16.gmra.mrb[0].mxu0 %v576
        %v8020 = vpop.f32.mrb[0].mxu0
        %v8021 = vadd.f32 %v7980, %v8020
        %v8022 = vpop.f32.mrb[0].mxu0
        %v8023 = vadd.f32 %v7982, %v8022
        %v8024 = vpop.f32.mrb[0].mxu0
        %v8025 = vpop.f32.mrb[0].mxu0
        %8026 = vdwg.mxu0
        %8027 = vmatprep.subr.bf16.mxu0 %v6779
        %8028 = vmatpush1.bf16.msra.mxu0 %v6778
        %8029 = vmatprep.subr.bf16.mxu0 %v6787
        %8030 = vmatpush1.bf16.msra.mxu0 %v6786
        %8031 = vmatprep.subr.bf16.mxu0 %v6795
        %8032 = vmatpush1.bf16.msra.mxu0 %v6794
        %8033 = vmatprep.subr.bf16.mxu0 %v6803
        %8034 = vmatpush1.bf16.msra.mxu0 %v6802
        %8035 = vmatprep.subr.bf16.mxu0 %v6811
        %8036 = vmatpush1.bf16.msra.mxu0 %v6810
        %8037 = vmatprep.subr.bf16.mxu0 %v6819
        %8038 = vmatpush1.bf16.msra.mxu0 %v6818
        %8039 = vmatprep.subr.bf16.mxu0 %v6827
        %8040 = vmatpush1.bf16.msra.mxu0 %v6826
        %8041 = vmatprep.subr.bf16.mxu0 %v6835
        %8042 = vmatpush1.bf16.msra.mxu0 %v6834
        %8043 = vmatprep.subr.bf16.mxu0 %v6843
        %8044 = vmatpush1.bf16.msra.mxu0 %v6842
        %8045 = vmatprep.subr.bf16.mxu0 %v6851
        %8046 = vmatpush1.bf16.msra.mxu0 %v6850
        %8047 = vmatprep.subr.bf16.mxu0 %v6859
        %8048 = vmatpush1.bf16.msra.mxu0 %v6858
        %8049 = vmatprep.subr.bf16.mxu0 %v6867
        %8050 = vmatpush1.bf16.msra.mxu0 %v6866
        %8051 = vmatprep.subr.bf16.mxu0 %v6875
        %8052 = vmatpush1.bf16.msra.mxu0 %v6874
        %8053 = vmatprep.subr.bf16.mxu0 %v6883
        %8054 = vmatpush1.bf16.msra.mxu0 %v6882
        %8055 = vmatprep.subr.bf16.mxu0 %v6891
        %8056 = vmatpush1.bf16.msra.mxu0 %v6890
        %8057 = vmatprep.subr.bf16.mxu0 %v6899
        %8058 = vmatpush1.bf16.msra.mxu0 %v6898
        %8059 = vmatprep.mubr.bf16.mxu0 %v579
        %8060 = vmatmul.mubr.bf16.gmra.mrb[0].mxu0 %v578
        %v8061 = vpop.f32.mrb[0].mxu0
        %v8062 = vadd.f32 %v8021, %v8061
        %v8063 = vpop.f32.mrb[0].mxu0
        %v8064 = vadd.f32 %v8023, %v8063
        %v8065 = vpop.f32.mrb[0].mxu0
        %v8066 = vpop.f32.mrb[0].mxu0
        %8067 = vdwg.mxu0
        %v8076 = vcombine.low %v7570, %v7572
        %v8077 = vcombine.low %v7734, %v7736
        %v8078 = vcombine.low %v7898, %v7900
        %v8079 = vcombine.low %v8062, %v8064
        %v8084 = vadd.f32 %v4336, %v8076
        %v8085 = vadd.f32 %v4337, %v8077
        %v8086 = vadd.f32 %v4338, %v8078
        %v8087 = vadd.f32 %v4339, %v8079
        %8088 = vst [vmem:[#allocation3] sm:$0xff] %v8084
        %8089 = vst [vmem:[#allocation3 + $0x8] sm:$0xff] %v8085
        %8090 = vst [vmem:[#allocation3 + $0x10] sm:$0xff] %v8086
        %8091 = vst [vmem:[#allocation3 + $0x18] sm:$0xff] %v8087
        %p8092 = scmp.eq.s32.totalorder %s38, 1
        // Predicated region
        $region69: #{vae_forward.4} parent=43 // pred_check
          %p8093 = pneg %p8092
        $region70: #{vae_forward.4} parent=43 // pred_check_branch
          %8095 = sbr.rel (%p8093) target = $region72
        $region71: #{vae_forward.4} parent=43 // pred_region
          %v8096 = vld [vmem:[#allocation2] sm:$0xff]
          %v8097 = vld [vmem:[#allocation2 + $0x8] sm:$0xff]
          %v8098 = vld [vmem:[#allocation2 + $0x10] sm:$0xff]
          %v8099 = vld [vmem:[#allocation2 + $0x18] sm:$0xff]
          %v8100 = vld [vmem:[%s420] sm:$0xff]
          %v8102 = vlaneseq
          %v8103 = vshrl.u32 %v8102, 7
          %v8104 = vsub.s32 0, %v8103
          %v8105 = vrot.slane %v8100, %v8104
          %v8106 = vlaneseq
          %v8107 = vshrl.u32 %v8106, 7
          %v8108 = vsub.s32 1, %v8107
          %v8109 = vrot.slane %v8100, %v8108
          %v8110 = vlaneseq
          %v8111 = vshrl.u32 %v8110, 7
          %v8112 = vsub.s32 2, %v8111
          %v8113 = vrot.slane %v8100, %v8112
          %v8114 = vlaneseq
          %v8115 = vshrl.u32 %v8114, 7
          %v8116 = vsub.s32 3, %v8115
          %v8117 = vrot.slane %v8100, %v8116
          %v8118 = vlaneseq
          %v8119 = vshrl.u32 %v8118, 7
          %v8120 = vsub.s32 4, %v8119
          %v8121 = vrot.slane %v8100, %v8120
          %v8122 = vlaneseq
          %v8123 = vshrl.u32 %v8122, 7
          %v8124 = vsub.s32 5, %v8123
          %v8125 = vrot.slane %v8100, %v8124
          %v8126 = vlaneseq
          %v8127 = vshrl.u32 %v8126, 7
          %v8128 = vsub.s32 6, %v8127
          %v8129 = vrot.slane %v8100, %v8128
          %v8130 = vlaneseq
          %v8131 = vshrl.u32 %v8130, 7
          %v8132 = vsub.s32 7, %v8131
          %v8133 = vrot.slane %v8100, %v8132
          %v8134 = vcombine.low %v8105, %v8109
          %v8135 = vcombine.low %v8113, %v8117
          %v8136 = vcombine.low %v8121, %v8125
          %v8137 = vcombine.low %v8129, %v8133
          %v8142 = vadd.f32 %v8096, %v8134
          %v8143 = vadd.f32 %v8097, %v8135
          %v8144 = vadd.f32 %v8098, %v8136
          %v8145 = vadd.f32 %v8099, %v8137
          %v8146 = vxor.u32 %v8142, 2147483648
          %v8147 = vxor.u32 %v8143, 2147483648
          %v8148 = vxor.u32 %v8144, 2147483648
          %v8149 = vxor.u32 %v8145, 2147483648
          %v8150 = vmul.f32 %v8146, 1.442695
          %v8151 = vpow.pop %v8150
          %v8152 = vmul.f32 %v8147, 1.442695
          %v8153 = vpow.pop %v8152
          %v8154 = vmul.f32 %v8148, 1.442695
          %v8155 = vpow.pop %v8154
          %v8156 = vmul.f32 %v8149, 1.442695
          %v8157 = vpow.pop %v8156
          %v8158 = vadd.f32 %v8151, 1.0
          %v8159 = vadd.f32 %v8153, 1.0
          %v8160 = vadd.f32 %v8155, 1.0
          %v8161 = vadd.f32 %v8157, 1.0
          %v8162 = vrcp.pop %v8158
          %v8163 = vmul.f32 1.0, %v8162
          %v8164 = vrcp.pop %v8159
          %v8165 = vmul.f32 1.0, %v8164
          %v8166 = vrcp.pop %v8160
          %v8167 = vmul.f32 1.0, %v8166
          %v8168 = vrcp.pop %v8161
          %v8169 = vmul.f32 1.0, %v8168
          %v8170 = vld [vmem:[#allocation3] sm:$0xff]
          %v8171 = vld [vmem:[#allocation3 + $0x8] sm:$0xff]
          %v8172 = vld [vmem:[#allocation3 + $0x10] sm:$0xff]
          %v8173 = vld [vmem:[#allocation3 + $0x18] sm:$0xff]
          %v8174 = vld [vmem:[%s438] sm:$0xff]
          %v8176 = vlaneseq
          %v8177 = vshrl.u32 %v8176, 7
          %v8178 = vsub.s32 0, %v8177
          %v8179 = vrot.slane %v8174, %v8178
          %v8180 = vlaneseq
          %v8181 = vshrl.u32 %v8180, 7
          %v8182 = vsub.s32 1, %v8181
          %v8183 = vrot.slane %v8174, %v8182
          %v8184 = vlaneseq
          %v8185 = vshrl.u32 %v8184, 7
          %v8186 = vsub.s32 2, %v8185
          %v8187 = vrot.slane %v8174, %v8186
          %v8188 = vlaneseq
          %v8189 = vshrl.u32 %v8188, 7
          %v8190 = vsub.s32 3, %v8189
          %v8191 = vrot.slane %v8174, %v8190
          %v8192 = vlaneseq
          %v8193 = vshrl.u32 %v8192, 7
          %v8194 = vsub.s32 4, %v8193
          %v8195 = vrot.slane %v8174, %v8194
          %v8196 = vlaneseq
          %v8197 = vshrl.u32 %v8196, 7
          %v8198 = vsub.s32 5, %v8197
          %v8199 = vrot.slane %v8174, %v8198
          %v8200 = vlaneseq
          %v8201 = vshrl.u32 %v8200, 7
          %v8202 = vsub.s32 6, %v8201
          %v8203 = vrot.slane %v8174, %v8202
          %v8204 = vlaneseq
          %v8205 = vshrl.u32 %v8204, 7
          %v8206 = vsub.s32 7, %v8205
          %v8207 = vrot.slane %v8174, %v8206
          %v8208 = vcombine.low %v8179, %v8183
          %v8209 = vcombine.low %v8187, %v8191
          %v8210 = vcombine.low %v8195, %v8199
          %v8211 = vcombine.low %v8203, %v8207
          %v8216 = vadd.f32 %v8170, %v8208
          %v8217 = vadd.f32 %v8171, %v8209
          %v8218 = vadd.f32 %v8172, %v8210
          %v8219 = vadd.f32 %v8173, %v8211
          %v8220 = vxor.u32 %v8216, 2147483648
          %v8221 = vxor.u32 %v8217, 2147483648
          %v8222 = vxor.u32 %v8218, 2147483648
          %v8223 = vxor.u32 %v8219, 2147483648
          %v8224 = vmul.f32 %v8220, 1.442695
          %v8225 = vpow.pop %v8224
          %v8226 = vmul.f32 %v8221, 1.442695
          %v8227 = vpow.pop %v8226
          %v8228 = vmul.f32 %v8222, 1.442695
          %v8229 = vpow.pop %v8228
          %v8230 = vmul.f32 %v8223, 1.442695
          %v8231 = vpow.pop %v8230
          %v8232 = vadd.f32 %v8225, 1.0
          %v8233 = vadd.f32 %v8227, 1.0
          %v8234 = vadd.f32 %v8229, 1.0
          %v8235 = vadd.f32 %v8231, 1.0
          %v8236 = vrcp.pop %v8232
          %v8237 = vmul.f32 1.0, %v8236
          %v8238 = vrcp.pop %v8233
          %v8239 = vmul.f32 1.0, %v8238
          %v8240 = vrcp.pop %v8234
          %v8241 = vmul.f32 1.0, %v8240
          %v8242 = vrcp.pop %v8235
          %v8243 = vmul.f32 1.0, %v8242
          %v8244 = vmul.f32 %v8237, 1.442695
          %v8245 = vpow.pop %v8244
          %v8246 = vmul.f32 %v8239, 1.442695
          %v8247 = vpow.pop %v8246
          %v8248 = vmul.f32 %v8241, 1.442695
          %v8249 = vpow.pop %v8248
          %v8250 = vmul.f32 %v8243, 1.442695
          %v8251 = vpow.pop %v8250
          %v8252 = vld [vmem:[%s447] sm:$0xff]
          %v8254 = vlaneseq
          %v8255 = vshrl.u32 %v8254, 7
          %v8256 = vsub.s32 0, %v8255
          %v8257 = vrot.slane %v8252, %v8256
          %v8258 = vlaneseq
          %v8259 = vshrl.u32 %v8258, 7
          %v8260 = vsub.s32 1, %v8259
          %v8261 = vrot.slane %v8252, %v8260
          %v8262 = vlaneseq
          %v8263 = vshrl.u32 %v8262, 7
          %v8264 = vsub.s32 2, %v8263
          %v8265 = vrot.slane %v8252, %v8264
          %v8266 = vlaneseq
          %v8267 = vshrl.u32 %v8266, 7
          %v8268 = vsub.s32 3, %v8267
          %v8269 = vrot.slane %v8252, %v8268
          %v8270 = vlaneseq
          %v8271 = vshrl.u32 %v8270, 7
          %v8272 = vsub.s32 4, %v8271
          %v8273 = vrot.slane %v8252, %v8272
          %v8274 = vlaneseq
          %v8275 = vshrl.u32 %v8274, 7
          %v8276 = vsub.s32 5, %v8275
          %v8277 = vrot.slane %v8252, %v8276
          %v8278 = vlaneseq
          %v8279 = vshrl.u32 %v8278, 7
          %v8280 = vsub.s32 6, %v8279
          %v8281 = vrot.slane %v8252, %v8280
          %v8282 = vlaneseq
          %v8283 = vshrl.u32 %v8282, 7
          %v8284 = vsub.s32 7, %v8283
          %v8285 = vrot.slane %v8252, %v8284
          %v8286 = vcombine.low %v8257, %v8261
          %v8287 = vcombine.low %v8265, %v8269
          %v8288 = vcombine.low %v8273, %v8277
          %v8289 = vcombine.low %v8281, %v8285
          %v8294 = vmul.f32 %v8245, %v8286
          %v8295 = vmul.f32 %v8247, %v8287
          %v8296 = vmul.f32 %v8249, %v8288
          %v8297 = vmul.f32 %v8251, %v8289
          %v8298 = vadd.f32 %v8163, %v8294
          %v8299 = vadd.f32 %v8165, %v8295
          %v8300 = vadd.f32 %v8167, %v8296
          %v8301 = vadd.f32 %v8169, %v8297
          %8302 = vst [vmem:[%s515] sm:$0xff] %v8163
          %8303 = vst [vmem:[%s515 + $0x8] sm:$0xff] %v8165
          %8304 = vst [vmem:[%s515 + $0x10] sm:$0xff] %v8167
          %8305 = vst [vmem:[%s515 + $0x18] sm:$0xff] %v8169
          %8306 = vst [vmem:[%s541] sm:$0xff] %v8298
          %8307 = vst [vmem:[%s541 + $0x8] sm:$0xff] %v8299
          %8308 = vst [vmem:[%s541 + $0x10] sm:$0xff] %v8300
          %8309 = vst [vmem:[%s541 + $0x18] sm:$0xff] %v8301
        $region72: #{vae_forward.4} parent=43 // pred_fallthru
          _
        %s8310 = smul.u32 8, %s37
        %p8311 = scmp.lt.s32.totalorder %s36, 0
        %s8312 = scalar_select %p8311, %s36, 0
        %p8313 = scmp.lt.s32.totalorder %s8310, 15
        %s8314 = scalar_select %p8313, %s8310, 15
        %s8315 = smul.addr %s8312, 16
        %s8316 = sadd.s32 %s8314, %s8315
        %s8317 = smul.addr %s8316, 4
        %s8318 = scalar_lea.vmem %s6, %s8317
        %s8319 = sand.u32 %s250, 1
        %s8320 = scalar_lea.sflag [#allocation6], %s8319
        %s8321 = sand.u32 %s250, 1
        %s8322 = smul.addr %s8321, 32
        %s8323 = scalar_lea.vmem [#allocation13], %s8322
        // Predicated region
        $region73: #{vae_forward.4} parent=43 // pred_check
          %p8324 = pneg %p232
        $region74: #{vae_forward.4} parent=43 // pred_check_branch
          %8326 = sbr.rel (%p8324) target = $region76
        $region75: #{vae_forward.4} parent=43 // pred_region
          %s8327 = smul.u32 8, %s37
        $region76: #{vae_forward.4} parent=43 // pred_fallthru
          _
        // Predicated region
        $region77: #{vae_forward.4} parent=43 // pred_check
          %p8328 = pneg %p260
        $region78: #{vae_forward.4} parent=43 // pred_check_branch
          %8330 = sbr.rel (%p8328) target = $region80
        $region79: #{vae_forward.4} parent=43 // pred_region
          %s8331 = smul.u32 8, %s37
          %s8333 = ssub.s32 512, 512
          %8334 = vsyncadd %s8320, %s8333
          %s8335 = smul.addr %s36, 16
          %s8336 = sadd.s32 %s8331, %s8335
          %s8337 = smul.addr %s8336, 64
          %s8338 = scalar_lea.hbm %s7, %s8337
          %s8340 = sshll.u32 %s8323, 4
          %s8341 = int_to_ptr.vmem [resolvable:$true] %s8340
          %8343 = dma.vmem_to_hbm [thread:$0]  %s8341, 512, %s8338, %s8320
        $region80: #{vae_forward.4} parent=43 // pred_fallthru
          _
      $region44: #{vae_forward.4} parent=5 // pred_fallthru
        _
      %p8344 = scmp.le.s32.totalorder 2, %s26
      // Predicated region
      $region81: #{vae_forward.4} parent=5 // pred_check
        %p8345 = pneg %p8344
      $region82: #{vae_forward.4} parent=5 // pred_check_branch
        %8347 = sbr.rel (%p8345) target = $region84
      $region83: #{vae_forward.4} parent=5 // pred_region
        %s8348 = ssub.s32 %s26, 2
        // Predicated region
        $region85: #{vae_forward.4} parent=83 // pred_check
          %p8349 = pneg %p238
        $region86: #{vae_forward.4} parent=83 // pred_check_branch
          %8351 = sbr.rel (%p8349) target = $region88
        $region87: #{vae_forward.4} parent=83 // pred_region
          %s8352 = smul.u32 8, %s40
          %p8353 = scmp.lt.s32.totalorder %s39, 0
          %s8354 = scalar_select %p8353, %s39, 0
          %p8355 = scmp.lt.s32.totalorder %s8352, 15
          %s8356 = scalar_select %p8355, %s8352, 15
          %s8357 = smul.addr %s8354, 16
          %s8358 = sadd.s32 %s8356, %s8357
          %s8359 = smul.addr %s8358, 4
          %s8360 = scalar_lea.vmem %s6, %s8359
        $region88: #{vae_forward.4} parent=83 // pred_fallthru
          _
        // Predicated region
        $region89: #{vae_forward.4} parent=83 // pred_check
          %p8361 = pneg %p266
        $region90: #{vae_forward.4} parent=83 // pred_check_branch
          %8363 = sbr.rel (%p8361) target = $region92
        $region91: #{vae_forward.4} parent=83 // pred_region
          %s8364 = sand.u32 %s251, 1
          %s8365 = scalar_lea.sflag [#allocation6], %s8364
          %s8366 = sand.u32 %s251, 1
          %s8367 = smul.addr %s8366, 32
          %s8368 = scalar_lea.vmem [#allocation13], %s8367
          %8369 = dma.done %s8365, 512
        $region92: #{vae_forward.4} parent=83 // pred_fallthru
          _
      $region84: #{vae_forward.4} parent=5 // pred_fallthru
        _
    $region6: #{vae_forward.4} parent=1 // loop_footer
      %s30 = sadd.s32 1, %s26
    $region7: #{vae_forward.4} parent=1 // loop_footer_branch
      %25 = sbr.rel target = $region3
    $region8: #{vae_forward.4} parent=1 // loop_exit
      _
    %8370 = vsyncpa [#allocation5], 1
    %s8371 = scalar_lea.sflag [#allocation5], 1
    %8372 = vsyncpa %s8371, 1
    %8373 = vsyncpa [#allocation8], 1
    %s8374 = scalar_lea.sflag [#allocation8], 1
    %8375 = vsyncpa %s8374, 1
    %8376 = vsyncpa [#allocation11], 1
    %s8377 = scalar_lea.sflag [#allocation11], 1
    %8378 = vsyncpa %s8377, 1
    %8379 = vsyncpa [#allocation6], 1
    %s8380 = scalar_lea.sflag [#allocation6], 1
    %8381 = vsyncpa %s8380, 1

</llo_original>
